<compile_context>
chip_gen: v7x
topology: tpu7x:2x2x1
jax: 0.10.0
libtpu: 0.0.40
codegen_flags: <defaults>
</compile_context>

<pallas_src>
import math
from functools import partial

import jax
import jax.numpy as jnp
from jax import lax
from jax.experimental import pallas as pl
from jax.experimental.pallas import tpu as pltpu


def _attn_kernel(x_ref, wqkv_ref, bqkv_ref, wproj_ref, bproj_ref, o_ref,
                 qv_ref, kT_ref, s_ref, acc_ref, *,
                 n_head, seq_len, q_tile, matmul_dtype, approx_recip):
    H, T, tq = n_head, seq_len, q_tile
    hd = qv_ref.shape[-1]
    scale = 1.0 / math.sqrt(hd)

    qi = pl.program_id(1)

    # ---- once per batch row: per-(group, head) QKV projection, staged -------
    #  * Q pre-scaled by 1/sqrt(hd)
    #  * K staged transposed (hd, T)
    #  * no (T, 3C) temp, no lane-minor hd-wide slices
    @pl.when(qi == 0)
    def _():
        x = x_ref[0]                                              # (T, C)
        for h in range(H):
            q = jnp.dot(x, wqkv_ref[0, h],
                        preferred_element_type=jnp.float32)       # (T, hd) f32
            q = (q + bqkv_ref[0, h]) * scale
            qv_ref[0, h] = q.astype(matmul_dtype)

            k = jnp.dot(x, wqkv_ref[1, h],
                        preferred_element_type=jnp.float32)       # (T, hd) f32
            k = k + bqkv_ref[1, h]
            kT_ref[h] = k.T.astype(matmul_dtype)                  # (hd, T)

            v = jnp.dot(x, wqkv_ref[2, h],
                        preferred_element_type=jnp.float32)       # (T, hd) f32
            qv_ref[1, h] = (v + bqkv_ref[2, h]).astype(matmul_dtype)

    # ---- per query tile ------------------------------------------------------
    q0 = pl.multiple_of(qi * tq, tq)

    # scores per head, fused with the running head-max (single pass)
    m = None
    for h in range(H):
        qh = qv_ref[0, h, pl.ds(q0, tq), :]                       # (tq, hd)
        s = jnp.dot(qh, kT_ref[h], preferred_element_type=jnp.float32)
        s_ref[h] = s                                              # (tq, T) f32
        m = s if m is None else jnp.maximum(m, s)

    # softmax over the HEAD axis (F.softmax(att, dim=1), as in the source);
    # elementwise in (t, s), reduction only over the leading head dim (f32).
    denom = jnp.zeros_like(m)
    for h in range(H):
        e = jnp.exp(s_ref[h] - m)
        s_ref[h] = e                                              # in place
        denom = denom + e
    inv_denom = pl.reciprocal(denom, approx=approx_recip)

    # y_h = att_h @ v_h ; head concat folded into the output projection:
    #   out = sum_h y_h @ W_proj[h]        (W_proj pre-reshaped to (H, hd, C))
    # accumulate in an explicit f32 VMEM scratch (no vreg spill of (tq, C)).
    acc_ref[...] = jnp.zeros_like(acc_ref)
    for h in range(H):
        att = (s_ref[h] * inv_denom).astype(matmul_dtype)         # (tq, T)
        y = jnp.dot(att, qv_ref[1, h],
                    preferred_element_type=jnp.float32)           # (tq, hd)
        acc_ref[...] += jnp.dot(y.astype(matmul_dtype), wproj_ref[h],
                                preferred_element_type=jnp.float32)
    o_ref[0] = (acc_ref[...] + bproj_ref[...]).astype(o_ref.dtype)


def _round_up(x, m):
    return (x + m - 1) // m * m


def _tile_bytes(sub, lane, itemsize):
    """Physical VMEM bytes of a 2-D (sub, lane) tile incl. (sublane, 128) padding."""
    sub_align = max(8, 32 // itemsize)
    return _round_up(max(sub, 1), sub_align) * _round_up(max(lane, 1), 128) * itemsize


def _estimate_vmem_bytes(T, C, n_head, tq, matmul_dtype, in_itemsize, out_itemsize):
    hd = C // n_head
    md = jnp.dtype(matmul_dtype).itemsize
    f32 = 4
    est = 0
    est += 2 * _tile_bytes(T, C, in_itemsize)                 # x row block (double-buffered)
    est += 2 * _tile_bytes(tq, C, out_itemsize)               # out block (double-buffered)
    est += 3 * n_head * _tile_bytes(C, hd, md)                # W_attn (3,H,C,hd), single copy
    est += 3 * n_head * _tile_bytes(1, hd, f32)               # b_attn
    est += n_head * _tile_bytes(hd, C, md)                    # W_proj (H,hd,C), single copy
    est += _tile_bytes(1, C, f32)                             # b_proj
    est += 2 * n_head * _tile_bytes(T, hd, md)                # q (scaled) + v scratch
    est += n_head * _tile_bytes(hd, T, md)                    # k^T scratch
    est += n_head * _tile_bytes(tq, T, f32)                   # score / exp scratch
    est += _tile_bytes(tq, C, f32)                            # output accumulator scratch
    est += _tile_bytes(T, hd, f32) + _tile_bytes(hd, T, f32)  # staging temporaries
    est += 4 * _tile_bytes(tq, C, f32)                        # misc temporaries
    return est


def _vmem_capacity_bytes():
    try:
        return int(pltpu.get_tpu_info().vmem_capacity_bytes)
    except Exception:
        return 64 * 1024 * 1024       # conservative default (v7x per-core VMEM)


def _pick_q_tile(T, C, n_head, matmul_dtype, in_itemsize, out_itemsize,
                 max_q_tile, vmem_capacity):
    budget = int(vmem_capacity * 0.75)
    cands = [c for c in (512, 256, 128, 64, 32, 16, 8)
             if c <= max_q_tile and c <= T and T % c == 0]
    if not cands:
        # TODO(synk): T not divisible by any candidate -> no q tiling (large scratch).
        cands = [T]
    for tq in cands:
        if _estimate_vmem_bytes(T, C, n_head, tq, matmul_dtype,
                                in_itemsize, out_itemsize) <= budget:
            return tq
    return cands[-1]


def causal_self_attention(x, w_attn, b_attn, w_proj, b_proj, *, n_head,
                          matmul_dtype=jnp.bfloat16, max_q_tile=256, q_tile=None):
    B, T, C = x.shape
    assert C % n_head == 0
    hd = C // n_head

    matmul_dtype = jnp.dtype(matmul_dtype)
    out_dtype = x.dtype
    in_itemsize = matmul_dtype.itemsize
    out_itemsize = jnp.dtype(out_dtype).itemsize
    cap = _vmem_capacity_bytes()

    tq = q_tile if q_tile is not None else _pick_q_tile(
        T, C, n_head, matmul_dtype, in_itemsize, out_itemsize, max_q_tile, cap)
    assert T % tq == 0
    nq = T // tq

    # host-side (free) weight re-layouts:
    #   W_attn (C, 3C) -> (3, H, C, hd); b_attn -> (3, H, 1, hd)
    #   W_proj (C, C)  -> (H, hd, C)   ; b_proj -> (1, C)
    wqkv = jnp.asarray(w_attn).reshape(C, 3, n_head, hd).transpose(1, 2, 0, 3)
    bqkv = jnp.asarray(b_attn).reshape(3, n_head, hd)[:, :, None, :]
    wproj = jnp.asarray(w_proj).reshape(n_head, hd, C)
    bproj = jnp.asarray(b_proj).reshape(1, C)

    # cast MXU operands once, host-side (bf16 runs the MXU at full rate on
    # v5e/v6e/v7x and halves weight/activation DMA + residency); biases stay
    # f32 since they are added to f32 accumulators.
    x_in = x.astype(matmul_dtype)
    wqkv = wqkv.astype(matmul_dtype)
    wproj = wproj.astype(matmul_dtype)
    bqkv = bqkv.astype(jnp.float32)
    bproj = bproj.astype(jnp.float32)

    est = _estimate_vmem_bytes(T, C, n_head, tq, matmul_dtype,
                               in_itemsize, out_itemsize)
    vmem_limit = min(max(int(est * 1.5), 32 * 1024 * 1024), int(cap * 0.9))

    kernel = partial(_attn_kernel, n_head=n_head, seq_len=T, q_tile=tq,
                     matmul_dtype=matmul_dtype,
                     approx_recip=(matmul_dtype != jnp.dtype(jnp.float32)))

    return pl.pallas_call(
        kernel,
        out_shape=jax.ShapeDtypeStruct((B, T, C), out_dtype),
        grid_spec=pltpu.PrefetchScalarGridSpec(
            num_scalar_prefetch=0,
            grid=(B, nq),
            in_specs=[
                pl.BlockSpec((1, T, C), lambda b, q: (b, 0, 0)),    # x (full row)
                # weights / biases: whole-array, single-buffered VMEM residents
                pl.BlockSpec(memory_space=pltpu.MemorySpace.VMEM),  # W_attn (3,H,C,hd)
                pl.BlockSpec(memory_space=pltpu.MemorySpace.VMEM),  # b_attn (3,H,1,hd)
                pl.BlockSpec(memory_space=pltpu.MemorySpace.VMEM),  # W_proj (H,hd,C)
                pl.BlockSpec(memory_space=pltpu.MemorySpace.VMEM),  # b_proj (1,C)
            ],
            out_specs=pl.BlockSpec((1, tq, C), lambda b, q: (b, q, 0)),
            scratch_shapes=[
                pltpu.VMEM((2, n_head, T, hd), matmul_dtype),   # q (pre-scaled), v
                pltpu.VMEM((n_head, hd, T), matmul_dtype),      # k^T (staged transposed)
                pltpu.VMEM((n_head, tq, T), jnp.float32),       # scores / exp (in place)
                pltpu.VMEM((tq, C), jnp.float32),               # output accumulator
            ],
        ),
        compiler_params=pltpu.CompilerParams(
            dimension_semantics=("parallel", "arbitrary"),
            vmem_limit_bytes=vmem_limit,
        ),
    )(x_in, wqkv, bqkv, wproj, bproj)


def reference_forward(x, w_attn, b_attn, w_proj, b_proj, *, n_head):
    """Pure-JAX mirror of the PyTorch forward (same quirks: no mask, softmax over heads)."""
    B, T, C = x.shape
    hd = C // n_head
    hp = lax.Precision.HIGHEST
    qkv = jnp.einsum('btc,cd->btd', x, w_attn, precision=hp) + b_attn.reshape(1, 1, -1)
    q, k, v = jnp.split(qkv, 3, axis=2)
    q = q.reshape(B, T, n_head, hd).transpose(0, 2, 1, 3)
    k = k.reshape(B, T, n_head, hd).transpose(0, 2, 1, 3)
    v = v.reshape(B, T, n_head, hd).transpose(0, 2, 1, 3)
    att = jnp.einsum('bhtd,bhsd->bhts', q, k, precision=hp) * (1.0 / math.sqrt(hd))
    att = jax.nn.softmax(att, axis=1)          # dim=1 (heads), as in the source
    y = jnp.einsum('bhts,bhsd->bhtd', att, v, precision=hp)
    y = y.transpose(0, 2, 1, 3).reshape(B, T, C)
    return jnp.einsum('btc,cd->btd', y, w_proj, precision=hp) + b_proj.reshape(1, 1, -1)


if __name__ == "__main__":
    # small config consistent with the module: n_embd % n_head == 0
    B, T, C, n_head = 2, 256, 128, 4

    key = jax.random.PRNGKey(0)
    kx, k1, k2, k3, k4 = jax.random.split(key, 5)

    x = jax.random.normal(kx, (B, T, C), dtype=jnp.float32)
    # c_attn: C -> 3C, c_proj: C -> C  (weights stored (in, out))
    w_attn = jax.random.normal(k1, (C, 3 * C), dtype=jnp.float32) * 0.02
    b_attn = jax.random.normal(k2, (1, 3 * C), dtype=jnp.float32) * 0.02
    w_proj = jax.random.normal(k3, (C, C), dtype=jnp.float32) * 0.02
    b_proj = jax.random.normal(k4, (1, C), dtype=jnp.float32) * 0.02

    ref = reference_forward(x, w_attn, b_attn, w_proj, b_proj, n_head=n_head)

    # f32 MXU-operand path with forced q tiling (exercises the multi-q-tile path)
    out_f32 = causal_self_attention(x, w_attn, b_attn, w_proj, b_proj,
                                    n_head=n_head, matmul_dtype=jnp.float32,
                                    q_tile=128)
    out_f32 = jax.block_until_ready(out_f32)
    assert out_f32.shape == (B, T, C)
    assert jnp.allclose(out_f32, ref, rtol=1e-2, atol=5e-3), "f32 mismatch"

    # bf16 MXU-operand path (default; v5e/v6e/v7x MXU fast path): loose check
    out_bf16 = causal_self_attention(x, w_attn, b_attn, w_proj, b_proj,
                                     n_head=n_head)
    out_bf16 = jax.block_until_ready(out_bf16)
    assert out_bf16.shape == (B, T, C)
    assert jnp.allclose(out_bf16, ref, rtol=8e-2, atol=4e-2), "bf16 mismatch"

    print("KERNEL_OK")
</pallas_src>

<mosaic_0001>
module attributes {stable_mosaic.version = 11 : i64} {
  func.func @_attn_kernel(%arg0: i32, %arg1: i32, %arg2: memref<1x256x128xf32, #tpu.memory_space<vmem>>, %arg3: memref<3x4x128x32xf32, #tpu.memory_space<vmem>>, %arg4: memref<3x4x1x32xf32, #tpu.memory_space<vmem>>, %arg5: memref<4x32x128xf32, #tpu.memory_space<vmem>>, %arg6: memref<1x128xf32, #tpu.memory_space<vmem>>, %arg7: memref<1x128x128xf32, #tpu.memory_space<vmem>>, %arg8: memref<2x4x256x32xf32, #tpu.memory_space<vmem>>, %arg9: memref<4x32x256xf32, #tpu.memory_space<vmem>>, %arg10: memref<4x128x256xf32, #tpu.memory_space<vmem>>, %arg11: memref<128x128xf32, #tpu.memory_space<vmem>>) attributes {dimension_semantics = [#tpu.dimension_semantics<parallel>, #tpu.dimension_semantics<arbitrary>], iteration_bounds = array<i64: 2, 2>, scalar_prefetch = 0 : i64, scratch_operands = 4 : i64, tpu.core_type = #tpu.core_type<tc>, window_params = [{transform_indices = @transform_0, window_bounds = array<i64: 1, 256, 128>}, {pipeline_mode = #tpu.pipeline_mode<synchronous>, transform_indices = @transform_1, window_bounds = array<i64: 3, 4, 128, 32>}, {pipeline_mode = #tpu.pipeline_mode<synchronous>, transform_indices = @transform_2, window_bounds = array<i64: 3, 4, 1, 32>}, {pipeline_mode = #tpu.pipeline_mode<synchronous>, transform_indices = @transform_3, window_bounds = array<i64: 4, 32, 128>}, {pipeline_mode = #tpu.pipeline_mode<synchronous>, transform_indices = @transform_4, window_bounds = array<i64: 1, 128>}, {transform_indices = @transform_5, window_bounds = array<i64: 1, 128, 128>}]} {
    %c0_i32 = arith.constant 0 : i32
    %0 = arith.cmpi eq, %arg1, %c0_i32 : i32
    %1 = arith.extui %0 : i1 to i32
    %c0_i32_0 = arith.constant 0 : i32
    %2 = arith.cmpi ne, %1, %c0_i32_0 : i32
    scf.if %2 {
      %c0_135 = arith.constant 0 : index
      %c0_136 = arith.constant 0 : index
      %c0_137 = arith.constant 0 : index
      %135 = vector.load %arg2[%c0_135, %c0_136, %c0_137] : memref<1x256x128xf32, #tpu.memory_space<vmem>>, vector<1x256x128xf32>
      %136 = vector.shape_cast %135 : vector<1x256x128xf32> to vector<256x128xf32>
      %c0_138 = arith.constant 0 : index
      %c0_139 = arith.constant 0 : index
      %c0_140 = arith.constant 0 : index
      %c0_141 = arith.constant 0 : index
      %137 = vector.load %arg3[%c0_138, %c0_139, %c0_140, %c0_141] : memref<3x4x128x32xf32, #tpu.memory_space<vmem>>, vector<1x1x128x32xf32>
      %138 = vector.shape_cast %137 : vector<1x1x128x32xf32> to vector<128x32xf32>
      %cst_142 = arith.constant dense<0.000000e+00> : vector<256x32xf32>
      %139 = tpu.matmul %136, %138, %cst_142 {dimension_numbers = #tpu.dot_dimension_numbers<[1], [0], [0], [1], [0, 0, 1, 1], [], []>} : vector<256x128xf32>, vector<128x32xf32>, vector<256x32xf32> -> vector<256x32xf32>
      %c0_143 = arith.constant 0 : index
      %c0_144 = arith.constant 0 : index
      %c0_145 = arith.constant 0 : index
      %c0_146 = arith.constant 0 : index
      %140 = vector.load %arg4[%c0_143, %c0_144, %c0_145, %c0_146] : memref<3x4x1x32xf32, #tpu.memory_space<vmem>>, vector<1x1x1x32xf32>
      %141 = vector.shape_cast %140 : vector<1x1x1x32xf32> to vector<1x32xf32>
      %142 = vector.broadcast %141 : vector<1x32xf32> to vector<256x32xf32>
      %143 = arith.addf %139, %142 : vector<256x32xf32>
      %cst_147 = arith.constant 0.176776692 : f32
      %144 = vector.broadcast %cst_147 : f32 to vector<256x32xf32>
      %145 = arith.mulf %143, %144 : vector<256x32xf32>
      %c0_148 = arith.constant 0 : index
      %c0_149 = arith.constant 0 : index
      %c0_150 = arith.constant 0 : index
      %c0_151 = arith.constant 0 : index
      %146 = vector.load %arg8[%c0_148, %c0_149, %c0_150, %c0_151] : memref<2x4x256x32xf32, #tpu.memory_space<vmem>>, vector<1x1x256x32xf32>
      %147 = vector.shape_cast %146 : vector<1x1x256x32xf32> to vector<256x32xf32>
      %148 = vector.shape_cast %145 : vector<256x32xf32> to vector<1x1x256x32xf32>
      tpu.vector_store %arg8[%c0_148, %c0_149, %c0_150, %c0_151], %148 {strides = array<i32>} : memref<2x4x256x32xf32, #tpu.memory_space<vmem>>, vector<1x1x256x32xf32>,
      %c1_152 = arith.constant 1 : index
      %c0_153 = arith.constant 0 : index
      %c0_154 = arith.constant 0 : index
      %c0_155 = arith.constant 0 : index
      %149 = vector.load %arg3[%c1_152, %c0_153, %c0_154, %c0_155] : memref<3x4x128x32xf32, #tpu.memory_space<vmem>>, vector<1x1x128x32xf32>
      %150 = vector.shape_cast %149 : vector<1x1x128x32xf32> to vector<128x32xf32>
      %cst_156 = arith.constant dense<0.000000e+00> : vector<256x32xf32>
      %151 = tpu.matmul %136, %150, %cst_156 {dimension_numbers = #tpu.dot_dimension_numbers<[1], [0], [0], [1], [0, 0, 1, 1], [], []>} : vector<256x128xf32>, vector<128x32xf32>, vector<256x32xf32> -> vector<256x32xf32>
      %c1_157 = arith.constant 1 : index
      %c0_158 = arith.constant 0 : index
      %c0_159 = arith.constant 0 : index
      %c0_160 = arith.constant 0 : index
      %152 = vector.load %arg4[%c1_157, %c0_158, %c0_159, %c0_160] : memref<3x4x1x32xf32, #tpu.memory_space<vmem>>, vector<1x1x1x32xf32>
      %153 = vector.shape_cast %152 : vector<1x1x1x32xf32> to vector<1x32xf32>
      %154 = vector.broadcast %153 : vector<1x32xf32> to vector<256x32xf32>
      %155 = arith.addf %151, %154 : vector<256x32xf32>
      %156 = tpu.transpose %155, [1, 0] : vector<256x32xf32> -> vector<32x256xf32>
      %c0_161 = arith.constant 0 : index
      %c0_162 = arith.constant 0 : index
      %c0_163 = arith.constant 0 : index
      %157 = vector.load %arg9[%c0_161, %c0_162, %c0_163] : memref<4x32x256xf32, #tpu.memory_space<vmem>>, vector<1x32x256xf32>
      %158 = vector.shape_cast %157 : vector<1x32x256xf32> to vector<32x256xf32>
      %159 = vector.shape_cast %156 : vector<32x256xf32> to vector<1x32x256xf32>
      tpu.vector_store %arg9[%c0_161, %c0_162, %c0_163], %159 {strides = array<i32>} : memref<4x32x256xf32, #tpu.memory_space<vmem>>, vector<1x32x256xf32>,
      %c2_164 = arith.constant 2 : index
      %c0_165 = arith.constant 0 : index
      %c0_166 = arith.constant 0 : index
      %c0_167 = arith.constant 0 : index
      %160 = vector.load %arg3[%c2_164, %c0_165, %c0_166, %c0_167] : memref<3x4x128x32xf32, #tpu.memory_space<vmem>>, vector<1x1x128x32xf32>
      %161 = vector.shape_cast %160 : vector<1x1x128x32xf32> to vector<128x32xf32>
      %cst_168 = arith.constant dense<0.000000e+00> : vector<256x32xf32>
      %162 = tpu.matmul %136, %161, %cst_168 {dimension_numbers = #tpu.dot_dimension_numbers<[1], [0], [0], [1], [0, 0, 1, 1], [], []>} : vector<256x128xf32>, vector<128x32xf32>, vector<256x32xf32> -> vector<256x32xf32>
      %c2_169 = arith.constant 2 : index
      %c0_170 = arith.constant 0 : index
      %c0_171 = arith.constant 0 : index
      %c0_172 = arith.constant 0 : index
      %163 = vector.load %arg4[%c2_169, %c0_170, %c0_171, %c0_172] : memref<3x4x1x32xf32, #tpu.memory_space<vmem>>, vector<1x1x1x32xf32>
      %164 = vector.shape_cast %163 : vector<1x1x1x32xf32> to vector<1x32xf32>
      %165 = vector.broadcast %164 : vector<1x32xf32> to vector<256x32xf32>
      %166 = arith.addf %162, %165 : vector<256x32xf32>
      %c1_173 = arith.constant 1 : index
      %c0_174 = arith.constant 0 : index
      %c0_175 = arith.constant 0 : index
      %c0_176 = arith.constant 0 : index
      %167 = vector.load %arg8[%c1_173, %c0_174, %c0_175, %c0_176] : memref<2x4x256x32xf32, #tpu.memory_space<vmem>>, vector<1x1x256x32xf32>
      %168 = vector.shape_cast %167 : vector<1x1x256x32xf32> to vector<256x32xf32>
      %169 = vector.shape_cast %166 : vector<256x32xf32> to vector<1x1x256x32xf32>
      tpu.vector_store %arg8[%c1_173, %c0_174, %c0_175, %c0_176], %169 {strides = array<i32>} : memref<2x4x256x32xf32, #tpu.memory_space<vmem>>, vector<1x1x256x32xf32>,
      %c0_177 = arith.constant 0 : index
      %c1_178 = arith.constant 1 : index
      %c0_179 = arith.constant 0 : index
      %c0_180 = arith.constant 0 : index
      %170 = vector.load %arg3[%c0_177, %c1_178, %c0_179, %c0_180] : memref<3x4x128x32xf32, #tpu.memory_space<vmem>>, vector<1x1x128x32xf32>
      %171 = vector.shape_cast %170 : vector<1x1x128x32xf32> to vector<128x32xf32>
      %cst_181 = arith.constant dense<0.000000e+00> : vector<256x32xf32>
      %172 = tpu.matmul %136, %171, %cst_181 {dimension_numbers = #tpu.dot_dimension_numbers<[1], [0], [0], [1], [0, 0, 1, 1], [], []>} : vector<256x128xf32>, vector<128x32xf32>, vector<256x32xf32> -> vector<256x32xf32>
      %c0_182 = arith.constant 0 : index
      %c1_183 = arith.constant 1 : index
      %c0_184 = arith.constant 0 : index
      %c0_185 = arith.constant 0 : index
      %173 = vector.load %arg4[%c0_182, %c1_183, %c0_184, %c0_185] : memref<3x4x1x32xf32, #tpu.memory_space<vmem>>, vector<1x1x1x32xf32>
      %174 = vector.shape_cast %173 : vector<1x1x1x32xf32> to vector<1x32xf32>
      %175 = vector.broadcast %174 : vector<1x32xf32> to vector<256x32xf32>
      %176 = arith.addf %172, %175 : vector<256x32xf32>
      %cst_186 = arith.constant 0.176776692 : f32
      %177 = vector.broadcast %cst_186 : f32 to vector<256x32xf32>
      %178 = arith.mulf %176, %177 : vector<256x32xf32>
      %c0_187 = arith.constant 0 : index
      %c1_188 = arith.constant 1 : index
      %c0_189 = arith.constant 0 : index
      %c0_190 = arith.constant 0 : index
      %179 = vector.load %arg8[%c0_187, %c1_188, %c0_189, %c0_190] : memref<2x4x256x32xf32, #tpu.memory_space<vmem>>, vector<1x1x256x32xf32>
      %180 = vector.shape_cast %179 : vector<1x1x256x32xf32> to vector<256x32xf32>
      %181 = vector.shape_cast %178 : vector<256x32xf32> to vector<1x1x256x32xf32>
      tpu.vector_store %arg8[%c0_187, %c1_188, %c0_189, %c0_190], %181 {strides = array<i32>} : memref<2x4x256x32xf32, #tpu.memory_space<vmem>>, vector<1x1x256x32xf32>,
      %c1_191 = arith.constant 1 : index
      %c1_192 = arith.constant 1 : index
      %c0_193 = arith.constant 0 : index
      %c0_194 = arith.constant 0 : index
      %182 = vector.load %arg3[%c1_191, %c1_192, %c0_193, %c0_194] : memref<3x4x128x32xf32, #tpu.memory_space<vmem>>, vector<1x1x128x32xf32>
      %183 = vector.shape_cast %182 : vector<1x1x128x32xf32> to vector<128x32xf32>
      %cst_195 = arith.constant dense<0.000000e+00> : vector<256x32xf32>
      %184 = tpu.matmul %136, %183, %cst_195 {dimension_numbers = #tpu.dot_dimension_numbers<[1], [0], [0], [1], [0, 0, 1, 1], [], []>} : vector<256x128xf32>, vector<128x32xf32>, vector<256x32xf32> -> vector<256x32xf32>
      %c1_196 = arith.constant 1 : index
      %c1_197 = arith.constant 1 : index
      %c0_198 = arith.constant 0 : index
      %c0_199 = arith.constant 0 : index
      %185 = vector.load %arg4[%c1_196, %c1_197, %c0_198, %c0_199] : memref<3x4x1x32xf32, #tpu.memory_space<vmem>>, vector<1x1x1x32xf32>
      %186 = vector.shape_cast %185 : vector<1x1x1x32xf32> to vector<1x32xf32>
      %187 = vector.broadcast %186 : vector<1x32xf32> to vector<256x32xf32>
      %188 = arith.addf %184, %187 : vector<256x32xf32>
      %189 = tpu.transpose %188, [1, 0] : vector<256x32xf32> -> vector<32x256xf32>
      %c1_200 = arith.constant 1 : index
      %c0_201 = arith.constant 0 : index
      %c0_202 = arith.constant 0 : index
      %190 = vector.load %arg9[%c1_200, %c0_201, %c0_202] : memref<4x32x256xf32, #tpu.memory_space<vmem>>, vector<1x32x256xf32>
      %191 = vector.shape_cast %190 : vector<1x32x256xf32> to vector<32x256xf32>
      %192 = vector.shape_cast %189 : vector<32x256xf32> to vector<1x32x256xf32>
      tpu.vector_store %arg9[%c1_200, %c0_201, %c0_202], %192 {strides = array<i32>} : memref<4x32x256xf32, #tpu.memory_space<vmem>>, vector<1x32x256xf32>,
      %c2_203 = arith.constant 2 : index
      %c1_204 = arith.constant 1 : index
      %c0_205 = arith.constant 0 : index
      %c0_206 = arith.constant 0 : index
      %193 = vector.load %arg3[%c2_203, %c1_204, %c0_205, %c0_206] : memref<3x4x128x32xf32, #tpu.memory_space<vmem>>, vector<1x1x128x32xf32>
      %194 = vector.shape_cast %193 : vector<1x1x128x32xf32> to vector<128x32xf32>
      %cst_207 = arith.constant dense<0.000000e+00> : vector<256x32xf32>
      %195 = tpu.matmul %136, %194, %cst_207 {dimension_numbers = #tpu.dot_dimension_numbers<[1], [0], [0], [1], [0, 0, 1, 1], [], []>} : vector<256x128xf32>, vector<128x32xf32>, vector<256x32xf32> -> vector<256x32xf32>
      %c2_208 = arith.constant 2 : index
      %c1_209 = arith.constant 1 : index
      %c0_210 = arith.constant 0 : index
      %c0_211 = arith.constant 0 : index
      %196 = vector.load %arg4[%c2_208, %c1_209, %c0_210, %c0_211] : memref<3x4x1x32xf32, #tpu.memory_space<vmem>>, vector<1x1x1x32xf32>
      %197 = vector.shape_cast %196 : vector<1x1x1x32xf32> to vector<1x32xf32>
      %198 = vector.broadcast %197 : vector<1x32xf32> to vector<256x32xf32>
      %199 = arith.addf %195, %198 : vector<256x32xf32>
      %c1_212 = arith.constant 1 : index
      %c1_213 = arith.constant 1 : index
      %c0_214 = arith.constant 0 : index
      %c0_215 = arith.constant 0 : index
      %200 = vector.load %arg8[%c1_212, %c1_213, %c0_214, %c0_215] : memref<2x4x256x32xf32, #tpu.memory_space<vmem>>, vector<1x1x256x32xf32>
      %201 = vector.shape_cast %200 : vector<1x1x256x32xf32> to vector<256x32xf32>
      %202 = vector.shape_cast %199 : vector<256x32xf32> to vector<1x1x256x32xf32>
      tpu.vector_store %arg8[%c1_212, %c1_213, %c0_214, %c0_215], %202 {strides = array<i32>} : memref<2x4x256x32xf32, #tpu.memory_space<vmem>>, vector<1x1x256x32xf32>,
      %c0_216 = arith.constant 0 : index
      %c2_217 = arith.constant 2 : index
      %c0_218 = arith.constant 0 : index
      %c0_219 = arith.constant 0 : index
      %203 = vector.load %arg3[%c0_216, %c2_217, %c0_218, %c0_219] : memref<3x4x128x32xf32, #tpu.memory_space<vmem>>, vector<1x1x128x32xf32>
      %204 = vector.shape_cast %203 : vector<1x1x128x32xf32> to vector<128x32xf32>
      %cst_220 = arith.constant dense<0.000000e+00> : vector<256x32xf32>
      %205 = tpu.matmul %136, %204, %cst_220 {dimension_numbers = #tpu.dot_dimension_numbers<[1], [0], [0], [1], [0, 0, 1, 1], [], []>} : vector<256x128xf32>, vector<128x32xf32>, vector<256x32xf32> -> vector<256x32xf32>
      %c0_221 = arith.constant 0 : index
      %c2_222 = arith.constant 2 : index
      %c0_223 = arith.constant 0 : index
      %c0_224 = arith.constant 0 : index
      %206 = vector.load %arg4[%c0_221, %c2_222, %c0_223, %c0_224] : memref<3x4x1x32xf32, #tpu.memory_space<vmem>>, vector<1x1x1x32xf32>
      %207 = vector.shape_cast %206 : vector<1x1x1x32xf32> to vector<1x32xf32>
      %208 = vector.broadcast %207 : vector<1x32xf32> to vector<256x32xf32>
      %209 = arith.addf %205, %208 : vector<256x32xf32>
      %cst_225 = arith.constant 0.176776692 : f32
      %210 = vector.broadcast %cst_225 : f32 to vector<256x32xf32>
      %211 = arith.mulf %209, %210 : vector<256x32xf32>
      %c0_226 = arith.constant 0 : index
      %c2_227 = arith.constant 2 : index
      %c0_228 = arith.constant 0 : index
      %c0_229 = arith.constant 0 : index
      %212 = vector.load %arg8[%c0_226, %c2_227, %c0_228, %c0_229] : memref<2x4x256x32xf32, #tpu.memory_space<vmem>>, vector<1x1x256x32xf32>
      %213 = vector.shape_cast %212 : vector<1x1x256x32xf32> to vector<256x32xf32>
      %214 = vector.shape_cast %211 : vector<256x32xf32> to vector<1x1x256x32xf32>
      tpu.vector_store %arg8[%c0_226, %c2_227, %c0_228, %c0_229], %214 {strides = array<i32>} : memref<2x4x256x32xf32, #tpu.memory_space<vmem>>, vector<1x1x256x32xf32>,
      %c1_230 = arith.constant 1 : index
      %c2_231 = arith.constant 2 : index
      %c0_232 = arith.constant 0 : index
      %c0_233 = arith.constant 0 : index
      %215 = vector.load %arg3[%c1_230, %c2_231, %c0_232, %c0_233] : memref<3x4x128x32xf32, #tpu.memory_space<vmem>>, vector<1x1x128x32xf32>
      %216 = vector.shape_cast %215 : vector<1x1x128x32xf32> to vector<128x32xf32>
      %cst_234 = arith.constant dense<0.000000e+00> : vector<256x32xf32>
      %217 = tpu.matmul %136, %216, %cst_234 {dimension_numbers = #tpu.dot_dimension_numbers<[1], [0], [0], [1], [0, 0, 1, 1], [], []>} : vector<256x128xf32>, vector<128x32xf32>, vector<256x32xf32> -> vector<256x32xf32>
      %c1_235 = arith.constant 1 : index
      %c2_236 = arith.constant 2 : index
      %c0_237 = arith.constant 0 : index
      %c0_238 = arith.constant 0 : index
      %218 = vector.load %arg4[%c1_235, %c2_236, %c0_237, %c0_238] : memref<3x4x1x32xf32, #tpu.memory_space<vmem>>, vector<1x1x1x32xf32>
      %219 = vector.shape_cast %218 : vector<1x1x1x32xf32> to vector<1x32xf32>
      %220 = vector.broadcast %219 : vector<1x32xf32> to vector<256x32xf32>
      %221 = arith.addf %217, %220 : vector<256x32xf32>
      %222 = tpu.transpose %221, [1, 0] : vector<256x32xf32> -> vector<32x256xf32>
      %c2_239 = arith.constant 2 : index
      %c0_240 = arith.constant 0 : index
      %c0_241 = arith.constant 0 : index
      %223 = vector.load %arg9[%c2_239, %c0_240, %c0_241] : memref<4x32x256xf32, #tpu.memory_space<vmem>>, vector<1x32x256xf32>
      %224 = vector.shape_cast %223 : vector<1x32x256xf32> to vector<32x256xf32>
      %225 = vector.shape_cast %222 : vector<32x256xf32> to vector<1x32x256xf32>
      tpu.vector_store %arg9[%c2_239, %c0_240, %c0_241], %225 {strides = array<i32>} : memref<4x32x256xf32, #tpu.memory_space<vmem>>, vector<1x32x256xf32>,
      %c2_242 = arith.constant 2 : index
      %c2_243 = arith.constant 2 : index
      %c0_244 = arith.constant 0 : index
      %c0_245 = arith.constant 0 : index
      %226 = vector.load %arg3[%c2_242, %c2_243, %c0_244, %c0_245] : memref<3x4x128x32xf32, #tpu.memory_space<vmem>>, vector<1x1x128x32xf32>
      %227 = vector.shape_cast %226 : vector<1x1x128x32xf32> to vector<128x32xf32>
      %cst_246 = arith.constant dense<0.000000e+00> : vector<256x32xf32>
      %228 = tpu.matmul %136, %227, %cst_246 {dimension_numbers = #tpu.dot_dimension_numbers<[1], [0], [0], [1], [0, 0, 1, 1], [], []>} : vector<256x128xf32>, vector<128x32xf32>, vector<256x32xf32> -> vector<256x32xf32>
      %c2_247 = arith.constant 2 : index
      %c2_248 = arith.constant 2 : index
      %c0_249 = arith.constant 0 : index
      %c0_250 = arith.constant 0 : index
      %229 = vector.load %arg4[%c2_247, %c2_248, %c0_249, %c0_250] : memref<3x4x1x32xf32, #tpu.memory_space<vmem>>, vector<1x1x1x32xf32>
      %230 = vector.shape_cast %229 : vector<1x1x1x32xf32> to vector<1x32xf32>
      %231 = vector.broadcast %230 : vector<1x32xf32> to vector<256x32xf32>
      %232 = arith.addf %228, %231 : vector<256x32xf32>
      %c1_251 = arith.constant 1 : index
      %c2_252 = arith.constant 2 : index
      %c0_253 = arith.constant 0 : index
      %c0_254 = arith.constant 0 : index
      %233 = vector.load %arg8[%c1_251, %c2_252, %c0_253, %c0_254] : memref<2x4x256x32xf32, #tpu.memory_space<vmem>>, vector<1x1x256x32xf32>
      %234 = vector.shape_cast %233 : vector<1x1x256x32xf32> to vector<256x32xf32>
      %235 = vector.shape_cast %232 : vector<256x32xf32> to vector<1x1x256x32xf32>
      tpu.vector_store %arg8[%c1_251, %c2_252, %c0_253, %c0_254], %235 {strides = array<i32>} : memref<2x4x256x32xf32, #tpu.memory_space<vmem>>, vector<1x1x256x32xf32>,
      %c0_255 = arith.constant 0 : index
      %c3_256 = arith.constant 3 : index
      %c0_257 = arith.constant 0 : index
      %c0_258 = arith.constant 0 : index
      %236 = vector.load %arg3[%c0_255, %c3_256, %c0_257, %c0_258] : memref<3x4x128x32xf32, #tpu.memory_space<vmem>>, vector<1x1x128x32xf32>
      %237 = vector.shape_cast %236 : vector<1x1x128x32xf32> to vector<128x32xf32>
      %cst_259 = arith.constant dense<0.000000e+00> : vector<256x32xf32>
      %238 = tpu.matmul %136, %237, %cst_259 {dimension_numbers = #tpu.dot_dimension_numbers<[1], [0], [0], [1], [0, 0, 1, 1], [], []>} : vector<256x128xf32>, vector<128x32xf32>, vector<256x32xf32> -> vector<256x32xf32>
      %c0_260 = arith.constant 0 : index
      %c3_261 = arith.constant 3 : index
      %c0_262 = arith.constant 0 : index
      %c0_263 = arith.constant 0 : index
      %239 = vector.load %arg4[%c0_260, %c3_261, %c0_262, %c0_263] : memref<3x4x1x32xf32, #tpu.memory_space<vmem>>, vector<1x1x1x32xf32>
      %240 = vector.shape_cast %239 : vector<1x1x1x32xf32> to vector<1x32xf32>
      %241 = vector.broadcast %240 : vector<1x32xf32> to vector<256x32xf32>
      %242 = arith.addf %238, %241 : vector<256x32xf32>
      %cst_264 = arith.constant 0.176776692 : f32
      %243 = vector.broadcast %cst_264 : f32 to vector<256x32xf32>
      %244 = arith.mulf %242, %243 : vector<256x32xf32>
      %c0_265 = arith.constant 0 : index
      %c3_266 = arith.constant 3 : index
      %c0_267 = arith.constant 0 : index
      %c0_268 = arith.constant 0 : index
      %245 = vector.load %arg8[%c0_265, %c3_266, %c0_267, %c0_268] : memref<2x4x256x32xf32, #tpu.memory_space<vmem>>, vector<1x1x256x32xf32>
      %246 = vector.shape_cast %245 : vector<1x1x256x32xf32> to vector<256x32xf32>
      %247 = vector.shape_cast %244 : vector<256x32xf32> to vector<1x1x256x32xf32>
      tpu.vector_store %arg8[%c0_265, %c3_266, %c0_267, %c0_268], %247 {strides = array<i32>} : memref<2x4x256x32xf32, #tpu.memory_space<vmem>>, vector<1x1x256x32xf32>,
      %c1_269 = arith.constant 1 : index
      %c3_270 = arith.constant 3 : index
      %c0_271 = arith.constant 0 : index
      %c0_272 = arith.constant 0 : index
      %248 = vector.load %arg3[%c1_269, %c3_270, %c0_271, %c0_272] : memref<3x4x128x32xf32, #tpu.memory_space<vmem>>, vector<1x1x128x32xf32>
      %249 = vector.shape_cast %248 : vector<1x1x128x32xf32> to vector<128x32xf32>
      %cst_273 = arith.constant dense<0.000000e+00> : vector<256x32xf32>
      %250 = tpu.matmul %136, %249, %cst_273 {dimension_numbers = #tpu.dot_dimension_numbers<[1], [0], [0], [1], [0, 0, 1, 1], [], []>} : vector<256x128xf32>, vector<128x32xf32>, vector<256x32xf32> -> vector<256x32xf32>
      %c1_274 = arith.constant 1 : index
      %c3_275 = arith.constant 3 : index
      %c0_276 = arith.constant 0 : index
      %c0_277 = arith.constant 0 : index
      %251 = vector.load %arg4[%c1_274, %c3_275, %c0_276, %c0_277] : memref<3x4x1x32xf32, #tpu.memory_space<vmem>>, vector<1x1x1x32xf32>
      %252 = vector.shape_cast %251 : vector<1x1x1x32xf32> to vector<1x32xf32>
      %253 = vector.broadcast %252 : vector<1x32xf32> to vector<256x32xf32>
      %254 = arith.addf %250, %253 : vector<256x32xf32>
      %255 = tpu.transpose %254, [1, 0] : vector<256x32xf32> -> vector<32x256xf32>
      %c3_278 = arith.constant 3 : index
      %c0_279 = arith.constant 0 : index
      %c0_280 = arith.constant 0 : index
      %256 = vector.load %arg9[%c3_278, %c0_279, %c0_280] : memref<4x32x256xf32, #tpu.memory_space<vmem>>, vector<1x32x256xf32>
      %257 = vector.shape_cast %256 : vector<1x32x256xf32> to vector<32x256xf32>
      %258 = vector.shape_cast %255 : vector<32x256xf32> to vector<1x32x256xf32>
      tpu.vector_store %arg9[%c3_278, %c0_279, %c0_280], %258 {strides = array<i32>} : memref<4x32x256xf32, #tpu.memory_space<vmem>>, vector<1x32x256xf32>,
      %c2_281 = arith.constant 2 : index
      %c3_282 = arith.constant 3 : index
      %c0_283 = arith.constant 0 : index
      %c0_284 = arith.constant 0 : index
      %259 = vector.load %arg3[%c2_281, %c3_282, %c0_283, %c0_284] : memref<3x4x128x32xf32, #tpu.memory_space<vmem>>, vector<1x1x128x32xf32>
      %260 = vector.shape_cast %259 : vector<1x1x128x32xf32> to vector<128x32xf32>
      %cst_285 = arith.constant dense<0.000000e+00> : vector<256x32xf32>
      %261 = tpu.matmul %136, %260, %cst_285 {dimension_numbers = #tpu.dot_dimension_numbers<[1], [0], [0], [1], [0, 0, 1, 1], [], []>} : vector<256x128xf32>, vector<128x32xf32>, vector<256x32xf32> -> vector<256x32xf32>
      %c2_286 = arith.constant 2 : index
      %c3_287 = arith.constant 3 : index
      %c0_288 = arith.constant 0 : index
      %c0_289 = arith.constant 0 : index
      %262 = vector.load %arg4[%c2_286, %c3_287, %c0_288, %c0_289] : memref<3x4x1x32xf32, #tpu.memory_space<vmem>>, vector<1x1x1x32xf32>
      %263 = vector.shape_cast %262 : vector<1x1x1x32xf32> to vector<1x32xf32>
      %264 = vector.broadcast %263 : vector<1x32xf32> to vector<256x32xf32>
      %265 = arith.addf %261, %264 : vector<256x32xf32>
      %c1_290 = arith.constant 1 : index
      %c3_291 = arith.constant 3 : index
      %c0_292 = arith.constant 0 : index
      %c0_293 = arith.constant 0 : index
      %266 = vector.load %arg8[%c1_290, %c3_291, %c0_292, %c0_293] : memref<2x4x256x32xf32, #tpu.memory_space<vmem>>, vector<1x1x256x32xf32>
      %267 = vector.shape_cast %266 : vector<1x1x256x32xf32> to vector<256x32xf32>
      %268 = vector.shape_cast %265 : vector<256x32xf32> to vector<1x1x256x32xf32>
      tpu.vector_store %arg8[%c1_290, %c3_291, %c0_292, %c0_293], %268 {strides = array<i32>} : memref<2x4x256x32xf32, #tpu.memory_space<vmem>>, vector<1x1x256x32xf32>,
    } else {
    }
    %c128_i32 = arith.constant 128 : i32
    %3 = arith.muli %arg1, %c128_i32 : i32
    %4 = tpu.assume_multiple %3, 128 : i32
    %c0 = arith.constant 0 : index
    %c0_1 = arith.constant 0 : index
    %5 = arith.index_cast %4 : i32 to index
    %c0_2 = arith.constant 0 : index
    %6 = vector.load %arg8[%c0, %c0_1, %5, %c0_2] : memref<2x4x256x32xf32, #tpu.memory_space<vmem>>, vector<1x1x128x32xf32>
    %7 = vector.shape_cast %6 : vector<1x1x128x32xf32> to vector<128x32xf32>
    %c0_3 = arith.constant 0 : index
    %c0_4 = arith.constant 0 : index
    %c0_5 = arith.constant 0 : index
    %8 = vector.load %arg9[%c0_3, %c0_4, %c0_5] : memref<4x32x256xf32, #tpu.memory_space<vmem>>, vector<1x32x256xf32>
    %9 = vector.shape_cast %8 : vector<1x32x256xf32> to vector<32x256xf32>
    %cst = arith.constant dense<0.000000e+00> : vector<128x256xf32>
    %10 = tpu.matmul %7, %9, %cst {dimension_numbers = #tpu.dot_dimension_numbers<[1], [0], [0], [1], [0, 0, 1, 1], [], []>} : vector<128x32xf32>, vector<32x256xf32>, vector<128x256xf32> -> vector<128x256xf32>
    %c0_6 = arith.constant 0 : index
    %c0_7 = arith.constant 0 : index
    %c0_8 = arith.constant 0 : index
    %11 = vector.load %arg10[%c0_6, %c0_7, %c0_8] : memref<4x128x256xf32, #tpu.memory_space<vmem>>, vector<1x128x256xf32>
    %12 = vector.shape_cast %11 : vector<1x128x256xf32> to vector<128x256xf32>
    %13 = vector.shape_cast %10 : vector<128x256xf32> to vector<1x128x256xf32>
    tpu.vector_store %arg10[%c0_6, %c0_7, %c0_8], %13 {strides = array<i32>} : memref<4x128x256xf32, #tpu.memory_space<vmem>>, vector<1x128x256xf32>,
    %c0_9 = arith.constant 0 : index
    %c1 = arith.constant 1 : index
    %14 = arith.index_cast %4 : i32 to index
    %c0_10 = arith.constant 0 : index
    %15 = vector.load %arg8[%c0_9, %c1, %14, %c0_10] : memref<2x4x256x32xf32, #tpu.memory_space<vmem>>, vector<1x1x128x32xf32>
    %16 = vector.shape_cast %15 : vector<1x1x128x32xf32> to vector<128x32xf32>
    %c1_11 = arith.constant 1 : index
    %c0_12 = arith.constant 0 : index
    %c0_13 = arith.constant 0 : index
    %17 = vector.load %arg9[%c1_11, %c0_12, %c0_13] : memref<4x32x256xf32, #tpu.memory_space<vmem>>, vector<1x32x256xf32>
    %18 = vector.shape_cast %17 : vector<1x32x256xf32> to vector<32x256xf32>
    %cst_14 = arith.constant dense<0.000000e+00> : vector<128x256xf32>
    %19 = tpu.matmul %16, %18, %cst_14 {dimension_numbers = #tpu.dot_dimension_numbers<[1], [0], [0], [1], [0, 0, 1, 1], [], []>} : vector<128x32xf32>, vector<32x256xf32>, vector<128x256xf32> -> vector<128x256xf32>
    %c1_15 = arith.constant 1 : index
    %c0_16 = arith.constant 0 : index
    %c0_17 = arith.constant 0 : index
    %20 = vector.load %arg10[%c1_15, %c0_16, %c0_17] : memref<4x128x256xf32, #tpu.memory_space<vmem>>, vector<1x128x256xf32>
    %21 = vector.shape_cast %20 : vector<1x128x256xf32> to vector<128x256xf32>
    %22 = vector.shape_cast %19 : vector<128x256xf32> to vector<1x128x256xf32>
    tpu.vector_store %arg10[%c1_15, %c0_16, %c0_17], %22 {strides = array<i32>} : memref<4x128x256xf32, #tpu.memory_space<vmem>>, vector<1x128x256xf32>,
    %23 = arith.maximumf %10, %19 : vector<128x256xf32>
    %c0_18 = arith.constant 0 : index
    %c2 = arith.constant 2 : index
    %24 = arith.index_cast %4 : i32 to index
    %c0_19 = arith.constant 0 : index
    %25 = vector.load %arg8[%c0_18, %c2, %24, %c0_19] : memref<2x4x256x32xf32, #tpu.memory_space<vmem>>, vector<1x1x128x32xf32>
    %26 = vector.shape_cast %25 : vector<1x1x128x32xf32> to vector<128x32xf32>
    %c2_20 = arith.constant 2 : index
    %c0_21 = arith.constant 0 : index
    %c0_22 = arith.constant 0 : index
    %27 = vector.load %arg9[%c2_20, %c0_21, %c0_22] : memref<4x32x256xf32, #tpu.memory_space<vmem>>, vector<1x32x256xf32>
    %28 = vector.shape_cast %27 : vector<1x32x256xf32> to vector<32x256xf32>
    %cst_23 = arith.constant dense<0.000000e+00> : vector<128x256xf32>
    %29 = tpu.matmul %26, %28, %cst_23 {dimension_numbers = #tpu.dot_dimension_numbers<[1], [0], [0], [1], [0, 0, 1, 1], [], []>} : vector<128x32xf32>, vector<32x256xf32>, vector<128x256xf32> -> vector<128x256xf32>
    %c2_24 = arith.constant 2 : index
    %c0_25 = arith.constant 0 : index
    %c0_26 = arith.constant 0 : index
    %30 = vector.load %arg10[%c2_24, %c0_25, %c0_26] : memref<4x128x256xf32, #tpu.memory_space<vmem>>, vector<1x128x256xf32>
    %31 = vector.shape_cast %30 : vector<1x128x256xf32> to vector<128x256xf32>
    %32 = vector.shape_cast %29 : vector<128x256xf32> to vector<1x128x256xf32>
    tpu.vector_store %arg10[%c2_24, %c0_25, %c0_26], %32 {strides = array<i32>} : memref<4x128x256xf32, #tpu.memory_space<vmem>>, vector<1x128x256xf32>,
    %33 = arith.maximumf %23, %29 : vector<128x256xf32>
    %c0_27 = arith.constant 0 : index
    %c3 = arith.constant 3 : index
    %34 = arith.index_cast %4 : i32 to index
    %c0_28 = arith.constant 0 : index
    %35 = vector.load %arg8[%c0_27, %c3, %34, %c0_28] : memref<2x4x256x32xf32, #tpu.memory_space<vmem>>, vector<1x1x128x32xf32>
    %36 = vector.shape_cast %35 : vector<1x1x128x32xf32> to vector<128x32xf32>
    %c3_29 = arith.constant 3 : index
    %c0_30 = arith.constant 0 : index
    %c0_31 = arith.constant 0 : index
    %37 = vector.load %arg9[%c3_29, %c0_30, %c0_31] : memref<4x32x256xf32, #tpu.memory_space<vmem>>, vector<1x32x256xf32>
    %38 = vector.shape_cast %37 : vector<1x32x256xf32> to vector<32x256xf32>
    %cst_32 = arith.constant dense<0.000000e+00> : vector<128x256xf32>
    %39 = tpu.matmul %36, %38, %cst_32 {dimension_numbers = #tpu.dot_dimension_numbers<[1], [0], [0], [1], [0, 0, 1, 1], [], []>} : vector<128x32xf32>, vector<32x256xf32>, vector<128x256xf32> -> vector<128x256xf32>
    %c3_33 = arith.constant 3 : index
    %c0_34 = arith.constant 0 : index
    %c0_35 = arith.constant 0 : index
    %40 = vector.load %arg10[%c3_33, %c0_34, %c0_35] : memref<4x128x256xf32, #tpu.memory_space<vmem>>, vector<1x128x256xf32>
    %41 = vector.shape_cast %40 : vector<1x128x256xf32> to vector<128x256xf32>
    %42 = vector.shape_cast %39 : vector<128x256xf32> to vector<1x128x256xf32>
    tpu.vector_store %arg10[%c3_33, %c0_34, %c0_35], %42 {strides = array<i32>} : memref<4x128x256xf32, #tpu.memory_space<vmem>>, vector<1x128x256xf32>,
    %43 = arith.maximumf %33, %39 : vector<128x256xf32>
    %cst_36 = arith.constant 0.000000e+00 : f32
    %44 = vector.broadcast %cst_36 : f32 to vector<128x256xf32>
    %c0_37 = arith.constant 0 : index
    %c0_38 = arith.constant 0 : index
    %c0_39 = arith.constant 0 : index
    %45 = vector.load %arg10[%c0_37, %c0_38, %c0_39] : memref<4x128x256xf32, #tpu.memory_space<vmem>>, vector<1x128x256xf32>
    %46 = vector.shape_cast %45 : vector<1x128x256xf32> to vector<128x256xf32>
    %47 = arith.subf %46, %43 : vector<128x256xf32>
    %48 = math.exp %47 : vector<128x256xf32>
    %c0_40 = arith.constant 0 : index
    %c0_41 = arith.constant 0 : index
    %c0_42 = arith.constant 0 : index
    %49 = vector.load %arg10[%c0_40, %c0_41, %c0_42] : memref<4x128x256xf32, #tpu.memory_space<vmem>>, vector<1x128x256xf32>
    %50 = vector.shape_cast %49 : vector<1x128x256xf32> to vector<128x256xf32>
    %51 = vector.shape_cast %48 : vector<128x256xf32> to vector<1x128x256xf32>
    tpu.vector_store %arg10[%c0_40, %c0_41, %c0_42], %51 {strides = array<i32>} : memref<4x128x256xf32, #tpu.memory_space<vmem>>, vector<1x128x256xf32>,
    %52 = arith.addf %44, %48 : vector<128x256xf32>
    %c1_43 = arith.constant 1 : index
    %c0_44 = arith.constant 0 : index
    %c0_45 = arith.constant 0 : index
    %53 = vector.load %arg10[%c1_43, %c0_44, %c0_45] : memref<4x128x256xf32, #tpu.memory_space<vmem>>, vector<1x128x256xf32>
    %54 = vector.shape_cast %53 : vector<1x128x256xf32> to vector<128x256xf32>
    %55 = arith.subf %54, %43 : vector<128x256xf32>
    %56 = math.exp %55 : vector<128x256xf32>
    %c1_46 = arith.constant 1 : index
    %c0_47 = arith.constant 0 : index
    %c0_48 = arith.constant 0 : index
    %57 = vector.load %arg10[%c1_46, %c0_47, %c0_48] : memref<4x128x256xf32, #tpu.memory_space<vmem>>, vector<1x128x256xf32>
    %58 = vector.shape_cast %57 : vector<1x128x256xf32> to vector<128x256xf32>
    %59 = vector.shape_cast %56 : vector<128x256xf32> to vector<1x128x256xf32>
    tpu.vector_store %arg10[%c1_46, %c0_47, %c0_48], %59 {strides = array<i32>} : memref<4x128x256xf32, #tpu.memory_space<vmem>>, vector<1x128x256xf32>,
    %60 = arith.addf %52, %56 : vector<128x256xf32>
    %c2_49 = arith.constant 2 : index
    %c0_50 = arith.constant 0 : index
    %c0_51 = arith.constant 0 : index
    %61 = vector.load %arg10[%c2_49, %c0_50, %c0_51] : memref<4x128x256xf32, #tpu.memory_space<vmem>>, vector<1x128x256xf32>
    %62 = vector.shape_cast %61 : vector<1x128x256xf32> to vector<128x256xf32>
    %63 = arith.subf %62, %43 : vector<128x256xf32>
    %64 = math.exp %63 : vector<128x256xf32>
    %c2_52 = arith.constant 2 : index
    %c0_53 = arith.constant 0 : index
    %c0_54 = arith.constant 0 : index
    %65 = vector.load %arg10[%c2_52, %c0_53, %c0_54] : memref<4x128x256xf32, #tpu.memory_space<vmem>>, vector<1x128x256xf32>
    %66 = vector.shape_cast %65 : vector<1x128x256xf32> to vector<128x256xf32>
    %67 = vector.shape_cast %64 : vector<128x256xf32> to vector<1x128x256xf32>
    tpu.vector_store %arg10[%c2_52, %c0_53, %c0_54], %67 {strides = array<i32>} : memref<4x128x256xf32, #tpu.memory_space<vmem>>, vector<1x128x256xf32>,
    %68 = arith.addf %60, %64 : vector<128x256xf32>
    %c3_55 = arith.constant 3 : index
    %c0_56 = arith.constant 0 : index
    %c0_57 = arith.constant 0 : index
    %69 = vector.load %arg10[%c3_55, %c0_56, %c0_57] : memref<4x128x256xf32, #tpu.memory_space<vmem>>, vector<1x128x256xf32>
    %70 = vector.shape_cast %69 : vector<1x128x256xf32> to vector<128x256xf32>
    %71 = arith.subf %70, %43 : vector<128x256xf32>
    %72 = math.exp %71 : vector<128x256xf32>
    %c3_58 = arith.constant 3 : index
    %c0_59 = arith.constant 0 : index
    %c0_60 = arith.constant 0 : index
    %73 = vector.load %arg10[%c3_58, %c0_59, %c0_60] : memref<4x128x256xf32, #tpu.memory_space<vmem>>, vector<1x128x256xf32>
    %74 = vector.shape_cast %73 : vector<1x128x256xf32> to vector<128x256xf32>
    %75 = vector.shape_cast %72 : vector<128x256xf32> to vector<1x128x256xf32>
    tpu.vector_store %arg10[%c3_58, %c0_59, %c0_60], %75 {strides = array<i32>} : memref<4x128x256xf32, #tpu.memory_space<vmem>>, vector<1x128x256xf32>,
    %76 = arith.addf %68, %72 : vector<128x256xf32>
    %77 = tpu.reciprocal %76 : vector<128x256xf32> -> vector<128x256xf32>
    %cst_61 = arith.constant 0.000000e+00 : f32
    %78 = vector.broadcast %cst_61 : f32 to vector<128x128xf32>
    %c0_62 = arith.constant 0 : index
    %c0_63 = arith.constant 0 : index
    %79 = vector.load %arg11[%c0_62, %c0_63] : memref<128x128xf32, #tpu.memory_space<vmem>>, vector<128x128xf32>
    tpu.vector_store %arg11[%c0_62, %c0_63], %78 {strides = array<i32>} : memref<128x128xf32, #tpu.memory_space<vmem>>, vector<128x128xf32>,
    %c0_64 = arith.constant 0 : index
    %c0_65 = arith.constant 0 : index
    %c0_66 = arith.constant 0 : index
    %80 = vector.load %arg10[%c0_64, %c0_65, %c0_66] : memref<4x128x256xf32, #tpu.memory_space<vmem>>, vector<1x128x256xf32>
    %81 = vector.shape_cast %80 : vector<1x128x256xf32> to vector<128x256xf32>
    %82 = arith.mulf %81, %77 : vector<128x256xf32>
    %c1_67 = arith.constant 1 : index
    %c0_68 = arith.constant 0 : index
    %c0_69 = arith.constant 0 : index
    %c0_70 = arith.constant 0 : index
    %83 = vector.load %arg8[%c1_67, %c0_68, %c0_69, %c0_70] : memref<2x4x256x32xf32, #tpu.memory_space<vmem>>, vector<1x1x256x32xf32>
    %84 = vector.shape_cast %83 : vector<1x1x256x32xf32> to vector<256x32xf32>
    %cst_71 = arith.constant dense<0.000000e+00> : vector<128x32xf32>
    %85 = tpu.matmul %82, %84, %cst_71 {dimension_numbers = #tpu.dot_dimension_numbers<[1], [0], [0], [1], [0, 0, 1, 1], [], []>} : vector<128x256xf32>, vector<256x32xf32>, vector<128x32xf32> -> vector<128x32xf32>
    %c0_72 = arith.constant 0 : index
    %c0_73 = arith.constant 0 : index
    %86 = vector.load %arg11[%c0_72, %c0_73] : memref<128x128xf32, #tpu.memory_space<vmem>>, vector<128x128xf32>
    %c0_74 = arith.constant 0 : index
    %c0_75 = arith.constant 0 : index
    %c0_76 = arith.constant 0 : index
    %87 = vector.load %arg5[%c0_74, %c0_75, %c0_76] : memref<4x32x128xf32, #tpu.memory_space<vmem>>, vector<1x32x128xf32>
    %88 = vector.shape_cast %87 : vector<1x32x128xf32> to vector<32x128xf32>
    %cst_77 = arith.constant dense<0.000000e+00> : vector<128x128xf32>
    %89 = tpu.matmul %85, %88, %cst_77 {dimension_numbers = #tpu.dot_dimension_numbers<[1], [0], [0], [1], [0, 0, 1, 1], [], []>} : vector<128x32xf32>, vector<32x128xf32>, vector<128x128xf32> -> vector<128x128xf32>
    %90 = arith.addf %86, %89 : vector<128x128xf32>
    %c0_78 = arith.constant 0 : index
    %c0_79 = arith.constant 0 : index
    %91 = vector.load %arg11[%c0_78, %c0_79] : memref<128x128xf32, #tpu.memory_space<vmem>>, vector<128x128xf32>
    tpu.vector_store %arg11[%c0_78, %c0_79], %90 {strides = array<i32>} : memref<128x128xf32, #tpu.memory_space<vmem>>, vector<128x128xf32>,
    %c1_80 = arith.constant 1 : index
    %c0_81 = arith.constant 0 : index
    %c0_82 = arith.constant 0 : index
    %92 = vector.load %arg10[%c1_80, %c0_81, %c0_82] : memref<4x128x256xf32, #tpu.memory_space<vmem>>, vector<1x128x256xf32>
    %93 = vector.shape_cast %92 : vector<1x128x256xf32> to vector<128x256xf32>
    %94 = arith.mulf %93, %77 : vector<128x256xf32>
    %c1_83 = arith.constant 1 : index
    %c1_84 = arith.constant 1 : index
    %c0_85 = arith.constant 0 : index
    %c0_86 = arith.constant 0 : index
    %95 = vector.load %arg8[%c1_83, %c1_84, %c0_85, %c0_86] : memref<2x4x256x32xf32, #tpu.memory_space<vmem>>, vector<1x1x256x32xf32>
    %96 = vector.shape_cast %95 : vector<1x1x256x32xf32> to vector<256x32xf32>
    %cst_87 = arith.constant dense<0.000000e+00> : vector<128x32xf32>
    %97 = tpu.matmul %94, %96, %cst_87 {dimension_numbers = #tpu.dot_dimension_numbers<[1], [0], [0], [1], [0, 0, 1, 1], [], []>} : vector<128x256xf32>, vector<256x32xf32>, vector<128x32xf32> -> vector<128x32xf32>
    %c0_88 = arith.constant 0 : index
    %c0_89 = arith.constant 0 : index
    %98 = vector.load %arg11[%c0_88, %c0_89] : memref<128x128xf32, #tpu.memory_space<vmem>>, vector<128x128xf32>
    %c1_90 = arith.constant 1 : index
    %c0_91 = arith.constant 0 : index
    %c0_92 = arith.constant 0 : index
    %99 = vector.load %arg5[%c1_90, %c0_91, %c0_92] : memref<4x32x128xf32, #tpu.memory_space<vmem>>, vector<1x32x128xf32>
    %100 = vector.shape_cast %99 : vector<1x32x128xf32> to vector<32x128xf32>
    %cst_93 = arith.constant dense<0.000000e+00> : vector<128x128xf32>
    %101 = tpu.matmul %97, %100, %cst_93 {dimension_numbers = #tpu.dot_dimension_numbers<[1], [0], [0], [1], [0, 0, 1, 1], [], []>} : vector<128x32xf32>, vector<32x128xf32>, vector<128x128xf32> -> vector<128x128xf32>
    %102 = arith.addf %98, %101 : vector<128x128xf32>
    %c0_94 = arith.constant 0 : index
    %c0_95 = arith.constant 0 : index
    %103 = vector.load %arg11[%c0_94, %c0_95] : memref<128x128xf32, #tpu.memory_space<vmem>>, vector<128x128xf32>
    tpu.vector_store %arg11[%c0_94, %c0_95], %102 {strides = array<i32>} : memref<128x128xf32, #tpu.memory_space<vmem>>, vector<128x128xf32>,
    %c2_96 = arith.constant 2 : index
    %c0_97 = arith.constant 0 : index
    %c0_98 = arith.constant 0 : index
    %104 = vector.load %arg10[%c2_96, %c0_97, %c0_98] : memref<4x128x256xf32, #tpu.memory_space<vmem>>, vector<1x128x256xf32>
    %105 = vector.shape_cast %104 : vector<1x128x256xf32> to vector<128x256xf32>
    %106 = arith.mulf %105, %77 : vector<128x256xf32>
    %c1_99 = arith.constant 1 : index
    %c2_100 = arith.constant 2 : index
    %c0_101 = arith.constant 0 : index
    %c0_102 = arith.constant 0 : index
    %107 = vector.load %arg8[%c1_99, %c2_100, %c0_101, %c0_102] : memref<2x4x256x32xf32, #tpu.memory_space<vmem>>, vector<1x1x256x32xf32>
    %108 = vector.shape_cast %107 : vector<1x1x256x32xf32> to vector<256x32xf32>
    %cst_103 = arith.constant dense<0.000000e+00> : vector<128x32xf32>
    %109 = tpu.matmul %106, %108, %cst_103 {dimension_numbers = #tpu.dot_dimension_numbers<[1], [0], [0], [1], [0, 0, 1, 1], [], []>} : vector<128x256xf32>, vector<256x32xf32>, vector<128x32xf32> -> vector<128x32xf32>
    %c0_104 = arith.constant 0 : index
    %c0_105 = arith.constant 0 : index
    %110 = vector.load %arg11[%c0_104, %c0_105] : memref<128x128xf32, #tpu.memory_space<vmem>>, vector<128x128xf32>
    %c2_106 = arith.constant 2 : index
    %c0_107 = arith.constant 0 : index
    %c0_108 = arith.constant 0 : index
    %111 = vector.load %arg5[%c2_106, %c0_107, %c0_108] : memref<4x32x128xf32, #tpu.memory_space<vmem>>, vector<1x32x128xf32>
    %112 = vector.shape_cast %111 : vector<1x32x128xf32> to vector<32x128xf32>
    %cst_109 = arith.constant dense<0.000000e+00> : vector<128x128xf32>
    %113 = tpu.matmul %109, %112, %cst_109 {dimension_numbers = #tpu.dot_dimension_numbers<[1], [0], [0], [1], [0, 0, 1, 1], [], []>} : vector<128x32xf32>, vector<32x128xf32>, vector<128x128xf32> -> vector<128x128xf32>
    %114 = arith.addf %110, %113 : vector<128x128xf32>
    %c0_110 = arith.constant 0 : index
    %c0_111 = arith.constant 0 : index
    %115 = vector.load %arg11[%c0_110, %c0_111] : memref<128x128xf32, #tpu.memory_space<vmem>>, vector<128x128xf32>
    tpu.vector_store %arg11[%c0_110, %c0_111], %114 {strides = array<i32>} : memref<128x128xf32, #tpu.memory_space<vmem>>, vector<128x128xf32>,
    %c3_112 = arith.constant 3 : index
    %c0_113 = arith.constant 0 : index
    %c0_114 = arith.constant 0 : index
    %116 = vector.load %arg10[%c3_112, %c0_113, %c0_114] : memref<4x128x256xf32, #tpu.memory_space<vmem>>, vector<1x128x256xf32>
    %117 = vector.shape_cast %116 : vector<1x128x256xf32> to vector<128x256xf32>
    %118 = arith.mulf %117, %77 : vector<128x256xf32>
    %c1_115 = arith.constant 1 : index
    %c3_116 = arith.constant 3 : index
    %c0_117 = arith.constant 0 : index
    %c0_118 = arith.constant 0 : index
    %119 = vector.load %arg8[%c1_115, %c3_116, %c0_117, %c0_118] : memref<2x4x256x32xf32, #tpu.memory_space<vmem>>, vector<1x1x256x32xf32>
    %120 = vector.shape_cast %119 : vector<1x1x256x32xf32> to vector<256x32xf32>
    %cst_119 = arith.constant dense<0.000000e+00> : vector<128x32xf32>
    %121 = tpu.matmul %118, %120, %cst_119 {dimension_numbers = #tpu.dot_dimension_numbers<[1], [0], [0], [1], [0, 0, 1, 1], [], []>} : vector<128x256xf32>, vector<256x32xf32>, vector<128x32xf32> -> vector<128x32xf32>
    %c0_120 = arith.constant 0 : index
    %c0_121 = arith.constant 0 : index
    %122 = vector.load %arg11[%c0_120, %c0_121] : memref<128x128xf32, #tpu.memory_space<vmem>>, vector<128x128xf32>
    %c3_122 = arith.constant 3 : index
    %c0_123 = arith.constant 0 : index
    %c0_124 = arith.constant 0 : index
    %123 = vector.load %arg5[%c3_122, %c0_123, %c0_124] : memref<4x32x128xf32, #tpu.memory_space<vmem>>, vector<1x32x128xf32>
    %124 = vector.shape_cast %123 : vector<1x32x128xf32> to vector<32x128xf32>
    %cst_125 = arith.constant dense<0.000000e+00> : vector<128x128xf32>
    %125 = tpu.matmul %121, %124, %cst_125 {dimension_numbers = #tpu.dot_dimension_numbers<[1], [0], [0], [1], [0, 0, 1, 1], [], []>} : vector<128x32xf32>, vector<32x128xf32>, vector<128x128xf32> -> vector<128x128xf32>
    %126 = arith.addf %122, %125 : vector<128x128xf32>
    %c0_126 = arith.constant 0 : index
    %c0_127 = arith.constant 0 : index
    %127 = vector.load %arg11[%c0_126, %c0_127] : memref<128x128xf32, #tpu.memory_space<vmem>>, vector<128x128xf32>
    tpu.vector_store %arg11[%c0_126, %c0_127], %126 {strides = array<i32>} : memref<128x128xf32, #tpu.memory_space<vmem>>, vector<128x128xf32>,
    %c0_128 = arith.constant 0 : index
    %c0_129 = arith.constant 0 : index
    %128 = vector.load %arg11[%c0_128, %c0_129] : memref<128x128xf32, #tpu.memory_space<vmem>>, vector<128x128xf32>
    %c0_130 = arith.constant 0 : index
    %c0_131 = arith.constant 0 : index
    %129 = vector.load %arg6[%c0_130, %c0_131] : memref<1x128xf32, #tpu.memory_space<vmem>>, vector<1x128xf32>
    %130 = vector.broadcast %129 : vector<1x128xf32> to vector<128x128xf32>
    %131 = arith.addf %128, %130 : vector<128x128xf32>
    %c0_132 = arith.constant 0 : index
    %c0_133 = arith.constant 0 : index
    %c0_134 = arith.constant 0 : index
    %132 = vector.load %arg7[%c0_132, %c0_133, %c0_134] : memref<1x128x128xf32, #tpu.memory_space<vmem>>, vector<1x128x128xf32>
    %133 = vector.shape_cast %132 : vector<1x128x128xf32> to vector<128x128xf32>
    %134 = vector.shape_cast %131 : vector<128x128xf32> to vector<1x128x128xf32>
    tpu.vector_store %arg7[%c0_132, %c0_133, %c0_134], %134 {strides = array<i32>} : memref<1x128x128xf32, #tpu.memory_space<vmem>>, vector<1x128x128xf32>,
    return
  }
  func.func @transform_0(%arg0: i32, %arg1: i32) -> (i32, i32, i32) {
    %c0_i32 = arith.constant 0 : i32
    %c0_i32_0 = arith.constant 0 : i32
    %c0_i32_1 = arith.constant 0 : i32
    return %arg0, %c0_i32, %c0_i32_0 : i32, i32, i32
  }
  func.func @transform_1(%arg0: i32, %arg1: i32) -> (i32, i32, i32, i32) {
    %c0_i32 = arith.constant 0 : i32
    %c0_i32_0 = arith.constant 0 : i32
    %c0_i32_1 = arith.constant 0 : i32
    %c0_i32_2 = arith.constant 0 : i32
    %c0_i32_3 = arith.constant 0 : i32
    return %c0_i32, %c0_i32_0, %c0_i32_1, %c0_i32_2 : i32, i32, i32, i32
  }
  func.func @transform_2(%arg0: i32, %arg1: i32) -> (i32, i32, i32, i32) {
    %c0_i32 = arith.constant 0 : i32
    %c0_i32_0 = arith.constant 0 : i32
    %c0_i32_1 = arith.constant 0 : i32
    %c0_i32_2 = arith.constant 0 : i32
    %c0_i32_3 = arith.constant 0 : i32
    return %c0_i32, %c0_i32_0, %c0_i32_1, %c0_i32_2 : i32, i32, i32, i32
  }
  func.func @transform_3(%arg0: i32, %arg1: i32) -> (i32, i32, i32) {
    %c0_i32 = arith.constant 0 : i32
    %c0_i32_0 = arith.constant 0 : i32
    %c0_i32_1 = arith.constant 0 : i32
    %c0_i32_2 = arith.constant 0 : i32
    return %c0_i32, %c0_i32_0, %c0_i32_1 : i32, i32, i32
  }
  func.func @transform_4(%arg0: i32, %arg1: i32) -> (i32, i32) {
    %c0_i32 = arith.constant 0 : i32
    %c0_i32_0 = arith.constant 0 : i32
    %c0_i32_1 = arith.constant 0 : i32
    return %c0_i32, %c0_i32_0 : i32, i32
  }
  func.func @transform_5(%arg0: i32, %arg1: i32) -> (i32, i32, i32) {
    %c0_i32 = arith.constant 0 : i32
    %c0_i32_0 = arith.constant 0 : i32
    return %arg0, %arg1, %c0_i32 : i32, i32, i32
  }
}

</mosaic_0001>

<llo_original>
// kernel: tpu_custom_call.1
$region0: #{tpu_custom_call.1}
  #allocation0 [shape = 'u32[]', space=smem, size = 0x4, offset = 0x4, fixed_abs, tag = 'smem constant byte address 0x4 - core index']
  #allocation1 [shape = 'u32[144,128]{1,0:T(1,128)}', space=vmem, size = 0x12000, scoped, tag = 'internal scratch']
  #allocation2 [shape = 'f32[2,4,256,32]{3,2,1,0:T(8,128)}', space=vmem, size = 0x100000, scoped, tag = 'scratch operand']
  #allocation3 [shape = 'f32[4,32,256]{2,1,0:T(8,128)}', space=vmem, size = 0x20000, scoped, tag = 'scratch operand']
  #allocation4 [shape = 'f32[4,128,256]{2,1,0:T(8,128)}', space=vmem, size = 0x80000, scoped, tag = 'scratch operand']
  #allocation5 [shape = 'f32[128,128]{1,0:T(8,128)}', space=vmem, size = 0x10000, scoped, tag = 'scratch operand']
  %s0 = inlined_call_operand.vmem [shape: f32[2,256,128], index: 0, kind: input, shape index: {}]
  %s1 = inlined_call_operand.vmem [shape: f32[3,4,128,32], index: 1, kind: input, shape index: {}]
  %s2 = inlined_call_operand.vmem [shape: f32[3,4,1,32], index: 2, kind: input, shape index: {}]
  %s3 = inlined_call_operand.vmem [shape: f32[4,32,128], index: 3, kind: input, shape index: {}]
  %s4 = inlined_call_operand.vmem [shape: f32[1,128], index: 4, kind: input, shape index: {}]
  %s5 = inlined_call_operand.hbm [shape: f32[2,256,128], index: 5, kind: output, shape index: {}]
  %s6 = sld [smem:[#allocation0]]
  $region57: #{tpu_custom_call.1} parent=0
    _
  %s8 = ssub.s32 1, %s6
  %s9 = scalar_select 0, %s8, %s6
  $region1: #{tpu_custom_call.1} parent=0
    #allocation6 [shape = 'u8[131072]{0}', space=vmem, size = 0x20000, scoped, tag = 'output window, operand 0']
    #allocation7 [shape = 's32[2]{0}', space=sflag, size = 0x8, scoped, tag = 'scoped memory for tpu_custom_call.1']
    %10 = vsyncpa [#allocation7], 0
    %s11 = scalar_lea.sflag [#allocation7], 1
    %12 = vsyncpa %s11, 0
    loop: start=0, step=1, limit=6
    $region2: #{tpu_custom_call.1} parent=1 // loop_pre_header
      _
    $region3: #{tpu_custom_call.1} parent=1 // loop_header
      %s14 = sphi 0, %s18
      %p15 = scmp.ge.s32.totalorder %s14, 6
      %s21 = sphi 0, %s33
      %s22 = sphi 0, %s29
      %s23 = sphi 0, %s21
      %s24 = sphi 0, %s22
      %s25 = sphi 0, %s23
      %s26 = sphi 0, %s24
      %s36 = sphi 0, %s38
      %s39 = sphi 0, %s36
      %s40 = sphi 0, %s39
      %s56 = sphi 0, %s40
      %s60 = sphi 0, %s60
      %s62 = sphi 0, %s60
      %s63 = sphi 0, %s62
      %s77 = sphi 0, %s63
      %s81 = sphi 0, %s81
      %s83 = sphi 0, %s81
      %s84 = sphi 0, %s83
      %s98 = sphi 0, %s84
      %s102 = sphi 0, %s102
      %s104 = sphi 0, %s102
      %s105 = sphi 0, %s104
      %s119 = sphi 0, %s105
      %s123 = sphi 0, %s123
      %s125 = sphi 0, %s123
      %s126 = sphi 0, %s125
      %s140 = sphi 0, %s126
      %s148 = sphi 0, %s150
      %s151 = sphi 0, %s148
      %s152 = sphi 0, %s151
      %s168 = sphi 0, %s152
    $region4: #{tpu_custom_call.1} parent=1 // loop_header_branch
      %17 = sbr.rel (%p15) target = $region8
    $region5: #{tpu_custom_call.1} parent=1 // loop_body
      %s19 = ssub.s32 %s14, 1
      %s20 = ssub.s32 %s14, 2
      %s27 = sadd.s32 1, %s22
      %p28 = scmp.ge.s32.totalorder %s27, 2
      %s29 = scalar_select %p28, 0, %s27
      %s30 = sadd.s32 1, %s21
      %s31 = scalar_select %p28, %s30, %s21
      %p32 = scmp.ge.s32.totalorder %s31, 2
      %s33 = scalar_select %p32, 0, %s31
      %s34 = ssub.s32 %s21, %s33
      %p35 = scmp.eq.s32.totalorder %s34, 0
      %s37 = sadd.s32 %s36, 1
      %s38 = scalar_select %p35, %s36, %s37
      %p41 = pneg %p35
      %p42 = scmp.eq.s32.totalorder %s14, 3
      %p43 = por %p41, %p42
      %p44 = scmp.ne.s32.totalorder %s36, %s39
      %p45 = scmp.eq.s32.totalorder %s14, 0
      %p46 = por %p44, %p45
      %p47 = scmp.ne.s32.totalorder %s36, %s39
      %p48 = scmp.eq.s32.totalorder %s19, 3
      %p49 = por %p47, %p48
      %p50 = scmp.ne.s32.totalorder %s39, %s40
      %p51 = scmp.eq.s32.totalorder %s19, 0
      %p52 = por %p50, %p51
      %p53 = scmp.ne.s32.totalorder %s39, %s40
      %p54 = scmp.eq.s32.totalorder %s20, 3
      %p55 = por %p53, %p54
      %p57 = scmp.ne.s32.totalorder %s40, %s56
      %p58 = scmp.eq.s32.totalorder %s20, 0
      %p59 = por %p57, %p58
      %s61 = sadd.s32 %s60, 1
      %p64 = scmp.eq.s32.totalorder %s14, 3
      %p65 = scmp.ne.s32.totalorder %s60, %s62
      %p66 = scmp.eq.s32.totalorder %s14, 0
      %p67 = por %p65, %p66
      %p68 = scmp.ne.s32.totalorder %s60, %s62
      %p69 = scmp.eq.s32.totalorder %s19, 3
      %p70 = por %p68, %p69
      %p71 = scmp.ne.s32.totalorder %s62, %s63
      %p72 = scmp.eq.s32.totalorder %s19, 0
      %p73 = por %p71, %p72
      %p74 = scmp.ne.s32.totalorder %s62, %s63
      %p75 = scmp.eq.s32.totalorder %s20, 3
      %p76 = por %p74, %p75
      %p78 = scmp.ne.s32.totalorder %s63, %s77
      %p79 = scmp.eq.s32.totalorder %s20, 0
      %p80 = por %p78, %p79
      %s82 = sadd.s32 %s81, 1
      %p85 = scmp.eq.s32.totalorder %s14, 3
      %p86 = scmp.ne.s32.totalorder %s81, %s83
      %p87 = scmp.eq.s32.totalorder %s14, 0
      %p88 = por %p86, %p87
      %p89 = scmp.ne.s32.totalorder %s81, %s83
      %p90 = scmp.eq.s32.totalorder %s19, 3
      %p91 = por %p89, %p90
      %p92 = scmp.ne.s32.totalorder %s83, %s84
      %p93 = scmp.eq.s32.totalorder %s19, 0
      %p94 = por %p92, %p93
      %p95 = scmp.ne.s32.totalorder %s83, %s84
      %p96 = scmp.eq.s32.totalorder %s20, 3
      %p97 = por %p95, %p96
      %p99 = scmp.ne.s32.totalorder %s84, %s98
      %p100 = scmp.eq.s32.totalorder %s20, 0
      %p101 = por %p99, %p100
      %s103 = sadd.s32 %s102, 1
      %p106 = scmp.eq.s32.totalorder %s14, 3
      %p107 = scmp.ne.s32.totalorder %s102, %s104
      %p108 = scmp.eq.s32.totalorder %s14, 0
      %p109 = por %p107, %p108
      %p110 = scmp.ne.s32.totalorder %s102, %s104
      %p111 = scmp.eq.s32.totalorder %s19, 3
      %p112 = por %p110, %p111
      %p113 = scmp.ne.s32.totalorder %s104, %s105
      %p114 = scmp.eq.s32.totalorder %s19, 0
      %p115 = por %p113, %p114
      %p116 = scmp.ne.s32.totalorder %s104, %s105
      %p117 = scmp.eq.s32.totalorder %s20, 3
      %p118 = por %p116, %p117
      %p120 = scmp.ne.s32.totalorder %s105, %s119
      %p121 = scmp.eq.s32.totalorder %s20, 0
      %p122 = por %p120, %p121
      %s124 = sadd.s32 %s123, 1
      %p127 = scmp.eq.s32.totalorder %s14, 3
      %p128 = scmp.ne.s32.totalorder %s123, %s125
      %p129 = scmp.eq.s32.totalorder %s14, 0
      %p130 = por %p128, %p129
      %p131 = scmp.ne.s32.totalorder %s123, %s125
      %p132 = scmp.eq.s32.totalorder %s19, 3
      %p133 = por %p131, %p132
      %p134 = scmp.ne.s32.totalorder %s125, %s126
      %p135 = scmp.eq.s32.totalorder %s19, 0
      %p136 = por %p134, %p135
      %p137 = scmp.ne.s32.totalorder %s125, %s126
      %p138 = scmp.eq.s32.totalorder %s20, 3
      %p139 = por %p137, %p138
      %p141 = scmp.ne.s32.totalorder %s126, %s140
      %p142 = scmp.eq.s32.totalorder %s20, 0
      %p143 = por %p141, %p142
      %s144 = ssub.s32 %s21, %s33
      %s145 = ssub.s32 %s22, %s29
      %s146 = sor.u32 %s144, %s145
      %p147 = scmp.eq.s32.totalorder %s146, 0
      %s149 = sadd.s32 %s148, 1
      %s150 = scalar_select %p147, %s148, %s149
      %p153 = pneg %p147
      %p154 = scmp.eq.s32.totalorder %s14, 3
      %p155 = por %p153, %p154
      %p156 = scmp.ne.s32.totalorder %s148, %s151
      %p157 = scmp.eq.s32.totalorder %s14, 0
      %p158 = por %p156, %p157
      %p159 = scmp.ne.s32.totalorder %s148, %s151
      %p160 = scmp.eq.s32.totalorder %s19, 3
      %p161 = por %p159, %p160
      %p162 = scmp.ne.s32.totalorder %s151, %s152
      %p163 = scmp.eq.s32.totalorder %s19, 0
      %p164 = por %p162, %p163
      %p165 = scmp.ne.s32.totalorder %s151, %s152
      %p166 = scmp.eq.s32.totalorder %s20, 3
      %p167 = por %p165, %p166
      %p169 = scmp.ne.s32.totalorder %s152, %s168
      %p170 = scmp.eq.s32.totalorder %s20, 0
      %p171 = por %p169, %p170
      %p172 = scmp.le.s32.totalorder 1, %s14
      %p173 = scmp.lt.s32.totalorder %s14, 5
      %p174 = pnand %p172, %p173
      %p175 = pneg %p174
      // Predicated region
      $region9: #{tpu_custom_call.1} parent=5 // pred_check
        _
      $region10: #{tpu_custom_call.1} parent=5 // pred_check_branch
        %177 = sbr.rel (%p174) target = $region12
      $region11: #{tpu_custom_call.1} parent=5 // pred_region
        %s178 = ssub.s32 %s14, 1
        // Predicated region
        $region13: #{tpu_custom_call.1} parent=11 // pred_check
          %p179 = pneg %p73
        $region14: #{tpu_custom_call.1} parent=11 // pred_check_branch
          %181 = sbr.rel (%p179) target = $region16
        $region15: #{tpu_custom_call.1} parent=11 // pred_region
          _
        $region16: #{tpu_custom_call.1} parent=11 // pred_fallthru
          _
        // Predicated region
        $region17: #{tpu_custom_call.1} parent=11 // pred_check
          %p182 = pneg %p94
        $region18: #{tpu_custom_call.1} parent=11 // pred_check_branch
          %184 = sbr.rel (%p182) target = $region20
        $region19: #{tpu_custom_call.1} parent=11 // pred_region
          _
        $region20: #{tpu_custom_call.1} parent=11 // pred_fallthru
          _
        // Predicated region
        $region21: #{tpu_custom_call.1} parent=11 // pred_check
          %p185 = pneg %p115
        $region22: #{tpu_custom_call.1} parent=11 // pred_check_branch
          %187 = sbr.rel (%p185) target = $region24
        $region23: #{tpu_custom_call.1} parent=11 // pred_region
          _
        $region24: #{tpu_custom_call.1} parent=11 // pred_fallthru
          _
        // Predicated region
        $region25: #{tpu_custom_call.1} parent=11 // pred_check
          %p188 = pneg %p136
        $region26: #{tpu_custom_call.1} parent=11 // pred_check_branch
          %190 = sbr.rel (%p188) target = $region28
        $region27: #{tpu_custom_call.1} parent=11 // pred_region
          _
        $region28: #{tpu_custom_call.1} parent=11 // pred_fallthru
          _
      $region12: #{tpu_custom_call.1} parent=5 // pred_fallthru
        _
      %p191 = scmp.lt.s32.totalorder %s14, 4
      // Predicated region
      $region29: #{tpu_custom_call.1} parent=5 // pred_check
        %p192 = pneg %p191
      $region30: #{tpu_custom_call.1} parent=5 // pred_check_branch
        %194 = sbr.rel (%p192) target = $region32
      $region31: #{tpu_custom_call.1} parent=5 // pred_region
        // Predicated region
        $region33: #{tpu_custom_call.1} parent=31 // pred_check
          %p195 = pneg %p46
        $region34: #{tpu_custom_call.1} parent=31 // pred_check_branch
          %197 = sbr.rel (%p195) target = $region36
        $region35: #{tpu_custom_call.1} parent=31 // pred_region
          %p198 = scmp.lt.s32.totalorder %s21, 1
          %s199 = scalar_select %p198, %s21, 1
          %s200 = smul.addr %s199, 32
          %s201 = smul.addr %s200, 8
          %s202 = scalar_lea.vmem %s0, %s201
        $region36: #{tpu_custom_call.1} parent=31 // pred_fallthru
          _
      $region32: #{tpu_custom_call.1} parent=5 // pred_fallthru
        _
      %p203 = scmp.le.s32.totalorder 1, %s14
      %p204 = scmp.lt.s32.totalorder %s14, 5
      %p205 = pnand %p203, %p204
      %p206 = pneg %p205
      // Predicated region
      $region37: #{tpu_custom_call.1} parent=5 // pred_check
        _
      $region38: #{tpu_custom_call.1} parent=5 // pred_check_branch
        %208 = sbr.rel (%p205) target = $region40
      $region39: #{tpu_custom_call.1} parent=5 // pred_region
        %s209 = ssub.s32 %s14, 1
        %p210 = scmp.lt.s32.totalorder %s23, 1
        %s211 = scalar_select %p210, %s23, 1
        %s212 = smul.addr %s211, 32
        %s213 = smul.addr %s212, 8
        %s214 = scalar_lea.vmem %s0, %s213
        %p215 = pneg %p52
        %p216 = pneg %p49
        %p217 = pneg %p73
        %p218 = pneg %p70
        %p219 = pneg %p94
        %p220 = pneg %p91
        %p221 = pneg %p115
        %p222 = pneg %p112
        %p223 = pneg %p136
        %p224 = pneg %p133
        %p225 = pneg %p164
        %p226 = pneg %p161
        %s227 = sand.u32 %s151, 1
        %s228 = scalar_lea.sflag [#allocation7], %s227
        %s229 = sand.u32 %s151, 1
        %s230 = smul.addr %s229, 128
        %s231 = scalar_lea.vmem [#allocation6], %s230
        %p232 = scmp.lt.s32.totalorder %s23, 1
        %s233 = scalar_select %p232, %s23, 1
        %s234 = smul.addr %s233, 32
        %s235 = smul.addr %s234, 8
        %s236 = scalar_lea.vmem %s0, %s235
        %s237 = smul.u32 16, %s24
        %p238 = scmp.eq.s32.totalorder %s24, 0
        // Predicated region
        $region41: #{tpu_custom_call.1} parent=39 // pred_check
          %p239 = pneg %p238
        $region42: #{tpu_custom_call.1} parent=39 // pred_check_branch
          %241 = sbr.rel (%p239) target = $region44
        $region43: #{tpu_custom_call.1} parent=39 // pred_region
          %v242 = vld [vmem:[%s236] sm:$0xff]
          %v243 = vld [vmem:[%s236 + $0x8] sm:$0xff]
          %v244 = vld [vmem:[%s236 + $0x10] sm:$0xff]
          %v245 = vld [vmem:[%s236 + $0x18] sm:$0xff]
          %v246 = vld [vmem:[%s236 + $0x20] sm:$0xff]
          %v247 = vld [vmem:[%s236 + $0x28] sm:$0xff]
          %v248 = vld [vmem:[%s236 + $0x30] sm:$0xff]
          %v249 = vld [vmem:[%s236 + $0x38] sm:$0xff]
          %v250 = vld [vmem:[%s236 + $0x40] sm:$0xff]
          %v251 = vld [vmem:[%s236 + $0x48] sm:$0xff]
          %v252 = vld [vmem:[%s236 + $0x50] sm:$0xff]
          %v253 = vld [vmem:[%s236 + $0x58] sm:$0xff]
          %v254 = vld [vmem:[%s236 + $0x60] sm:$0xff]
          %v255 = vld [vmem:[%s236 + $0x68] sm:$0xff]
          %v256 = vld [vmem:[%s236 + $0x70] sm:$0xff]
          %v257 = vld [vmem:[%s236 + $0x78] sm:$0xff]
          %v258 = vld [vmem:[%s236 + $0x80] sm:$0xff]
          %v259 = vld [vmem:[%s236 + $0x88] sm:$0xff]
          %v260 = vld [vmem:[%s236 + $0x90] sm:$0xff]
          %v261 = vld [vmem:[%s236 + $0x98] sm:$0xff]
          %v262 = vld [vmem:[%s236 + $0xa0] sm:$0xff]
          %v263 = vld [vmem:[%s236 + $0xa8] sm:$0xff]
          %v264 = vld [vmem:[%s236 + $0xb0] sm:$0xff]
          %v265 = vld [vmem:[%s236 + $0xb8] sm:$0xff]
          %v266 = vld [vmem:[%s236 + $0xc0] sm:$0xff]
          %v267 = vld [vmem:[%s236 + $0xc8] sm:$0xff]
          %v268 = vld [vmem:[%s236 + $0xd0] sm:$0xff]
          %v269 = vld [vmem:[%s236 + $0xd8] sm:$0xff]
          %v270 = vld [vmem:[%s236 + $0xe0] sm:$0xff]
          %v271 = vld [vmem:[%s236 + $0xe8] sm:$0xff]
          %v272 = vld [vmem:[%s236 + $0xf0] sm:$0xff]
          %v273 = vld [vmem:[%s236 + $0xf8] sm:$0xff]
          %v274 = vld [vmem:[%s1] sm:$0xff]
          %v275 = vld [vmem:[%s1 + $0x8] sm:$0xff]
          %v276 = vld [vmem:[%s1 + $0x10] sm:$0xff]
          %v277 = vld [vmem:[%s1 + $0x18] sm:$0xff]
          %v278 = vld [vmem:[%s1 + $0x20] sm:$0xff]
          %v279 = vld [vmem:[%s1 + $0x28] sm:$0xff]
          %v280 = vld [vmem:[%s1 + $0x30] sm:$0xff]
          %v281 = vld [vmem:[%s1 + $0x38] sm:$0xff]
          %v282 = vld [vmem:[%s1 + $0x40] sm:$0xff]
          %v283 = vld [vmem:[%s1 + $0x48] sm:$0xff]
          %v284 = vld [vmem:[%s1 + $0x50] sm:$0xff]
          %v285 = vld [vmem:[%s1 + $0x58] sm:$0xff]
          %v286 = vld [vmem:[%s1 + $0x60] sm:$0xff]
          %v287 = vld [vmem:[%s1 + $0x68] sm:$0xff]
          %v288 = vld [vmem:[%s1 + $0x70] sm:$0xff]
          %v289 = vld [vmem:[%s1 + $0x78] sm:$0xff]
          %v290 = vld [vmem:[%s2] sm:$0x1]
          %v292 = vlaneseq
          %v293 = vshrl.u32 %v292, 7
          %v294 = vsub.s32 0, %v293
          %v295 = vrot.slane %v290, %v294
          %297 = vmatprep.subr.mxu0 0.0
          %298 = vmatpush1.msra.mxu0 %v274
          %299 = vmatprep.subr.mxu0 0.0
          %300 = vmatpush1.msra.mxu0 %v275
          %301 = vmatprep.subr.mxu0 0.0
          %302 = vmatpush1.msra.mxu0 %v276
          %303 = vmatprep.subr.mxu0 0.0
          %304 = vmatpush1.msra.mxu0 %v277
          %305 = vmatprep.subr.mxu0 0.0
          %306 = vmatpush1.msra.mxu0 %v278
          %307 = vmatprep.subr.mxu0 0.0
          %308 = vmatpush1.msra.mxu0 %v279
          %309 = vmatprep.subr.mxu0 0.0
          %310 = vmatpush1.msra.mxu0 %v280
          %311 = vmatprep.subr.mxu0 0.0
          %312 = vmatpush1.msra.mxu0 %v281
          %313 = vmatprep.subr.mxu0 0.0
          %314 = vmatpush1.msra.mxu0 %v282
          %315 = vmatprep.subr.mxu0 0.0
          %316 = vmatpush1.msra.mxu0 %v283
          %317 = vmatprep.subr.mxu0 0.0
          %318 = vmatpush1.msra.mxu0 %v284
          %319 = vmatprep.subr.mxu0 0.0
          %320 = vmatpush1.msra.mxu0 %v285
          %321 = vmatprep.subr.mxu0 0.0
          %322 = vmatpush1.msra.mxu0 %v286
          %323 = vmatprep.subr.mxu0 0.0
          %324 = vmatpush1.msra.mxu0 %v287
          %325 = vmatprep.subr.mxu0 0.0
          %326 = vmatpush1.msra.mxu0 %v288
          %327 = vmatprep.subr.mxu0 0.0
          %328 = vmatpush1.msra.mxu0 %v289
          %329 = vmatprep.subr.mxu0 0.0
          %330 = vmatpush1.msra.mxu0 0.0
          %331 = vmatprep.subr.mxu0 0.0
          %332 = vmatpush1.msra.mxu0 0.0
          %333 = vmatprep.subr.mxu0 0.0
          %334 = vmatpush1.msra.mxu0 0.0
          %335 = vmatprep.subr.mxu0 0.0
          %336 = vmatpush1.msra.mxu0 0.0
          %337 = vmatprep.subr.mxu0 0.0
          %338 = vmatpush1.msra.mxu0 0.0
          %339 = vmatprep.subr.mxu0 0.0
          %340 = vmatpush1.msra.mxu0 0.0
          %341 = vmatprep.subr.mxu0 0.0
          %342 = vmatpush1.msra.mxu0 0.0
          %343 = vmatprep.subr.mxu0 0.0
          %344 = vmatpush1.msra.mxu0 0.0
          %345 = vmatprep.subr.mxu0 0.0
          %346 = vmatpush1.msra.mxu0 0.0
          %347 = vmatprep.subr.mxu0 0.0
          %348 = vmatpush1.msra.mxu0 0.0
          %349 = vmatprep.subr.mxu0 0.0
          %350 = vmatpush1.msra.mxu0 0.0
          %351 = vmatprep.subr.mxu0 0.0
          %352 = vmatpush1.msra.mxu0 0.0
          %353 = vmatprep.subr.mxu0 0.0
          %354 = vmatpush1.msra.mxu0 0.0
          %355 = vmatprep.subr.mxu0 0.0
          %356 = vmatpush1.msra.mxu0 0.0
          %357 = vmatprep.subr.mxu0 0.0
          %358 = vmatpush1.msra.mxu0 0.0
          %359 = vmatprep.subr.mxu0 0.0
          %360 = vmatpush1.msra.mxu0 0.0
          %361 = vmatprep.mubr.f32.mxu0 0.0
          %362 = vmatmul.mubr.f32.gmra.mrb[0].mxu0 %v242
          %v363 = vpop.f32.mrb[0].mxu0
          %v364 = vadd.f32 %v295, %v363
          %v365 = vpop.f32.mrb[0].mxu0
          %366 = vmatprep.mubr.f32.mxu0 0.0
          %367 = vmatmul.mubr.f32.gmra.mrb[0].mxu0 %v243
          %v368 = vpop.f32.mrb[0].mxu0
          %v369 = vadd.f32 %v295, %v368
          %v370 = vpop.f32.mrb[0].mxu0
          %371 = vmatprep.mubr.f32.mxu0 0.0
          %372 = vmatmul.mubr.f32.gmra.mrb[0].mxu0 %v244
          %v373 = vpop.f32.mrb[0].mxu0
          %v374 = vadd.f32 %v295, %v373
          %v375 = vpop.f32.mrb[0].mxu0
          %376 = vmatprep.mubr.f32.mxu0 0.0
          %377 = vmatmul.mubr.f32.gmra.mrb[0].mxu0 %v245
          %v378 = vpop.f32.mrb[0].mxu0
          %v379 = vadd.f32 %v295, %v378
          %v380 = vpop.f32.mrb[0].mxu0
          %381 = vmatprep.mubr.f32.mxu0 0.0
          %382 = vmatmul.mubr.f32.gmra.mrb[0].mxu0 %v246
          %v383 = vpop.f32.mrb[0].mxu0
          %v384 = vadd.f32 %v295, %v383
          %v385 = vpop.f32.mrb[0].mxu0
          %386 = vmatprep.mubr.f32.mxu0 0.0
          %387 = vmatmul.mubr.f32.gmra.mrb[0].mxu0 %v247
          %v388 = vpop.f32.mrb[0].mxu0
          %v389 = vadd.f32 %v295, %v388
          %v390 = vpop.f32.mrb[0].mxu0
          %391 = vmatprep.mubr.f32.mxu0 0.0
          %392 = vmatmul.mubr.f32.gmra.mrb[0].mxu0 %v248
          %v393 = vpop.f32.mrb[0].mxu0
          %v394 = vadd.f32 %v295, %v393
          %v395 = vpop.f32.mrb[0].mxu0
          %396 = vmatprep.mubr.f32.mxu0 0.0
          %397 = vmatmul.mubr.f32.gmra.mrb[0].mxu0 %v249
          %v398 = vpop.f32.mrb[0].mxu0
          %v399 = vadd.f32 %v295, %v398
          %v400 = vpop.f32.mrb[0].mxu0
          %401 = vmatprep.mubr.f32.mxu0 0.0
          %402 = vmatmul.mubr.f32.gmra.mrb[0].mxu0 %v250
          %v403 = vpop.f32.mrb[0].mxu0
          %v404 = vadd.f32 %v295, %v403
          %v405 = vpop.f32.mrb[0].mxu0
          %406 = vmatprep.mubr.f32.mxu0 0.0
          %407 = vmatmul.mubr.f32.gmra.mrb[0].mxu0 %v251
          %v408 = vpop.f32.mrb[0].mxu0
          %v409 = vadd.f32 %v295, %v408
          %v410 = vpop.f32.mrb[0].mxu0
          %411 = vmatprep.mubr.f32.mxu0 0.0
          %412 = vmatmul.mubr.f32.gmra.mrb[0].mxu0 %v252
          %v413 = vpop.f32.mrb[0].mxu0
          %v414 = vadd.f32 %v295, %v413
          %v415 = vpop.f32.mrb[0].mxu0
          %416 = vmatprep.mubr.f32.mxu0 0.0
          %417 = vmatmul.mubr.f32.gmra.mrb[0].mxu0 %v253
          %v418 = vpop.f32.mrb[0].mxu0
          %v419 = vadd.f32 %v295, %v418
          %v420 = vpop.f32.mrb[0].mxu0
          %421 = vmatprep.mubr.f32.mxu0 0.0
          %422 = vmatmul.mubr.f32.gmra.mrb[0].mxu0 %v254
          %v423 = vpop.f32.mrb[0].mxu0
          %v424 = vadd.f32 %v295, %v423
          %v425 = vpop.f32.mrb[0].mxu0
          %426 = vmatprep.mubr.f32.mxu0 0.0
          %427 = vmatmul.mubr.f32.gmra.mrb[0].mxu0 %v255
          %v428 = vpop.f32.mrb[0].mxu0
          %v429 = vadd.f32 %v295, %v428
          %v430 = vpop.f32.mrb[0].mxu0
          %431 = vmatprep.mubr.f32.mxu0 0.0
          %432 = vmatmul.mubr.f32.gmra.mrb[0].mxu0 %v256
          %v433 = vpop.f32.mrb[0].mxu0
          %v434 = vadd.f32 %v295, %v433
          %v435 = vpop.f32.mrb[0].mxu0
          %436 = vmatprep.mubr.f32.mxu0 0.0
          %437 = vmatmul.mubr.f32.gmra.mrb[0].mxu0 %v257
          %v438 = vpop.f32.mrb[0].mxu0
          %v439 = vadd.f32 %v295, %v438
          %v440 = vpop.f32.mrb[0].mxu0
          %441 = vmatprep.mubr.f32.mxu0 0.0
          %442 = vmatmul.mubr.f32.gmra.mrb[0].mxu0 %v258
          %v443 = vpop.f32.mrb[0].mxu0
          %v444 = vadd.f32 %v295, %v443
          %v445 = vpop.f32.mrb[0].mxu0
          %446 = vmatprep.mubr.f32.mxu0 0.0
          %447 = vmatmul.mubr.f32.gmra.mrb[0].mxu0 %v259
          %v448 = vpop.f32.mrb[0].mxu0
          %v449 = vadd.f32 %v295, %v448
          %v450 = vpop.f32.mrb[0].mxu0
          %451 = vmatprep.mubr.f32.mxu0 0.0
          %452 = vmatmul.mubr.f32.gmra.mrb[0].mxu0 %v260
          %v453 = vpop.f32.mrb[0].mxu0
          %v454 = vadd.f32 %v295, %v453
          %v455 = vpop.f32.mrb[0].mxu0
          %456 = vmatprep.mubr.f32.mxu0 0.0
          %457 = vmatmul.mubr.f32.gmra.mrb[0].mxu0 %v261
          %v458 = vpop.f32.mrb[0].mxu0
          %v459 = vadd.f32 %v295, %v458
          %v460 = vpop.f32.mrb[0].mxu0
          %461 = vmatprep.mubr.f32.mxu0 0.0
          %462 = vmatmul.mubr.f32.gmra.mrb[0].mxu0 %v262
          %v463 = vpop.f32.mrb[0].mxu0
          %v464 = vadd.f32 %v295, %v463
          %v465 = vpop.f32.mrb[0].mxu0
          %466 = vmatprep.mubr.f32.mxu0 0.0
          %467 = vmatmul.mubr.f32.gmra.mrb[0].mxu0 %v263
          %v468 = vpop.f32.mrb[0].mxu0
          %v469 = vadd.f32 %v295, %v468
          %v470 = vpop.f32.mrb[0].mxu0
          %471 = vmatprep.mubr.f32.mxu0 0.0
          %472 = vmatmul.mubr.f32.gmra.mrb[0].mxu0 %v264
          %v473 = vpop.f32.mrb[0].mxu0
          %v474 = vadd.f32 %v295, %v473
          %v475 = vpop.f32.mrb[0].mxu0
          %476 = vmatprep.mubr.f32.mxu0 0.0
          %477 = vmatmul.mubr.f32.gmra.mrb[0].mxu0 %v265
          %v478 = vpop.f32.mrb[0].mxu0
          %v479 = vadd.f32 %v295, %v478
          %v480 = vpop.f32.mrb[0].mxu0
          %481 = vmatprep.mubr.f32.mxu0 0.0
          %482 = vmatmul.mubr.f32.gmra.mrb[0].mxu0 %v266
          %v483 = vpop.f32.mrb[0].mxu0
          %v484 = vadd.f32 %v295, %v483
          %v485 = vpop.f32.mrb[0].mxu0
          %486 = vmatprep.mubr.f32.mxu0 0.0
          %487 = vmatmul.mubr.f32.gmra.mrb[0].mxu0 %v267
          %v488 = vpop.f32.mrb[0].mxu0
          %v489 = vadd.f32 %v295, %v488
          %v490 = vpop.f32.mrb[0].mxu0
          %491 = vmatprep.mubr.f32.mxu0 0.0
          %492 = vmatmul.mubr.f32.gmra.mrb[0].mxu0 %v268
          %v493 = vpop.f32.mrb[0].mxu0
          %v494 = vadd.f32 %v295, %v493
          %v495 = vpop.f32.mrb[0].mxu0
          %496 = vmatprep.mubr.f32.mxu0 0.0
          %497 = vmatmul.mubr.f32.gmra.mrb[0].mxu0 %v269
          %v498 = vpop.f32.mrb[0].mxu0
          %v499 = vadd.f32 %v295, %v498
          %v500 = vpop.f32.mrb[0].mxu0
          %501 = vmatprep.mubr.f32.mxu0 0.0
          %502 = vmatmul.mubr.f32.gmra.mrb[0].mxu0 %v270
          %v503 = vpop.f32.mrb[0].mxu0
          %v504 = vadd.f32 %v295, %v503
          %v505 = vpop.f32.mrb[0].mxu0
          %506 = vmatprep.mubr.f32.mxu0 0.0
          %507 = vmatmul.mubr.f32.gmra.mrb[0].mxu0 %v271
          %v508 = vpop.f32.mrb[0].mxu0
          %v509 = vadd.f32 %v295, %v508
          %v510 = vpop.f32.mrb[0].mxu0
          %511 = vmatprep.mubr.f32.mxu0 0.0
          %512 = vmatmul.mubr.f32.gmra.mrb[0].mxu0 %v272
          %v513 = vpop.f32.mrb[0].mxu0
          %v514 = vadd.f32 %v295, %v513
          %v515 = vpop.f32.mrb[0].mxu0
          %516 = vmatprep.mubr.f32.mxu0 0.0
          %517 = vmatmul.mubr.f32.gmra.mrb[0].mxu0 %v273
          %v518 = vpop.f32.mrb[0].mxu0
          %v519 = vadd.f32 %v295, %v518
          %v520 = vpop.f32.mrb[0].mxu0
          %521 = vdwg.mxu0
          %v522 = vmul.f32 %v364, 0.17677669
          %v523 = vmul.f32 %v369, 0.17677669
          %v524 = vmul.f32 %v374, 0.17677669
          %v525 = vmul.f32 %v379, 0.17677669
          %v526 = vmul.f32 %v384, 0.17677669
          %v527 = vmul.f32 %v389, 0.17677669
          %v528 = vmul.f32 %v394, 0.17677669
          %v529 = vmul.f32 %v399, 0.17677669
          %v530 = vmul.f32 %v404, 0.17677669
          %v531 = vmul.f32 %v409, 0.17677669
          %v532 = vmul.f32 %v414, 0.17677669
          %v533 = vmul.f32 %v419, 0.17677669
          %v534 = vmul.f32 %v424, 0.17677669
          %v535 = vmul.f32 %v429, 0.17677669
          %v536 = vmul.f32 %v434, 0.17677669
          %v537 = vmul.f32 %v439, 0.17677669
          %v538 = vmul.f32 %v444, 0.17677669
          %v539 = vmul.f32 %v449, 0.17677669
          %v540 = vmul.f32 %v454, 0.17677669
          %v541 = vmul.f32 %v459, 0.17677669
          %v542 = vmul.f32 %v464, 0.17677669
          %v543 = vmul.f32 %v469, 0.17677669
          %v544 = vmul.f32 %v474, 0.17677669
          %v545 = vmul.f32 %v479, 0.17677669
          %v546 = vmul.f32 %v484, 0.17677669
          %v547 = vmul.f32 %v489, 0.17677669
          %v548 = vmul.f32 %v494, 0.17677669
          %v549 = vmul.f32 %v499, 0.17677669
          %v550 = vmul.f32 %v504, 0.17677669
          %v551 = vmul.f32 %v509, 0.17677669
          %v552 = vmul.f32 %v514, 0.17677669
          %v553 = vmul.f32 %v519, 0.17677669
          %vm554 = vcmask 261120
          %555 = vst.msk [vmem:[#allocation2] sm:$0xff] %vm554, %v522
          %556 = vst.msk [vmem:[#allocation2 + $0x8] sm:$0xff] %vm554, %v523
          %557 = vst.msk [vmem:[#allocation2 + $0x10] sm:$0xff] %vm554, %v524
          %558 = vst.msk [vmem:[#allocation2 + $0x18] sm:$0xff] %vm554, %v525
          %559 = vst.msk [vmem:[#allocation2 + $0x20] sm:$0xff] %vm554, %v526
          %560 = vst.msk [vmem:[#allocation2 + $0x28] sm:$0xff] %vm554, %v527
          %561 = vst.msk [vmem:[#allocation2 + $0x30] sm:$0xff] %vm554, %v528
          %562 = vst.msk [vmem:[#allocation2 + $0x38] sm:$0xff] %vm554, %v529
          %563 = vst.msk [vmem:[#allocation2 + $0x40] sm:$0xff] %vm554, %v530
          %564 = vst.msk [vmem:[#allocation2 + $0x48] sm:$0xff] %vm554, %v531
          %565 = vst.msk [vmem:[#allocation2 + $0x50] sm:$0xff] %vm554, %v532
          %566 = vst.msk [vmem:[#allocation2 + $0x58] sm:$0xff] %vm554, %v533
          %567 = vst.msk [vmem:[#allocation2 + $0x60] sm:$0xff] %vm554, %v534
          %568 = vst.msk [vmem:[#allocation2 + $0x68] sm:$0xff] %vm554, %v535
          %569 = vst.msk [vmem:[#allocation2 + $0x70] sm:$0xff] %vm554, %v536
          %570 = vst.msk [vmem:[#allocation2 + $0x78] sm:$0xff] %vm554, %v537
          %571 = vst.msk [vmem:[#allocation2 + $0x80] sm:$0xff] %vm554, %v538
          %572 = vst.msk [vmem:[#allocation2 + $0x88] sm:$0xff] %vm554, %v539
          %573 = vst.msk [vmem:[#allocation2 + $0x90] sm:$0xff] %vm554, %v540
          %574 = vst.msk [vmem:[#allocation2 + $0x98] sm:$0xff] %vm554, %v541
          %575 = vst.msk [vmem:[#allocation2 + $0xa0] sm:$0xff] %vm554, %v542
          %576 = vst.msk [vmem:[#allocation2 + $0xa8] sm:$0xff] %vm554, %v543
          %577 = vst.msk [vmem:[#allocation2 + $0xb0] sm:$0xff] %vm554, %v544
          %578 = vst.msk [vmem:[#allocation2 + $0xb8] sm:$0xff] %vm554, %v545
          %579 = vst.msk [vmem:[#allocation2 + $0xc0] sm:$0xff] %vm554, %v546
          %580 = vst.msk [vmem:[#allocation2 + $0xc8] sm:$0xff] %vm554, %v547
          %581 = vst.msk [vmem:[#allocation2 + $0xd0] sm:$0xff] %vm554, %v548
          %582 = vst.msk [vmem:[#allocation2 + $0xd8] sm:$0xff] %vm554, %v549
          %583 = vst.msk [vmem:[#allocation2 + $0xe0] sm:$0xff] %vm554, %v550
          %584 = vst.msk [vmem:[#allocation2 + $0xe8] sm:$0xff] %vm554, %v551
          %585 = vst.msk [vmem:[#allocation2 + $0xf0] sm:$0xff] %vm554, %v552
          %586 = vst.msk [vmem:[#allocation2 + $0xf8] sm:$0xff] %vm554, %v553
          %s587 = scalar_lea.vmem %s1, 512
          %v588 = vld [vmem:[%s587] sm:$0xff]
          %v589 = vld [vmem:[%s587 + $0x8] sm:$0xff]
          %v590 = vld [vmem:[%s587 + $0x10] sm:$0xff]
          %v591 = vld [vmem:[%s587 + $0x18] sm:$0xff]
          %v592 = vld [vmem:[%s587 + $0x20] sm:$0xff]
          %v593 = vld [vmem:[%s587 + $0x28] sm:$0xff]
          %v594 = vld [vmem:[%s587 + $0x30] sm:$0xff]
          %v595 = vld [vmem:[%s587 + $0x38] sm:$0xff]
          %v596 = vld [vmem:[%s587 + $0x40] sm:$0xff]
          %v597 = vld [vmem:[%s587 + $0x48] sm:$0xff]
          %v598 = vld [vmem:[%s587 + $0x50] sm:$0xff]
          %v599 = vld [vmem:[%s587 + $0x58] sm:$0xff]
          %v600 = vld [vmem:[%s587 + $0x60] sm:$0xff]
          %v601 = vld [vmem:[%s587 + $0x68] sm:$0xff]
          %v602 = vld [vmem:[%s587 + $0x70] sm:$0xff]
          %v603 = vld [vmem:[%s587 + $0x78] sm:$0xff]
          %s604 = scalar_lea.vmem %s2, 4
          %v605 = vld [vmem:[%s604] sm:$0x1]
          %v607 = vlaneseq
          %v608 = vshrl.u32 %v607, 7
          %v609 = vsub.s32 0, %v608
          %v610 = vrot.slane %v605, %v609
          %612 = vmatprep.subr.mxu0 0.0
          %613 = vmatpush1.msra.mxu0 %v588
          %614 = vmatprep.subr.mxu0 0.0
          %615 = vmatpush1.msra.mxu0 %v589
          %616 = vmatprep.subr.mxu0 0.0
          %617 = vmatpush1.msra.mxu0 %v590
          %618 = vmatprep.subr.mxu0 0.0
          %619 = vmatpush1.msra.mxu0 %v591
          %620 = vmatprep.subr.mxu0 0.0
          %621 = vmatpush1.msra.mxu0 %v592
          %622 = vmatprep.subr.mxu0 0.0
          %623 = vmatpush1.msra.mxu0 %v593
          %624 = vmatprep.subr.mxu0 0.0
          %625 = vmatpush1.msra.mxu0 %v594
          %626 = vmatprep.subr.mxu0 0.0
          %627 = vmatpush1.msra.mxu0 %v595
          %628 = vmatprep.subr.mxu0 0.0
          %629 = vmatpush1.msra.mxu0 %v596
          %630 = vmatprep.subr.mxu0 0.0
          %631 = vmatpush1.msra.mxu0 %v597
          %632 = vmatprep.subr.mxu0 0.0
          %633 = vmatpush1.msra.mxu0 %v598
          %634 = vmatprep.subr.mxu0 0.0
          %635 = vmatpush1.msra.mxu0 %v599
          %636 = vmatprep.subr.mxu0 0.0
          %637 = vmatpush1.msra.mxu0 %v600
          %638 = vmatprep.subr.mxu0 0.0
          %639 = vmatpush1.msra.mxu0 %v601
          %640 = vmatprep.subr.mxu0 0.0
          %641 = vmatpush1.msra.mxu0 %v602
          %642 = vmatprep.subr.mxu0 0.0
          %643 = vmatpush1.msra.mxu0 %v603
          %644 = vmatprep.subr.mxu0 0.0
          %645 = vmatpush1.msra.mxu0 0.0
          %646 = vmatprep.subr.mxu0 0.0
          %647 = vmatpush1.msra.mxu0 0.0
          %648 = vmatprep.subr.mxu0 0.0
          %649 = vmatpush1.msra.mxu0 0.0
          %650 = vmatprep.subr.mxu0 0.0
          %651 = vmatpush1.msra.mxu0 0.0
          %652 = vmatprep.subr.mxu0 0.0
          %653 = vmatpush1.msra.mxu0 0.0
          %654 = vmatprep.subr.mxu0 0.0
          %655 = vmatpush1.msra.mxu0 0.0
          %656 = vmatprep.subr.mxu0 0.0
          %657 = vmatpush1.msra.mxu0 0.0
          %658 = vmatprep.subr.mxu0 0.0
          %659 = vmatpush1.msra.mxu0 0.0
          %660 = vmatprep.subr.mxu0 0.0
          %661 = vmatpush1.msra.mxu0 0.0
          %662 = vmatprep.subr.mxu0 0.0
          %663 = vmatpush1.msra.mxu0 0.0
          %664 = vmatprep.subr.mxu0 0.0
          %665 = vmatpush1.msra.mxu0 0.0
          %666 = vmatprep.subr.mxu0 0.0
          %667 = vmatpush1.msra.mxu0 0.0
          %668 = vmatprep.subr.mxu0 0.0
          %669 = vmatpush1.msra.mxu0 0.0
          %670 = vmatprep.subr.mxu0 0.0
          %671 = vmatpush1.msra.mxu0 0.0
          %672 = vmatprep.subr.mxu0 0.0
          %673 = vmatpush1.msra.mxu0 0.0
          %674 = vmatprep.subr.mxu0 0.0
          %675 = vmatpush1.msra.mxu0 0.0
          %676 = vmatprep.mubr.f32.mxu0 0.0
          %677 = vmatmul.mubr.f32.gmra.mrb[0].mxu0 %v242
          %v678 = vpop.f32.mrb[0].mxu0
          %v679 = vadd.f32 %v610, %v678
          %v680 = vpop.f32.mrb[0].mxu0
          %681 = vmatprep.mubr.f32.mxu0 0.0
          %682 = vmatmul.mubr.f32.gmra.mrb[0].mxu0 %v243
          %v683 = vpop.f32.mrb[0].mxu0
          %v684 = vadd.f32 %v610, %v683
          %v685 = vpop.f32.mrb[0].mxu0
          %686 = vmatprep.mubr.f32.mxu0 0.0
          %687 = vmatmul.mubr.f32.gmra.mrb[0].mxu0 %v244
          %v688 = vpop.f32.mrb[0].mxu0
          %v689 = vadd.f32 %v610, %v688
          %v690 = vpop.f32.mrb[0].mxu0
          %691 = vmatprep.mubr.f32.mxu0 0.0
          %692 = vmatmul.mubr.f32.gmra.mrb[0].mxu0 %v245
          %v693 = vpop.f32.mrb[0].mxu0
          %v694 = vadd.f32 %v610, %v693
          %v695 = vpop.f32.mrb[0].mxu0
          %696 = vmatprep.mubr.f32.mxu0 0.0
          %697 = vmatmul.mubr.f32.gmra.mrb[0].mxu0 %v246
          %v698 = vpop.f32.mrb[0].mxu0
          %v699 = vadd.f32 %v610, %v698
          %v700 = vpop.f32.mrb[0].mxu0
          %701 = vmatprep.mubr.f32.mxu0 0.0
          %702 = vmatmul.mubr.f32.gmra.mrb[0].mxu0 %v247
          %v703 = vpop.f32.mrb[0].mxu0
          %v704 = vadd.f32 %v610, %v703
          %v705 = vpop.f32.mrb[0].mxu0
          %706 = vmatprep.mubr.f32.mxu0 0.0
          %707 = vmatmul.mubr.f32.gmra.mrb[0].mxu0 %v248
          %v708 = vpop.f32.mrb[0].mxu0
          %v709 = vadd.f32 %v610, %v708
          %v710 = vpop.f32.mrb[0].mxu0
          %711 = vmatprep.mubr.f32.mxu0 0.0
          %712 = vmatmul.mubr.f32.gmra.mrb[0].mxu0 %v249
          %v713 = vpop.f32.mrb[0].mxu0
          %v714 = vadd.f32 %v610, %v713
          %v715 = vpop.f32.mrb[0].mxu0
          %716 = vmatprep.mubr.f32.mxu0 0.0
          %717 = vmatmul.mubr.f32.gmra.mrb[0].mxu0 %v250
          %v718 = vpop.f32.mrb[0].mxu0
          %v719 = vadd.f32 %v610, %v718
          %v720 = vpop.f32.mrb[0].mxu0
          %721 = vmatprep.mubr.f32.mxu0 0.0
          %722 = vmatmul.mubr.f32.gmra.mrb[0].mxu0 %v251
          %v723 = vpop.f32.mrb[0].mxu0
          %v724 = vadd.f32 %v610, %v723
          %v725 = vpop.f32.mrb[0].mxu0
          %726 = vmatprep.mubr.f32.mxu0 0.0
          %727 = vmatmul.mubr.f32.gmra.mrb[0].mxu0 %v252
          %v728 = vpop.f32.mrb[0].mxu0
          %v729 = vadd.f32 %v610, %v728
          %v730 = vpop.f32.mrb[0].mxu0
          %731 = vmatprep.mubr.f32.mxu0 0.0
          %732 = vmatmul.mubr.f32.gmra.mrb[0].mxu0 %v253
          %v733 = vpop.f32.mrb[0].mxu0
          %v734 = vadd.f32 %v610, %v733
          %v735 = vpop.f32.mrb[0].mxu0
          %736 = vmatprep.mubr.f32.mxu0 0.0
          %737 = vmatmul.mubr.f32.gmra.mrb[0].mxu0 %v254
          %v738 = vpop.f32.mrb[0].mxu0
          %v739 = vadd.f32 %v610, %v738
          %v740 = vpop.f32.mrb[0].mxu0
          %741 = vmatprep.mubr.f32.mxu0 0.0
          %742 = vmatmul.mubr.f32.gmra.mrb[0].mxu0 %v255
          %v743 = vpop.f32.mrb[0].mxu0
          %v744 = vadd.f32 %v610, %v743
          %v745 = vpop.f32.mrb[0].mxu0
          %746 = vmatprep.mubr.f32.mxu0 0.0
          %747 = vmatmul.mubr.f32.gmra.mrb[0].mxu0 %v256
          %v748 = vpop.f32.mrb[0].mxu0
          %v749 = vadd.f32 %v610, %v748
          %v750 = vpop.f32.mrb[0].mxu0
          %751 = vmatprep.mubr.f32.mxu0 0.0
          %752 = vmatmul.mubr.f32.gmra.mrb[0].mxu0 %v257
          %v753 = vpop.f32.mrb[0].mxu0
          %v754 = vadd.f32 %v610, %v753
          %v755 = vpop.f32.mrb[0].mxu0
          %756 = vmatprep.mubr.f32.mxu0 0.0
          %757 = vmatmul.mubr.f32.gmra.mrb[0].mxu0 %v258
          %v758 = vpop.f32.mrb[0].mxu0
          %v759 = vadd.f32 %v610, %v758
          %v760 = vpop.f32.mrb[0].mxu0
          %761 = vmatprep.mubr.f32.mxu0 0.0
          %762 = vmatmul.mubr.f32.gmra.mrb[0].mxu0 %v259
          %v763 = vpop.f32.mrb[0].mxu0
          %v764 = vadd.f32 %v610, %v763
          %v765 = vpop.f32.mrb[0].mxu0
          %766 = vmatprep.mubr.f32.mxu0 0.0
          %767 = vmatmul.mubr.f32.gmra.mrb[0].mxu0 %v260
          %v768 = vpop.f32.mrb[0].mxu0
          %v769 = vadd.f32 %v610, %v768
          %v770 = vpop.f32.mrb[0].mxu0
          %771 = vmatprep.mubr.f32.mxu0 0.0
          %772 = vmatmul.mubr.f32.gmra.mrb[0].mxu0 %v261
          %v773 = vpop.f32.mrb[0].mxu0
          %v774 = vadd.f32 %v610, %v773
          %v775 = vpop.f32.mrb[0].mxu0
          %776 = vmatprep.mubr.f32.mxu0 0.0
          %777 = vmatmul.mubr.f32.gmra.mrb[0].mxu0 %v262
          %v778 = vpop.f32.mrb[0].mxu0
          %v779 = vadd.f32 %v610, %v778
          %v780 = vpop.f32.mrb[0].mxu0
          %781 = vmatprep.mubr.f32.mxu0 0.0
          %782 = vmatmul.mubr.f32.gmra.mrb[0].mxu0 %v263
          %v783 = vpop.f32.mrb[0].mxu0
          %v784 = vadd.f32 %v610, %v783
          %v785 = vpop.f32.mrb[0].mxu0
          %786 = vmatprep.mubr.f32.mxu0 0.0
          %787 = vmatmul.mubr.f32.gmra.mrb[0].mxu0 %v264
          %v788 = vpop.f32.mrb[0].mxu0
          %v789 = vadd.f32 %v610, %v788
          %v790 = vpop.f32.mrb[0].mxu0
          %791 = vmatprep.mubr.f32.mxu0 0.0
          %792 = vmatmul.mubr.f32.gmra.mrb[0].mxu0 %v265
          %v793 = vpop.f32.mrb[0].mxu0
          %v794 = vadd.f32 %v610, %v793
          %v795 = vpop.f32.mrb[0].mxu0
          %796 = vmatprep.mubr.f32.mxu0 0.0
          %797 = vmatmul.mubr.f32.gmra.mrb[0].mxu0 %v266
          %v798 = vpop.f32.mrb[0].mxu0
          %v799 = vadd.f32 %v610, %v798
          %v800 = vpop.f32.mrb[0].mxu0
          %801 = vmatprep.mubr.f32.mxu0 0.0
          %802 = vmatmul.mubr.f32.gmra.mrb[0].mxu0 %v267
          %v803 = vpop.f32.mrb[0].mxu0
          %v804 = vadd.f32 %v610, %v803
          %v805 = vpop.f32.mrb[0].mxu0
          %806 = vmatprep.mubr.f32.mxu0 0.0
          %807 = vmatmul.mubr.f32.gmra.mrb[0].mxu0 %v268
          %v808 = vpop.f32.mrb[0].mxu0
          %v809 = vadd.f32 %v610, %v808
          %v810 = vpop.f32.mrb[0].mxu0
          %811 = vmatprep.mubr.f32.mxu0 0.0
          %812 = vmatmul.mubr.f32.gmra.mrb[0].mxu0 %v269
          %v813 = vpop.f32.mrb[0].mxu0
          %v814 = vadd.f32 %v610, %v813
          %v815 = vpop.f32.mrb[0].mxu0
          %816 = vmatprep.mubr.f32.mxu0 0.0
          %817 = vmatmul.mubr.f32.gmra.mrb[0].mxu0 %v270
          %v818 = vpop.f32.mrb[0].mxu0
          %v819 = vadd.f32 %v610, %v818
          %v820 = vpop.f32.mrb[0].mxu0
          %821 = vmatprep.mubr.f32.mxu0 0.0
          %822 = vmatmul.mubr.f32.gmra.mrb[0].mxu0 %v271
          %v823 = vpop.f32.mrb[0].mxu0
          %v824 = vadd.f32 %v610, %v823
          %v825 = vpop.f32.mrb[0].mxu0
          %826 = vmatprep.mubr.f32.mxu0 0.0
          %827 = vmatmul.mubr.f32.gmra.mrb[0].mxu0 %v272
          %v828 = vpop.f32.mrb[0].mxu0
          %v829 = vadd.f32 %v610, %v828
          %v830 = vpop.f32.mrb[0].mxu0
          %831 = vmatprep.mubr.f32.mxu0 0.0
          %832 = vmatmul.mubr.f32.gmra.mrb[0].mxu0 %v273
          %v833 = vpop.f32.mrb[0].mxu0
          %v834 = vadd.f32 %v610, %v833
          %v835 = vpop.f32.mrb[0].mxu0
          %836 = vdwg.mxu0
          %837 = vxpose.xlu0.b32.start [1/16] %v679, 128
          %838 = vxpose.xlu0.b32.cont [2/16] %v684, 128
          %839 = vxpose.xlu0.b32.cont [3/16] %v689, 128
          %840 = vxpose.xlu0.b32.cont [4/16] %v694, 128
          %841 = vxpose.xlu0.b32.cont [5/16] %v699, 128
          %842 = vxpose.xlu0.b32.cont [6/16] %v704, 128
          %843 = vxpose.xlu0.b32.cont [7/16] %v709, 128
          %844 = vxpose.xlu0.b32.cont [8/16] %v714, 128
          %845 = vxpose.xlu0.b32.cont [9/16] %v719, 128
          %846 = vxpose.xlu0.b32.cont [10/16] %v724, 128
          %847 = vxpose.xlu0.b32.cont [11/16] %v729, 128
          %848 = vxpose.xlu0.b32.cont [12/16] %v734, 128
          %849 = vxpose.xlu0.b32.cont [13/16] %v739, 128
          %850 = vxpose.xlu0.b32.cont [14/16] %v744, 128
          %851 = vxpose.xlu0.b32.cont [15/16] %v749, 128
          %852 = vxpose.xlu0.b32.end [16/16] %v754, 128
          %v853 = vpop.trf.xlu0
          %v854 = vpop.trf.xlu0
          %v855 = vpop.trf.xlu0
          %v856 = vpop.trf.xlu0
          %v857 = vpop.trf.xlu0
          %v858 = vpop.trf.xlu0
          %v859 = vpop.trf.xlu0
          %v860 = vpop.trf.xlu0
          %v861 = vpop.trf.xlu0
          %v862 = vpop.trf.xlu0
          %v863 = vpop.trf.xlu0
          %v864 = vpop.trf.xlu0
          %v865 = vpop.trf.xlu0
          %v866 = vpop.trf.xlu0
          %v867 = vpop.trf.xlu0
          %v868 = vpop.trf.xlu0
          %869 = vxpose.xlu0.b32.start [1/16] %v759, 128
          %870 = vxpose.xlu0.b32.cont [2/16] %v764, 128
          %871 = vxpose.xlu0.b32.cont [3/16] %v769, 128
          %872 = vxpose.xlu0.b32.cont [4/16] %v774, 128
          %873 = vxpose.xlu0.b32.cont [5/16] %v779, 128
          %874 = vxpose.xlu0.b32.cont [6/16] %v784, 128
          %875 = vxpose.xlu0.b32.cont [7/16] %v789, 128
          %876 = vxpose.xlu0.b32.cont [8/16] %v794, 128
          %877 = vxpose.xlu0.b32.cont [9/16] %v799, 128
          %878 = vxpose.xlu0.b32.cont [10/16] %v804, 128
          %879 = vxpose.xlu0.b32.cont [11/16] %v809, 128
          %880 = vxpose.xlu0.b32.cont [12/16] %v814, 128
          %881 = vxpose.xlu0.b32.cont [13/16] %v819, 128
          %882 = vxpose.xlu0.b32.cont [14/16] %v824, 128
          %883 = vxpose.xlu0.b32.cont [15/16] %v829, 128
          %884 = vxpose.xlu0.b32.end [16/16] %v834, 128
          %v885 = vpop.trf.xlu0
          %v886 = vpop.trf.xlu0
          %v887 = vpop.trf.xlu0
          %v888 = vpop.trf.xlu0
          %v889 = vpop.trf.xlu0
          %v890 = vpop.trf.xlu0
          %v891 = vpop.trf.xlu0
          %v892 = vpop.trf.xlu0
          %v893 = vpop.trf.xlu0
          %v894 = vpop.trf.xlu0
          %v895 = vpop.trf.xlu0
          %v896 = vpop.trf.xlu0
          %v897 = vpop.trf.xlu0
          %v898 = vpop.trf.xlu0
          %v899 = vpop.trf.xlu0
          %v900 = vpop.trf.xlu0
          %901 = vst [vmem:[#allocation3] sm:$0xff] %v853
          %902 = vst [vmem:[#allocation3 + $0x8] sm:$0xff] %v885
          %903 = vst [vmem:[#allocation3 + $0x10] sm:$0xff] %v854
          %904 = vst [vmem:[#allocation3 + $0x18] sm:$0xff] %v886
          %905 = vst [vmem:[#allocation3 + $0x20] sm:$0xff] %v855
          %906 = vst [vmem:[#allocation3 + $0x28] sm:$0xff] %v887
          %907 = vst [vmem:[#allocation3 + $0x30] sm:$0xff] %v856
          %908 = vst [vmem:[#allocation3 + $0x38] sm:$0xff] %v888
          %s909 = scalar_lea.vmem %s1, 1024
          %v910 = vld [vmem:[%s909] sm:$0xff]
          %v911 = vld [vmem:[%s909 + $0x8] sm:$0xff]
          %v912 = vld [vmem:[%s909 + $0x10] sm:$0xff]
          %v913 = vld [vmem:[%s909 + $0x18] sm:$0xff]
          %v914 = vld [vmem:[%s909 + $0x20] sm:$0xff]
          %v915 = vld [vmem:[%s909 + $0x28] sm:$0xff]
          %v916 = vld [vmem:[%s909 + $0x30] sm:$0xff]
          %v917 = vld [vmem:[%s909 + $0x38] sm:$0xff]
          %v918 = vld [vmem:[%s909 + $0x40] sm:$0xff]
          %v919 = vld [vmem:[%s909 + $0x48] sm:$0xff]
          %v920 = vld [vmem:[%s909 + $0x50] sm:$0xff]
          %v921 = vld [vmem:[%s909 + $0x58] sm:$0xff]
          %v922 = vld [vmem:[%s909 + $0x60] sm:$0xff]
          %v923 = vld [vmem:[%s909 + $0x68] sm:$0xff]
          %v924 = vld [vmem:[%s909 + $0x70] sm:$0xff]
          %v925 = vld [vmem:[%s909 + $0x78] sm:$0xff]
          %s926 = scalar_lea.vmem %s2, 8
          %v927 = vld [vmem:[%s926] sm:$0x1]
          %v929 = vlaneseq
          %v930 = vshrl.u32 %v929, 7
          %v931 = vsub.s32 0, %v930
          %v932 = vrot.slane %v927, %v931
          %934 = vmatprep.subr.mxu0 0.0
          %935 = vmatpush1.msra.mxu0 %v910
          %936 = vmatprep.subr.mxu0 0.0
          %937 = vmatpush1.msra.mxu0 %v911
          %938 = vmatprep.subr.mxu0 0.0
          %939 = vmatpush1.msra.mxu0 %v912
          %940 = vmatprep.subr.mxu0 0.0
          %941 = vmatpush1.msra.mxu0 %v913
          %942 = vmatprep.subr.mxu0 0.0
          %943 = vmatpush1.msra.mxu0 %v914
          %944 = vmatprep.subr.mxu0 0.0
          %945 = vmatpush1.msra.mxu0 %v915
          %946 = vmatprep.subr.mxu0 0.0
          %947 = vmatpush1.msra.mxu0 %v916
          %948 = vmatprep.subr.mxu0 0.0
          %949 = vmatpush1.msra.mxu0 %v917
          %950 = vmatprep.subr.mxu0 0.0
          %951 = vmatpush1.msra.mxu0 %v918
          %952 = vmatprep.subr.mxu0 0.0
          %953 = vmatpush1.msra.mxu0 %v919
          %954 = vmatprep.subr.mxu0 0.0
          %955 = vmatpush1.msra.mxu0 %v920
          %956 = vmatprep.subr.mxu0 0.0
          %957 = vmatpush1.msra.mxu0 %v921
          %958 = vmatprep.subr.mxu0 0.0
          %959 = vmatpush1.msra.mxu0 %v922
          %960 = vmatprep.subr.mxu0 0.0
          %961 = vmatpush1.msra.mxu0 %v923
          %962 = vmatprep.subr.mxu0 0.0
          %963 = vmatpush1.msra.mxu0 %v924
          %964 = vmatprep.subr.mxu0 0.0
          %965 = vmatpush1.msra.mxu0 %v925
          %966 = vmatprep.subr.mxu0 0.0
          %967 = vmatpush1.msra.mxu0 0.0
          %968 = vmatprep.subr.mxu0 0.0
          %969 = vmatpush1.msra.mxu0 0.0
          %970 = vmatprep.subr.mxu0 0.0
          %971 = vmatpush1.msra.mxu0 0.0
          %972 = vmatprep.subr.mxu0 0.0
          %973 = vmatpush1.msra.mxu0 0.0
          %974 = vmatprep.subr.mxu0 0.0
          %975 = vmatpush1.msra.mxu0 0.0
          %976 = vmatprep.subr.mxu0 0.0
          %977 = vmatpush1.msra.mxu0 0.0
          %978 = vmatprep.subr.mxu0 0.0
          %979 = vmatpush1.msra.mxu0 0.0
          %980 = vmatprep.subr.mxu0 0.0
          %981 = vmatpush1.msra.mxu0 0.0
          %982 = vmatprep.subr.mxu0 0.0
          %983 = vmatpush1.msra.mxu0 0.0
          %984 = vmatprep.subr.mxu0 0.0
          %985 = vmatpush1.msra.mxu0 0.0
          %986 = vmatprep.subr.mxu0 0.0
          %987 = vmatpush1.msra.mxu0 0.0
          %988 = vmatprep.subr.mxu0 0.0
          %989 = vmatpush1.msra.mxu0 0.0
          %990 = vmatprep.subr.mxu0 0.0
          %991 = vmatpush1.msra.mxu0 0.0
          %992 = vmatprep.subr.mxu0 0.0
          %993 = vmatpush1.msra.mxu0 0.0
          %994 = vmatprep.subr.mxu0 0.0
          %995 = vmatpush1.msra.mxu0 0.0
          %996 = vmatprep.subr.mxu0 0.0
          %997 = vmatpush1.msra.mxu0 0.0
          %998 = vmatprep.mubr.f32.mxu0 0.0
          %999 = vmatmul.mubr.f32.gmra.mrb[0].mxu0 %v242
          %v1000 = vpop.f32.mrb[0].mxu0
          %v1001 = vadd.f32 %v932, %v1000
          %v1002 = vpop.f32.mrb[0].mxu0
          %1003 = vmatprep.mubr.f32.mxu0 0.0
          %1004 = vmatmul.mubr.f32.gmra.mrb[0].mxu0 %v243
          %v1005 = vpop.f32.mrb[0].mxu0
          %v1006 = vadd.f32 %v932, %v1005
          %v1007 = vpop.f32.mrb[0].mxu0
          %1008 = vmatprep.mubr.f32.mxu0 0.0
          %1009 = vmatmul.mubr.f32.gmra.mrb[0].mxu0 %v244
          %v1010 = vpop.f32.mrb[0].mxu0
          %v1011 = vadd.f32 %v932, %v1010
          %v1012 = vpop.f32.mrb[0].mxu0
          %1013 = vmatprep.mubr.f32.mxu0 0.0
          %1014 = vmatmul.mubr.f32.gmra.mrb[0].mxu0 %v245
          %v1015 = vpop.f32.mrb[0].mxu0
          %v1016 = vadd.f32 %v932, %v1015
          %v1017 = vpop.f32.mrb[0].mxu0
          %1018 = vmatprep.mubr.f32.mxu0 0.0
          %1019 = vmatmul.mubr.f32.gmra.mrb[0].mxu0 %v246
          %v1020 = vpop.f32.mrb[0].mxu0
          %v1021 = vadd.f32 %v932, %v1020
          %v1022 = vpop.f32.mrb[0].mxu0
          %1023 = vmatprep.mubr.f32.mxu0 0.0
          %1024 = vmatmul.mubr.f32.gmra.mrb[0].mxu0 %v247
          %v1025 = vpop.f32.mrb[0].mxu0
          %v1026 = vadd.f32 %v932, %v1025
          %v1027 = vpop.f32.mrb[0].mxu0
          %1028 = vmatprep.mubr.f32.mxu0 0.0
          %1029 = vmatmul.mubr.f32.gmra.mrb[0].mxu0 %v248
          %v1030 = vpop.f32.mrb[0].mxu0
          %v1031 = vadd.f32 %v932, %v1030
          %v1032 = vpop.f32.mrb[0].mxu0
          %1033 = vmatprep.mubr.f32.mxu0 0.0
          %1034 = vmatmul.mubr.f32.gmra.mrb[0].mxu0 %v249
          %v1035 = vpop.f32.mrb[0].mxu0
          %v1036 = vadd.f32 %v932, %v1035
          %v1037 = vpop.f32.mrb[0].mxu0
          %1038 = vmatprep.mubr.f32.mxu0 0.0
          %1039 = vmatmul.mubr.f32.gmra.mrb[0].mxu0 %v250
          %v1040 = vpop.f32.mrb[0].mxu0
          %v1041 = vadd.f32 %v932, %v1040
          %v1042 = vpop.f32.mrb[0].mxu0
          %1043 = vmatprep.mubr.f32.mxu0 0.0
          %1044 = vmatmul.mubr.f32.gmra.mrb[0].mxu0 %v251
          %v1045 = vpop.f32.mrb[0].mxu0
          %v1046 = vadd.f32 %v932, %v1045
          %v1047 = vpop.f32.mrb[0].mxu0
          %1048 = vmatprep.mubr.f32.mxu0 0.0
          %1049 = vmatmul.mubr.f32.gmra.mrb[0].mxu0 %v252
          %v1050 = vpop.f32.mrb[0].mxu0
          %v1051 = vadd.f32 %v932, %v1050
          %v1052 = vpop.f32.mrb[0].mxu0
          %1053 = vmatprep.mubr.f32.mxu0 0.0
          %1054 = vmatmul.mubr.f32.gmra.mrb[0].mxu0 %v253
          %v1055 = vpop.f32.mrb[0].mxu0
          %v1056 = vadd.f32 %v932, %v1055
          %v1057 = vpop.f32.mrb[0].mxu0
          %1058 = vmatprep.mubr.f32.mxu0 0.0
          %1059 = vmatmul.mubr.f32.gmra.mrb[0].mxu0 %v254
          %v1060 = vpop.f32.mrb[0].mxu0
          %v1061 = vadd.f32 %v932, %v1060
          %v1062 = vpop.f32.mrb[0].mxu0
          %1063 = vmatprep.mubr.f32.mxu0 0.0
          %1064 = vmatmul.mubr.f32.gmra.mrb[0].mxu0 %v255
          %v1065 = vpop.f32.mrb[0].mxu0
          %v1066 = vadd.f32 %v932, %v1065
          %v1067 = vpop.f32.mrb[0].mxu0
          %1068 = vmatprep.mubr.f32.mxu0 0.0
          %1069 = vmatmul.mubr.f32.gmra.mrb[0].mxu0 %v256
          %v1070 = vpop.f32.mrb[0].mxu0
          %v1071 = vadd.f32 %v932, %v1070
          %v1072 = vpop.f32.mrb[0].mxu0
          %1073 = vmatprep.mubr.f32.mxu0 0.0
          %1074 = vmatmul.mubr.f32.gmra.mrb[0].mxu0 %v257
          %v1075 = vpop.f32.mrb[0].mxu0
          %v1076 = vadd.f32 %v932, %v1075
          %v1077 = vpop.f32.mrb[0].mxu0
          %1078 = vmatprep.mubr.f32.mxu0 0.0
          %1079 = vmatmul.mubr.f32.gmra.mrb[0].mxu0 %v258
          %v1080 = vpop.f32.mrb[0].mxu0
          %v1081 = vadd.f32 %v932, %v1080
          %v1082 = vpop.f32.mrb[0].mxu0
          %1083 = vmatprep.mubr.f32.mxu0 0.0
          %1084 = vmatmul.mubr.f32.gmra.mrb[0].mxu0 %v259
          %v1085 = vpop.f32.mrb[0].mxu0
          %v1086 = vadd.f32 %v932, %v1085
          %v1087 = vpop.f32.mrb[0].mxu0
          %1088 = vmatprep.mubr.f32.mxu0 0.0
          %1089 = vmatmul.mubr.f32.gmra.mrb[0].mxu0 %v260
          %v1090 = vpop.f32.mrb[0].mxu0
          %v1091 = vadd.f32 %v932, %v1090
          %v1092 = vpop.f32.mrb[0].mxu0
          %1093 = vmatprep.mubr.f32.mxu0 0.0
          %1094 = vmatmul.mubr.f32.gmra.mrb[0].mxu0 %v261
          %v1095 = vpop.f32.mrb[0].mxu0
          %v1096 = vadd.f32 %v932, %v1095
          %v1097 = vpop.f32.mrb[0].mxu0
          %1098 = vmatprep.mubr.f32.mxu0 0.0
          %1099 = vmatmul.mubr.f32.gmra.mrb[0].mxu0 %v262
          %v1100 = vpop.f32.mrb[0].mxu0
          %v1101 = vadd.f32 %v932, %v1100
          %v1102 = vpop.f32.mrb[0].mxu0
          %1103 = vmatprep.mubr.f32.mxu0 0.0
          %1104 = vmatmul.mubr.f32.gmra.mrb[0].mxu0 %v263
          %v1105 = vpop.f32.mrb[0].mxu0
          %v1106 = vadd.f32 %v932, %v1105
          %v1107 = vpop.f32.mrb[0].mxu0
          %1108 = vmatprep.mubr.f32.mxu0 0.0
          %1109 = vmatmul.mubr.f32.gmra.mrb[0].mxu0 %v264
          %v1110 = vpop.f32.mrb[0].mxu0
          %v1111 = vadd.f32 %v932, %v1110
          %v1112 = vpop.f32.mrb[0].mxu0
          %1113 = vmatprep.mubr.f32.mxu0 0.0
          %1114 = vmatmul.mubr.f32.gmra.mrb[0].mxu0 %v265
          %v1115 = vpop.f32.mrb[0].mxu0
          %v1116 = vadd.f32 %v932, %v1115
          %v1117 = vpop.f32.mrb[0].mxu0
          %1118 = vmatprep.mubr.f32.mxu0 0.0
          %1119 = vmatmul.mubr.f32.gmra.mrb[0].mxu0 %v266
          %v1120 = vpop.f32.mrb[0].mxu0
          %v1121 = vadd.f32 %v932, %v1120
          %v1122 = vpop.f32.mrb[0].mxu0
          %1123 = vmatprep.mubr.f32.mxu0 0.0
          %1124 = vmatmul.mubr.f32.gmra.mrb[0].mxu0 %v267
          %v1125 = vpop.f32.mrb[0].mxu0
          %v1126 = vadd.f32 %v932, %v1125
          %v1127 = vpop.f32.mrb[0].mxu0
          %1128 = vmatprep.mubr.f32.mxu0 0.0
          %1129 = vmatmul.mubr.f32.gmra.mrb[0].mxu0 %v268
          %v1130 = vpop.f32.mrb[0].mxu0
          %v1131 = vadd.f32 %v932, %v1130
          %v1132 = vpop.f32.mrb[0].mxu0
          %1133 = vmatprep.mubr.f32.mxu0 0.0
          %1134 = vmatmul.mubr.f32.gmra.mrb[0].mxu0 %v269
          %v1135 = vpop.f32.mrb[0].mxu0
          %v1136 = vadd.f32 %v932, %v1135
          %v1137 = vpop.f32.mrb[0].mxu0
          %1138 = vmatprep.mubr.f32.mxu0 0.0
          %1139 = vmatmul.mubr.f32.gmra.mrb[0].mxu0 %v270
          %v1140 = vpop.f32.mrb[0].mxu0
          %v1141 = vadd.f32 %v932, %v1140
          %v1142 = vpop.f32.mrb[0].mxu0
          %1143 = vmatprep.mubr.f32.mxu0 0.0
          %1144 = vmatmul.mubr.f32.gmra.mrb[0].mxu0 %v271
          %v1145 = vpop.f32.mrb[0].mxu0
          %v1146 = vadd.f32 %v932, %v1145
          %v1147 = vpop.f32.mrb[0].mxu0
          %1148 = vmatprep.mubr.f32.mxu0 0.0
          %1149 = vmatmul.mubr.f32.gmra.mrb[0].mxu0 %v272
          %v1150 = vpop.f32.mrb[0].mxu0
          %v1151 = vadd.f32 %v932, %v1150
          %v1152 = vpop.f32.mrb[0].mxu0
          %1153 = vmatprep.mubr.f32.mxu0 0.0
          %1154 = vmatmul.mubr.f32.gmra.mrb[0].mxu0 %v273
          %v1155 = vpop.f32.mrb[0].mxu0
          %v1156 = vadd.f32 %v932, %v1155
          %v1157 = vpop.f32.mrb[0].mxu0
          %1158 = vdwg.mxu0
          %s1159 = scalar_lea.vmem [#allocation2], 1024
          %1160 = vst.msk [vmem:[%s1159] sm:$0xff] %vm554, %v1001
          %1161 = vst.msk [vmem:[%s1159 + $0x8] sm:$0xff] %vm554, %v1006
          %1162 = vst.msk [vmem:[%s1159 + $0x10] sm:$0xff] %vm554, %v1011
          %1163 = vst.msk [vmem:[%s1159 + $0x18] sm:$0xff] %vm554, %v1016
          %1164 = vst.msk [vmem:[%s1159 + $0x20] sm:$0xff] %vm554, %v1021
          %1165 = vst.msk [vmem:[%s1159 + $0x28] sm:$0xff] %vm554, %v1026
          %1166 = vst.msk [vmem:[%s1159 + $0x30] sm:$0xff] %vm554, %v1031
          %1167 = vst.msk [vmem:[%s1159 + $0x38] sm:$0xff] %vm554, %v1036
          %1168 = vst.msk [vmem:[%s1159 + $0x40] sm:$0xff] %vm554, %v1041
          %1169 = vst.msk [vmem:[%s1159 + $0x48] sm:$0xff] %vm554, %v1046
          %1170 = vst.msk [vmem:[%s1159 + $0x50] sm:$0xff] %vm554, %v1051
          %1171 = vst.msk [vmem:[%s1159 + $0x58] sm:$0xff] %vm554, %v1056
          %1172 = vst.msk [vmem:[%s1159 + $0x60] sm:$0xff] %vm554, %v1061
          %1173 = vst.msk [vmem:[%s1159 + $0x68] sm:$0xff] %vm554, %v1066
          %1174 = vst.msk [vmem:[%s1159 + $0x70] sm:$0xff] %vm554, %v1071
          %1175 = vst.msk [vmem:[%s1159 + $0x78] sm:$0xff] %vm554, %v1076
          %1176 = vst.msk [vmem:[%s1159 + $0x80] sm:$0xff] %vm554, %v1081
          %1177 = vst.msk [vmem:[%s1159 + $0x88] sm:$0xff] %vm554, %v1086
          %1178 = vst.msk [vmem:[%s1159 + $0x90] sm:$0xff] %vm554, %v1091
          %1179 = vst.msk [vmem:[%s1159 + $0x98] sm:$0xff] %vm554, %v1096
          %1180 = vst.msk [vmem:[%s1159 + $0xa0] sm:$0xff] %vm554, %v1101
          %1181 = vst.msk [vmem:[%s1159 + $0xa8] sm:$0xff] %vm554, %v1106
          %1182 = vst.msk [vmem:[%s1159 + $0xb0] sm:$0xff] %vm554, %v1111
          %1183 = vst.msk [vmem:[%s1159 + $0xb8] sm:$0xff] %vm554, %v1116
          %1184 = vst.msk [vmem:[%s1159 + $0xc0] sm:$0xff] %vm554, %v1121
          %1185 = vst.msk [vmem:[%s1159 + $0xc8] sm:$0xff] %vm554, %v1126
          %1186 = vst.msk [vmem:[%s1159 + $0xd0] sm:$0xff] %vm554, %v1131
          %1187 = vst.msk [vmem:[%s1159 + $0xd8] sm:$0xff] %vm554, %v1136
          %1188 = vst.msk [vmem:[%s1159 + $0xe0] sm:$0xff] %vm554, %v1141
          %1189 = vst.msk [vmem:[%s1159 + $0xe8] sm:$0xff] %vm554, %v1146
          %1190 = vst.msk [vmem:[%s1159 + $0xf0] sm:$0xff] %vm554, %v1151
          %1191 = vst.msk [vmem:[%s1159 + $0xf8] sm:$0xff] %vm554, %v1156
          %s1192 = scalar_lea.vmem %s1, 128
          %v1193 = vld [vmem:[%s1192] sm:$0xff]
          %v1194 = vld [vmem:[%s1192 + $0x8] sm:$0xff]
          %v1195 = vld [vmem:[%s1192 + $0x10] sm:$0xff]
          %v1196 = vld [vmem:[%s1192 + $0x18] sm:$0xff]
          %v1197 = vld [vmem:[%s1192 + $0x20] sm:$0xff]
          %v1198 = vld [vmem:[%s1192 + $0x28] sm:$0xff]
          %v1199 = vld [vmem:[%s1192 + $0x30] sm:$0xff]
          %v1200 = vld [vmem:[%s1192 + $0x38] sm:$0xff]
          %v1201 = vld [vmem:[%s1192 + $0x40] sm:$0xff]
          %v1202 = vld [vmem:[%s1192 + $0x48] sm:$0xff]
          %v1203 = vld [vmem:[%s1192 + $0x50] sm:$0xff]
          %v1204 = vld [vmem:[%s1192 + $0x58] sm:$0xff]
          %v1205 = vld [vmem:[%s1192 + $0x60] sm:$0xff]
          %v1206 = vld [vmem:[%s1192 + $0x68] sm:$0xff]
          %v1207 = vld [vmem:[%s1192 + $0x70] sm:$0xff]
          %v1208 = vld [vmem:[%s1192 + $0x78] sm:$0xff]
          %s1209 = scalar_lea.vmem %s2, 1
          %v1210 = vld [vmem:[%s1209] sm:$0x1]
          %v1212 = vlaneseq
          %v1213 = vshrl.u32 %v1212, 7
          %v1214 = vsub.s32 0, %v1213
          %v1215 = vrot.slane %v1210, %v1214
          %1217 = vmatprep.subr.mxu0 0.0
          %1218 = vmatpush1.msra.mxu0 %v1193
          %1219 = vmatprep.subr.mxu0 0.0
          %1220 = vmatpush1.msra.mxu0 %v1194
          %1221 = vmatprep.subr.mxu0 0.0
          %1222 = vmatpush1.msra.mxu0 %v1195
          %1223 = vmatprep.subr.mxu0 0.0
          %1224 = vmatpush1.msra.mxu0 %v1196
          %1225 = vmatprep.subr.mxu0 0.0
          %1226 = vmatpush1.msra.mxu0 %v1197
          %1227 = vmatprep.subr.mxu0 0.0
          %1228 = vmatpush1.msra.mxu0 %v1198
          %1229 = vmatprep.subr.mxu0 0.0
          %1230 = vmatpush1.msra.mxu0 %v1199
          %1231 = vmatprep.subr.mxu0 0.0
          %1232 = vmatpush1.msra.mxu0 %v1200
          %1233 = vmatprep.subr.mxu0 0.0
          %1234 = vmatpush1.msra.mxu0 %v1201
          %1235 = vmatprep.subr.mxu0 0.0
          %1236 = vmatpush1.msra.mxu0 %v1202
          %1237 = vmatprep.subr.mxu0 0.0
          %1238 = vmatpush1.msra.mxu0 %v1203
          %1239 = vmatprep.subr.mxu0 0.0
          %1240 = vmatpush1.msra.mxu0 %v1204
          %1241 = vmatprep.subr.mxu0 0.0
          %1242 = vmatpush1.msra.mxu0 %v1205
          %1243 = vmatprep.subr.mxu0 0.0
          %1244 = vmatpush1.msra.mxu0 %v1206
          %1245 = vmatprep.subr.mxu0 0.0
          %1246 = vmatpush1.msra.mxu0 %v1207
          %1247 = vmatprep.subr.mxu0 0.0
          %1248 = vmatpush1.msra.mxu0 %v1208
          %1249 = vmatprep.subr.mxu0 0.0
          %1250 = vmatpush1.msra.mxu0 0.0
          %1251 = vmatprep.subr.mxu0 0.0
          %1252 = vmatpush1.msra.mxu0 0.0
          %1253 = vmatprep.subr.mxu0 0.0
          %1254 = vmatpush1.msra.mxu0 0.0
          %1255 = vmatprep.subr.mxu0 0.0
          %1256 = vmatpush1.msra.mxu0 0.0
          %1257 = vmatprep.subr.mxu0 0.0
          %1258 = vmatpush1.msra.mxu0 0.0
          %1259 = vmatprep.subr.mxu0 0.0
          %1260 = vmatpush1.msra.mxu0 0.0
          %1261 = vmatprep.subr.mxu0 0.0
          %1262 = vmatpush1.msra.mxu0 0.0
          %1263 = vmatprep.subr.mxu0 0.0
          %1264 = vmatpush1.msra.mxu0 0.0
          %1265 = vmatprep.subr.mxu0 0.0
          %1266 = vmatpush1.msra.mxu0 0.0
          %1267 = vmatprep.subr.mxu0 0.0
          %1268 = vmatpush1.msra.mxu0 0.0
          %1269 = vmatprep.subr.mxu0 0.0
          %1270 = vmatpush1.msra.mxu0 0.0
          %1271 = vmatprep.subr.mxu0 0.0
          %1272 = vmatpush1.msra.mxu0 0.0
          %1273 = vmatprep.subr.mxu0 0.0
          %1274 = vmatpush1.msra.mxu0 0.0
          %1275 = vmatprep.subr.mxu0 0.0
          %1276 = vmatpush1.msra.mxu0 0.0
          %1277 = vmatprep.subr.mxu0 0.0
          %1278 = vmatpush1.msra.mxu0 0.0
          %1279 = vmatprep.subr.mxu0 0.0
          %1280 = vmatpush1.msra.mxu0 0.0
          %1281 = vmatprep.mubr.f32.mxu0 0.0
          %1282 = vmatmul.mubr.f32.gmra.mrb[0].mxu0 %v242
          %v1283 = vpop.f32.mrb[0].mxu0
          %v1284 = vadd.f32 %v1215, %v1283
          %v1285 = vpop.f32.mrb[0].mxu0
          %1286 = vmatprep.mubr.f32.mxu0 0.0
          %1287 = vmatmul.mubr.f32.gmra.mrb[0].mxu0 %v243
          %v1288 = vpop.f32.mrb[0].mxu0
          %v1289 = vadd.f32 %v1215, %v1288
          %v1290 = vpop.f32.mrb[0].mxu0
          %1291 = vmatprep.mubr.f32.mxu0 0.0
          %1292 = vmatmul.mubr.f32.gmra.mrb[0].mxu0 %v244
          %v1293 = vpop.f32.mrb[0].mxu0
          %v1294 = vadd.f32 %v1215, %v1293
          %v1295 = vpop.f32.mrb[0].mxu0
          %1296 = vmatprep.mubr.f32.mxu0 0.0
          %1297 = vmatmul.mubr.f32.gmra.mrb[0].mxu0 %v245
          %v1298 = vpop.f32.mrb[0].mxu0
          %v1299 = vadd.f32 %v1215, %v1298
          %v1300 = vpop.f32.mrb[0].mxu0
          %1301 = vmatprep.mubr.f32.mxu0 0.0
          %1302 = vmatmul.mubr.f32.gmra.mrb[0].mxu0 %v246
          %v1303 = vpop.f32.mrb[0].mxu0
          %v1304 = vadd.f32 %v1215, %v1303
          %v1305 = vpop.f32.mrb[0].mxu0
          %1306 = vmatprep.mubr.f32.mxu0 0.0
          %1307 = vmatmul.mubr.f32.gmra.mrb[0].mxu0 %v247
          %v1308 = vpop.f32.mrb[0].mxu0
          %v1309 = vadd.f32 %v1215, %v1308
          %v1310 = vpop.f32.mrb[0].mxu0
          %1311 = vmatprep.mubr.f32.mxu0 0.0
          %1312 = vmatmul.mubr.f32.gmra.mrb[0].mxu0 %v248
          %v1313 = vpop.f32.mrb[0].mxu0
          %v1314 = vadd.f32 %v1215, %v1313
          %v1315 = vpop.f32.mrb[0].mxu0
          %1316 = vmatprep.mubr.f32.mxu0 0.0
          %1317 = vmatmul.mubr.f32.gmra.mrb[0].mxu0 %v249
          %v1318 = vpop.f32.mrb[0].mxu0
          %v1319 = vadd.f32 %v1215, %v1318
          %v1320 = vpop.f32.mrb[0].mxu0
          %1321 = vmatprep.mubr.f32.mxu0 0.0
          %1322 = vmatmul.mubr.f32.gmra.mrb[0].mxu0 %v250
          %v1323 = vpop.f32.mrb[0].mxu0
          %v1324 = vadd.f32 %v1215, %v1323
          %v1325 = vpop.f32.mrb[0].mxu0
          %1326 = vmatprep.mubr.f32.mxu0 0.0
          %1327 = vmatmul.mubr.f32.gmra.mrb[0].mxu0 %v251
          %v1328 = vpop.f32.mrb[0].mxu0
          %v1329 = vadd.f32 %v1215, %v1328
          %v1330 = vpop.f32.mrb[0].mxu0
          %1331 = vmatprep.mubr.f32.mxu0 0.0
          %1332 = vmatmul.mubr.f32.gmra.mrb[0].mxu0 %v252
          %v1333 = vpop.f32.mrb[0].mxu0
          %v1334 = vadd.f32 %v1215, %v1333
          %v1335 = vpop.f32.mrb[0].mxu0
          %1336 = vmatprep.mubr.f32.mxu0 0.0
          %1337 = vmatmul.mubr.f32.gmra.mrb[0].mxu0 %v253
          %v1338 = vpop.f32.mrb[0].mxu0
          %v1339 = vadd.f32 %v1215, %v1338
          %v1340 = vpop.f32.mrb[0].mxu0
          %1341 = vmatprep.mubr.f32.mxu0 0.0
          %1342 = vmatmul.mubr.f32.gmra.mrb[0].mxu0 %v254
          %v1343 = vpop.f32.mrb[0].mxu0
          %v1344 = vadd.f32 %v1215, %v1343
          %v1345 = vpop.f32.mrb[0].mxu0
          %1346 = vmatprep.mubr.f32.mxu0 0.0
          %1347 = vmatmul.mubr.f32.gmra.mrb[0].mxu0 %v255
          %v1348 = vpop.f32.mrb[0].mxu0
          %v1349 = vadd.f32 %v1215, %v1348
          %v1350 = vpop.f32.mrb[0].mxu0
          %1351 = vmatprep.mubr.f32.mxu0 0.0
          %1352 = vmatmul.mubr.f32.gmra.mrb[0].mxu0 %v256
          %v1353 = vpop.f32.mrb[0].mxu0
          %v1354 = vadd.f32 %v1215, %v1353
          %v1355 = vpop.f32.mrb[0].mxu0
          %1356 = vmatprep.mubr.f32.mxu0 0.0
          %1357 = vmatmul.mubr.f32.gmra.mrb[0].mxu0 %v257
          %v1358 = vpop.f32.mrb[0].mxu0
          %v1359 = vadd.f32 %v1215, %v1358
          %v1360 = vpop.f32.mrb[0].mxu0
          %1361 = vmatprep.mubr.f32.mxu0 0.0
          %1362 = vmatmul.mubr.f32.gmra.mrb[0].mxu0 %v258
          %v1363 = vpop.f32.mrb[0].mxu0
          %v1364 = vadd.f32 %v1215, %v1363
          %v1365 = vpop.f32.mrb[0].mxu0
          %1366 = vmatprep.mubr.f32.mxu0 0.0
          %1367 = vmatmul.mubr.f32.gmra.mrb[0].mxu0 %v259
          %v1368 = vpop.f32.mrb[0].mxu0
          %v1369 = vadd.f32 %v1215, %v1368
          %v1370 = vpop.f32.mrb[0].mxu0
          %1371 = vmatprep.mubr.f32.mxu0 0.0
          %1372 = vmatmul.mubr.f32.gmra.mrb[0].mxu0 %v260
          %v1373 = vpop.f32.mrb[0].mxu0
          %v1374 = vadd.f32 %v1215, %v1373
          %v1375 = vpop.f32.mrb[0].mxu0
          %1376 = vmatprep.mubr.f32.mxu0 0.0
          %1377 = vmatmul.mubr.f32.gmra.mrb[0].mxu0 %v261
          %v1378 = vpop.f32.mrb[0].mxu0
          %v1379 = vadd.f32 %v1215, %v1378
          %v1380 = vpop.f32.mrb[0].mxu0
          %1381 = vmatprep.mubr.f32.mxu0 0.0
          %1382 = vmatmul.mubr.f32.gmra.mrb[0].mxu0 %v262
          %v1383 = vpop.f32.mrb[0].mxu0
          %v1384 = vadd.f32 %v1215, %v1383
          %v1385 = vpop.f32.mrb[0].mxu0
          %1386 = vmatprep.mubr.f32.mxu0 0.0
          %1387 = vmatmul.mubr.f32.gmra.mrb[0].mxu0 %v263
          %v1388 = vpop.f32.mrb[0].mxu0
          %v1389 = vadd.f32 %v1215, %v1388
          %v1390 = vpop.f32.mrb[0].mxu0
          %1391 = vmatprep.mubr.f32.mxu0 0.0
          %1392 = vmatmul.mubr.f32.gmra.mrb[0].mxu0 %v264
          %v1393 = vpop.f32.mrb[0].mxu0
          %v1394 = vadd.f32 %v1215, %v1393
          %v1395 = vpop.f32.mrb[0].mxu0
          %1396 = vmatprep.mubr.f32.mxu0 0.0
          %1397 = vmatmul.mubr.f32.gmra.mrb[0].mxu0 %v265
          %v1398 = vpop.f32.mrb[0].mxu0
          %v1399 = vadd.f32 %v1215, %v1398
          %v1400 = vpop.f32.mrb[0].mxu0
          %1401 = vmatprep.mubr.f32.mxu0 0.0
          %1402 = vmatmul.mubr.f32.gmra.mrb[0].mxu0 %v266
          %v1403 = vpop.f32.mrb[0].mxu0
          %v1404 = vadd.f32 %v1215, %v1403
          %v1405 = vpop.f32.mrb[0].mxu0
          %1406 = vmatprep.mubr.f32.mxu0 0.0
          %1407 = vmatmul.mubr.f32.gmra.mrb[0].mxu0 %v267
          %v1408 = vpop.f32.mrb[0].mxu0
          %v1409 = vadd.f32 %v1215, %v1408
          %v1410 = vpop.f32.mrb[0].mxu0
          %1411 = vmatprep.mubr.f32.mxu0 0.0
          %1412 = vmatmul.mubr.f32.gmra.mrb[0].mxu0 %v268
          %v1413 = vpop.f32.mrb[0].mxu0
          %v1414 = vadd.f32 %v1215, %v1413
          %v1415 = vpop.f32.mrb[0].mxu0
          %1416 = vmatprep.mubr.f32.mxu0 0.0
          %1417 = vmatmul.mubr.f32.gmra.mrb[0].mxu0 %v269
          %v1418 = vpop.f32.mrb[0].mxu0
          %v1419 = vadd.f32 %v1215, %v1418
          %v1420 = vpop.f32.mrb[0].mxu0
          %1421 = vmatprep.mubr.f32.mxu0 0.0
          %1422 = vmatmul.mubr.f32.gmra.mrb[0].mxu0 %v270
          %v1423 = vpop.f32.mrb[0].mxu0
          %v1424 = vadd.f32 %v1215, %v1423
          %v1425 = vpop.f32.mrb[0].mxu0
          %1426 = vmatprep.mubr.f32.mxu0 0.0
          %1427 = vmatmul.mubr.f32.gmra.mrb[0].mxu0 %v271
          %v1428 = vpop.f32.mrb[0].mxu0
          %v1429 = vadd.f32 %v1215, %v1428
          %v1430 = vpop.f32.mrb[0].mxu0
          %1431 = vmatprep.mubr.f32.mxu0 0.0
          %1432 = vmatmul.mubr.f32.gmra.mrb[0].mxu0 %v272
          %v1433 = vpop.f32.mrb[0].mxu0
          %v1434 = vadd.f32 %v1215, %v1433
          %v1435 = vpop.f32.mrb[0].mxu0
          %1436 = vmatprep.mubr.f32.mxu0 0.0
          %1437 = vmatmul.mubr.f32.gmra.mrb[0].mxu0 %v273
          %v1438 = vpop.f32.mrb[0].mxu0
          %v1439 = vadd.f32 %v1215, %v1438
          %v1440 = vpop.f32.mrb[0].mxu0
          %1441 = vdwg.mxu0
          %v1442 = vmul.f32 %v1284, 0.17677669
          %v1443 = vmul.f32 %v1289, 0.17677669
          %v1444 = vmul.f32 %v1294, 0.17677669
          %v1445 = vmul.f32 %v1299, 0.17677669
          %v1446 = vmul.f32 %v1304, 0.17677669
          %v1447 = vmul.f32 %v1309, 0.17677669
          %v1448 = vmul.f32 %v1314, 0.17677669
          %v1449 = vmul.f32 %v1319, 0.17677669
          %v1450 = vmul.f32 %v1324, 0.17677669
          %v1451 = vmul.f32 %v1329, 0.17677669
          %v1452 = vmul.f32 %v1334, 0.17677669
          %v1453 = vmul.f32 %v1339, 0.17677669
          %v1454 = vmul.f32 %v1344, 0.17677669
          %v1455 = vmul.f32 %v1349, 0.17677669
          %v1456 = vmul.f32 %v1354, 0.17677669
          %v1457 = vmul.f32 %v1359, 0.17677669
          %v1458 = vmul.f32 %v1364, 0.17677669
          %v1459 = vmul.f32 %v1369, 0.17677669
          %v1460 = vmul.f32 %v1374, 0.17677669
          %v1461 = vmul.f32 %v1379, 0.17677669
          %v1462 = vmul.f32 %v1384, 0.17677669
          %v1463 = vmul.f32 %v1389, 0.17677669
          %v1464 = vmul.f32 %v1394, 0.17677669
          %v1465 = vmul.f32 %v1399, 0.17677669
          %v1466 = vmul.f32 %v1404, 0.17677669
          %v1467 = vmul.f32 %v1409, 0.17677669
          %v1468 = vmul.f32 %v1414, 0.17677669
          %v1469 = vmul.f32 %v1419, 0.17677669
          %v1470 = vmul.f32 %v1424, 0.17677669
          %v1471 = vmul.f32 %v1429, 0.17677669
          %v1472 = vmul.f32 %v1434, 0.17677669
          %v1473 = vmul.f32 %v1439, 0.17677669
          %s1474 = scalar_lea.vmem [#allocation2], 256
          %1475 = vst.msk [vmem:[%s1474] sm:$0xff] %vm554, %v1442
          %1476 = vst.msk [vmem:[%s1474 + $0x8] sm:$0xff] %vm554, %v1443
          %1477 = vst.msk [vmem:[%s1474 + $0x10] sm:$0xff] %vm554, %v1444
          %1478 = vst.msk [vmem:[%s1474 + $0x18] sm:$0xff] %vm554, %v1445
          %1479 = vst.msk [vmem:[%s1474 + $0x20] sm:$0xff] %vm554, %v1446
          %1480 = vst.msk [vmem:[%s1474 + $0x28] sm:$0xff] %vm554, %v1447
          %1481 = vst.msk [vmem:[%s1474 + $0x30] sm:$0xff] %vm554, %v1448
          %1482 = vst.msk [vmem:[%s1474 + $0x38] sm:$0xff] %vm554, %v1449
          %1483 = vst.msk [vmem:[%s1474 + $0x40] sm:$0xff] %vm554, %v1450
          %1484 = vst.msk [vmem:[%s1474 + $0x48] sm:$0xff] %vm554, %v1451
          %1485 = vst.msk [vmem:[%s1474 + $0x50] sm:$0xff] %vm554, %v1452
          %1486 = vst.msk [vmem:[%s1474 + $0x58] sm:$0xff] %vm554, %v1453
          %1487 = vst.msk [vmem:[%s1474 + $0x60] sm:$0xff] %vm554, %v1454
          %1488 = vst.msk [vmem:[%s1474 + $0x68] sm:$0xff] %vm554, %v1455
          %1489 = vst.msk [vmem:[%s1474 + $0x70] sm:$0xff] %vm554, %v1456
          %1490 = vst.msk [vmem:[%s1474 + $0x78] sm:$0xff] %vm554, %v1457
          %1491 = vst.msk [vmem:[%s1474 + $0x80] sm:$0xff] %vm554, %v1458
          %1492 = vst.msk [vmem:[%s1474 + $0x88] sm:$0xff] %vm554, %v1459
          %1493 = vst.msk [vmem:[%s1474 + $0x90] sm:$0xff] %vm554, %v1460
          %1494 = vst.msk [vmem:[%s1474 + $0x98] sm:$0xff] %vm554, %v1461
          %1495 = vst.msk [vmem:[%s1474 + $0xa0] sm:$0xff] %vm554, %v1462
          %1496 = vst.msk [vmem:[%s1474 + $0xa8] sm:$0xff] %vm554, %v1463
          %1497 = vst.msk [vmem:[%s1474 + $0xb0] sm:$0xff] %vm554, %v1464
          %1498 = vst.msk [vmem:[%s1474 + $0xb8] sm:$0xff] %vm554, %v1465
          %1499 = vst.msk [vmem:[%s1474 + $0xc0] sm:$0xff] %vm554, %v1466
          %1500 = vst.msk [vmem:[%s1474 + $0xc8] sm:$0xff] %vm554, %v1467
          %1501 = vst.msk [vmem:[%s1474 + $0xd0] sm:$0xff] %vm554, %v1468
          %1502 = vst.msk [vmem:[%s1474 + $0xd8] sm:$0xff] %vm554, %v1469
          %1503 = vst.msk [vmem:[%s1474 + $0xe0] sm:$0xff] %vm554, %v1470
          %1504 = vst.msk [vmem:[%s1474 + $0xe8] sm:$0xff] %vm554, %v1471
          %1505 = vst.msk [vmem:[%s1474 + $0xf0] sm:$0xff] %vm554, %v1472
          %1506 = vst.msk [vmem:[%s1474 + $0xf8] sm:$0xff] %vm554, %v1473
          %s1507 = scalar_lea.vmem %s1, 640
          %v1508 = vld [vmem:[%s1507] sm:$0xff]
          %v1509 = vld [vmem:[%s1507 + $0x8] sm:$0xff]
          %v1510 = vld [vmem:[%s1507 + $0x10] sm:$0xff]
          %v1511 = vld [vmem:[%s1507 + $0x18] sm:$0xff]
          %v1512 = vld [vmem:[%s1507 + $0x20] sm:$0xff]
          %v1513 = vld [vmem:[%s1507 + $0x28] sm:$0xff]
          %v1514 = vld [vmem:[%s1507 + $0x30] sm:$0xff]
          %v1515 = vld [vmem:[%s1507 + $0x38] sm:$0xff]
          %v1516 = vld [vmem:[%s1507 + $0x40] sm:$0xff]
          %v1517 = vld [vmem:[%s1507 + $0x48] sm:$0xff]
          %v1518 = vld [vmem:[%s1507 + $0x50] sm:$0xff]
          %v1519 = vld [vmem:[%s1507 + $0x58] sm:$0xff]
          %v1520 = vld [vmem:[%s1507 + $0x60] sm:$0xff]
          %v1521 = vld [vmem:[%s1507 + $0x68] sm:$0xff]
          %v1522 = vld [vmem:[%s1507 + $0x70] sm:$0xff]
          %v1523 = vld [vmem:[%s1507 + $0x78] sm:$0xff]
          %s1524 = scalar_lea.vmem %s2, 5
          %v1525 = vld [vmem:[%s1524] sm:$0x1]
          %v1527 = vlaneseq
          %v1528 = vshrl.u32 %v1527, 7
          %v1529 = vsub.s32 0, %v1528
          %v1530 = vrot.slane %v1525, %v1529
          %1532 = vmatprep.subr.mxu0 0.0
          %1533 = vmatpush1.msra.mxu0 %v1508
          %1534 = vmatprep.subr.mxu0 0.0
          %1535 = vmatpush1.msra.mxu0 %v1509
          %1536 = vmatprep.subr.mxu0 0.0
          %1537 = vmatpush1.msra.mxu0 %v1510
          %1538 = vmatprep.subr.mxu0 0.0
          %1539 = vmatpush1.msra.mxu0 %v1511
          %1540 = vmatprep.subr.mxu0 0.0
          %1541 = vmatpush1.msra.mxu0 %v1512
          %1542 = vmatprep.subr.mxu0 0.0
          %1543 = vmatpush1.msra.mxu0 %v1513
          %1544 = vmatprep.subr.mxu0 0.0
          %1545 = vmatpush1.msra.mxu0 %v1514
          %1546 = vmatprep.subr.mxu0 0.0
          %1547 = vmatpush1.msra.mxu0 %v1515
          %1548 = vmatprep.subr.mxu0 0.0
          %1549 = vmatpush1.msra.mxu0 %v1516
          %1550 = vmatprep.subr.mxu0 0.0
          %1551 = vmatpush1.msra.mxu0 %v1517
          %1552 = vmatprep.subr.mxu0 0.0
          %1553 = vmatpush1.msra.mxu0 %v1518
          %1554 = vmatprep.subr.mxu0 0.0
          %1555 = vmatpush1.msra.mxu0 %v1519
          %1556 = vmatprep.subr.mxu0 0.0
          %1557 = vmatpush1.msra.mxu0 %v1520
          %1558 = vmatprep.subr.mxu0 0.0
          %1559 = vmatpush1.msra.mxu0 %v1521
          %1560 = vmatprep.subr.mxu0 0.0
          %1561 = vmatpush1.msra.mxu0 %v1522
          %1562 = vmatprep.subr.mxu0 0.0
          %1563 = vmatpush1.msra.mxu0 %v1523
          %1564 = vmatprep.subr.mxu0 0.0
          %1565 = vmatpush1.msra.mxu0 0.0
          %1566 = vmatprep.subr.mxu0 0.0
          %1567 = vmatpush1.msra.mxu0 0.0
          %1568 = vmatprep.subr.mxu0 0.0
          %1569 = vmatpush1.msra.mxu0 0.0
          %1570 = vmatprep.subr.mxu0 0.0
          %1571 = vmatpush1.msra.mxu0 0.0
          %1572 = vmatprep.subr.mxu0 0.0
          %1573 = vmatpush1.msra.mxu0 0.0
          %1574 = vmatprep.subr.mxu0 0.0
          %1575 = vmatpush1.msra.mxu0 0.0
          %1576 = vmatprep.subr.mxu0 0.0
          %1577 = vmatpush1.msra.mxu0 0.0
          %1578 = vmatprep.subr.mxu0 0.0
          %1579 = vmatpush1.msra.mxu0 0.0
          %1580 = vmatprep.subr.mxu0 0.0
          %1581 = vmatpush1.msra.mxu0 0.0
          %1582 = vmatprep.subr.mxu0 0.0
          %1583 = vmatpush1.msra.mxu0 0.0
          %1584 = vmatprep.subr.mxu0 0.0
          %1585 = vmatpush1.msra.mxu0 0.0
          %1586 = vmatprep.subr.mxu0 0.0
          %1587 = vmatpush1.msra.mxu0 0.0
          %1588 = vmatprep.subr.mxu0 0.0
          %1589 = vmatpush1.msra.mxu0 0.0
          %1590 = vmatprep.subr.mxu0 0.0
          %1591 = vmatpush1.msra.mxu0 0.0
          %1592 = vmatprep.subr.mxu0 0.0
          %1593 = vmatpush1.msra.mxu0 0.0
          %1594 = vmatprep.subr.mxu0 0.0
          %1595 = vmatpush1.msra.mxu0 0.0
          %1596 = vmatprep.mubr.f32.mxu0 0.0
          %1597 = vmatmul.mubr.f32.gmra.mrb[0].mxu0 %v242
          %v1598 = vpop.f32.mrb[0].mxu0
          %v1599 = vadd.f32 %v1530, %v1598
          %v1600 = vpop.f32.mrb[0].mxu0
          %1601 = vmatprep.mubr.f32.mxu0 0.0
          %1602 = vmatmul.mubr.f32.gmra.mrb[0].mxu0 %v243
          %v1603 = vpop.f32.mrb[0].mxu0
          %v1604 = vadd.f32 %v1530, %v1603
          %v1605 = vpop.f32.mrb[0].mxu0
          %1606 = vmatprep.mubr.f32.mxu0 0.0
          %1607 = vmatmul.mubr.f32.gmra.mrb[0].mxu0 %v244
          %v1608 = vpop.f32.mrb[0].mxu0
          %v1609 = vadd.f32 %v1530, %v1608
          %v1610 = vpop.f32.mrb[0].mxu0
          %1611 = vmatprep.mubr.f32.mxu0 0.0
          %1612 = vmatmul.mubr.f32.gmra.mrb[0].mxu0 %v245
          %v1613 = vpop.f32.mrb[0].mxu0
          %v1614 = vadd.f32 %v1530, %v1613
          %v1615 = vpop.f32.mrb[0].mxu0
          %1616 = vmatprep.mubr.f32.mxu0 0.0
          %1617 = vmatmul.mubr.f32.gmra.mrb[0].mxu0 %v246
          %v1618 = vpop.f32.mrb[0].mxu0
          %v1619 = vadd.f32 %v1530, %v1618
          %v1620 = vpop.f32.mrb[0].mxu0
          %1621 = vmatprep.mubr.f32.mxu0 0.0
          %1622 = vmatmul.mubr.f32.gmra.mrb[0].mxu0 %v247
          %v1623 = vpop.f32.mrb[0].mxu0
          %v1624 = vadd.f32 %v1530, %v1623
          %v1625 = vpop.f32.mrb[0].mxu0
          %1626 = vmatprep.mubr.f32.mxu0 0.0
          %1627 = vmatmul.mubr.f32.gmra.mrb[0].mxu0 %v248
          %v1628 = vpop.f32.mrb[0].mxu0
          %v1629 = vadd.f32 %v1530, %v1628
          %v1630 = vpop.f32.mrb[0].mxu0
          %1631 = vmatprep.mubr.f32.mxu0 0.0
          %1632 = vmatmul.mubr.f32.gmra.mrb[0].mxu0 %v249
          %v1633 = vpop.f32.mrb[0].mxu0
          %v1634 = vadd.f32 %v1530, %v1633
          %v1635 = vpop.f32.mrb[0].mxu0
          %1636 = vmatprep.mubr.f32.mxu0 0.0
          %1637 = vmatmul.mubr.f32.gmra.mrb[0].mxu0 %v250
          %v1638 = vpop.f32.mrb[0].mxu0
          %v1639 = vadd.f32 %v1530, %v1638
          %v1640 = vpop.f32.mrb[0].mxu0
          %1641 = vmatprep.mubr.f32.mxu0 0.0
          %1642 = vmatmul.mubr.f32.gmra.mrb[0].mxu0 %v251
          %v1643 = vpop.f32.mrb[0].mxu0
          %v1644 = vadd.f32 %v1530, %v1643
          %v1645 = vpop.f32.mrb[0].mxu0
          %1646 = vmatprep.mubr.f32.mxu0 0.0
          %1647 = vmatmul.mubr.f32.gmra.mrb[0].mxu0 %v252
          %v1648 = vpop.f32.mrb[0].mxu0
          %v1649 = vadd.f32 %v1530, %v1648
          %v1650 = vpop.f32.mrb[0].mxu0
          %1651 = vmatprep.mubr.f32.mxu0 0.0
          %1652 = vmatmul.mubr.f32.gmra.mrb[0].mxu0 %v253
          %v1653 = vpop.f32.mrb[0].mxu0
          %v1654 = vadd.f32 %v1530, %v1653
          %v1655 = vpop.f32.mrb[0].mxu0
          %1656 = vmatprep.mubr.f32.mxu0 0.0
          %1657 = vmatmul.mubr.f32.gmra.mrb[0].mxu0 %v254
          %v1658 = vpop.f32.mrb[0].mxu0
          %v1659 = vadd.f32 %v1530, %v1658
          %v1660 = vpop.f32.mrb[0].mxu0
          %1661 = vmatprep.mubr.f32.mxu0 0.0
          %1662 = vmatmul.mubr.f32.gmra.mrb[0].mxu0 %v255
          %v1663 = vpop.f32.mrb[0].mxu0
          %v1664 = vadd.f32 %v1530, %v1663
          %v1665 = vpop.f32.mrb[0].mxu0
          %1666 = vmatprep.mubr.f32.mxu0 0.0
          %1667 = vmatmul.mubr.f32.gmra.mrb[0].mxu0 %v256
          %v1668 = vpop.f32.mrb[0].mxu0
          %v1669 = vadd.f32 %v1530, %v1668
          %v1670 = vpop.f32.mrb[0].mxu0
          %1671 = vmatprep.mubr.f32.mxu0 0.0
          %1672 = vmatmul.mubr.f32.gmra.mrb[0].mxu0 %v257
          %v1673 = vpop.f32.mrb[0].mxu0
          %v1674 = vadd.f32 %v1530, %v1673
          %v1675 = vpop.f32.mrb[0].mxu0
          %1676 = vmatprep.mubr.f32.mxu0 0.0
          %1677 = vmatmul.mubr.f32.gmra.mrb[0].mxu0 %v258
          %v1678 = vpop.f32.mrb[0].mxu0
          %v1679 = vadd.f32 %v1530, %v1678
          %v1680 = vpop.f32.mrb[0].mxu0
          %1681 = vmatprep.mubr.f32.mxu0 0.0
          %1682 = vmatmul.mubr.f32.gmra.mrb[0].mxu0 %v259
          %v1683 = vpop.f32.mrb[0].mxu0
          %v1684 = vadd.f32 %v1530, %v1683
          %v1685 = vpop.f32.mrb[0].mxu0
          %1686 = vmatprep.mubr.f32.mxu0 0.0
          %1687 = vmatmul.mubr.f32.gmra.mrb[0].mxu0 %v260
          %v1688 = vpop.f32.mrb[0].mxu0
          %v1689 = vadd.f32 %v1530, %v1688
          %v1690 = vpop.f32.mrb[0].mxu0
          %1691 = vmatprep.mubr.f32.mxu0 0.0
          %1692 = vmatmul.mubr.f32.gmra.mrb[0].mxu0 %v261
          %v1693 = vpop.f32.mrb[0].mxu0
          %v1694 = vadd.f32 %v1530, %v1693
          %v1695 = vpop.f32.mrb[0].mxu0
          %1696 = vmatprep.mubr.f32.mxu0 0.0
          %1697 = vmatmul.mubr.f32.gmra.mrb[0].mxu0 %v262
          %v1698 = vpop.f32.mrb[0].mxu0
          %v1699 = vadd.f32 %v1530, %v1698
          %v1700 = vpop.f32.mrb[0].mxu0
          %1701 = vmatprep.mubr.f32.mxu0 0.0
          %1702 = vmatmul.mubr.f32.gmra.mrb[0].mxu0 %v263
          %v1703 = vpop.f32.mrb[0].mxu0
          %v1704 = vadd.f32 %v1530, %v1703
          %v1705 = vpop.f32.mrb[0].mxu0
          %1706 = vmatprep.mubr.f32.mxu0 0.0
          %1707 = vmatmul.mubr.f32.gmra.mrb[0].mxu0 %v264
          %v1708 = vpop.f32.mrb[0].mxu0
          %v1709 = vadd.f32 %v1530, %v1708
          %v1710 = vpop.f32.mrb[0].mxu0
          %1711 = vmatprep.mubr.f32.mxu0 0.0
          %1712 = vmatmul.mubr.f32.gmra.mrb[0].mxu0 %v265
          %v1713 = vpop.f32.mrb[0].mxu0
          %v1714 = vadd.f32 %v1530, %v1713
          %v1715 = vpop.f32.mrb[0].mxu0
          %1716 = vmatprep.mubr.f32.mxu0 0.0
          %1717 = vmatmul.mubr.f32.gmra.mrb[0].mxu0 %v266
          %v1718 = vpop.f32.mrb[0].mxu0
          %v1719 = vadd.f32 %v1530, %v1718
          %v1720 = vpop.f32.mrb[0].mxu0
          %1721 = vmatprep.mubr.f32.mxu0 0.0
          %1722 = vmatmul.mubr.f32.gmra.mrb[0].mxu0 %v267
          %v1723 = vpop.f32.mrb[0].mxu0
          %v1724 = vadd.f32 %v1530, %v1723
          %v1725 = vpop.f32.mrb[0].mxu0
          %1726 = vmatprep.mubr.f32.mxu0 0.0
          %1727 = vmatmul.mubr.f32.gmra.mrb[0].mxu0 %v268
          %v1728 = vpop.f32.mrb[0].mxu0
          %v1729 = vadd.f32 %v1530, %v1728
          %v1730 = vpop.f32.mrb[0].mxu0
          %1731 = vmatprep.mubr.f32.mxu0 0.0
          %1732 = vmatmul.mubr.f32.gmra.mrb[0].mxu0 %v269
          %v1733 = vpop.f32.mrb[0].mxu0
          %v1734 = vadd.f32 %v1530, %v1733
          %v1735 = vpop.f32.mrb[0].mxu0
          %1736 = vmatprep.mubr.f32.mxu0 0.0
          %1737 = vmatmul.mubr.f32.gmra.mrb[0].mxu0 %v270
          %v1738 = vpop.f32.mrb[0].mxu0
          %v1739 = vadd.f32 %v1530, %v1738
          %v1740 = vpop.f32.mrb[0].mxu0
          %1741 = vmatprep.mubr.f32.mxu0 0.0
          %1742 = vmatmul.mubr.f32.gmra.mrb[0].mxu0 %v271
          %v1743 = vpop.f32.mrb[0].mxu0
          %v1744 = vadd.f32 %v1530, %v1743
          %v1745 = vpop.f32.mrb[0].mxu0
          %1746 = vmatprep.mubr.f32.mxu0 0.0
          %1747 = vmatmul.mubr.f32.gmra.mrb[0].mxu0 %v272
          %v1748 = vpop.f32.mrb[0].mxu0
          %v1749 = vadd.f32 %v1530, %v1748
          %v1750 = vpop.f32.mrb[0].mxu0
          %1751 = vmatprep.mubr.f32.mxu0 0.0
          %1752 = vmatmul.mubr.f32.gmra.mrb[0].mxu0 %v273
          %v1753 = vpop.f32.mrb[0].mxu0
          %v1754 = vadd.f32 %v1530, %v1753
          %v1755 = vpop.f32.mrb[0].mxu0
          %1756 = vdwg.mxu0
          %1757 = vxpose.xlu0.b32.start [1/16] %v1599, 128
          %1758 = vxpose.xlu0.b32.cont [2/16] %v1604, 128
          %1759 = vxpose.xlu0.b32.cont [3/16] %v1609, 128
          %1760 = vxpose.xlu0.b32.cont [4/16] %v1614, 128
          %1761 = vxpose.xlu0.b32.cont [5/16] %v1619, 128
          %1762 = vxpose.xlu0.b32.cont [6/16] %v1624, 128
          %1763 = vxpose.xlu0.b32.cont [7/16] %v1629, 128
          %1764 = vxpose.xlu0.b32.cont [8/16] %v1634, 128
          %1765 = vxpose.xlu0.b32.cont [9/16] %v1639, 128
          %1766 = vxpose.xlu0.b32.cont [10/16] %v1644, 128
          %1767 = vxpose.xlu0.b32.cont [11/16] %v1649, 128
          %1768 = vxpose.xlu0.b32.cont [12/16] %v1654, 128
          %1769 = vxpose.xlu0.b32.cont [13/16] %v1659, 128
          %1770 = vxpose.xlu0.b32.cont [14/16] %v1664, 128
          %1771 = vxpose.xlu0.b32.cont [15/16] %v1669, 128
          %1772 = vxpose.xlu0.b32.end [16/16] %v1674, 128
          %v1773 = vpop.trf.xlu0
          %v1774 = vpop.trf.xlu0
          %v1775 = vpop.trf.xlu0
          %v1776 = vpop.trf.xlu0
          %v1777 = vpop.trf.xlu0
          %v1778 = vpop.trf.xlu0
          %v1779 = vpop.trf.xlu0
          %v1780 = vpop.trf.xlu0
          %v1781 = vpop.trf.xlu0
          %v1782 = vpop.trf.xlu0
          %v1783 = vpop.trf.xlu0
          %v1784 = vpop.trf.xlu0
          %v1785 = vpop.trf.xlu0
          %v1786 = vpop.trf.xlu0
          %v1787 = vpop.trf.xlu0
          %v1788 = vpop.trf.xlu0
          %1789 = vxpose.xlu0.b32.start [1/16] %v1679, 128
          %1790 = vxpose.xlu0.b32.cont [2/16] %v1684, 128
          %1791 = vxpose.xlu0.b32.cont [3/16] %v1689, 128
          %1792 = vxpose.xlu0.b32.cont [4/16] %v1694, 128
          %1793 = vxpose.xlu0.b32.cont [5/16] %v1699, 128
          %1794 = vxpose.xlu0.b32.cont [6/16] %v1704, 128
          %1795 = vxpose.xlu0.b32.cont [7/16] %v1709, 128
          %1796 = vxpose.xlu0.b32.cont [8/16] %v1714, 128
          %1797 = vxpose.xlu0.b32.cont [9/16] %v1719, 128
          %1798 = vxpose.xlu0.b32.cont [10/16] %v1724, 128
          %1799 = vxpose.xlu0.b32.cont [11/16] %v1729, 128
          %1800 = vxpose.xlu0.b32.cont [12/16] %v1734, 128
          %1801 = vxpose.xlu0.b32.cont [13/16] %v1739, 128
          %1802 = vxpose.xlu0.b32.cont [14/16] %v1744, 128
          %1803 = vxpose.xlu0.b32.cont [15/16] %v1749, 128
          %1804 = vxpose.xlu0.b32.end [16/16] %v1754, 128
          %v1805 = vpop.trf.xlu0
          %v1806 = vpop.trf.xlu0
          %v1807 = vpop.trf.xlu0
          %v1808 = vpop.trf.xlu0
          %v1809 = vpop.trf.xlu0
          %v1810 = vpop.trf.xlu0
          %v1811 = vpop.trf.xlu0
          %v1812 = vpop.trf.xlu0
          %v1813 = vpop.trf.xlu0
          %v1814 = vpop.trf.xlu0
          %v1815 = vpop.trf.xlu0
          %v1816 = vpop.trf.xlu0
          %v1817 = vpop.trf.xlu0
          %v1818 = vpop.trf.xlu0
          %v1819 = vpop.trf.xlu0
          %v1820 = vpop.trf.xlu0
          %s1821 = scalar_lea.vmem [#allocation3], 64
          %1822 = vst [vmem:[%s1821] sm:$0xff] %v1773
          %1823 = vst [vmem:[%s1821 + $0x8] sm:$0xff] %v1805
          %1824 = vst [vmem:[%s1821 + $0x10] sm:$0xff] %v1774
          %1825 = vst [vmem:[%s1821 + $0x18] sm:$0xff] %v1806
          %1826 = vst [vmem:[%s1821 + $0x20] sm:$0xff] %v1775
          %1827 = vst [vmem:[%s1821 + $0x28] sm:$0xff] %v1807
          %1828 = vst [vmem:[%s1821 + $0x30] sm:$0xff] %v1776
          %1829 = vst [vmem:[%s1821 + $0x38] sm:$0xff] %v1808
          %s1830 = scalar_lea.vmem %s1, 1152
          %v1831 = vld [vmem:[%s1830] sm:$0xff]
          %v1832 = vld [vmem:[%s1830 + $0x8] sm:$0xff]
          %v1833 = vld [vmem:[%s1830 + $0x10] sm:$0xff]
          %v1834 = vld [vmem:[%s1830 + $0x18] sm:$0xff]
          %v1835 = vld [vmem:[%s1830 + $0x20] sm:$0xff]
          %v1836 = vld [vmem:[%s1830 + $0x28] sm:$0xff]
          %v1837 = vld [vmem:[%s1830 + $0x30] sm:$0xff]
          %v1838 = vld [vmem:[%s1830 + $0x38] sm:$0xff]
          %v1839 = vld [vmem:[%s1830 + $0x40] sm:$0xff]
          %v1840 = vld [vmem:[%s1830 + $0x48] sm:$0xff]
          %v1841 = vld [vmem:[%s1830 + $0x50] sm:$0xff]
          %v1842 = vld [vmem:[%s1830 + $0x58] sm:$0xff]
          %v1843 = vld [vmem:[%s1830 + $0x60] sm:$0xff]
          %v1844 = vld [vmem:[%s1830 + $0x68] sm:$0xff]
          %v1845 = vld [vmem:[%s1830 + $0x70] sm:$0xff]
          %v1846 = vld [vmem:[%s1830 + $0x78] sm:$0xff]
          %s1847 = scalar_lea.vmem %s2, 9
          %v1848 = vld [vmem:[%s1847] sm:$0x1]
          %v1850 = vlaneseq
          %v1851 = vshrl.u32 %v1850, 7
          %v1852 = vsub.s32 0, %v1851
          %v1853 = vrot.slane %v1848, %v1852
          %1855 = vmatprep.subr.mxu0 0.0
          %1856 = vmatpush1.msra.mxu0 %v1831
          %1857 = vmatprep.subr.mxu0 0.0
          %1858 = vmatpush1.msra.mxu0 %v1832
          %1859 = vmatprep.subr.mxu0 0.0
          %1860 = vmatpush1.msra.mxu0 %v1833
          %1861 = vmatprep.subr.mxu0 0.0
          %1862 = vmatpush1.msra.mxu0 %v1834
          %1863 = vmatprep.subr.mxu0 0.0
          %1864 = vmatpush1.msra.mxu0 %v1835
          %1865 = vmatprep.subr.mxu0 0.0
          %1866 = vmatpush1.msra.mxu0 %v1836
          %1867 = vmatprep.subr.mxu0 0.0
          %1868 = vmatpush1.msra.mxu0 %v1837
          %1869 = vmatprep.subr.mxu0 0.0
          %1870 = vmatpush1.msra.mxu0 %v1838
          %1871 = vmatprep.subr.mxu0 0.0
          %1872 = vmatpush1.msra.mxu0 %v1839
          %1873 = vmatprep.subr.mxu0 0.0
          %1874 = vmatpush1.msra.mxu0 %v1840
          %1875 = vmatprep.subr.mxu0 0.0
          %1876 = vmatpush1.msra.mxu0 %v1841
          %1877 = vmatprep.subr.mxu0 0.0
          %1878 = vmatpush1.msra.mxu0 %v1842
          %1879 = vmatprep.subr.mxu0 0.0
          %1880 = vmatpush1.msra.mxu0 %v1843
          %1881 = vmatprep.subr.mxu0 0.0
          %1882 = vmatpush1.msra.mxu0 %v1844
          %1883 = vmatprep.subr.mxu0 0.0
          %1884 = vmatpush1.msra.mxu0 %v1845
          %1885 = vmatprep.subr.mxu0 0.0
          %1886 = vmatpush1.msra.mxu0 %v1846
          %1887 = vmatprep.subr.mxu0 0.0
          %1888 = vmatpush1.msra.mxu0 0.0
          %1889 = vmatprep.subr.mxu0 0.0
          %1890 = vmatpush1.msra.mxu0 0.0
          %1891 = vmatprep.subr.mxu0 0.0
          %1892 = vmatpush1.msra.mxu0 0.0
          %1893 = vmatprep.subr.mxu0 0.0
          %1894 = vmatpush1.msra.mxu0 0.0
          %1895 = vmatprep.subr.mxu0 0.0
          %1896 = vmatpush1.msra.mxu0 0.0
          %1897 = vmatprep.subr.mxu0 0.0
          %1898 = vmatpush1.msra.mxu0 0.0
          %1899 = vmatprep.subr.mxu0 0.0
          %1900 = vmatpush1.msra.mxu0 0.0
          %1901 = vmatprep.subr.mxu0 0.0
          %1902 = vmatpush1.msra.mxu0 0.0
          %1903 = vmatprep.subr.mxu0 0.0
          %1904 = vmatpush1.msra.mxu0 0.0
          %1905 = vmatprep.subr.mxu0 0.0
          %1906 = vmatpush1.msra.mxu0 0.0
          %1907 = vmatprep.subr.mxu0 0.0
          %1908 = vmatpush1.msra.mxu0 0.0
          %1909 = vmatprep.subr.mxu0 0.0
          %1910 = vmatpush1.msra.mxu0 0.0
          %1911 = vmatprep.subr.mxu0 0.0
          %1912 = vmatpush1.msra.mxu0 0.0
          %1913 = vmatprep.subr.mxu0 0.0
          %1914 = vmatpush1.msra.mxu0 0.0
          %1915 = vmatprep.subr.mxu0 0.0
          %1916 = vmatpush1.msra.mxu0 0.0
          %1917 = vmatprep.subr.mxu0 0.0
          %1918 = vmatpush1.msra.mxu0 0.0
          %1919 = vmatprep.mubr.f32.mxu0 0.0
          %1920 = vmatmul.mubr.f32.gmra.mrb[0].mxu0 %v242
          %v1921 = vpop.f32.mrb[0].mxu0
          %v1922 = vadd.f32 %v1853, %v1921
          %v1923 = vpop.f32.mrb[0].mxu0
          %1924 = vmatprep.mubr.f32.mxu0 0.0
          %1925 = vmatmul.mubr.f32.gmra.mrb[0].mxu0 %v243
          %v1926 = vpop.f32.mrb[0].mxu0
          %v1927 = vadd.f32 %v1853, %v1926
          %v1928 = vpop.f32.mrb[0].mxu0
          %1929 = vmatprep.mubr.f32.mxu0 0.0
          %1930 = vmatmul.mubr.f32.gmra.mrb[0].mxu0 %v244
          %v1931 = vpop.f32.mrb[0].mxu0
          %v1932 = vadd.f32 %v1853, %v1931
          %v1933 = vpop.f32.mrb[0].mxu0
          %1934 = vmatprep.mubr.f32.mxu0 0.0
          %1935 = vmatmul.mubr.f32.gmra.mrb[0].mxu0 %v245
          %v1936 = vpop.f32.mrb[0].mxu0
          %v1937 = vadd.f32 %v1853, %v1936
          %v1938 = vpop.f32.mrb[0].mxu0
          %1939 = vmatprep.mubr.f32.mxu0 0.0
          %1940 = vmatmul.mubr.f32.gmra.mrb[0].mxu0 %v246
          %v1941 = vpop.f32.mrb[0].mxu0
          %v1942 = vadd.f32 %v1853, %v1941
          %v1943 = vpop.f32.mrb[0].mxu0
          %1944 = vmatprep.mubr.f32.mxu0 0.0
          %1945 = vmatmul.mubr.f32.gmra.mrb[0].mxu0 %v247
          %v1946 = vpop.f32.mrb[0].mxu0
          %v1947 = vadd.f32 %v1853, %v1946
          %v1948 = vpop.f32.mrb[0].mxu0
          %1949 = vmatprep.mubr.f32.mxu0 0.0
          %1950 = vmatmul.mubr.f32.gmra.mrb[0].mxu0 %v248
          %v1951 = vpop.f32.mrb[0].mxu0
          %v1952 = vadd.f32 %v1853, %v1951
          %v1953 = vpop.f32.mrb[0].mxu0
          %1954 = vmatprep.mubr.f32.mxu0 0.0
          %1955 = vmatmul.mubr.f32.gmra.mrb[0].mxu0 %v249
          %v1956 = vpop.f32.mrb[0].mxu0
          %v1957 = vadd.f32 %v1853, %v1956
          %v1958 = vpop.f32.mrb[0].mxu0
          %1959 = vmatprep.mubr.f32.mxu0 0.0
          %1960 = vmatmul.mubr.f32.gmra.mrb[0].mxu0 %v250
          %v1961 = vpop.f32.mrb[0].mxu0
          %v1962 = vadd.f32 %v1853, %v1961
          %v1963 = vpop.f32.mrb[0].mxu0
          %1964 = vmatprep.mubr.f32.mxu0 0.0
          %1965 = vmatmul.mubr.f32.gmra.mrb[0].mxu0 %v251
          %v1966 = vpop.f32.mrb[0].mxu0
          %v1967 = vadd.f32 %v1853, %v1966
          %v1968 = vpop.f32.mrb[0].mxu0
          %1969 = vmatprep.mubr.f32.mxu0 0.0
          %1970 = vmatmul.mubr.f32.gmra.mrb[0].mxu0 %v252
          %v1971 = vpop.f32.mrb[0].mxu0
          %v1972 = vadd.f32 %v1853, %v1971
          %v1973 = vpop.f32.mrb[0].mxu0
          %1974 = vmatprep.mubr.f32.mxu0 0.0
          %1975 = vmatmul.mubr.f32.gmra.mrb[0].mxu0 %v253
          %v1976 = vpop.f32.mrb[0].mxu0
          %v1977 = vadd.f32 %v1853, %v1976
          %v1978 = vpop.f32.mrb[0].mxu0
          %1979 = vmatprep.mubr.f32.mxu0 0.0
          %1980 = vmatmul.mubr.f32.gmra.mrb[0].mxu0 %v254
          %v1981 = vpop.f32.mrb[0].mxu0
          %v1982 = vadd.f32 %v1853, %v1981
          %v1983 = vpop.f32.mrb[0].mxu0
          %1984 = vmatprep.mubr.f32.mxu0 0.0
          %1985 = vmatmul.mubr.f32.gmra.mrb[0].mxu0 %v255
          %v1986 = vpop.f32.mrb[0].mxu0
          %v1987 = vadd.f32 %v1853, %v1986
          %v1988 = vpop.f32.mrb[0].mxu0
          %1989 = vmatprep.mubr.f32.mxu0 0.0
          %1990 = vmatmul.mubr.f32.gmra.mrb[0].mxu0 %v256
          %v1991 = vpop.f32.mrb[0].mxu0
          %v1992 = vadd.f32 %v1853, %v1991
          %v1993 = vpop.f32.mrb[0].mxu0
          %1994 = vmatprep.mubr.f32.mxu0 0.0
          %1995 = vmatmul.mubr.f32.gmra.mrb[0].mxu0 %v257
          %v1996 = vpop.f32.mrb[0].mxu0
          %v1997 = vadd.f32 %v1853, %v1996
          %v1998 = vpop.f32.mrb[0].mxu0
          %1999 = vmatprep.mubr.f32.mxu0 0.0
          %2000 = vmatmul.mubr.f32.gmra.mrb[0].mxu0 %v258
          %v2001 = vpop.f32.mrb[0].mxu0
          %v2002 = vadd.f32 %v1853, %v2001
          %v2003 = vpop.f32.mrb[0].mxu0
          %2004 = vmatprep.mubr.f32.mxu0 0.0
          %2005 = vmatmul.mubr.f32.gmra.mrb[0].mxu0 %v259
          %v2006 = vpop.f32.mrb[0].mxu0
          %v2007 = vadd.f32 %v1853, %v2006
          %v2008 = vpop.f32.mrb[0].mxu0
          %2009 = vmatprep.mubr.f32.mxu0 0.0
          %2010 = vmatmul.mubr.f32.gmra.mrb[0].mxu0 %v260
          %v2011 = vpop.f32.mrb[0].mxu0
          %v2012 = vadd.f32 %v1853, %v2011
          %v2013 = vpop.f32.mrb[0].mxu0
          %2014 = vmatprep.mubr.f32.mxu0 0.0
          %2015 = vmatmul.mubr.f32.gmra.mrb[0].mxu0 %v261
          %v2016 = vpop.f32.mrb[0].mxu0
          %v2017 = vadd.f32 %v1853, %v2016
          %v2018 = vpop.f32.mrb[0].mxu0
          %2019 = vmatprep.mubr.f32.mxu0 0.0
          %2020 = vmatmul.mubr.f32.gmra.mrb[0].mxu0 %v262
          %v2021 = vpop.f32.mrb[0].mxu0
          %v2022 = vadd.f32 %v1853, %v2021
          %v2023 = vpop.f32.mrb[0].mxu0
          %2024 = vmatprep.mubr.f32.mxu0 0.0
          %2025 = vmatmul.mubr.f32.gmra.mrb[0].mxu0 %v263
          %v2026 = vpop.f32.mrb[0].mxu0
          %v2027 = vadd.f32 %v1853, %v2026
          %v2028 = vpop.f32.mrb[0].mxu0
          %2029 = vmatprep.mubr.f32.mxu0 0.0
          %2030 = vmatmul.mubr.f32.gmra.mrb[0].mxu0 %v264
          %v2031 = vpop.f32.mrb[0].mxu0
          %v2032 = vadd.f32 %v1853, %v2031
          %v2033 = vpop.f32.mrb[0].mxu0
          %2034 = vmatprep.mubr.f32.mxu0 0.0
          %2035 = vmatmul.mubr.f32.gmra.mrb[0].mxu0 %v265
          %v2036 = vpop.f32.mrb[0].mxu0
          %v2037 = vadd.f32 %v1853, %v2036
          %v2038 = vpop.f32.mrb[0].mxu0
          %2039 = vmatprep.mubr.f32.mxu0 0.0
          %2040 = vmatmul.mubr.f32.gmra.mrb[0].mxu0 %v266
          %v2041 = vpop.f32.mrb[0].mxu0
          %v2042 = vadd.f32 %v1853, %v2041
          %v2043 = vpop.f32.mrb[0].mxu0
          %2044 = vmatprep.mubr.f32.mxu0 0.0
          %2045 = vmatmul.mubr.f32.gmra.mrb[0].mxu0 %v267
          %v2046 = vpop.f32.mrb[0].mxu0
          %v2047 = vadd.f32 %v1853, %v2046
          %v2048 = vpop.f32.mrb[0].mxu0
          %2049 = vmatprep.mubr.f32.mxu0 0.0
          %2050 = vmatmul.mubr.f32.gmra.mrb[0].mxu0 %v268
          %v2051 = vpop.f32.mrb[0].mxu0
          %v2052 = vadd.f32 %v1853, %v2051
          %v2053 = vpop.f32.mrb[0].mxu0
          %2054 = vmatprep.mubr.f32.mxu0 0.0
          %2055 = vmatmul.mubr.f32.gmra.mrb[0].mxu0 %v269
          %v2056 = vpop.f32.mrb[0].mxu0
          %v2057 = vadd.f32 %v1853, %v2056
          %v2058 = vpop.f32.mrb[0].mxu0
          %2059 = vmatprep.mubr.f32.mxu0 0.0
          %2060 = vmatmul.mubr.f32.gmra.mrb[0].mxu0 %v270
          %v2061 = vpop.f32.mrb[0].mxu0
          %v2062 = vadd.f32 %v1853, %v2061
          %v2063 = vpop.f32.mrb[0].mxu0
          %2064 = vmatprep.mubr.f32.mxu0 0.0
          %2065 = vmatmul.mubr.f32.gmra.mrb[0].mxu0 %v271
          %v2066 = vpop.f32.mrb[0].mxu0
          %v2067 = vadd.f32 %v1853, %v2066
          %v2068 = vpop.f32.mrb[0].mxu0
          %2069 = vmatprep.mubr.f32.mxu0 0.0
          %2070 = vmatmul.mubr.f32.gmra.mrb[0].mxu0 %v272
          %v2071 = vpop.f32.mrb[0].mxu0
          %v2072 = vadd.f32 %v1853, %v2071
          %v2073 = vpop.f32.mrb[0].mxu0
          %2074 = vmatprep.mubr.f32.mxu0 0.0
          %2075 = vmatmul.mubr.f32.gmra.mrb[0].mxu0 %v273
          %v2076 = vpop.f32.mrb[0].mxu0
          %v2077 = vadd.f32 %v1853, %v2076
          %v2078 = vpop.f32.mrb[0].mxu0
          %2079 = vdwg.mxu0
          %s2080 = scalar_lea.vmem [#allocation2], 1280
          %2081 = vst.msk [vmem:[%s2080] sm:$0xff] %vm554, %v1922
          %2082 = vst.msk [vmem:[%s2080 + $0x8] sm:$0xff] %vm554, %v1927
          %2083 = vst.msk [vmem:[%s2080 + $0x10] sm:$0xff] %vm554, %v1932
          %2084 = vst.msk [vmem:[%s2080 + $0x18] sm:$0xff] %vm554, %v1937
          %2085 = vst.msk [vmem:[%s2080 + $0x20] sm:$0xff] %vm554, %v1942
          %2086 = vst.msk [vmem:[%s2080 + $0x28] sm:$0xff] %vm554, %v1947
          %2087 = vst.msk [vmem:[%s2080 + $0x30] sm:$0xff] %vm554, %v1952
          %2088 = vst.msk [vmem:[%s2080 + $0x38] sm:$0xff] %vm554, %v1957
          %2089 = vst.msk [vmem:[%s2080 + $0x40] sm:$0xff] %vm554, %v1962
          %2090 = vst.msk [vmem:[%s2080 + $0x48] sm:$0xff] %vm554, %v1967
          %2091 = vst.msk [vmem:[%s2080 + $0x50] sm:$0xff] %vm554, %v1972
          %2092 = vst.msk [vmem:[%s2080 + $0x58] sm:$0xff] %vm554, %v1977
          %2093 = vst.msk [vmem:[%s2080 + $0x60] sm:$0xff] %vm554, %v1982
          %2094 = vst.msk [vmem:[%s2080 + $0x68] sm:$0xff] %vm554, %v1987
          %2095 = vst.msk [vmem:[%s2080 + $0x70] sm:$0xff] %vm554, %v1992
          %2096 = vst.msk [vmem:[%s2080 + $0x78] sm:$0xff] %vm554, %v1997
          %2097 = vst.msk [vmem:[%s2080 + $0x80] sm:$0xff] %vm554, %v2002
          %2098 = vst.msk [vmem:[%s2080 + $0x88] sm:$0xff] %vm554, %v2007
          %2099 = vst.msk [vmem:[%s2080 + $0x90] sm:$0xff] %vm554, %v2012
          %2100 = vst.msk [vmem:[%s2080 + $0x98] sm:$0xff] %vm554, %v2017
          %2101 = vst.msk [vmem:[%s2080 + $0xa0] sm:$0xff] %vm554, %v2022
          %2102 = vst.msk [vmem:[%s2080 + $0xa8] sm:$0xff] %vm554, %v2027
          %2103 = vst.msk [vmem:[%s2080 + $0xb0] sm:$0xff] %vm554, %v2032
          %2104 = vst.msk [vmem:[%s2080 + $0xb8] sm:$0xff] %vm554, %v2037
          %2105 = vst.msk [vmem:[%s2080 + $0xc0] sm:$0xff] %vm554, %v2042
          %2106 = vst.msk [vmem:[%s2080 + $0xc8] sm:$0xff] %vm554, %v2047
          %2107 = vst.msk [vmem:[%s2080 + $0xd0] sm:$0xff] %vm554, %v2052
          %2108 = vst.msk [vmem:[%s2080 + $0xd8] sm:$0xff] %vm554, %v2057
          %2109 = vst.msk [vmem:[%s2080 + $0xe0] sm:$0xff] %vm554, %v2062
          %2110 = vst.msk [vmem:[%s2080 + $0xe8] sm:$0xff] %vm554, %v2067
          %2111 = vst.msk [vmem:[%s2080 + $0xf0] sm:$0xff] %vm554, %v2072
          %2112 = vst.msk [vmem:[%s2080 + $0xf8] sm:$0xff] %vm554, %v2077
          %s2113 = scalar_lea.vmem %s1, 256
          %v2114 = vld [vmem:[%s2113] sm:$0xff]
          %v2115 = vld [vmem:[%s2113 + $0x8] sm:$0xff]
          %v2116 = vld [vmem:[%s2113 + $0x10] sm:$0xff]
          %v2117 = vld [vmem:[%s2113 + $0x18] sm:$0xff]
          %v2118 = vld [vmem:[%s2113 + $0x20] sm:$0xff]
          %v2119 = vld [vmem:[%s2113 + $0x28] sm:$0xff]
          %v2120 = vld [vmem:[%s2113 + $0x30] sm:$0xff]
          %v2121 = vld [vmem:[%s2113 + $0x38] sm:$0xff]
          %v2122 = vld [vmem:[%s2113 + $0x40] sm:$0xff]
          %v2123 = vld [vmem:[%s2113 + $0x48] sm:$0xff]
          %v2124 = vld [vmem:[%s2113 + $0x50] sm:$0xff]
          %v2125 = vld [vmem:[%s2113 + $0x58] sm:$0xff]
          %v2126 = vld [vmem:[%s2113 + $0x60] sm:$0xff]
          %v2127 = vld [vmem:[%s2113 + $0x68] sm:$0xff]
          %v2128 = vld [vmem:[%s2113 + $0x70] sm:$0xff]
          %v2129 = vld [vmem:[%s2113 + $0x78] sm:$0xff]
          %s2130 = scalar_lea.vmem %s2, 2
          %v2131 = vld [vmem:[%s2130] sm:$0x1]
          %v2133 = vlaneseq
          %v2134 = vshrl.u32 %v2133, 7
          %v2135 = vsub.s32 0, %v2134
          %v2136 = vrot.slane %v2131, %v2135
          %2138 = vmatprep.subr.mxu0 0.0
          %2139 = vmatpush1.msra.mxu0 %v2114
          %2140 = vmatprep.subr.mxu0 0.0
          %2141 = vmatpush1.msra.mxu0 %v2115
          %2142 = vmatprep.subr.mxu0 0.0
          %2143 = vmatpush1.msra.mxu0 %v2116
          %2144 = vmatprep.subr.mxu0 0.0
          %2145 = vmatpush1.msra.mxu0 %v2117
          %2146 = vmatprep.subr.mxu0 0.0
          %2147 = vmatpush1.msra.mxu0 %v2118
          %2148 = vmatprep.subr.mxu0 0.0
          %2149 = vmatpush1.msra.mxu0 %v2119
          %2150 = vmatprep.subr.mxu0 0.0
          %2151 = vmatpush1.msra.mxu0 %v2120
          %2152 = vmatprep.subr.mxu0 0.0
          %2153 = vmatpush1.msra.mxu0 %v2121
          %2154 = vmatprep.subr.mxu0 0.0
          %2155 = vmatpush1.msra.mxu0 %v2122
          %2156 = vmatprep.subr.mxu0 0.0
          %2157 = vmatpush1.msra.mxu0 %v2123
          %2158 = vmatprep.subr.mxu0 0.0
          %2159 = vmatpush1.msra.mxu0 %v2124
          %2160 = vmatprep.subr.mxu0 0.0
          %2161 = vmatpush1.msra.mxu0 %v2125
          %2162 = vmatprep.subr.mxu0 0.0
          %2163 = vmatpush1.msra.mxu0 %v2126
          %2164 = vmatprep.subr.mxu0 0.0
          %2165 = vmatpush1.msra.mxu0 %v2127
          %2166 = vmatprep.subr.mxu0 0.0
          %2167 = vmatpush1.msra.mxu0 %v2128
          %2168 = vmatprep.subr.mxu0 0.0
          %2169 = vmatpush1.msra.mxu0 %v2129
          %2170 = vmatprep.subr.mxu0 0.0
          %2171 = vmatpush1.msra.mxu0 0.0
          %2172 = vmatprep.subr.mxu0 0.0
          %2173 = vmatpush1.msra.mxu0 0.0
          %2174 = vmatprep.subr.mxu0 0.0
          %2175 = vmatpush1.msra.mxu0 0.0
          %2176 = vmatprep.subr.mxu0 0.0
          %2177 = vmatpush1.msra.mxu0 0.0
          %2178 = vmatprep.subr.mxu0 0.0
          %2179 = vmatpush1.msra.mxu0 0.0
          %2180 = vmatprep.subr.mxu0 0.0
          %2181 = vmatpush1.msra.mxu0 0.0
          %2182 = vmatprep.subr.mxu0 0.0
          %2183 = vmatpush1.msra.mxu0 0.0
          %2184 = vmatprep.subr.mxu0 0.0
          %2185 = vmatpush1.msra.mxu0 0.0
          %2186 = vmatprep.subr.mxu0 0.0
          %2187 = vmatpush1.msra.mxu0 0.0
          %2188 = vmatprep.subr.mxu0 0.0
          %2189 = vmatpush1.msra.mxu0 0.0
          %2190 = vmatprep.subr.mxu0 0.0
          %2191 = vmatpush1.msra.mxu0 0.0
          %2192 = vmatprep.subr.mxu0 0.0
          %2193 = vmatpush1.msra.mxu0 0.0
          %2194 = vmatprep.subr.mxu0 0.0
          %2195 = vmatpush1.msra.mxu0 0.0
          %2196 = vmatprep.subr.mxu0 0.0
          %2197 = vmatpush1.msra.mxu0 0.0
          %2198 = vmatprep.subr.mxu0 0.0
          %2199 = vmatpush1.msra.mxu0 0.0
          %2200 = vmatprep.subr.mxu0 0.0
          %2201 = vmatpush1.msra.mxu0 0.0
          %2202 = vmatprep.mubr.f32.mxu0 0.0
          %2203 = vmatmul.mubr.f32.gmra.mrb[0].mxu0 %v242
          %v2204 = vpop.f32.mrb[0].mxu0
          %v2205 = vadd.f32 %v2136, %v2204
          %v2206 = vpop.f32.mrb[0].mxu0
          %2207 = vmatprep.mubr.f32.mxu0 0.0
          %2208 = vmatmul.mubr.f32.gmra.mrb[0].mxu0 %v243
          %v2209 = vpop.f32.mrb[0].mxu0
          %v2210 = vadd.f32 %v2136, %v2209
          %v2211 = vpop.f32.mrb[0].mxu0
          %2212 = vmatprep.mubr.f32.mxu0 0.0
          %2213 = vmatmul.mubr.f32.gmra.mrb[0].mxu0 %v244
          %v2214 = vpop.f32.mrb[0].mxu0
          %v2215 = vadd.f32 %v2136, %v2214
          %v2216 = vpop.f32.mrb[0].mxu0
          %2217 = vmatprep.mubr.f32.mxu0 0.0
          %2218 = vmatmul.mubr.f32.gmra.mrb[0].mxu0 %v245
          %v2219 = vpop.f32.mrb[0].mxu0
          %v2220 = vadd.f32 %v2136, %v2219
          %v2221 = vpop.f32.mrb[0].mxu0
          %2222 = vmatprep.mubr.f32.mxu0 0.0
          %2223 = vmatmul.mubr.f32.gmra.mrb[0].mxu0 %v246
          %v2224 = vpop.f32.mrb[0].mxu0
          %v2225 = vadd.f32 %v2136, %v2224
          %v2226 = vpop.f32.mrb[0].mxu0
          %2227 = vmatprep.mubr.f32.mxu0 0.0
          %2228 = vmatmul.mubr.f32.gmra.mrb[0].mxu0 %v247
          %v2229 = vpop.f32.mrb[0].mxu0
          %v2230 = vadd.f32 %v2136, %v2229
          %v2231 = vpop.f32.mrb[0].mxu0
          %2232 = vmatprep.mubr.f32.mxu0 0.0
          %2233 = vmatmul.mubr.f32.gmra.mrb[0].mxu0 %v248
          %v2234 = vpop.f32.mrb[0].mxu0
          %v2235 = vadd.f32 %v2136, %v2234
          %v2236 = vpop.f32.mrb[0].mxu0
          %2237 = vmatprep.mubr.f32.mxu0 0.0
          %2238 = vmatmul.mubr.f32.gmra.mrb[0].mxu0 %v249
          %v2239 = vpop.f32.mrb[0].mxu0
          %v2240 = vadd.f32 %v2136, %v2239
          %v2241 = vpop.f32.mrb[0].mxu0
          %2242 = vmatprep.mubr.f32.mxu0 0.0
          %2243 = vmatmul.mubr.f32.gmra.mrb[0].mxu0 %v250
          %v2244 = vpop.f32.mrb[0].mxu0
          %v2245 = vadd.f32 %v2136, %v2244
          %v2246 = vpop.f32.mrb[0].mxu0
          %2247 = vmatprep.mubr.f32.mxu0 0.0
          %2248 = vmatmul.mubr.f32.gmra.mrb[0].mxu0 %v251
          %v2249 = vpop.f32.mrb[0].mxu0
          %v2250 = vadd.f32 %v2136, %v2249
          %v2251 = vpop.f32.mrb[0].mxu0
          %2252 = vmatprep.mubr.f32.mxu0 0.0
          %2253 = vmatmul.mubr.f32.gmra.mrb[0].mxu0 %v252
          %v2254 = vpop.f32.mrb[0].mxu0
          %v2255 = vadd.f32 %v2136, %v2254
          %v2256 = vpop.f32.mrb[0].mxu0
          %2257 = vmatprep.mubr.f32.mxu0 0.0
          %2258 = vmatmul.mubr.f32.gmra.mrb[0].mxu0 %v253
          %v2259 = vpop.f32.mrb[0].mxu0
          %v2260 = vadd.f32 %v2136, %v2259
          %v2261 = vpop.f32.mrb[0].mxu0
          %2262 = vmatprep.mubr.f32.mxu0 0.0
          %2263 = vmatmul.mubr.f32.gmra.mrb[0].mxu0 %v254
          %v2264 = vpop.f32.mrb[0].mxu0
          %v2265 = vadd.f32 %v2136, %v2264
          %v2266 = vpop.f32.mrb[0].mxu0
          %2267 = vmatprep.mubr.f32.mxu0 0.0
          %2268 = vmatmul.mubr.f32.gmra.mrb[0].mxu0 %v255
          %v2269 = vpop.f32.mrb[0].mxu0
          %v2270 = vadd.f32 %v2136, %v2269
          %v2271 = vpop.f32.mrb[0].mxu0
          %2272 = vmatprep.mubr.f32.mxu0 0.0
          %2273 = vmatmul.mubr.f32.gmra.mrb[0].mxu0 %v256
          %v2274 = vpop.f32.mrb[0].mxu0
          %v2275 = vadd.f32 %v2136, %v2274
          %v2276 = vpop.f32.mrb[0].mxu0
          %2277 = vmatprep.mubr.f32.mxu0 0.0
          %2278 = vmatmul.mubr.f32.gmra.mrb[0].mxu0 %v257
          %v2279 = vpop.f32.mrb[0].mxu0
          %v2280 = vadd.f32 %v2136, %v2279
          %v2281 = vpop.f32.mrb[0].mxu0
          %2282 = vmatprep.mubr.f32.mxu0 0.0
          %2283 = vmatmul.mubr.f32.gmra.mrb[0].mxu0 %v258
          %v2284 = vpop.f32.mrb[0].mxu0
          %v2285 = vadd.f32 %v2136, %v2284
          %v2286 = vpop.f32.mrb[0].mxu0
          %2287 = vmatprep.mubr.f32.mxu0 0.0
          %2288 = vmatmul.mubr.f32.gmra.mrb[0].mxu0 %v259
          %v2289 = vpop.f32.mrb[0].mxu0
          %v2290 = vadd.f32 %v2136, %v2289
          %v2291 = vpop.f32.mrb[0].mxu0
          %2292 = vmatprep.mubr.f32.mxu0 0.0
          %2293 = vmatmul.mubr.f32.gmra.mrb[0].mxu0 %v260
          %v2294 = vpop.f32.mrb[0].mxu0
          %v2295 = vadd.f32 %v2136, %v2294
          %v2296 = vpop.f32.mrb[0].mxu0
          %2297 = vmatprep.mubr.f32.mxu0 0.0
          %2298 = vmatmul.mubr.f32.gmra.mrb[0].mxu0 %v261
          %v2299 = vpop.f32.mrb[0].mxu0
          %v2300 = vadd.f32 %v2136, %v2299
          %v2301 = vpop.f32.mrb[0].mxu0
          %2302 = vmatprep.mubr.f32.mxu0 0.0
          %2303 = vmatmul.mubr.f32.gmra.mrb[0].mxu0 %v262
          %v2304 = vpop.f32.mrb[0].mxu0
          %v2305 = vadd.f32 %v2136, %v2304
          %v2306 = vpop.f32.mrb[0].mxu0
          %2307 = vmatprep.mubr.f32.mxu0 0.0
          %2308 = vmatmul.mubr.f32.gmra.mrb[0].mxu0 %v263
          %v2309 = vpop.f32.mrb[0].mxu0
          %v2310 = vadd.f32 %v2136, %v2309
          %v2311 = vpop.f32.mrb[0].mxu0
          %2312 = vmatprep.mubr.f32.mxu0 0.0
          %2313 = vmatmul.mubr.f32.gmra.mrb[0].mxu0 %v264
          %v2314 = vpop.f32.mrb[0].mxu0
          %v2315 = vadd.f32 %v2136, %v2314
          %v2316 = vpop.f32.mrb[0].mxu0
          %2317 = vmatprep.mubr.f32.mxu0 0.0
          %2318 = vmatmul.mubr.f32.gmra.mrb[0].mxu0 %v265
          %v2319 = vpop.f32.mrb[0].mxu0
          %v2320 = vadd.f32 %v2136, %v2319
          %v2321 = vpop.f32.mrb[0].mxu0
          %2322 = vmatprep.mubr.f32.mxu0 0.0
          %2323 = vmatmul.mubr.f32.gmra.mrb[0].mxu0 %v266
          %v2324 = vpop.f32.mrb[0].mxu0
          %v2325 = vadd.f32 %v2136, %v2324
          %v2326 = vpop.f32.mrb[0].mxu0
          %2327 = vmatprep.mubr.f32.mxu0 0.0
          %2328 = vmatmul.mubr.f32.gmra.mrb[0].mxu0 %v267
          %v2329 = vpop.f32.mrb[0].mxu0
          %v2330 = vadd.f32 %v2136, %v2329
          %v2331 = vpop.f32.mrb[0].mxu0
          %2332 = vmatprep.mubr.f32.mxu0 0.0
          %2333 = vmatmul.mubr.f32.gmra.mrb[0].mxu0 %v268
          %v2334 = vpop.f32.mrb[0].mxu0
          %v2335 = vadd.f32 %v2136, %v2334
          %v2336 = vpop.f32.mrb[0].mxu0
          %2337 = vmatprep.mubr.f32.mxu0 0.0
          %2338 = vmatmul.mubr.f32.gmra.mrb[0].mxu0 %v269
          %v2339 = vpop.f32.mrb[0].mxu0
          %v2340 = vadd.f32 %v2136, %v2339
          %v2341 = vpop.f32.mrb[0].mxu0
          %2342 = vmatprep.mubr.f32.mxu0 0.0
          %2343 = vmatmul.mubr.f32.gmra.mrb[0].mxu0 %v270
          %v2344 = vpop.f32.mrb[0].mxu0
          %v2345 = vadd.f32 %v2136, %v2344
          %v2346 = vpop.f32.mrb[0].mxu0
          %2347 = vmatprep.mubr.f32.mxu0 0.0
          %2348 = vmatmul.mubr.f32.gmra.mrb[0].mxu0 %v271
          %v2349 = vpop.f32.mrb[0].mxu0
          %v2350 = vadd.f32 %v2136, %v2349
          %v2351 = vpop.f32.mrb[0].mxu0
          %2352 = vmatprep.mubr.f32.mxu0 0.0
          %2353 = vmatmul.mubr.f32.gmra.mrb[0].mxu0 %v272
          %v2354 = vpop.f32.mrb[0].mxu0
          %v2355 = vadd.f32 %v2136, %v2354
          %v2356 = vpop.f32.mrb[0].mxu0
          %2357 = vmatprep.mubr.f32.mxu0 0.0
          %2358 = vmatmul.mubr.f32.gmra.mrb[0].mxu0 %v273
          %v2359 = vpop.f32.mrb[0].mxu0
          %v2360 = vadd.f32 %v2136, %v2359
          %v2361 = vpop.f32.mrb[0].mxu0
          %2362 = vdwg.mxu0
          %v2363 = vmul.f32 %v2205, 0.17677669
          %v2364 = vmul.f32 %v2210, 0.17677669
          %v2365 = vmul.f32 %v2215, 0.17677669
          %v2366 = vmul.f32 %v2220, 0.17677669
          %v2367 = vmul.f32 %v2225, 0.17677669
          %v2368 = vmul.f32 %v2230, 0.17677669
          %v2369 = vmul.f32 %v2235, 0.17677669
          %v2370 = vmul.f32 %v2240, 0.17677669
          %v2371 = vmul.f32 %v2245, 0.17677669
          %v2372 = vmul.f32 %v2250, 0.17677669
          %v2373 = vmul.f32 %v2255, 0.17677669
          %v2374 = vmul.f32 %v2260, 0.17677669
          %v2375 = vmul.f32 %v2265, 0.17677669
          %v2376 = vmul.f32 %v2270, 0.17677669
          %v2377 = vmul.f32 %v2275, 0.17677669
          %v2378 = vmul.f32 %v2280, 0.17677669
          %v2379 = vmul.f32 %v2285, 0.17677669
          %v2380 = vmul.f32 %v2290, 0.17677669
          %v2381 = vmul.f32 %v2295, 0.17677669
          %v2382 = vmul.f32 %v2300, 0.17677669
          %v2383 = vmul.f32 %v2305, 0.17677669
          %v2384 = vmul.f32 %v2310, 0.17677669
          %v2385 = vmul.f32 %v2315, 0.17677669
          %v2386 = vmul.f32 %v2320, 0.17677669
          %v2387 = vmul.f32 %v2325, 0.17677669
          %v2388 = vmul.f32 %v2330, 0.17677669
          %v2389 = vmul.f32 %v2335, 0.17677669
          %v2390 = vmul.f32 %v2340, 0.17677669
          %v2391 = vmul.f32 %v2345, 0.17677669
          %v2392 = vmul.f32 %v2350, 0.17677669
          %v2393 = vmul.f32 %v2355, 0.17677669
          %v2394 = vmul.f32 %v2360, 0.17677669
          %s2395 = scalar_lea.vmem [#allocation2], 512
          %2396 = vst.msk [vmem:[%s2395] sm:$0xff] %vm554, %v2363
          %2397 = vst.msk [vmem:[%s2395 + $0x8] sm:$0xff] %vm554, %v2364
          %2398 = vst.msk [vmem:[%s2395 + $0x10] sm:$0xff] %vm554, %v2365
          %2399 = vst.msk [vmem:[%s2395 + $0x18] sm:$0xff] %vm554, %v2366
          %2400 = vst.msk [vmem:[%s2395 + $0x20] sm:$0xff] %vm554, %v2367
          %2401 = vst.msk [vmem:[%s2395 + $0x28] sm:$0xff] %vm554, %v2368
          %2402 = vst.msk [vmem:[%s2395 + $0x30] sm:$0xff] %vm554, %v2369
          %2403 = vst.msk [vmem:[%s2395 + $0x38] sm:$0xff] %vm554, %v2370
          %2404 = vst.msk [vmem:[%s2395 + $0x40] sm:$0xff] %vm554, %v2371
          %2405 = vst.msk [vmem:[%s2395 + $0x48] sm:$0xff] %vm554, %v2372
          %2406 = vst.msk [vmem:[%s2395 + $0x50] sm:$0xff] %vm554, %v2373
          %2407 = vst.msk [vmem:[%s2395 + $0x58] sm:$0xff] %vm554, %v2374
          %2408 = vst.msk [vmem:[%s2395 + $0x60] sm:$0xff] %vm554, %v2375
          %2409 = vst.msk [vmem:[%s2395 + $0x68] sm:$0xff] %vm554, %v2376
          %2410 = vst.msk [vmem:[%s2395 + $0x70] sm:$0xff] %vm554, %v2377
          %2411 = vst.msk [vmem:[%s2395 + $0x78] sm:$0xff] %vm554, %v2378
          %2412 = vst.msk [vmem:[%s2395 + $0x80] sm:$0xff] %vm554, %v2379
          %2413 = vst.msk [vmem:[%s2395 + $0x88] sm:$0xff] %vm554, %v2380
          %2414 = vst.msk [vmem:[%s2395 + $0x90] sm:$0xff] %vm554, %v2381
          %2415 = vst.msk [vmem:[%s2395 + $0x98] sm:$0xff] %vm554, %v2382
          %2416 = vst.msk [vmem:[%s2395 + $0xa0] sm:$0xff] %vm554, %v2383
          %2417 = vst.msk [vmem:[%s2395 + $0xa8] sm:$0xff] %vm554, %v2384
          %2418 = vst.msk [vmem:[%s2395 + $0xb0] sm:$0xff] %vm554, %v2385
          %2419 = vst.msk [vmem:[%s2395 + $0xb8] sm:$0xff] %vm554, %v2386
          %2420 = vst.msk [vmem:[%s2395 + $0xc0] sm:$0xff] %vm554, %v2387
          %2421 = vst.msk [vmem:[%s2395 + $0xc8] sm:$0xff] %vm554, %v2388
          %2422 = vst.msk [vmem:[%s2395 + $0xd0] sm:$0xff] %vm554, %v2389
          %2423 = vst.msk [vmem:[%s2395 + $0xd8] sm:$0xff] %vm554, %v2390
          %2424 = vst.msk [vmem:[%s2395 + $0xe0] sm:$0xff] %vm554, %v2391
          %2425 = vst.msk [vmem:[%s2395 + $0xe8] sm:$0xff] %vm554, %v2392
          %2426 = vst.msk [vmem:[%s2395 + $0xf0] sm:$0xff] %vm554, %v2393
          %2427 = vst.msk [vmem:[%s2395 + $0xf8] sm:$0xff] %vm554, %v2394
          %s2428 = scalar_lea.vmem %s1, 768
          %v2429 = vld [vmem:[%s2428] sm:$0xff]
          %v2430 = vld [vmem:[%s2428 + $0x8] sm:$0xff]
          %v2431 = vld [vmem:[%s2428 + $0x10] sm:$0xff]
          %v2432 = vld [vmem:[%s2428 + $0x18] sm:$0xff]
          %v2433 = vld [vmem:[%s2428 + $0x20] sm:$0xff]
          %v2434 = vld [vmem:[%s2428 + $0x28] sm:$0xff]
          %v2435 = vld [vmem:[%s2428 + $0x30] sm:$0xff]
          %v2436 = vld [vmem:[%s2428 + $0x38] sm:$0xff]
          %v2437 = vld [vmem:[%s2428 + $0x40] sm:$0xff]
          %v2438 = vld [vmem:[%s2428 + $0x48] sm:$0xff]
          %v2439 = vld [vmem:[%s2428 + $0x50] sm:$0xff]
          %v2440 = vld [vmem:[%s2428 + $0x58] sm:$0xff]
          %v2441 = vld [vmem:[%s2428 + $0x60] sm:$0xff]
          %v2442 = vld [vmem:[%s2428 + $0x68] sm:$0xff]
          %v2443 = vld [vmem:[%s2428 + $0x70] sm:$0xff]
          %v2444 = vld [vmem:[%s2428 + $0x78] sm:$0xff]
          %s2445 = scalar_lea.vmem %s2, 6
          %v2446 = vld [vmem:[%s2445] sm:$0x1]
          %v2448 = vlaneseq
          %v2449 = vshrl.u32 %v2448, 7
          %v2450 = vsub.s32 0, %v2449
          %v2451 = vrot.slane %v2446, %v2450
          %2453 = vmatprep.subr.mxu0 0.0
          %2454 = vmatpush1.msra.mxu0 %v2429
          %2455 = vmatprep.subr.mxu0 0.0
          %2456 = vmatpush1.msra.mxu0 %v2430
          %2457 = vmatprep.subr.mxu0 0.0
          %2458 = vmatpush1.msra.mxu0 %v2431
          %2459 = vmatprep.subr.mxu0 0.0
          %2460 = vmatpush1.msra.mxu0 %v2432
          %2461 = vmatprep.subr.mxu0 0.0
          %2462 = vmatpush1.msra.mxu0 %v2433
          %2463 = vmatprep.subr.mxu0 0.0
          %2464 = vmatpush1.msra.mxu0 %v2434
          %2465 = vmatprep.subr.mxu0 0.0
          %2466 = vmatpush1.msra.mxu0 %v2435
          %2467 = vmatprep.subr.mxu0 0.0
          %2468 = vmatpush1.msra.mxu0 %v2436
          %2469 = vmatprep.subr.mxu0 0.0
          %2470 = vmatpush1.msra.mxu0 %v2437
          %2471 = vmatprep.subr.mxu0 0.0
          %2472 = vmatpush1.msra.mxu0 %v2438
          %2473 = vmatprep.subr.mxu0 0.0
          %2474 = vmatpush1.msra.mxu0 %v2439
          %2475 = vmatprep.subr.mxu0 0.0
          %2476 = vmatpush1.msra.mxu0 %v2440
          %2477 = vmatprep.subr.mxu0 0.0
          %2478 = vmatpush1.msra.mxu0 %v2441
          %2479 = vmatprep.subr.mxu0 0.0
          %2480 = vmatpush1.msra.mxu0 %v2442
          %2481 = vmatprep.subr.mxu0 0.0
          %2482 = vmatpush1.msra.mxu0 %v2443
          %2483 = vmatprep.subr.mxu0 0.0
          %2484 = vmatpush1.msra.mxu0 %v2444
          %2485 = vmatprep.subr.mxu0 0.0
          %2486 = vmatpush1.msra.mxu0 0.0
          %2487 = vmatprep.subr.mxu0 0.0
          %2488 = vmatpush1.msra.mxu0 0.0
          %2489 = vmatprep.subr.mxu0 0.0
          %2490 = vmatpush1.msra.mxu0 0.0
          %2491 = vmatprep.subr.mxu0 0.0
          %2492 = vmatpush1.msra.mxu0 0.0
          %2493 = vmatprep.subr.mxu0 0.0
          %2494 = vmatpush1.msra.mxu0 0.0
          %2495 = vmatprep.subr.mxu0 0.0
          %2496 = vmatpush1.msra.mxu0 0.0
          %2497 = vmatprep.subr.mxu0 0.0
          %2498 = vmatpush1.msra.mxu0 0.0
          %2499 = vmatprep.subr.mxu0 0.0
          %2500 = vmatpush1.msra.mxu0 0.0
          %2501 = vmatprep.subr.mxu0 0.0
          %2502 = vmatpush1.msra.mxu0 0.0
          %2503 = vmatprep.subr.mxu0 0.0
          %2504 = vmatpush1.msra.mxu0 0.0
          %2505 = vmatprep.subr.mxu0 0.0
          %2506 = vmatpush1.msra.mxu0 0.0
          %2507 = vmatprep.subr.mxu0 0.0
          %2508 = vmatpush1.msra.mxu0 0.0
          %2509 = vmatprep.subr.mxu0 0.0
          %2510 = vmatpush1.msra.mxu0 0.0
          %2511 = vmatprep.subr.mxu0 0.0
          %2512 = vmatpush1.msra.mxu0 0.0
          %2513 = vmatprep.subr.mxu0 0.0
          %2514 = vmatpush1.msra.mxu0 0.0
          %2515 = vmatprep.subr.mxu0 0.0
          %2516 = vmatpush1.msra.mxu0 0.0
          %2517 = vmatprep.mubr.f32.mxu0 0.0
          %2518 = vmatmul.mubr.f32.gmra.mrb[0].mxu0 %v242
          %v2519 = vpop.f32.mrb[0].mxu0
          %v2520 = vadd.f32 %v2451, %v2519
          %v2521 = vpop.f32.mrb[0].mxu0
          %2522 = vmatprep.mubr.f32.mxu0 0.0
          %2523 = vmatmul.mubr.f32.gmra.mrb[0].mxu0 %v243
          %v2524 = vpop.f32.mrb[0].mxu0
          %v2525 = vadd.f32 %v2451, %v2524
          %v2526 = vpop.f32.mrb[0].mxu0
          %2527 = vmatprep.mubr.f32.mxu0 0.0
          %2528 = vmatmul.mubr.f32.gmra.mrb[0].mxu0 %v244
          %v2529 = vpop.f32.mrb[0].mxu0
          %v2530 = vadd.f32 %v2451, %v2529
          %v2531 = vpop.f32.mrb[0].mxu0
          %2532 = vmatprep.mubr.f32.mxu0 0.0
          %2533 = vmatmul.mubr.f32.gmra.mrb[0].mxu0 %v245
          %v2534 = vpop.f32.mrb[0].mxu0
          %v2535 = vadd.f32 %v2451, %v2534
          %v2536 = vpop.f32.mrb[0].mxu0
          %2537 = vmatprep.mubr.f32.mxu0 0.0
          %2538 = vmatmul.mubr.f32.gmra.mrb[0].mxu0 %v246
          %v2539 = vpop.f32.mrb[0].mxu0
          %v2540 = vadd.f32 %v2451, %v2539
          %v2541 = vpop.f32.mrb[0].mxu0
          %2542 = vmatprep.mubr.f32.mxu0 0.0
          %2543 = vmatmul.mubr.f32.gmra.mrb[0].mxu0 %v247
          %v2544 = vpop.f32.mrb[0].mxu0
          %v2545 = vadd.f32 %v2451, %v2544
          %v2546 = vpop.f32.mrb[0].mxu0
          %2547 = vmatprep.mubr.f32.mxu0 0.0
          %2548 = vmatmul.mubr.f32.gmra.mrb[0].mxu0 %v248
          %v2549 = vpop.f32.mrb[0].mxu0
          %v2550 = vadd.f32 %v2451, %v2549
          %v2551 = vpop.f32.mrb[0].mxu0
          %2552 = vmatprep.mubr.f32.mxu0 0.0
          %2553 = vmatmul.mubr.f32.gmra.mrb[0].mxu0 %v249
          %v2554 = vpop.f32.mrb[0].mxu0
          %v2555 = vadd.f32 %v2451, %v2554
          %v2556 = vpop.f32.mrb[0].mxu0
          %2557 = vmatprep.mubr.f32.mxu0 0.0
          %2558 = vmatmul.mubr.f32.gmra.mrb[0].mxu0 %v250
          %v2559 = vpop.f32.mrb[0].mxu0
          %v2560 = vadd.f32 %v2451, %v2559
          %v2561 = vpop.f32.mrb[0].mxu0
          %2562 = vmatprep.mubr.f32.mxu0 0.0
          %2563 = vmatmul.mubr.f32.gmra.mrb[0].mxu0 %v251
          %v2564 = vpop.f32.mrb[0].mxu0
          %v2565 = vadd.f32 %v2451, %v2564
          %v2566 = vpop.f32.mrb[0].mxu0
          %2567 = vmatprep.mubr.f32.mxu0 0.0
          %2568 = vmatmul.mubr.f32.gmra.mrb[0].mxu0 %v252
          %v2569 = vpop.f32.mrb[0].mxu0
          %v2570 = vadd.f32 %v2451, %v2569
          %v2571 = vpop.f32.mrb[0].mxu0
          %2572 = vmatprep.mubr.f32.mxu0 0.0
          %2573 = vmatmul.mubr.f32.gmra.mrb[0].mxu0 %v253
          %v2574 = vpop.f32.mrb[0].mxu0
          %v2575 = vadd.f32 %v2451, %v2574
          %v2576 = vpop.f32.mrb[0].mxu0
          %2577 = vmatprep.mubr.f32.mxu0 0.0
          %2578 = vmatmul.mubr.f32.gmra.mrb[0].mxu0 %v254
          %v2579 = vpop.f32.mrb[0].mxu0
          %v2580 = vadd.f32 %v2451, %v2579
          %v2581 = vpop.f32.mrb[0].mxu0
          %2582 = vmatprep.mubr.f32.mxu0 0.0
          %2583 = vmatmul.mubr.f32.gmra.mrb[0].mxu0 %v255
          %v2584 = vpop.f32.mrb[0].mxu0
          %v2585 = vadd.f32 %v2451, %v2584
          %v2586 = vpop.f32.mrb[0].mxu0
          %2587 = vmatprep.mubr.f32.mxu0 0.0
          %2588 = vmatmul.mubr.f32.gmra.mrb[0].mxu0 %v256
          %v2589 = vpop.f32.mrb[0].mxu0
          %v2590 = vadd.f32 %v2451, %v2589
          %v2591 = vpop.f32.mrb[0].mxu0
          %2592 = vmatprep.mubr.f32.mxu0 0.0
          %2593 = vmatmul.mubr.f32.gmra.mrb[0].mxu0 %v257
          %v2594 = vpop.f32.mrb[0].mxu0
          %v2595 = vadd.f32 %v2451, %v2594
          %v2596 = vpop.f32.mrb[0].mxu0
          %2597 = vmatprep.mubr.f32.mxu0 0.0
          %2598 = vmatmul.mubr.f32.gmra.mrb[0].mxu0 %v258
          %v2599 = vpop.f32.mrb[0].mxu0
          %v2600 = vadd.f32 %v2451, %v2599
          %v2601 = vpop.f32.mrb[0].mxu0
          %2602 = vmatprep.mubr.f32.mxu0 0.0
          %2603 = vmatmul.mubr.f32.gmra.mrb[0].mxu0 %v259
          %v2604 = vpop.f32.mrb[0].mxu0
          %v2605 = vadd.f32 %v2451, %v2604
          %v2606 = vpop.f32.mrb[0].mxu0
          %2607 = vmatprep.mubr.f32.mxu0 0.0
          %2608 = vmatmul.mubr.f32.gmra.mrb[0].mxu0 %v260
          %v2609 = vpop.f32.mrb[0].mxu0
          %v2610 = vadd.f32 %v2451, %v2609
          %v2611 = vpop.f32.mrb[0].mxu0
          %2612 = vmatprep.mubr.f32.mxu0 0.0
          %2613 = vmatmul.mubr.f32.gmra.mrb[0].mxu0 %v261
          %v2614 = vpop.f32.mrb[0].mxu0
          %v2615 = vadd.f32 %v2451, %v2614
          %v2616 = vpop.f32.mrb[0].mxu0
          %2617 = vmatprep.mubr.f32.mxu0 0.0
          %2618 = vmatmul.mubr.f32.gmra.mrb[0].mxu0 %v262
          %v2619 = vpop.f32.mrb[0].mxu0
          %v2620 = vadd.f32 %v2451, %v2619
          %v2621 = vpop.f32.mrb[0].mxu0
          %2622 = vmatprep.mubr.f32.mxu0 0.0
          %2623 = vmatmul.mubr.f32.gmra.mrb[0].mxu0 %v263
          %v2624 = vpop.f32.mrb[0].mxu0
          %v2625 = vadd.f32 %v2451, %v2624
          %v2626 = vpop.f32.mrb[0].mxu0
          %2627 = vmatprep.mubr.f32.mxu0 0.0
          %2628 = vmatmul.mubr.f32.gmra.mrb[0].mxu0 %v264
          %v2629 = vpop.f32.mrb[0].mxu0
          %v2630 = vadd.f32 %v2451, %v2629
          %v2631 = vpop.f32.mrb[0].mxu0
          %2632 = vmatprep.mubr.f32.mxu0 0.0
          %2633 = vmatmul.mubr.f32.gmra.mrb[0].mxu0 %v265
          %v2634 = vpop.f32.mrb[0].mxu0
          %v2635 = vadd.f32 %v2451, %v2634
          %v2636 = vpop.f32.mrb[0].mxu0
          %2637 = vmatprep.mubr.f32.mxu0 0.0
          %2638 = vmatmul.mubr.f32.gmra.mrb[0].mxu0 %v266
          %v2639 = vpop.f32.mrb[0].mxu0
          %v2640 = vadd.f32 %v2451, %v2639
          %v2641 = vpop.f32.mrb[0].mxu0
          %2642 = vmatprep.mubr.f32.mxu0 0.0
          %2643 = vmatmul.mubr.f32.gmra.mrb[0].mxu0 %v267
          %v2644 = vpop.f32.mrb[0].mxu0
          %v2645 = vadd.f32 %v2451, %v2644
          %v2646 = vpop.f32.mrb[0].mxu0
          %2647 = vmatprep.mubr.f32.mxu0 0.0
          %2648 = vmatmul.mubr.f32.gmra.mrb[0].mxu0 %v268
          %v2649 = vpop.f32.mrb[0].mxu0
          %v2650 = vadd.f32 %v2451, %v2649
          %v2651 = vpop.f32.mrb[0].mxu0
          %2652 = vmatprep.mubr.f32.mxu0 0.0
          %2653 = vmatmul.mubr.f32.gmra.mrb[0].mxu0 %v269
          %v2654 = vpop.f32.mrb[0].mxu0
          %v2655 = vadd.f32 %v2451, %v2654
          %v2656 = vpop.f32.mrb[0].mxu0
          %2657 = vmatprep.mubr.f32.mxu0 0.0
          %2658 = vmatmul.mubr.f32.gmra.mrb[0].mxu0 %v270
          %v2659 = vpop.f32.mrb[0].mxu0
          %v2660 = vadd.f32 %v2451, %v2659
          %v2661 = vpop.f32.mrb[0].mxu0
          %2662 = vmatprep.mubr.f32.mxu0 0.0
          %2663 = vmatmul.mubr.f32.gmra.mrb[0].mxu0 %v271
          %v2664 = vpop.f32.mrb[0].mxu0
          %v2665 = vadd.f32 %v2451, %v2664
          %v2666 = vpop.f32.mrb[0].mxu0
          %2667 = vmatprep.mubr.f32.mxu0 0.0
          %2668 = vmatmul.mubr.f32.gmra.mrb[0].mxu0 %v272
          %v2669 = vpop.f32.mrb[0].mxu0
          %v2670 = vadd.f32 %v2451, %v2669
          %v2671 = vpop.f32.mrb[0].mxu0
          %2672 = vmatprep.mubr.f32.mxu0 0.0
          %2673 = vmatmul.mubr.f32.gmra.mrb[0].mxu0 %v273
          %v2674 = vpop.f32.mrb[0].mxu0
          %v2675 = vadd.f32 %v2451, %v2674
          %v2676 = vpop.f32.mrb[0].mxu0
          %2677 = vdwg.mxu0
          %2678 = vxpose.xlu0.b32.start [1/16] %v2520, 128
          %2679 = vxpose.xlu0.b32.cont [2/16] %v2525, 128
          %2680 = vxpose.xlu0.b32.cont [3/16] %v2530, 128
          %2681 = vxpose.xlu0.b32.cont [4/16] %v2535, 128
          %2682 = vxpose.xlu0.b32.cont [5/16] %v2540, 128
          %2683 = vxpose.xlu0.b32.cont [6/16] %v2545, 128
          %2684 = vxpose.xlu0.b32.cont [7/16] %v2550, 128
          %2685 = vxpose.xlu0.b32.cont [8/16] %v2555, 128
          %2686 = vxpose.xlu0.b32.cont [9/16] %v2560, 128
          %2687 = vxpose.xlu0.b32.cont [10/16] %v2565, 128
          %2688 = vxpose.xlu0.b32.cont [11/16] %v2570, 128
          %2689 = vxpose.xlu0.b32.cont [12/16] %v2575, 128
          %2690 = vxpose.xlu0.b32.cont [13/16] %v2580, 128
          %2691 = vxpose.xlu0.b32.cont [14/16] %v2585, 128
          %2692 = vxpose.xlu0.b32.cont [15/16] %v2590, 128
          %2693 = vxpose.xlu0.b32.end [16/16] %v2595, 128
          %v2694 = vpop.trf.xlu0
          %v2695 = vpop.trf.xlu0
          %v2696 = vpop.trf.xlu0
          %v2697 = vpop.trf.xlu0
          %v2698 = vpop.trf.xlu0
          %v2699 = vpop.trf.xlu0
          %v2700 = vpop.trf.xlu0
          %v2701 = vpop.trf.xlu0
          %v2702 = vpop.trf.xlu0
          %v2703 = vpop.trf.xlu0
          %v2704 = vpop.trf.xlu0
          %v2705 = vpop.trf.xlu0
          %v2706 = vpop.trf.xlu0
          %v2707 = vpop.trf.xlu0
          %v2708 = vpop.trf.xlu0
          %v2709 = vpop.trf.xlu0
          %2710 = vxpose.xlu0.b32.start [1/16] %v2600, 128
          %2711 = vxpose.xlu0.b32.cont [2/16] %v2605, 128
          %2712 = vxpose.xlu0.b32.cont [3/16] %v2610, 128
          %2713 = vxpose.xlu0.b32.cont [4/16] %v2615, 128
          %2714 = vxpose.xlu0.b32.cont [5/16] %v2620, 128
          %2715 = vxpose.xlu0.b32.cont [6/16] %v2625, 128
          %2716 = vxpose.xlu0.b32.cont [7/16] %v2630, 128
          %2717 = vxpose.xlu0.b32.cont [8/16] %v2635, 128
          %2718 = vxpose.xlu0.b32.cont [9/16] %v2640, 128
          %2719 = vxpose.xlu0.b32.cont [10/16] %v2645, 128
          %2720 = vxpose.xlu0.b32.cont [11/16] %v2650, 128
          %2721 = vxpose.xlu0.b32.cont [12/16] %v2655, 128
          %2722 = vxpose.xlu0.b32.cont [13/16] %v2660, 128
          %2723 = vxpose.xlu0.b32.cont [14/16] %v2665, 128
          %2724 = vxpose.xlu0.b32.cont [15/16] %v2670, 128
          %2725 = vxpose.xlu0.b32.end [16/16] %v2675, 128
          %v2726 = vpop.trf.xlu0
          %v2727 = vpop.trf.xlu0
          %v2728 = vpop.trf.xlu0
          %v2729 = vpop.trf.xlu0
          %v2730 = vpop.trf.xlu0
          %v2731 = vpop.trf.xlu0
          %v2732 = vpop.trf.xlu0
          %v2733 = vpop.trf.xlu0
          %v2734 = vpop.trf.xlu0
          %v2735 = vpop.trf.xlu0
          %v2736 = vpop.trf.xlu0
          %v2737 = vpop.trf.xlu0
          %v2738 = vpop.trf.xlu0
          %v2739 = vpop.trf.xlu0
          %v2740 = vpop.trf.xlu0
          %v2741 = vpop.trf.xlu0
          %s2742 = scalar_lea.vmem [#allocation3], 128
          %2743 = vst [vmem:[%s2742] sm:$0xff] %v2694
          %2744 = vst [vmem:[%s2742 + $0x8] sm:$0xff] %v2726
          %2745 = vst [vmem:[%s2742 + $0x10] sm:$0xff] %v2695
          %2746 = vst [vmem:[%s2742 + $0x18] sm:$0xff] %v2727
          %2747 = vst [vmem:[%s2742 + $0x20] sm:$0xff] %v2696
          %2748 = vst [vmem:[%s2742 + $0x28] sm:$0xff] %v2728
          %2749 = vst [vmem:[%s2742 + $0x30] sm:$0xff] %v2697
          %2750 = vst [vmem:[%s2742 + $0x38] sm:$0xff] %v2729
          %s2751 = scalar_lea.vmem %s1, 1280
          %v2752 = vld [vmem:[%s2751] sm:$0xff]
          %v2753 = vld [vmem:[%s2751 + $0x8] sm:$0xff]
          %v2754 = vld [vmem:[%s2751 + $0x10] sm:$0xff]
          %v2755 = vld [vmem:[%s2751 + $0x18] sm:$0xff]
          %v2756 = vld [vmem:[%s2751 + $0x20] sm:$0xff]
          %v2757 = vld [vmem:[%s2751 + $0x28] sm:$0xff]
          %v2758 = vld [vmem:[%s2751 + $0x30] sm:$0xff]
          %v2759 = vld [vmem:[%s2751 + $0x38] sm:$0xff]
          %v2760 = vld [vmem:[%s2751 + $0x40] sm:$0xff]
          %v2761 = vld [vmem:[%s2751 + $0x48] sm:$0xff]
          %v2762 = vld [vmem:[%s2751 + $0x50] sm:$0xff]
          %v2763 = vld [vmem:[%s2751 + $0x58] sm:$0xff]
          %v2764 = vld [vmem:[%s2751 + $0x60] sm:$0xff]
          %v2765 = vld [vmem:[%s2751 + $0x68] sm:$0xff]
          %v2766 = vld [vmem:[%s2751 + $0x70] sm:$0xff]
          %v2767 = vld [vmem:[%s2751 + $0x78] sm:$0xff]
          %s2768 = scalar_lea.vmem %s2, 10
          %v2769 = vld [vmem:[%s2768] sm:$0x1]
          %v2771 = vlaneseq
          %v2772 = vshrl.u32 %v2771, 7
          %v2773 = vsub.s32 0, %v2772
          %v2774 = vrot.slane %v2769, %v2773
          %2776 = vmatprep.subr.mxu0 0.0
          %2777 = vmatpush1.msra.mxu0 %v2752
          %2778 = vmatprep.subr.mxu0 0.0
          %2779 = vmatpush1.msra.mxu0 %v2753
          %2780 = vmatprep.subr.mxu0 0.0
          %2781 = vmatpush1.msra.mxu0 %v2754
          %2782 = vmatprep.subr.mxu0 0.0
          %2783 = vmatpush1.msra.mxu0 %v2755
          %2784 = vmatprep.subr.mxu0 0.0
          %2785 = vmatpush1.msra.mxu0 %v2756
          %2786 = vmatprep.subr.mxu0 0.0
          %2787 = vmatpush1.msra.mxu0 %v2757
          %2788 = vmatprep.subr.mxu0 0.0
          %2789 = vmatpush1.msra.mxu0 %v2758
          %2790 = vmatprep.subr.mxu0 0.0
          %2791 = vmatpush1.msra.mxu0 %v2759
          %2792 = vmatprep.subr.mxu0 0.0
          %2793 = vmatpush1.msra.mxu0 %v2760
          %2794 = vmatprep.subr.mxu0 0.0
          %2795 = vmatpush1.msra.mxu0 %v2761
          %2796 = vmatprep.subr.mxu0 0.0
          %2797 = vmatpush1.msra.mxu0 %v2762
          %2798 = vmatprep.subr.mxu0 0.0
          %2799 = vmatpush1.msra.mxu0 %v2763
          %2800 = vmatprep.subr.mxu0 0.0
          %2801 = vmatpush1.msra.mxu0 %v2764
          %2802 = vmatprep.subr.mxu0 0.0
          %2803 = vmatpush1.msra.mxu0 %v2765
          %2804 = vmatprep.subr.mxu0 0.0
          %2805 = vmatpush1.msra.mxu0 %v2766
          %2806 = vmatprep.subr.mxu0 0.0
          %2807 = vmatpush1.msra.mxu0 %v2767
          %2808 = vmatprep.subr.mxu0 0.0
          %2809 = vmatpush1.msra.mxu0 0.0
          %2810 = vmatprep.subr.mxu0 0.0
          %2811 = vmatpush1.msra.mxu0 0.0
          %2812 = vmatprep.subr.mxu0 0.0
          %2813 = vmatpush1.msra.mxu0 0.0
          %2814 = vmatprep.subr.mxu0 0.0
          %2815 = vmatpush1.msra.mxu0 0.0
          %2816 = vmatprep.subr.mxu0 0.0
          %2817 = vmatpush1.msra.mxu0 0.0
          %2818 = vmatprep.subr.mxu0 0.0
          %2819 = vmatpush1.msra.mxu0 0.0
          %2820 = vmatprep.subr.mxu0 0.0
          %2821 = vmatpush1.msra.mxu0 0.0
          %2822 = vmatprep.subr.mxu0 0.0
          %2823 = vmatpush1.msra.mxu0 0.0
          %2824 = vmatprep.subr.mxu0 0.0
          %2825 = vmatpush1.msra.mxu0 0.0
          %2826 = vmatprep.subr.mxu0 0.0
          %2827 = vmatpush1.msra.mxu0 0.0
          %2828 = vmatprep.subr.mxu0 0.0
          %2829 = vmatpush1.msra.mxu0 0.0
          %2830 = vmatprep.subr.mxu0 0.0
          %2831 = vmatpush1.msra.mxu0 0.0
          %2832 = vmatprep.subr.mxu0 0.0
          %2833 = vmatpush1.msra.mxu0 0.0
          %2834 = vmatprep.subr.mxu0 0.0
          %2835 = vmatpush1.msra.mxu0 0.0
          %2836 = vmatprep.subr.mxu0 0.0
          %2837 = vmatpush1.msra.mxu0 0.0
          %2838 = vmatprep.subr.mxu0 0.0
          %2839 = vmatpush1.msra.mxu0 0.0
          %2840 = vmatprep.mubr.f32.mxu0 0.0
          %2841 = vmatmul.mubr.f32.gmra.mrb[0].mxu0 %v242
          %v2842 = vpop.f32.mrb[0].mxu0
          %v2843 = vadd.f32 %v2774, %v2842
          %v2844 = vpop.f32.mrb[0].mxu0
          %2845 = vmatprep.mubr.f32.mxu0 0.0
          %2846 = vmatmul.mubr.f32.gmra.mrb[0].mxu0 %v243
          %v2847 = vpop.f32.mrb[0].mxu0
          %v2848 = vadd.f32 %v2774, %v2847
          %v2849 = vpop.f32.mrb[0].mxu0
          %2850 = vmatprep.mubr.f32.mxu0 0.0
          %2851 = vmatmul.mubr.f32.gmra.mrb[0].mxu0 %v244
          %v2852 = vpop.f32.mrb[0].mxu0
          %v2853 = vadd.f32 %v2774, %v2852
          %v2854 = vpop.f32.mrb[0].mxu0
          %2855 = vmatprep.mubr.f32.mxu0 0.0
          %2856 = vmatmul.mubr.f32.gmra.mrb[0].mxu0 %v245
          %v2857 = vpop.f32.mrb[0].mxu0
          %v2858 = vadd.f32 %v2774, %v2857
          %v2859 = vpop.f32.mrb[0].mxu0
          %2860 = vmatprep.mubr.f32.mxu0 0.0
          %2861 = vmatmul.mubr.f32.gmra.mrb[0].mxu0 %v246
          %v2862 = vpop.f32.mrb[0].mxu0
          %v2863 = vadd.f32 %v2774, %v2862
          %v2864 = vpop.f32.mrb[0].mxu0
          %2865 = vmatprep.mubr.f32.mxu0 0.0
          %2866 = vmatmul.mubr.f32.gmra.mrb[0].mxu0 %v247
          %v2867 = vpop.f32.mrb[0].mxu0
          %v2868 = vadd.f32 %v2774, %v2867
          %v2869 = vpop.f32.mrb[0].mxu0
          %2870 = vmatprep.mubr.f32.mxu0 0.0
          %2871 = vmatmul.mubr.f32.gmra.mrb[0].mxu0 %v248
          %v2872 = vpop.f32.mrb[0].mxu0
          %v2873 = vadd.f32 %v2774, %v2872
          %v2874 = vpop.f32.mrb[0].mxu0
          %2875 = vmatprep.mubr.f32.mxu0 0.0
          %2876 = vmatmul.mubr.f32.gmra.mrb[0].mxu0 %v249
          %v2877 = vpop.f32.mrb[0].mxu0
          %v2878 = vadd.f32 %v2774, %v2877
          %v2879 = vpop.f32.mrb[0].mxu0
          %2880 = vmatprep.mubr.f32.mxu0 0.0
          %2881 = vmatmul.mubr.f32.gmra.mrb[0].mxu0 %v250
          %v2882 = vpop.f32.mrb[0].mxu0
          %v2883 = vadd.f32 %v2774, %v2882
          %v2884 = vpop.f32.mrb[0].mxu0
          %2885 = vmatprep.mubr.f32.mxu0 0.0
          %2886 = vmatmul.mubr.f32.gmra.mrb[0].mxu0 %v251
          %v2887 = vpop.f32.mrb[0].mxu0
          %v2888 = vadd.f32 %v2774, %v2887
          %v2889 = vpop.f32.mrb[0].mxu0
          %2890 = vmatprep.mubr.f32.mxu0 0.0
          %2891 = vmatmul.mubr.f32.gmra.mrb[0].mxu0 %v252
          %v2892 = vpop.f32.mrb[0].mxu0
          %v2893 = vadd.f32 %v2774, %v2892
          %v2894 = vpop.f32.mrb[0].mxu0
          %2895 = vmatprep.mubr.f32.mxu0 0.0
          %2896 = vmatmul.mubr.f32.gmra.mrb[0].mxu0 %v253
          %v2897 = vpop.f32.mrb[0].mxu0
          %v2898 = vadd.f32 %v2774, %v2897
          %v2899 = vpop.f32.mrb[0].mxu0
          %2900 = vmatprep.mubr.f32.mxu0 0.0
          %2901 = vmatmul.mubr.f32.gmra.mrb[0].mxu0 %v254
          %v2902 = vpop.f32.mrb[0].mxu0
          %v2903 = vadd.f32 %v2774, %v2902
          %v2904 = vpop.f32.mrb[0].mxu0
          %2905 = vmatprep.mubr.f32.mxu0 0.0
          %2906 = vmatmul.mubr.f32.gmra.mrb[0].mxu0 %v255
          %v2907 = vpop.f32.mrb[0].mxu0
          %v2908 = vadd.f32 %v2774, %v2907
          %v2909 = vpop.f32.mrb[0].mxu0
          %2910 = vmatprep.mubr.f32.mxu0 0.0
          %2911 = vmatmul.mubr.f32.gmra.mrb[0].mxu0 %v256
          %v2912 = vpop.f32.mrb[0].mxu0
          %v2913 = vadd.f32 %v2774, %v2912
          %v2914 = vpop.f32.mrb[0].mxu0
          %2915 = vmatprep.mubr.f32.mxu0 0.0
          %2916 = vmatmul.mubr.f32.gmra.mrb[0].mxu0 %v257
          %v2917 = vpop.f32.mrb[0].mxu0
          %v2918 = vadd.f32 %v2774, %v2917
          %v2919 = vpop.f32.mrb[0].mxu0
          %2920 = vmatprep.mubr.f32.mxu0 0.0
          %2921 = vmatmul.mubr.f32.gmra.mrb[0].mxu0 %v258
          %v2922 = vpop.f32.mrb[0].mxu0
          %v2923 = vadd.f32 %v2774, %v2922
          %v2924 = vpop.f32.mrb[0].mxu0
          %2925 = vmatprep.mubr.f32.mxu0 0.0
          %2926 = vmatmul.mubr.f32.gmra.mrb[0].mxu0 %v259
          %v2927 = vpop.f32.mrb[0].mxu0
          %v2928 = vadd.f32 %v2774, %v2927
          %v2929 = vpop.f32.mrb[0].mxu0
          %2930 = vmatprep.mubr.f32.mxu0 0.0
          %2931 = vmatmul.mubr.f32.gmra.mrb[0].mxu0 %v260
          %v2932 = vpop.f32.mrb[0].mxu0
          %v2933 = vadd.f32 %v2774, %v2932
          %v2934 = vpop.f32.mrb[0].mxu0
          %2935 = vmatprep.mubr.f32.mxu0 0.0
          %2936 = vmatmul.mubr.f32.gmra.mrb[0].mxu0 %v261
          %v2937 = vpop.f32.mrb[0].mxu0
          %v2938 = vadd.f32 %v2774, %v2937
          %v2939 = vpop.f32.mrb[0].mxu0
          %2940 = vmatprep.mubr.f32.mxu0 0.0
          %2941 = vmatmul.mubr.f32.gmra.mrb[0].mxu0 %v262
          %v2942 = vpop.f32.mrb[0].mxu0
          %v2943 = vadd.f32 %v2774, %v2942
          %v2944 = vpop.f32.mrb[0].mxu0
          %2945 = vmatprep.mubr.f32.mxu0 0.0
          %2946 = vmatmul.mubr.f32.gmra.mrb[0].mxu0 %v263
          %v2947 = vpop.f32.mrb[0].mxu0
          %v2948 = vadd.f32 %v2774, %v2947
          %v2949 = vpop.f32.mrb[0].mxu0
          %2950 = vmatprep.mubr.f32.mxu0 0.0
          %2951 = vmatmul.mubr.f32.gmra.mrb[0].mxu0 %v264
          %v2952 = vpop.f32.mrb[0].mxu0
          %v2953 = vadd.f32 %v2774, %v2952
          %v2954 = vpop.f32.mrb[0].mxu0
          %2955 = vmatprep.mubr.f32.mxu0 0.0
          %2956 = vmatmul.mubr.f32.gmra.mrb[0].mxu0 %v265
          %v2957 = vpop.f32.mrb[0].mxu0
          %v2958 = vadd.f32 %v2774, %v2957
          %v2959 = vpop.f32.mrb[0].mxu0
          %2960 = vmatprep.mubr.f32.mxu0 0.0
          %2961 = vmatmul.mubr.f32.gmra.mrb[0].mxu0 %v266
          %v2962 = vpop.f32.mrb[0].mxu0
          %v2963 = vadd.f32 %v2774, %v2962
          %v2964 = vpop.f32.mrb[0].mxu0
          %2965 = vmatprep.mubr.f32.mxu0 0.0
          %2966 = vmatmul.mubr.f32.gmra.mrb[0].mxu0 %v267
          %v2967 = vpop.f32.mrb[0].mxu0
          %v2968 = vadd.f32 %v2774, %v2967
          %v2969 = vpop.f32.mrb[0].mxu0
          %2970 = vmatprep.mubr.f32.mxu0 0.0
          %2971 = vmatmul.mubr.f32.gmra.mrb[0].mxu0 %v268
          %v2972 = vpop.f32.mrb[0].mxu0
          %v2973 = vadd.f32 %v2774, %v2972
          %v2974 = vpop.f32.mrb[0].mxu0
          %2975 = vmatprep.mubr.f32.mxu0 0.0
          %2976 = vmatmul.mubr.f32.gmra.mrb[0].mxu0 %v269
          %v2977 = vpop.f32.mrb[0].mxu0
          %v2978 = vadd.f32 %v2774, %v2977
          %v2979 = vpop.f32.mrb[0].mxu0
          %2980 = vmatprep.mubr.f32.mxu0 0.0
          %2981 = vmatmul.mubr.f32.gmra.mrb[0].mxu0 %v270
          %v2982 = vpop.f32.mrb[0].mxu0
          %v2983 = vadd.f32 %v2774, %v2982
          %v2984 = vpop.f32.mrb[0].mxu0
          %2985 = vmatprep.mubr.f32.mxu0 0.0
          %2986 = vmatmul.mubr.f32.gmra.mrb[0].mxu0 %v271
          %v2987 = vpop.f32.mrb[0].mxu0
          %v2988 = vadd.f32 %v2774, %v2987
          %v2989 = vpop.f32.mrb[0].mxu0
          %2990 = vmatprep.mubr.f32.mxu0 0.0
          %2991 = vmatmul.mubr.f32.gmra.mrb[0].mxu0 %v272
          %v2992 = vpop.f32.mrb[0].mxu0
          %v2993 = vadd.f32 %v2774, %v2992
          %v2994 = vpop.f32.mrb[0].mxu0
          %2995 = vmatprep.mubr.f32.mxu0 0.0
          %2996 = vmatmul.mubr.f32.gmra.mrb[0].mxu0 %v273
          %v2997 = vpop.f32.mrb[0].mxu0
          %v2998 = vadd.f32 %v2774, %v2997
          %v2999 = vpop.f32.mrb[0].mxu0
          %3000 = vdwg.mxu0
          %s3001 = scalar_lea.vmem [#allocation2], 1536
          %3002 = vst.msk [vmem:[%s3001] sm:$0xff] %vm554, %v2843
          %3003 = vst.msk [vmem:[%s3001 + $0x8] sm:$0xff] %vm554, %v2848
          %3004 = vst.msk [vmem:[%s3001 + $0x10] sm:$0xff] %vm554, %v2853
          %3005 = vst.msk [vmem:[%s3001 + $0x18] sm:$0xff] %vm554, %v2858
          %3006 = vst.msk [vmem:[%s3001 + $0x20] sm:$0xff] %vm554, %v2863
          %3007 = vst.msk [vmem:[%s3001 + $0x28] sm:$0xff] %vm554, %v2868
          %3008 = vst.msk [vmem:[%s3001 + $0x30] sm:$0xff] %vm554, %v2873
          %3009 = vst.msk [vmem:[%s3001 + $0x38] sm:$0xff] %vm554, %v2878
          %3010 = vst.msk [vmem:[%s3001 + $0x40] sm:$0xff] %vm554, %v2883
          %3011 = vst.msk [vmem:[%s3001 + $0x48] sm:$0xff] %vm554, %v2888
          %3012 = vst.msk [vmem:[%s3001 + $0x50] sm:$0xff] %vm554, %v2893
          %3013 = vst.msk [vmem:[%s3001 + $0x58] sm:$0xff] %vm554, %v2898
          %3014 = vst.msk [vmem:[%s3001 + $0x60] sm:$0xff] %vm554, %v2903
          %3015 = vst.msk [vmem:[%s3001 + $0x68] sm:$0xff] %vm554, %v2908
          %3016 = vst.msk [vmem:[%s3001 + $0x70] sm:$0xff] %vm554, %v2913
          %3017 = vst.msk [vmem:[%s3001 + $0x78] sm:$0xff] %vm554, %v2918
          %3018 = vst.msk [vmem:[%s3001 + $0x80] sm:$0xff] %vm554, %v2923
          %3019 = vst.msk [vmem:[%s3001 + $0x88] sm:$0xff] %vm554, %v2928
          %3020 = vst.msk [vmem:[%s3001 + $0x90] sm:$0xff] %vm554, %v2933
          %3021 = vst.msk [vmem:[%s3001 + $0x98] sm:$0xff] %vm554, %v2938
          %3022 = vst.msk [vmem:[%s3001 + $0xa0] sm:$0xff] %vm554, %v2943
          %3023 = vst.msk [vmem:[%s3001 + $0xa8] sm:$0xff] %vm554, %v2948
          %3024 = vst.msk [vmem:[%s3001 + $0xb0] sm:$0xff] %vm554, %v2953
          %3025 = vst.msk [vmem:[%s3001 + $0xb8] sm:$0xff] %vm554, %v2958
          %3026 = vst.msk [vmem:[%s3001 + $0xc0] sm:$0xff] %vm554, %v2963
          %3027 = vst.msk [vmem:[%s3001 + $0xc8] sm:$0xff] %vm554, %v2968
          %3028 = vst.msk [vmem:[%s3001 + $0xd0] sm:$0xff] %vm554, %v2973
          %3029 = vst.msk [vmem:[%s3001 + $0xd8] sm:$0xff] %vm554, %v2978
          %3030 = vst.msk [vmem:[%s3001 + $0xe0] sm:$0xff] %vm554, %v2983
          %3031 = vst.msk [vmem:[%s3001 + $0xe8] sm:$0xff] %vm554, %v2988
          %3032 = vst.msk [vmem:[%s3001 + $0xf0] sm:$0xff] %vm554, %v2993
          %3033 = vst.msk [vmem:[%s3001 + $0xf8] sm:$0xff] %vm554, %v2998
          %s3034 = scalar_lea.vmem %s1, 384
          %v3035 = vld [vmem:[%s3034] sm:$0xff]
          %v3036 = vld [vmem:[%s3034 + $0x8] sm:$0xff]
          %v3037 = vld [vmem:[%s3034 + $0x10] sm:$0xff]
          %v3038 = vld [vmem:[%s3034 + $0x18] sm:$0xff]
          %v3039 = vld [vmem:[%s3034 + $0x20] sm:$0xff]
          %v3040 = vld [vmem:[%s3034 + $0x28] sm:$0xff]
          %v3041 = vld [vmem:[%s3034 + $0x30] sm:$0xff]
          %v3042 = vld [vmem:[%s3034 + $0x38] sm:$0xff]
          %v3043 = vld [vmem:[%s3034 + $0x40] sm:$0xff]
          %v3044 = vld [vmem:[%s3034 + $0x48] sm:$0xff]
          %v3045 = vld [vmem:[%s3034 + $0x50] sm:$0xff]
          %v3046 = vld [vmem:[%s3034 + $0x58] sm:$0xff]
          %v3047 = vld [vmem:[%s3034 + $0x60] sm:$0xff]
          %v3048 = vld [vmem:[%s3034 + $0x68] sm:$0xff]
          %v3049 = vld [vmem:[%s3034 + $0x70] sm:$0xff]
          %v3050 = vld [vmem:[%s3034 + $0x78] sm:$0xff]
          %s3051 = scalar_lea.vmem %s2, 3
          %v3052 = vld [vmem:[%s3051] sm:$0x1]
          %v3054 = vlaneseq
          %v3055 = vshrl.u32 %v3054, 7
          %v3056 = vsub.s32 0, %v3055
          %v3057 = vrot.slane %v3052, %v3056
          %3059 = vmatprep.subr.mxu0 0.0
          %3060 = vmatpush1.msra.mxu0 %v3035
          %3061 = vmatprep.subr.mxu0 0.0
          %3062 = vmatpush1.msra.mxu0 %v3036
          %3063 = vmatprep.subr.mxu0 0.0
          %3064 = vmatpush1.msra.mxu0 %v3037
          %3065 = vmatprep.subr.mxu0 0.0
          %3066 = vmatpush1.msra.mxu0 %v3038
          %3067 = vmatprep.subr.mxu0 0.0
          %3068 = vmatpush1.msra.mxu0 %v3039
          %3069 = vmatprep.subr.mxu0 0.0
          %3070 = vmatpush1.msra.mxu0 %v3040
          %3071 = vmatprep.subr.mxu0 0.0
          %3072 = vmatpush1.msra.mxu0 %v3041
          %3073 = vmatprep.subr.mxu0 0.0
          %3074 = vmatpush1.msra.mxu0 %v3042
          %3075 = vmatprep.subr.mxu0 0.0
          %3076 = vmatpush1.msra.mxu0 %v3043
          %3077 = vmatprep.subr.mxu0 0.0
          %3078 = vmatpush1.msra.mxu0 %v3044
          %3079 = vmatprep.subr.mxu0 0.0
          %3080 = vmatpush1.msra.mxu0 %v3045
          %3081 = vmatprep.subr.mxu0 0.0
          %3082 = vmatpush1.msra.mxu0 %v3046
          %3083 = vmatprep.subr.mxu0 0.0
          %3084 = vmatpush1.msra.mxu0 %v3047
          %3085 = vmatprep.subr.mxu0 0.0
          %3086 = vmatpush1.msra.mxu0 %v3048
          %3087 = vmatprep.subr.mxu0 0.0
          %3088 = vmatpush1.msra.mxu0 %v3049
          %3089 = vmatprep.subr.mxu0 0.0
          %3090 = vmatpush1.msra.mxu0 %v3050
          %3091 = vmatprep.subr.mxu0 0.0
          %3092 = vmatpush1.msra.mxu0 0.0
          %3093 = vmatprep.subr.mxu0 0.0
          %3094 = vmatpush1.msra.mxu0 0.0
          %3095 = vmatprep.subr.mxu0 0.0
          %3096 = vmatpush1.msra.mxu0 0.0
          %3097 = vmatprep.subr.mxu0 0.0
          %3098 = vmatpush1.msra.mxu0 0.0
          %3099 = vmatprep.subr.mxu0 0.0
          %3100 = vmatpush1.msra.mxu0 0.0
          %3101 = vmatprep.subr.mxu0 0.0
          %3102 = vmatpush1.msra.mxu0 0.0
          %3103 = vmatprep.subr.mxu0 0.0
          %3104 = vmatpush1.msra.mxu0 0.0
          %3105 = vmatprep.subr.mxu0 0.0
          %3106 = vmatpush1.msra.mxu0 0.0
          %3107 = vmatprep.subr.mxu0 0.0
          %3108 = vmatpush1.msra.mxu0 0.0
          %3109 = vmatprep.subr.mxu0 0.0
          %3110 = vmatpush1.msra.mxu0 0.0
          %3111 = vmatprep.subr.mxu0 0.0
          %3112 = vmatpush1.msra.mxu0 0.0
          %3113 = vmatprep.subr.mxu0 0.0
          %3114 = vmatpush1.msra.mxu0 0.0
          %3115 = vmatprep.subr.mxu0 0.0
          %3116 = vmatpush1.msra.mxu0 0.0
          %3117 = vmatprep.subr.mxu0 0.0
          %3118 = vmatpush1.msra.mxu0 0.0
          %3119 = vmatprep.subr.mxu0 0.0
          %3120 = vmatpush1.msra.mxu0 0.0
          %3121 = vmatprep.subr.mxu0 0.0
          %3122 = vmatpush1.msra.mxu0 0.0
          %3123 = vmatprep.mubr.f32.mxu0 0.0
          %3124 = vmatmul.mubr.f32.gmra.mrb[0].mxu0 %v242
          %v3125 = vpop.f32.mrb[0].mxu0
          %v3126 = vadd.f32 %v3057, %v3125
          %v3127 = vpop.f32.mrb[0].mxu0
          %3128 = vmatprep.mubr.f32.mxu0 0.0
          %3129 = vmatmul.mubr.f32.gmra.mrb[0].mxu0 %v243
          %v3130 = vpop.f32.mrb[0].mxu0
          %v3131 = vadd.f32 %v3057, %v3130
          %v3132 = vpop.f32.mrb[0].mxu0
          %3133 = vmatprep.mubr.f32.mxu0 0.0
          %3134 = vmatmul.mubr.f32.gmra.mrb[0].mxu0 %v244
          %v3135 = vpop.f32.mrb[0].mxu0
          %v3136 = vadd.f32 %v3057, %v3135
          %v3137 = vpop.f32.mrb[0].mxu0
          %3138 = vmatprep.mubr.f32.mxu0 0.0
          %3139 = vmatmul.mubr.f32.gmra.mrb[0].mxu0 %v245
          %v3140 = vpop.f32.mrb[0].mxu0
          %v3141 = vadd.f32 %v3057, %v3140
          %v3142 = vpop.f32.mrb[0].mxu0
          %3143 = vmatprep.mubr.f32.mxu0 0.0
          %3144 = vmatmul.mubr.f32.gmra.mrb[0].mxu0 %v246
          %v3145 = vpop.f32.mrb[0].mxu0
          %v3146 = vadd.f32 %v3057, %v3145
          %v3147 = vpop.f32.mrb[0].mxu0
          %3148 = vmatprep.mubr.f32.mxu0 0.0
          %3149 = vmatmul.mubr.f32.gmra.mrb[0].mxu0 %v247
          %v3150 = vpop.f32.mrb[0].mxu0
          %v3151 = vadd.f32 %v3057, %v3150
          %v3152 = vpop.f32.mrb[0].mxu0
          %3153 = vmatprep.mubr.f32.mxu0 0.0
          %3154 = vmatmul.mubr.f32.gmra.mrb[0].mxu0 %v248
          %v3155 = vpop.f32.mrb[0].mxu0
          %v3156 = vadd.f32 %v3057, %v3155
          %v3157 = vpop.f32.mrb[0].mxu0
          %3158 = vmatprep.mubr.f32.mxu0 0.0
          %3159 = vmatmul.mubr.f32.gmra.mrb[0].mxu0 %v249
          %v3160 = vpop.f32.mrb[0].mxu0
          %v3161 = vadd.f32 %v3057, %v3160
          %v3162 = vpop.f32.mrb[0].mxu0
          %3163 = vmatprep.mubr.f32.mxu0 0.0
          %3164 = vmatmul.mubr.f32.gmra.mrb[0].mxu0 %v250
          %v3165 = vpop.f32.mrb[0].mxu0
          %v3166 = vadd.f32 %v3057, %v3165
          %v3167 = vpop.f32.mrb[0].mxu0
          %3168 = vmatprep.mubr.f32.mxu0 0.0
          %3169 = vmatmul.mubr.f32.gmra.mrb[0].mxu0 %v251
          %v3170 = vpop.f32.mrb[0].mxu0
          %v3171 = vadd.f32 %v3057, %v3170
          %v3172 = vpop.f32.mrb[0].mxu0
          %3173 = vmatprep.mubr.f32.mxu0 0.0
          %3174 = vmatmul.mubr.f32.gmra.mrb[0].mxu0 %v252
          %v3175 = vpop.f32.mrb[0].mxu0
          %v3176 = vadd.f32 %v3057, %v3175
          %v3177 = vpop.f32.mrb[0].mxu0
          %3178 = vmatprep.mubr.f32.mxu0 0.0
          %3179 = vmatmul.mubr.f32.gmra.mrb[0].mxu0 %v253
          %v3180 = vpop.f32.mrb[0].mxu0
          %v3181 = vadd.f32 %v3057, %v3180
          %v3182 = vpop.f32.mrb[0].mxu0
          %3183 = vmatprep.mubr.f32.mxu0 0.0
          %3184 = vmatmul.mubr.f32.gmra.mrb[0].mxu0 %v254
          %v3185 = vpop.f32.mrb[0].mxu0
          %v3186 = vadd.f32 %v3057, %v3185
          %v3187 = vpop.f32.mrb[0].mxu0
          %3188 = vmatprep.mubr.f32.mxu0 0.0
          %3189 = vmatmul.mubr.f32.gmra.mrb[0].mxu0 %v255
          %v3190 = vpop.f32.mrb[0].mxu0
          %v3191 = vadd.f32 %v3057, %v3190
          %v3192 = vpop.f32.mrb[0].mxu0
          %3193 = vmatprep.mubr.f32.mxu0 0.0
          %3194 = vmatmul.mubr.f32.gmra.mrb[0].mxu0 %v256
          %v3195 = vpop.f32.mrb[0].mxu0
          %v3196 = vadd.f32 %v3057, %v3195
          %v3197 = vpop.f32.mrb[0].mxu0
          %3198 = vmatprep.mubr.f32.mxu0 0.0
          %3199 = vmatmul.mubr.f32.gmra.mrb[0].mxu0 %v257
          %v3200 = vpop.f32.mrb[0].mxu0
          %v3201 = vadd.f32 %v3057, %v3200
          %v3202 = vpop.f32.mrb[0].mxu0
          %3203 = vmatprep.mubr.f32.mxu0 0.0
          %3204 = vmatmul.mubr.f32.gmra.mrb[0].mxu0 %v258
          %v3205 = vpop.f32.mrb[0].mxu0
          %v3206 = vadd.f32 %v3057, %v3205
          %v3207 = vpop.f32.mrb[0].mxu0
          %3208 = vmatprep.mubr.f32.mxu0 0.0
          %3209 = vmatmul.mubr.f32.gmra.mrb[0].mxu0 %v259
          %v3210 = vpop.f32.mrb[0].mxu0
          %v3211 = vadd.f32 %v3057, %v3210
          %v3212 = vpop.f32.mrb[0].mxu0
          %3213 = vmatprep.mubr.f32.mxu0 0.0
          %3214 = vmatmul.mubr.f32.gmra.mrb[0].mxu0 %v260
          %v3215 = vpop.f32.mrb[0].mxu0
          %v3216 = vadd.f32 %v3057, %v3215
          %v3217 = vpop.f32.mrb[0].mxu0
          %3218 = vmatprep.mubr.f32.mxu0 0.0
          %3219 = vmatmul.mubr.f32.gmra.mrb[0].mxu0 %v261
          %v3220 = vpop.f32.mrb[0].mxu0
          %v3221 = vadd.f32 %v3057, %v3220
          %v3222 = vpop.f32.mrb[0].mxu0
          %3223 = vmatprep.mubr.f32.mxu0 0.0
          %3224 = vmatmul.mubr.f32.gmra.mrb[0].mxu0 %v262
          %v3225 = vpop.f32.mrb[0].mxu0
          %v3226 = vadd.f32 %v3057, %v3225
          %v3227 = vpop.f32.mrb[0].mxu0
          %3228 = vmatprep.mubr.f32.mxu0 0.0
          %3229 = vmatmul.mubr.f32.gmra.mrb[0].mxu0 %v263
          %v3230 = vpop.f32.mrb[0].mxu0
          %v3231 = vadd.f32 %v3057, %v3230
          %v3232 = vpop.f32.mrb[0].mxu0
          %3233 = vmatprep.mubr.f32.mxu0 0.0
          %3234 = vmatmul.mubr.f32.gmra.mrb[0].mxu0 %v264
          %v3235 = vpop.f32.mrb[0].mxu0
          %v3236 = vadd.f32 %v3057, %v3235
          %v3237 = vpop.f32.mrb[0].mxu0
          %3238 = vmatprep.mubr.f32.mxu0 0.0
          %3239 = vmatmul.mubr.f32.gmra.mrb[0].mxu0 %v265
          %v3240 = vpop.f32.mrb[0].mxu0
          %v3241 = vadd.f32 %v3057, %v3240
          %v3242 = vpop.f32.mrb[0].mxu0
          %3243 = vmatprep.mubr.f32.mxu0 0.0
          %3244 = vmatmul.mubr.f32.gmra.mrb[0].mxu0 %v266
          %v3245 = vpop.f32.mrb[0].mxu0
          %v3246 = vadd.f32 %v3057, %v3245
          %v3247 = vpop.f32.mrb[0].mxu0
          %3248 = vmatprep.mubr.f32.mxu0 0.0
          %3249 = vmatmul.mubr.f32.gmra.mrb[0].mxu0 %v267
          %v3250 = vpop.f32.mrb[0].mxu0
          %v3251 = vadd.f32 %v3057, %v3250
          %v3252 = vpop.f32.mrb[0].mxu0
          %3253 = vmatprep.mubr.f32.mxu0 0.0
          %3254 = vmatmul.mubr.f32.gmra.mrb[0].mxu0 %v268
          %v3255 = vpop.f32.mrb[0].mxu0
          %v3256 = vadd.f32 %v3057, %v3255
          %v3257 = vpop.f32.mrb[0].mxu0
          %3258 = vmatprep.mubr.f32.mxu0 0.0
          %3259 = vmatmul.mubr.f32.gmra.mrb[0].mxu0 %v269
          %v3260 = vpop.f32.mrb[0].mxu0
          %v3261 = vadd.f32 %v3057, %v3260
          %v3262 = vpop.f32.mrb[0].mxu0
          %3263 = vmatprep.mubr.f32.mxu0 0.0
          %3264 = vmatmul.mubr.f32.gmra.mrb[0].mxu0 %v270
          %v3265 = vpop.f32.mrb[0].mxu0
          %v3266 = vadd.f32 %v3057, %v3265
          %v3267 = vpop.f32.mrb[0].mxu0
          %3268 = vmatprep.mubr.f32.mxu0 0.0
          %3269 = vmatmul.mubr.f32.gmra.mrb[0].mxu0 %v271
          %v3270 = vpop.f32.mrb[0].mxu0
          %v3271 = vadd.f32 %v3057, %v3270
          %v3272 = vpop.f32.mrb[0].mxu0
          %3273 = vmatprep.mubr.f32.mxu0 0.0
          %3274 = vmatmul.mubr.f32.gmra.mrb[0].mxu0 %v272
          %v3275 = vpop.f32.mrb[0].mxu0
          %v3276 = vadd.f32 %v3057, %v3275
          %v3277 = vpop.f32.mrb[0].mxu0
          %3278 = vmatprep.mubr.f32.mxu0 0.0
          %3279 = vmatmul.mubr.f32.gmra.mrb[0].mxu0 %v273
          %v3280 = vpop.f32.mrb[0].mxu0
          %v3281 = vadd.f32 %v3057, %v3280
          %v3282 = vpop.f32.mrb[0].mxu0
          %3283 = vdwg.mxu0
          %v3284 = vmul.f32 %v3126, 0.17677669
          %v3285 = vmul.f32 %v3131, 0.17677669
          %v3286 = vmul.f32 %v3136, 0.17677669
          %v3287 = vmul.f32 %v3141, 0.17677669
          %v3288 = vmul.f32 %v3146, 0.17677669
          %v3289 = vmul.f32 %v3151, 0.17677669
          %v3290 = vmul.f32 %v3156, 0.17677669
          %v3291 = vmul.f32 %v3161, 0.17677669
          %v3292 = vmul.f32 %v3166, 0.17677669
          %v3293 = vmul.f32 %v3171, 0.17677669
          %v3294 = vmul.f32 %v3176, 0.17677669
          %v3295 = vmul.f32 %v3181, 0.17677669
          %v3296 = vmul.f32 %v3186, 0.17677669
          %v3297 = vmul.f32 %v3191, 0.17677669
          %v3298 = vmul.f32 %v3196, 0.17677669
          %v3299 = vmul.f32 %v3201, 0.17677669
          %v3300 = vmul.f32 %v3206, 0.17677669
          %v3301 = vmul.f32 %v3211, 0.17677669
          %v3302 = vmul.f32 %v3216, 0.17677669
          %v3303 = vmul.f32 %v3221, 0.17677669
          %v3304 = vmul.f32 %v3226, 0.17677669
          %v3305 = vmul.f32 %v3231, 0.17677669
          %v3306 = vmul.f32 %v3236, 0.17677669
          %v3307 = vmul.f32 %v3241, 0.17677669
          %v3308 = vmul.f32 %v3246, 0.17677669
          %v3309 = vmul.f32 %v3251, 0.17677669
          %v3310 = vmul.f32 %v3256, 0.17677669
          %v3311 = vmul.f32 %v3261, 0.17677669
          %v3312 = vmul.f32 %v3266, 0.17677669
          %v3313 = vmul.f32 %v3271, 0.17677669
          %v3314 = vmul.f32 %v3276, 0.17677669
          %v3315 = vmul.f32 %v3281, 0.17677669
          %s3316 = scalar_lea.vmem [#allocation2], 768
          %3317 = vst.msk [vmem:[%s3316] sm:$0xff] %vm554, %v3284
          %3318 = vst.msk [vmem:[%s3316 + $0x8] sm:$0xff] %vm554, %v3285
          %3319 = vst.msk [vmem:[%s3316 + $0x10] sm:$0xff] %vm554, %v3286
          %3320 = vst.msk [vmem:[%s3316 + $0x18] sm:$0xff] %vm554, %v3287
          %3321 = vst.msk [vmem:[%s3316 + $0x20] sm:$0xff] %vm554, %v3288
          %3322 = vst.msk [vmem:[%s3316 + $0x28] sm:$0xff] %vm554, %v3289
          %3323 = vst.msk [vmem:[%s3316 + $0x30] sm:$0xff] %vm554, %v3290
          %3324 = vst.msk [vmem:[%s3316 + $0x38] sm:$0xff] %vm554, %v3291
          %3325 = vst.msk [vmem:[%s3316 + $0x40] sm:$0xff] %vm554, %v3292
          %3326 = vst.msk [vmem:[%s3316 + $0x48] sm:$0xff] %vm554, %v3293
          %3327 = vst.msk [vmem:[%s3316 + $0x50] sm:$0xff] %vm554, %v3294
          %3328 = vst.msk [vmem:[%s3316 + $0x58] sm:$0xff] %vm554, %v3295
          %3329 = vst.msk [vmem:[%s3316 + $0x60] sm:$0xff] %vm554, %v3296
          %3330 = vst.msk [vmem:[%s3316 + $0x68] sm:$0xff] %vm554, %v3297
          %3331 = vst.msk [vmem:[%s3316 + $0x70] sm:$0xff] %vm554, %v3298
          %3332 = vst.msk [vmem:[%s3316 + $0x78] sm:$0xff] %vm554, %v3299
          %3333 = vst.msk [vmem:[%s3316 + $0x80] sm:$0xff] %vm554, %v3300
          %3334 = vst.msk [vmem:[%s3316 + $0x88] sm:$0xff] %vm554, %v3301
          %3335 = vst.msk [vmem:[%s3316 + $0x90] sm:$0xff] %vm554, %v3302
          %3336 = vst.msk [vmem:[%s3316 + $0x98] sm:$0xff] %vm554, %v3303
          %3337 = vst.msk [vmem:[%s3316 + $0xa0] sm:$0xff] %vm554, %v3304
          %3338 = vst.msk [vmem:[%s3316 + $0xa8] sm:$0xff] %vm554, %v3305
          %3339 = vst.msk [vmem:[%s3316 + $0xb0] sm:$0xff] %vm554, %v3306
          %3340 = vst.msk [vmem:[%s3316 + $0xb8] sm:$0xff] %vm554, %v3307
          %3341 = vst.msk [vmem:[%s3316 + $0xc0] sm:$0xff] %vm554, %v3308
          %3342 = vst.msk [vmem:[%s3316 + $0xc8] sm:$0xff] %vm554, %v3309
          %3343 = vst.msk [vmem:[%s3316 + $0xd0] sm:$0xff] %vm554, %v3310
          %3344 = vst.msk [vmem:[%s3316 + $0xd8] sm:$0xff] %vm554, %v3311
          %3345 = vst.msk [vmem:[%s3316 + $0xe0] sm:$0xff] %vm554, %v3312
          %3346 = vst.msk [vmem:[%s3316 + $0xe8] sm:$0xff] %vm554, %v3313
          %3347 = vst.msk [vmem:[%s3316 + $0xf0] sm:$0xff] %vm554, %v3314
          %3348 = vst.msk [vmem:[%s3316 + $0xf8] sm:$0xff] %vm554, %v3315
          %s3349 = scalar_lea.vmem %s1, 896
          %v3350 = vld [vmem:[%s3349] sm:$0xff]
          %v3351 = vld [vmem:[%s3349 + $0x8] sm:$0xff]
          %v3352 = vld [vmem:[%s3349 + $0x10] sm:$0xff]
          %v3353 = vld [vmem:[%s3349 + $0x18] sm:$0xff]
          %v3354 = vld [vmem:[%s3349 + $0x20] sm:$0xff]
          %v3355 = vld [vmem:[%s3349 + $0x28] sm:$0xff]
          %v3356 = vld [vmem:[%s3349 + $0x30] sm:$0xff]
          %v3357 = vld [vmem:[%s3349 + $0x38] sm:$0xff]
          %v3358 = vld [vmem:[%s3349 + $0x40] sm:$0xff]
          %v3359 = vld [vmem:[%s3349 + $0x48] sm:$0xff]
          %v3360 = vld [vmem:[%s3349 + $0x50] sm:$0xff]
          %v3361 = vld [vmem:[%s3349 + $0x58] sm:$0xff]
          %v3362 = vld [vmem:[%s3349 + $0x60] sm:$0xff]
          %v3363 = vld [vmem:[%s3349 + $0x68] sm:$0xff]
          %v3364 = vld [vmem:[%s3349 + $0x70] sm:$0xff]
          %v3365 = vld [vmem:[%s3349 + $0x78] sm:$0xff]
          %s3366 = scalar_lea.vmem %s2, 7
          %v3367 = vld [vmem:[%s3366] sm:$0x1]
          %v3369 = vlaneseq
          %v3370 = vshrl.u32 %v3369, 7
          %v3371 = vsub.s32 0, %v3370
          %v3372 = vrot.slane %v3367, %v3371
          %3374 = vmatprep.subr.mxu0 0.0
          %3375 = vmatpush1.msra.mxu0 %v3350
          %3376 = vmatprep.subr.mxu0 0.0
          %3377 = vmatpush1.msra.mxu0 %v3351
          %3378 = vmatprep.subr.mxu0 0.0
          %3379 = vmatpush1.msra.mxu0 %v3352
          %3380 = vmatprep.subr.mxu0 0.0
          %3381 = vmatpush1.msra.mxu0 %v3353
          %3382 = vmatprep.subr.mxu0 0.0
          %3383 = vmatpush1.msra.mxu0 %v3354
          %3384 = vmatprep.subr.mxu0 0.0
          %3385 = vmatpush1.msra.mxu0 %v3355
          %3386 = vmatprep.subr.mxu0 0.0
          %3387 = vmatpush1.msra.mxu0 %v3356
          %3388 = vmatprep.subr.mxu0 0.0
          %3389 = vmatpush1.msra.mxu0 %v3357
          %3390 = vmatprep.subr.mxu0 0.0
          %3391 = vmatpush1.msra.mxu0 %v3358
          %3392 = vmatprep.subr.mxu0 0.0
          %3393 = vmatpush1.msra.mxu0 %v3359
          %3394 = vmatprep.subr.mxu0 0.0
          %3395 = vmatpush1.msra.mxu0 %v3360
          %3396 = vmatprep.subr.mxu0 0.0
          %3397 = vmatpush1.msra.mxu0 %v3361
          %3398 = vmatprep.subr.mxu0 0.0
          %3399 = vmatpush1.msra.mxu0 %v3362
          %3400 = vmatprep.subr.mxu0 0.0
          %3401 = vmatpush1.msra.mxu0 %v3363
          %3402 = vmatprep.subr.mxu0 0.0
          %3403 = vmatpush1.msra.mxu0 %v3364
          %3404 = vmatprep.subr.mxu0 0.0
          %3405 = vmatpush1.msra.mxu0 %v3365
          %3406 = vmatprep.subr.mxu0 0.0
          %3407 = vmatpush1.msra.mxu0 0.0
          %3408 = vmatprep.subr.mxu0 0.0
          %3409 = vmatpush1.msra.mxu0 0.0
          %3410 = vmatprep.subr.mxu0 0.0
          %3411 = vmatpush1.msra.mxu0 0.0
          %3412 = vmatprep.subr.mxu0 0.0
          %3413 = vmatpush1.msra.mxu0 0.0
          %3414 = vmatprep.subr.mxu0 0.0
          %3415 = vmatpush1.msra.mxu0 0.0
          %3416 = vmatprep.subr.mxu0 0.0
          %3417 = vmatpush1.msra.mxu0 0.0
          %3418 = vmatprep.subr.mxu0 0.0
          %3419 = vmatpush1.msra.mxu0 0.0
          %3420 = vmatprep.subr.mxu0 0.0
          %3421 = vmatpush1.msra.mxu0 0.0
          %3422 = vmatprep.subr.mxu0 0.0
          %3423 = vmatpush1.msra.mxu0 0.0
          %3424 = vmatprep.subr.mxu0 0.0
          %3425 = vmatpush1.msra.mxu0 0.0
          %3426 = vmatprep.subr.mxu0 0.0
          %3427 = vmatpush1.msra.mxu0 0.0
          %3428 = vmatprep.subr.mxu0 0.0
          %3429 = vmatpush1.msra.mxu0 0.0
          %3430 = vmatprep.subr.mxu0 0.0
          %3431 = vmatpush1.msra.mxu0 0.0
          %3432 = vmatprep.subr.mxu0 0.0
          %3433 = vmatpush1.msra.mxu0 0.0
          %3434 = vmatprep.subr.mxu0 0.0
          %3435 = vmatpush1.msra.mxu0 0.0
          %3436 = vmatprep.subr.mxu0 0.0
          %3437 = vmatpush1.msra.mxu0 0.0
          %3438 = vmatprep.mubr.f32.mxu0 0.0
          %3439 = vmatmul.mubr.f32.gmra.mrb[0].mxu0 %v242
          %v3440 = vpop.f32.mrb[0].mxu0
          %v3441 = vadd.f32 %v3372, %v3440
          %v3442 = vpop.f32.mrb[0].mxu0
          %3443 = vmatprep.mubr.f32.mxu0 0.0
          %3444 = vmatmul.mubr.f32.gmra.mrb[0].mxu0 %v243
          %v3445 = vpop.f32.mrb[0].mxu0
          %v3446 = vadd.f32 %v3372, %v3445
          %v3447 = vpop.f32.mrb[0].mxu0
          %3448 = vmatprep.mubr.f32.mxu0 0.0
          %3449 = vmatmul.mubr.f32.gmra.mrb[0].mxu0 %v244
          %v3450 = vpop.f32.mrb[0].mxu0
          %v3451 = vadd.f32 %v3372, %v3450
          %v3452 = vpop.f32.mrb[0].mxu0
          %3453 = vmatprep.mubr.f32.mxu0 0.0
          %3454 = vmatmul.mubr.f32.gmra.mrb[0].mxu0 %v245
          %v3455 = vpop.f32.mrb[0].mxu0
          %v3456 = vadd.f32 %v3372, %v3455
          %v3457 = vpop.f32.mrb[0].mxu0
          %3458 = vmatprep.mubr.f32.mxu0 0.0
          %3459 = vmatmul.mubr.f32.gmra.mrb[0].mxu0 %v246
          %v3460 = vpop.f32.mrb[0].mxu0
          %v3461 = vadd.f32 %v3372, %v3460
          %v3462 = vpop.f32.mrb[0].mxu0
          %3463 = vmatprep.mubr.f32.mxu0 0.0
          %3464 = vmatmul.mubr.f32.gmra.mrb[0].mxu0 %v247
          %v3465 = vpop.f32.mrb[0].mxu0
          %v3466 = vadd.f32 %v3372, %v3465
          %v3467 = vpop.f32.mrb[0].mxu0
          %3468 = vmatprep.mubr.f32.mxu0 0.0
          %3469 = vmatmul.mubr.f32.gmra.mrb[0].mxu0 %v248
          %v3470 = vpop.f32.mrb[0].mxu0
          %v3471 = vadd.f32 %v3372, %v3470
          %v3472 = vpop.f32.mrb[0].mxu0
          %3473 = vmatprep.mubr.f32.mxu0 0.0
          %3474 = vmatmul.mubr.f32.gmra.mrb[0].mxu0 %v249
          %v3475 = vpop.f32.mrb[0].mxu0
          %v3476 = vadd.f32 %v3372, %v3475
          %v3477 = vpop.f32.mrb[0].mxu0
          %3478 = vmatprep.mubr.f32.mxu0 0.0
          %3479 = vmatmul.mubr.f32.gmra.mrb[0].mxu0 %v250
          %v3480 = vpop.f32.mrb[0].mxu0
          %v3481 = vadd.f32 %v3372, %v3480
          %v3482 = vpop.f32.mrb[0].mxu0
          %3483 = vmatprep.mubr.f32.mxu0 0.0
          %3484 = vmatmul.mubr.f32.gmra.mrb[0].mxu0 %v251
          %v3485 = vpop.f32.mrb[0].mxu0
          %v3486 = vadd.f32 %v3372, %v3485
          %v3487 = vpop.f32.mrb[0].mxu0
          %3488 = vmatprep.mubr.f32.mxu0 0.0
          %3489 = vmatmul.mubr.f32.gmra.mrb[0].mxu0 %v252
          %v3490 = vpop.f32.mrb[0].mxu0
          %v3491 = vadd.f32 %v3372, %v3490
          %v3492 = vpop.f32.mrb[0].mxu0
          %3493 = vmatprep.mubr.f32.mxu0 0.0
          %3494 = vmatmul.mubr.f32.gmra.mrb[0].mxu0 %v253
          %v3495 = vpop.f32.mrb[0].mxu0
          %v3496 = vadd.f32 %v3372, %v3495
          %v3497 = vpop.f32.mrb[0].mxu0
          %3498 = vmatprep.mubr.f32.mxu0 0.0
          %3499 = vmatmul.mubr.f32.gmra.mrb[0].mxu0 %v254
          %v3500 = vpop.f32.mrb[0].mxu0
          %v3501 = vadd.f32 %v3372, %v3500
          %v3502 = vpop.f32.mrb[0].mxu0
          %3503 = vmatprep.mubr.f32.mxu0 0.0
          %3504 = vmatmul.mubr.f32.gmra.mrb[0].mxu0 %v255
          %v3505 = vpop.f32.mrb[0].mxu0
          %v3506 = vadd.f32 %v3372, %v3505
          %v3507 = vpop.f32.mrb[0].mxu0
          %3508 = vmatprep.mubr.f32.mxu0 0.0
          %3509 = vmatmul.mubr.f32.gmra.mrb[0].mxu0 %v256
          %v3510 = vpop.f32.mrb[0].mxu0
          %v3511 = vadd.f32 %v3372, %v3510
          %v3512 = vpop.f32.mrb[0].mxu0
          %3513 = vmatprep.mubr.f32.mxu0 0.0
          %3514 = vmatmul.mubr.f32.gmra.mrb[0].mxu0 %v257
          %v3515 = vpop.f32.mrb[0].mxu0
          %v3516 = vadd.f32 %v3372, %v3515
          %v3517 = vpop.f32.mrb[0].mxu0
          %3518 = vmatprep.mubr.f32.mxu0 0.0
          %3519 = vmatmul.mubr.f32.gmra.mrb[0].mxu0 %v258
          %v3520 = vpop.f32.mrb[0].mxu0
          %v3521 = vadd.f32 %v3372, %v3520
          %v3522 = vpop.f32.mrb[0].mxu0
          %3523 = vmatprep.mubr.f32.mxu0 0.0
          %3524 = vmatmul.mubr.f32.gmra.mrb[0].mxu0 %v259
          %v3525 = vpop.f32.mrb[0].mxu0
          %v3526 = vadd.f32 %v3372, %v3525
          %v3527 = vpop.f32.mrb[0].mxu0
          %3528 = vmatprep.mubr.f32.mxu0 0.0
          %3529 = vmatmul.mubr.f32.gmra.mrb[0].mxu0 %v260
          %v3530 = vpop.f32.mrb[0].mxu0
          %v3531 = vadd.f32 %v3372, %v3530
          %v3532 = vpop.f32.mrb[0].mxu0
          %3533 = vmatprep.mubr.f32.mxu0 0.0
          %3534 = vmatmul.mubr.f32.gmra.mrb[0].mxu0 %v261
          %v3535 = vpop.f32.mrb[0].mxu0
          %v3536 = vadd.f32 %v3372, %v3535
          %v3537 = vpop.f32.mrb[0].mxu0
          %3538 = vmatprep.mubr.f32.mxu0 0.0
          %3539 = vmatmul.mubr.f32.gmra.mrb[0].mxu0 %v262
          %v3540 = vpop.f32.mrb[0].mxu0
          %v3541 = vadd.f32 %v3372, %v3540
          %v3542 = vpop.f32.mrb[0].mxu0
          %3543 = vmatprep.mubr.f32.mxu0 0.0
          %3544 = vmatmul.mubr.f32.gmra.mrb[0].mxu0 %v263
          %v3545 = vpop.f32.mrb[0].mxu0
          %v3546 = vadd.f32 %v3372, %v3545
          %v3547 = vpop.f32.mrb[0].mxu0
          %3548 = vmatprep.mubr.f32.mxu0 0.0
          %3549 = vmatmul.mubr.f32.gmra.mrb[0].mxu0 %v264
          %v3550 = vpop.f32.mrb[0].mxu0
          %v3551 = vadd.f32 %v3372, %v3550
          %v3552 = vpop.f32.mrb[0].mxu0
          %3553 = vmatprep.mubr.f32.mxu0 0.0
          %3554 = vmatmul.mubr.f32.gmra.mrb[0].mxu0 %v265
          %v3555 = vpop.f32.mrb[0].mxu0
          %v3556 = vadd.f32 %v3372, %v3555
          %v3557 = vpop.f32.mrb[0].mxu0
          %3558 = vmatprep.mubr.f32.mxu0 0.0
          %3559 = vmatmul.mubr.f32.gmra.mrb[0].mxu0 %v266
          %v3560 = vpop.f32.mrb[0].mxu0
          %v3561 = vadd.f32 %v3372, %v3560
          %v3562 = vpop.f32.mrb[0].mxu0
          %3563 = vmatprep.mubr.f32.mxu0 0.0
          %3564 = vmatmul.mubr.f32.gmra.mrb[0].mxu0 %v267
          %v3565 = vpop.f32.mrb[0].mxu0
          %v3566 = vadd.f32 %v3372, %v3565
          %v3567 = vpop.f32.mrb[0].mxu0
          %3568 = vmatprep.mubr.f32.mxu0 0.0
          %3569 = vmatmul.mubr.f32.gmra.mrb[0].mxu0 %v268
          %v3570 = vpop.f32.mrb[0].mxu0
          %v3571 = vadd.f32 %v3372, %v3570
          %v3572 = vpop.f32.mrb[0].mxu0
          %3573 = vmatprep.mubr.f32.mxu0 0.0
          %3574 = vmatmul.mubr.f32.gmra.mrb[0].mxu0 %v269
          %v3575 = vpop.f32.mrb[0].mxu0
          %v3576 = vadd.f32 %v3372, %v3575
          %v3577 = vpop.f32.mrb[0].mxu0
          %3578 = vmatprep.mubr.f32.mxu0 0.0
          %3579 = vmatmul.mubr.f32.gmra.mrb[0].mxu0 %v270
          %v3580 = vpop.f32.mrb[0].mxu0
          %v3581 = vadd.f32 %v3372, %v3580
          %v3582 = vpop.f32.mrb[0].mxu0
          %3583 = vmatprep.mubr.f32.mxu0 0.0
          %3584 = vmatmul.mubr.f32.gmra.mrb[0].mxu0 %v271
          %v3585 = vpop.f32.mrb[0].mxu0
          %v3586 = vadd.f32 %v3372, %v3585
          %v3587 = vpop.f32.mrb[0].mxu0
          %3588 = vmatprep.mubr.f32.mxu0 0.0
          %3589 = vmatmul.mubr.f32.gmra.mrb[0].mxu0 %v272
          %v3590 = vpop.f32.mrb[0].mxu0
          %v3591 = vadd.f32 %v3372, %v3590
          %v3592 = vpop.f32.mrb[0].mxu0
          %3593 = vmatprep.mubr.f32.mxu0 0.0
          %3594 = vmatmul.mubr.f32.gmra.mrb[0].mxu0 %v273
          %v3595 = vpop.f32.mrb[0].mxu0
          %v3596 = vadd.f32 %v3372, %v3595
          %v3597 = vpop.f32.mrb[0].mxu0
          %3598 = vdwg.mxu0
          %3599 = vxpose.xlu0.b32.start [1/16] %v3441, 128
          %3600 = vxpose.xlu0.b32.cont [2/16] %v3446, 128
          %3601 = vxpose.xlu0.b32.cont [3/16] %v3451, 128
          %3602 = vxpose.xlu0.b32.cont [4/16] %v3456, 128
          %3603 = vxpose.xlu0.b32.cont [5/16] %v3461, 128
          %3604 = vxpose.xlu0.b32.cont [6/16] %v3466, 128
          %3605 = vxpose.xlu0.b32.cont [7/16] %v3471, 128
          %3606 = vxpose.xlu0.b32.cont [8/16] %v3476, 128
          %3607 = vxpose.xlu0.b32.cont [9/16] %v3481, 128
          %3608 = vxpose.xlu0.b32.cont [10/16] %v3486, 128
          %3609 = vxpose.xlu0.b32.cont [11/16] %v3491, 128
          %3610 = vxpose.xlu0.b32.cont [12/16] %v3496, 128
          %3611 = vxpose.xlu0.b32.cont [13/16] %v3501, 128
          %3612 = vxpose.xlu0.b32.cont [14/16] %v3506, 128
          %3613 = vxpose.xlu0.b32.cont [15/16] %v3511, 128
          %3614 = vxpose.xlu0.b32.end [16/16] %v3516, 128
          %v3615 = vpop.trf.xlu0
          %v3616 = vpop.trf.xlu0
          %v3617 = vpop.trf.xlu0
          %v3618 = vpop.trf.xlu0
          %v3619 = vpop.trf.xlu0
          %v3620 = vpop.trf.xlu0
          %v3621 = vpop.trf.xlu0
          %v3622 = vpop.trf.xlu0
          %v3623 = vpop.trf.xlu0
          %v3624 = vpop.trf.xlu0
          %v3625 = vpop.trf.xlu0
          %v3626 = vpop.trf.xlu0
          %v3627 = vpop.trf.xlu0
          %v3628 = vpop.trf.xlu0
          %v3629 = vpop.trf.xlu0
          %v3630 = vpop.trf.xlu0
          %3631 = vxpose.xlu0.b32.start [1/16] %v3521, 128
          %3632 = vxpose.xlu0.b32.cont [2/16] %v3526, 128
          %3633 = vxpose.xlu0.b32.cont [3/16] %v3531, 128
          %3634 = vxpose.xlu0.b32.cont [4/16] %v3536, 128
          %3635 = vxpose.xlu0.b32.cont [5/16] %v3541, 128
          %3636 = vxpose.xlu0.b32.cont [6/16] %v3546, 128
          %3637 = vxpose.xlu0.b32.cont [7/16] %v3551, 128
          %3638 = vxpose.xlu0.b32.cont [8/16] %v3556, 128
          %3639 = vxpose.xlu0.b32.cont [9/16] %v3561, 128
          %3640 = vxpose.xlu0.b32.cont [10/16] %v3566, 128
          %3641 = vxpose.xlu0.b32.cont [11/16] %v3571, 128
          %3642 = vxpose.xlu0.b32.cont [12/16] %v3576, 128
          %3643 = vxpose.xlu0.b32.cont [13/16] %v3581, 128
          %3644 = vxpose.xlu0.b32.cont [14/16] %v3586, 128
          %3645 = vxpose.xlu0.b32.cont [15/16] %v3591, 128
          %3646 = vxpose.xlu0.b32.end [16/16] %v3596, 128
          %v3647 = vpop.trf.xlu0
          %v3648 = vpop.trf.xlu0
          %v3649 = vpop.trf.xlu0
          %v3650 = vpop.trf.xlu0
          %v3651 = vpop.trf.xlu0
          %v3652 = vpop.trf.xlu0
          %v3653 = vpop.trf.xlu0
          %v3654 = vpop.trf.xlu0
          %v3655 = vpop.trf.xlu0
          %v3656 = vpop.trf.xlu0
          %v3657 = vpop.trf.xlu0
          %v3658 = vpop.trf.xlu0
          %v3659 = vpop.trf.xlu0
          %v3660 = vpop.trf.xlu0
          %v3661 = vpop.trf.xlu0
          %v3662 = vpop.trf.xlu0
          %s3663 = scalar_lea.vmem [#allocation3], 192
          %3664 = vst [vmem:[%s3663] sm:$0xff] %v3615
          %3665 = vst [vmem:[%s3663 + $0x8] sm:$0xff] %v3647
          %3666 = vst [vmem:[%s3663 + $0x10] sm:$0xff] %v3616
          %3667 = vst [vmem:[%s3663 + $0x18] sm:$0xff] %v3648
          %3668 = vst [vmem:[%s3663 + $0x20] sm:$0xff] %v3617
          %3669 = vst [vmem:[%s3663 + $0x28] sm:$0xff] %v3649
          %3670 = vst [vmem:[%s3663 + $0x30] sm:$0xff] %v3618
          %3671 = vst [vmem:[%s3663 + $0x38] sm:$0xff] %v3650
          %s3672 = scalar_lea.vmem %s1, 1408
          %v3673 = vld [vmem:[%s3672] sm:$0xff]
          %v3674 = vld [vmem:[%s3672 + $0x8] sm:$0xff]
          %v3675 = vld [vmem:[%s3672 + $0x10] sm:$0xff]
          %v3676 = vld [vmem:[%s3672 + $0x18] sm:$0xff]
          %v3677 = vld [vmem:[%s3672 + $0x20] sm:$0xff]
          %v3678 = vld [vmem:[%s3672 + $0x28] sm:$0xff]
          %v3679 = vld [vmem:[%s3672 + $0x30] sm:$0xff]
          %v3680 = vld [vmem:[%s3672 + $0x38] sm:$0xff]
          %v3681 = vld [vmem:[%s3672 + $0x40] sm:$0xff]
          %v3682 = vld [vmem:[%s3672 + $0x48] sm:$0xff]
          %v3683 = vld [vmem:[%s3672 + $0x50] sm:$0xff]
          %v3684 = vld [vmem:[%s3672 + $0x58] sm:$0xff]
          %v3685 = vld [vmem:[%s3672 + $0x60] sm:$0xff]
          %v3686 = vld [vmem:[%s3672 + $0x68] sm:$0xff]
          %v3687 = vld [vmem:[%s3672 + $0x70] sm:$0xff]
          %v3688 = vld [vmem:[%s3672 + $0x78] sm:$0xff]
          %s3689 = scalar_lea.vmem %s2, 11
          %v3690 = vld [vmem:[%s3689] sm:$0x1]
          %v3692 = vlaneseq
          %v3693 = vshrl.u32 %v3692, 7
          %v3694 = vsub.s32 0, %v3693
          %v3695 = vrot.slane %v3690, %v3694
          %3697 = vmatprep.subr.mxu0 0.0
          %3698 = vmatpush1.msra.mxu0 %v3673
          %3699 = vmatprep.subr.mxu0 0.0
          %3700 = vmatpush1.msra.mxu0 %v3674
          %3701 = vmatprep.subr.mxu0 0.0
          %3702 = vmatpush1.msra.mxu0 %v3675
          %3703 = vmatprep.subr.mxu0 0.0
          %3704 = vmatpush1.msra.mxu0 %v3676
          %3705 = vmatprep.subr.mxu0 0.0
          %3706 = vmatpush1.msra.mxu0 %v3677
          %3707 = vmatprep.subr.mxu0 0.0
          %3708 = vmatpush1.msra.mxu0 %v3678
          %3709 = vmatprep.subr.mxu0 0.0
          %3710 = vmatpush1.msra.mxu0 %v3679
          %3711 = vmatprep.subr.mxu0 0.0
          %3712 = vmatpush1.msra.mxu0 %v3680
          %3713 = vmatprep.subr.mxu0 0.0
          %3714 = vmatpush1.msra.mxu0 %v3681
          %3715 = vmatprep.subr.mxu0 0.0
          %3716 = vmatpush1.msra.mxu0 %v3682
          %3717 = vmatprep.subr.mxu0 0.0
          %3718 = vmatpush1.msra.mxu0 %v3683
          %3719 = vmatprep.subr.mxu0 0.0
          %3720 = vmatpush1.msra.mxu0 %v3684
          %3721 = vmatprep.subr.mxu0 0.0
          %3722 = vmatpush1.msra.mxu0 %v3685
          %3723 = vmatprep.subr.mxu0 0.0
          %3724 = vmatpush1.msra.mxu0 %v3686
          %3725 = vmatprep.subr.mxu0 0.0
          %3726 = vmatpush1.msra.mxu0 %v3687
          %3727 = vmatprep.subr.mxu0 0.0
          %3728 = vmatpush1.msra.mxu0 %v3688
          %3729 = vmatprep.subr.mxu0 0.0
          %3730 = vmatpush1.msra.mxu0 0.0
          %3731 = vmatprep.subr.mxu0 0.0
          %3732 = vmatpush1.msra.mxu0 0.0
          %3733 = vmatprep.subr.mxu0 0.0
          %3734 = vmatpush1.msra.mxu0 0.0
          %3735 = vmatprep.subr.mxu0 0.0
          %3736 = vmatpush1.msra.mxu0 0.0
          %3737 = vmatprep.subr.mxu0 0.0
          %3738 = vmatpush1.msra.mxu0 0.0
          %3739 = vmatprep.subr.mxu0 0.0
          %3740 = vmatpush1.msra.mxu0 0.0
          %3741 = vmatprep.subr.mxu0 0.0
          %3742 = vmatpush1.msra.mxu0 0.0
          %3743 = vmatprep.subr.mxu0 0.0
          %3744 = vmatpush1.msra.mxu0 0.0
          %3745 = vmatprep.subr.mxu0 0.0
          %3746 = vmatpush1.msra.mxu0 0.0
          %3747 = vmatprep.subr.mxu0 0.0
          %3748 = vmatpush1.msra.mxu0 0.0
          %3749 = vmatprep.subr.mxu0 0.0
          %3750 = vmatpush1.msra.mxu0 0.0
          %3751 = vmatprep.subr.mxu0 0.0
          %3752 = vmatpush1.msra.mxu0 0.0
          %3753 = vmatprep.subr.mxu0 0.0
          %3754 = vmatpush1.msra.mxu0 0.0
          %3755 = vmatprep.subr.mxu0 0.0
          %3756 = vmatpush1.msra.mxu0 0.0
          %3757 = vmatprep.subr.mxu0 0.0
          %3758 = vmatpush1.msra.mxu0 0.0
          %3759 = vmatprep.subr.mxu0 0.0
          %3760 = vmatpush1.msra.mxu0 0.0
          %3761 = vmatprep.mubr.f32.mxu0 0.0
          %3762 = vmatmul.mubr.f32.gmra.mrb[0].mxu0 %v242
          %v3763 = vpop.f32.mrb[0].mxu0
          %v3764 = vadd.f32 %v3695, %v3763
          %v3765 = vpop.f32.mrb[0].mxu0
          %3766 = vmatprep.mubr.f32.mxu0 0.0
          %3767 = vmatmul.mubr.f32.gmra.mrb[0].mxu0 %v243
          %v3768 = vpop.f32.mrb[0].mxu0
          %v3769 = vadd.f32 %v3695, %v3768
          %v3770 = vpop.f32.mrb[0].mxu0
          %3771 = vmatprep.mubr.f32.mxu0 0.0
          %3772 = vmatmul.mubr.f32.gmra.mrb[0].mxu0 %v244
          %v3773 = vpop.f32.mrb[0].mxu0
          %v3774 = vadd.f32 %v3695, %v3773
          %v3775 = vpop.f32.mrb[0].mxu0
          %3776 = vmatprep.mubr.f32.mxu0 0.0
          %3777 = vmatmul.mubr.f32.gmra.mrb[0].mxu0 %v245
          %v3778 = vpop.f32.mrb[0].mxu0
          %v3779 = vadd.f32 %v3695, %v3778
          %v3780 = vpop.f32.mrb[0].mxu0
          %3781 = vmatprep.mubr.f32.mxu0 0.0
          %3782 = vmatmul.mubr.f32.gmra.mrb[0].mxu0 %v246
          %v3783 = vpop.f32.mrb[0].mxu0
          %v3784 = vadd.f32 %v3695, %v3783
          %v3785 = vpop.f32.mrb[0].mxu0
          %3786 = vmatprep.mubr.f32.mxu0 0.0
          %3787 = vmatmul.mubr.f32.gmra.mrb[0].mxu0 %v247
          %v3788 = vpop.f32.mrb[0].mxu0
          %v3789 = vadd.f32 %v3695, %v3788
          %v3790 = vpop.f32.mrb[0].mxu0
          %3791 = vmatprep.mubr.f32.mxu0 0.0
          %3792 = vmatmul.mubr.f32.gmra.mrb[0].mxu0 %v248
          %v3793 = vpop.f32.mrb[0].mxu0
          %v3794 = vadd.f32 %v3695, %v3793
          %v3795 = vpop.f32.mrb[0].mxu0
          %3796 = vmatprep.mubr.f32.mxu0 0.0
          %3797 = vmatmul.mubr.f32.gmra.mrb[0].mxu0 %v249
          %v3798 = vpop.f32.mrb[0].mxu0
          %v3799 = vadd.f32 %v3695, %v3798
          %v3800 = vpop.f32.mrb[0].mxu0
          %3801 = vmatprep.mubr.f32.mxu0 0.0
          %3802 = vmatmul.mubr.f32.gmra.mrb[0].mxu0 %v250
          %v3803 = vpop.f32.mrb[0].mxu0
          %v3804 = vadd.f32 %v3695, %v3803
          %v3805 = vpop.f32.mrb[0].mxu0
          %3806 = vmatprep.mubr.f32.mxu0 0.0
          %3807 = vmatmul.mubr.f32.gmra.mrb[0].mxu0 %v251
          %v3808 = vpop.f32.mrb[0].mxu0
          %v3809 = vadd.f32 %v3695, %v3808
          %v3810 = vpop.f32.mrb[0].mxu0
          %3811 = vmatprep.mubr.f32.mxu0 0.0
          %3812 = vmatmul.mubr.f32.gmra.mrb[0].mxu0 %v252
          %v3813 = vpop.f32.mrb[0].mxu0
          %v3814 = vadd.f32 %v3695, %v3813
          %v3815 = vpop.f32.mrb[0].mxu0
          %3816 = vmatprep.mubr.f32.mxu0 0.0
          %3817 = vmatmul.mubr.f32.gmra.mrb[0].mxu0 %v253
          %v3818 = vpop.f32.mrb[0].mxu0
          %v3819 = vadd.f32 %v3695, %v3818
          %v3820 = vpop.f32.mrb[0].mxu0
          %3821 = vmatprep.mubr.f32.mxu0 0.0
          %3822 = vmatmul.mubr.f32.gmra.mrb[0].mxu0 %v254
          %v3823 = vpop.f32.mrb[0].mxu0
          %v3824 = vadd.f32 %v3695, %v3823
          %v3825 = vpop.f32.mrb[0].mxu0
          %3826 = vmatprep.mubr.f32.mxu0 0.0
          %3827 = vmatmul.mubr.f32.gmra.mrb[0].mxu0 %v255
          %v3828 = vpop.f32.mrb[0].mxu0
          %v3829 = vadd.f32 %v3695, %v3828
          %v3830 = vpop.f32.mrb[0].mxu0
          %3831 = vmatprep.mubr.f32.mxu0 0.0
          %3832 = vmatmul.mubr.f32.gmra.mrb[0].mxu0 %v256
          %v3833 = vpop.f32.mrb[0].mxu0
          %v3834 = vadd.f32 %v3695, %v3833
          %v3835 = vpop.f32.mrb[0].mxu0
          %3836 = vmatprep.mubr.f32.mxu0 0.0
          %3837 = vmatmul.mubr.f32.gmra.mrb[0].mxu0 %v257
          %v3838 = vpop.f32.mrb[0].mxu0
          %v3839 = vadd.f32 %v3695, %v3838
          %v3840 = vpop.f32.mrb[0].mxu0
          %3841 = vmatprep.mubr.f32.mxu0 0.0
          %3842 = vmatmul.mubr.f32.gmra.mrb[0].mxu0 %v258
          %v3843 = vpop.f32.mrb[0].mxu0
          %v3844 = vadd.f32 %v3695, %v3843
          %v3845 = vpop.f32.mrb[0].mxu0
          %3846 = vmatprep.mubr.f32.mxu0 0.0
          %3847 = vmatmul.mubr.f32.gmra.mrb[0].mxu0 %v259
          %v3848 = vpop.f32.mrb[0].mxu0
          %v3849 = vadd.f32 %v3695, %v3848
          %v3850 = vpop.f32.mrb[0].mxu0
          %3851 = vmatprep.mubr.f32.mxu0 0.0
          %3852 = vmatmul.mubr.f32.gmra.mrb[0].mxu0 %v260
          %v3853 = vpop.f32.mrb[0].mxu0
          %v3854 = vadd.f32 %v3695, %v3853
          %v3855 = vpop.f32.mrb[0].mxu0
          %3856 = vmatprep.mubr.f32.mxu0 0.0
          %3857 = vmatmul.mubr.f32.gmra.mrb[0].mxu0 %v261
          %v3858 = vpop.f32.mrb[0].mxu0
          %v3859 = vadd.f32 %v3695, %v3858
          %v3860 = vpop.f32.mrb[0].mxu0
          %3861 = vmatprep.mubr.f32.mxu0 0.0
          %3862 = vmatmul.mubr.f32.gmra.mrb[0].mxu0 %v262
          %v3863 = vpop.f32.mrb[0].mxu0
          %v3864 = vadd.f32 %v3695, %v3863
          %v3865 = vpop.f32.mrb[0].mxu0
          %3866 = vmatprep.mubr.f32.mxu0 0.0
          %3867 = vmatmul.mubr.f32.gmra.mrb[0].mxu0 %v263
          %v3868 = vpop.f32.mrb[0].mxu0
          %v3869 = vadd.f32 %v3695, %v3868
          %v3870 = vpop.f32.mrb[0].mxu0
          %3871 = vmatprep.mubr.f32.mxu0 0.0
          %3872 = vmatmul.mubr.f32.gmra.mrb[0].mxu0 %v264
          %v3873 = vpop.f32.mrb[0].mxu0
          %v3874 = vadd.f32 %v3695, %v3873
          %v3875 = vpop.f32.mrb[0].mxu0
          %3876 = vmatprep.mubr.f32.mxu0 0.0
          %3877 = vmatmul.mubr.f32.gmra.mrb[0].mxu0 %v265
          %v3878 = vpop.f32.mrb[0].mxu0
          %v3879 = vadd.f32 %v3695, %v3878
          %v3880 = vpop.f32.mrb[0].mxu0
          %3881 = vmatprep.mubr.f32.mxu0 0.0
          %3882 = vmatmul.mubr.f32.gmra.mrb[0].mxu0 %v266
          %v3883 = vpop.f32.mrb[0].mxu0
          %v3884 = vadd.f32 %v3695, %v3883
          %v3885 = vpop.f32.mrb[0].mxu0
          %3886 = vmatprep.mubr.f32.mxu0 0.0
          %3887 = vmatmul.mubr.f32.gmra.mrb[0].mxu0 %v267
          %v3888 = vpop.f32.mrb[0].mxu0
          %v3889 = vadd.f32 %v3695, %v3888
          %v3890 = vpop.f32.mrb[0].mxu0
          %3891 = vmatprep.mubr.f32.mxu0 0.0
          %3892 = vmatmul.mubr.f32.gmra.mrb[0].mxu0 %v268
          %v3893 = vpop.f32.mrb[0].mxu0
          %v3894 = vadd.f32 %v3695, %v3893
          %v3895 = vpop.f32.mrb[0].mxu0
          %3896 = vmatprep.mubr.f32.mxu0 0.0
          %3897 = vmatmul.mubr.f32.gmra.mrb[0].mxu0 %v269
          %v3898 = vpop.f32.mrb[0].mxu0
          %v3899 = vadd.f32 %v3695, %v3898
          %v3900 = vpop.f32.mrb[0].mxu0
          %3901 = vmatprep.mubr.f32.mxu0 0.0
          %3902 = vmatmul.mubr.f32.gmra.mrb[0].mxu0 %v270
          %v3903 = vpop.f32.mrb[0].mxu0
          %v3904 = vadd.f32 %v3695, %v3903
          %v3905 = vpop.f32.mrb[0].mxu0
          %3906 = vmatprep.mubr.f32.mxu0 0.0
          %3907 = vmatmul.mubr.f32.gmra.mrb[0].mxu0 %v271
          %v3908 = vpop.f32.mrb[0].mxu0
          %v3909 = vadd.f32 %v3695, %v3908
          %v3910 = vpop.f32.mrb[0].mxu0
          %3911 = vmatprep.mubr.f32.mxu0 0.0
          %3912 = vmatmul.mubr.f32.gmra.mrb[0].mxu0 %v272
          %v3913 = vpop.f32.mrb[0].mxu0
          %v3914 = vadd.f32 %v3695, %v3913
          %v3915 = vpop.f32.mrb[0].mxu0
          %3916 = vmatprep.mubr.f32.mxu0 0.0
          %3917 = vmatmul.mubr.f32.gmra.mrb[0].mxu0 %v273
          %v3918 = vpop.f32.mrb[0].mxu0
          %v3919 = vadd.f32 %v3695, %v3918
          %v3920 = vpop.f32.mrb[0].mxu0
          %3921 = vdwg.mxu0
          %s3922 = scalar_lea.vmem [#allocation2], 1792
          %3923 = vst.msk [vmem:[%s3922] sm:$0xff] %vm554, %v3764
          %3924 = vst.msk [vmem:[%s3922 + $0x8] sm:$0xff] %vm554, %v3769
          %3925 = vst.msk [vmem:[%s3922 + $0x10] sm:$0xff] %vm554, %v3774
          %3926 = vst.msk [vmem:[%s3922 + $0x18] sm:$0xff] %vm554, %v3779
          %3927 = vst.msk [vmem:[%s3922 + $0x20] sm:$0xff] %vm554, %v3784
          %3928 = vst.msk [vmem:[%s3922 + $0x28] sm:$0xff] %vm554, %v3789
          %3929 = vst.msk [vmem:[%s3922 + $0x30] sm:$0xff] %vm554, %v3794
          %3930 = vst.msk [vmem:[%s3922 + $0x38] sm:$0xff] %vm554, %v3799
          %3931 = vst.msk [vmem:[%s3922 + $0x40] sm:$0xff] %vm554, %v3804
          %3932 = vst.msk [vmem:[%s3922 + $0x48] sm:$0xff] %vm554, %v3809
          %3933 = vst.msk [vmem:[%s3922 + $0x50] sm:$0xff] %vm554, %v3814
          %3934 = vst.msk [vmem:[%s3922 + $0x58] sm:$0xff] %vm554, %v3819
          %3935 = vst.msk [vmem:[%s3922 + $0x60] sm:$0xff] %vm554, %v3824
          %3936 = vst.msk [vmem:[%s3922 + $0x68] sm:$0xff] %vm554, %v3829
          %3937 = vst.msk [vmem:[%s3922 + $0x70] sm:$0xff] %vm554, %v3834
          %3938 = vst.msk [vmem:[%s3922 + $0x78] sm:$0xff] %vm554, %v3839
          %3939 = vst.msk [vmem:[%s3922 + $0x80] sm:$0xff] %vm554, %v3844
          %3940 = vst.msk [vmem:[%s3922 + $0x88] sm:$0xff] %vm554, %v3849
          %3941 = vst.msk [vmem:[%s3922 + $0x90] sm:$0xff] %vm554, %v3854
          %3942 = vst.msk [vmem:[%s3922 + $0x98] sm:$0xff] %vm554, %v3859
          %3943 = vst.msk [vmem:[%s3922 + $0xa0] sm:$0xff] %vm554, %v3864
          %3944 = vst.msk [vmem:[%s3922 + $0xa8] sm:$0xff] %vm554, %v3869
          %3945 = vst.msk [vmem:[%s3922 + $0xb0] sm:$0xff] %vm554, %v3874
          %3946 = vst.msk [vmem:[%s3922 + $0xb8] sm:$0xff] %vm554, %v3879
          %3947 = vst.msk [vmem:[%s3922 + $0xc0] sm:$0xff] %vm554, %v3884
          %3948 = vst.msk [vmem:[%s3922 + $0xc8] sm:$0xff] %vm554, %v3889
          %3949 = vst.msk [vmem:[%s3922 + $0xd0] sm:$0xff] %vm554, %v3894
          %3950 = vst.msk [vmem:[%s3922 + $0xd8] sm:$0xff] %vm554, %v3899
          %3951 = vst.msk [vmem:[%s3922 + $0xe0] sm:$0xff] %vm554, %v3904
          %3952 = vst.msk [vmem:[%s3922 + $0xe8] sm:$0xff] %vm554, %v3909
          %3953 = vst.msk [vmem:[%s3922 + $0xf0] sm:$0xff] %vm554, %v3914
          %3954 = vst.msk [vmem:[%s3922 + $0xf8] sm:$0xff] %vm554, %v3919
        $region44: #{tpu_custom_call.1} parent=39 // pred_fallthru
          _
        %s3955 = smul.u32 %s24, 128
        %s3956 = scalar_lea.vmem [#allocation2], %s3955
        %v3957 = vld [vmem:[%s3956] sm:$0xff]
        %v3958 = vld [vmem:[%s3956 + $0x8] sm:$0xff]
        %v3959 = vld [vmem:[%s3956 + $0x10] sm:$0xff]
        %v3960 = vld [vmem:[%s3956 + $0x18] sm:$0xff]
        %v3961 = vld [vmem:[%s3956 + $0x20] sm:$0xff]
        %v3962 = vld [vmem:[%s3956 + $0x28] sm:$0xff]
        %v3963 = vld [vmem:[%s3956 + $0x30] sm:$0xff]
        %v3964 = vld [vmem:[%s3956 + $0x38] sm:$0xff]
        %v3965 = vld [vmem:[%s3956 + $0x40] sm:$0xff]
        %v3966 = vld [vmem:[%s3956 + $0x48] sm:$0xff]
        %v3967 = vld [vmem:[%s3956 + $0x50] sm:$0xff]
        %v3968 = vld [vmem:[%s3956 + $0x58] sm:$0xff]
        %v3969 = vld [vmem:[%s3956 + $0x60] sm:$0xff]
        %v3970 = vld [vmem:[%s3956 + $0x68] sm:$0xff]
        %v3971 = vld [vmem:[%s3956 + $0x70] sm:$0xff]
        %v3972 = vld [vmem:[%s3956 + $0x78] sm:$0xff]
        %v3973 = vld [vmem:[#allocation3] sm:$0xff]
        %v3974 = vld [vmem:[#allocation3 + $0x8] sm:$0xff]
        %v3975 = vld [vmem:[#allocation3 + $0x10] sm:$0xff]
        %v3976 = vld [vmem:[#allocation3 + $0x18] sm:$0xff]
        %v3977 = vld [vmem:[#allocation3 + $0x20] sm:$0xff]
        %v3978 = vld [vmem:[#allocation3 + $0x28] sm:$0xff]
        %v3979 = vld [vmem:[#allocation3 + $0x30] sm:$0xff]
        %v3980 = vld [vmem:[#allocation3 + $0x38] sm:$0xff]
        %vm3981 = vcmask 261120
        %v3983 = vsel %vm3981, %v3957, 0
        %v3986 = vsel %vm3981, %v3958, 0
        %v3989 = vsel %vm3981, %v3959, 0
        %v3992 = vsel %vm3981, %v3960, 0
        %v3995 = vsel %vm3981, %v3961, 0
        %v3998 = vsel %vm3981, %v3962, 0
        %v4001 = vsel %vm3981, %v3963, 0
        %v4004 = vsel %vm3981, %v3964, 0
        %v4007 = vsel %vm3981, %v3965, 0
        %v4010 = vsel %vm3981, %v3966, 0
        %v4013 = vsel %vm3981, %v3967, 0
        %v4016 = vsel %vm3981, %v3968, 0
        %v4019 = vsel %vm3981, %v3969, 0
        %v4022 = vsel %vm3981, %v3970, 0
        %v4025 = vsel %vm3981, %v3971, 0
        %v4028 = vsel %vm3981, %v3972, 0
        %4030 = vmatprep.subr.mxu0 %v3974
        %4031 = vmatpush1.msra.mxu0 %v3973
        %4032 = vmatprep.subr.mxu0 %v3976
        %4033 = vmatpush1.msra.mxu0 %v3975
        %4034 = vmatprep.subr.mxu0 %v3978
        %4035 = vmatpush1.msra.mxu0 %v3977
        %4036 = vmatprep.subr.mxu0 %v3980
        %4037 = vmatpush1.msra.mxu0 %v3979
        %4038 = vmatprep.subr.mxu0 0.0
        %4039 = vmatpush1.msra.mxu0 0.0
        %4040 = vmatprep.subr.mxu0 0.0
        %4041 = vmatpush1.msra.mxu0 0.0
        %4042 = vmatprep.subr.mxu0 0.0
        %4043 = vmatpush1.msra.mxu0 0.0
        %4044 = vmatprep.subr.mxu0 0.0
        %4045 = vmatpush1.msra.mxu0 0.0
        %4046 = vmatprep.subr.mxu0 0.0
        %4047 = vmatpush1.msra.mxu0 0.0
        %4048 = vmatprep.subr.mxu0 0.0
        %4049 = vmatpush1.msra.mxu0 0.0
        %4050 = vmatprep.subr.mxu0 0.0
        %4051 = vmatpush1.msra.mxu0 0.0
        %4052 = vmatprep.subr.mxu0 0.0
        %4053 = vmatpush1.msra.mxu0 0.0
        %4054 = vmatprep.subr.mxu0 0.0
        %4055 = vmatpush1.msra.mxu0 0.0
        %4056 = vmatprep.subr.mxu0 0.0
        %4057 = vmatpush1.msra.mxu0 0.0
        %4058 = vmatprep.subr.mxu0 0.0
        %4059 = vmatpush1.msra.mxu0 0.0
        %4060 = vmatprep.subr.mxu0 0.0
        %4061 = vmatpush1.msra.mxu0 0.0
        %4062 = vmatprep.subr.mxu0 0.0
        %4063 = vmatpush1.msra.mxu0 0.0
        %4064 = vmatprep.subr.mxu0 0.0
        %4065 = vmatpush1.msra.mxu0 0.0
        %4066 = vmatprep.subr.mxu0 0.0
        %4067 = vmatpush1.msra.mxu0 0.0
        %4068 = vmatprep.subr.mxu0 0.0
        %4069 = vmatpush1.msra.mxu0 0.0
        %4070 = vmatprep.subr.mxu0 0.0
        %4071 = vmatpush1.msra.mxu0 0.0
        %4072 = vmatprep.subr.mxu0 0.0
        %4073 = vmatpush1.msra.mxu0 0.0
        %4074 = vmatprep.subr.mxu0 0.0
        %4075 = vmatpush1.msra.mxu0 0.0
        %4076 = vmatprep.subr.mxu0 0.0
        %4077 = vmatpush1.msra.mxu0 0.0
        %4078 = vmatprep.subr.mxu0 0.0
        %4079 = vmatpush1.msra.mxu0 0.0
        %4080 = vmatprep.subr.mxu0 0.0
        %4081 = vmatpush1.msra.mxu0 0.0
        %4082 = vmatprep.subr.mxu0 0.0
        %4083 = vmatpush1.msra.mxu0 0.0
        %4084 = vmatprep.subr.mxu0 0.0
        %4085 = vmatpush1.msra.mxu0 0.0
        %4086 = vmatprep.subr.mxu0 0.0
        %4087 = vmatpush1.msra.mxu0 0.0
        %4088 = vmatprep.subr.mxu0 0.0
        %4089 = vmatpush1.msra.mxu0 0.0
        %4090 = vmatprep.subr.mxu0 0.0
        %4091 = vmatpush1.msra.mxu0 0.0
        %4092 = vmatprep.subr.mxu0 0.0
        %4093 = vmatpush1.msra.mxu0 0.0
        %4094 = vmatprep.mubr.f32.mxu0 0.0
        %4095 = vmatmul.mubr.f32.gmra.mrb[0].mxu0 %v3983
        %v4096 = vpop.f32.mrb[0].mxu0
        %v4097 = vadd.f32 0.0, %v4096
        %v4098 = vpop.f32.mrb[0].mxu0
        %v4099 = vadd.f32 0.0, %v4098
        %4100 = vmatprep.mubr.f32.mxu0 0.0
        %4101 = vmatmul.mubr.f32.gmra.mrb[0].mxu0 %v3986
        %v4102 = vpop.f32.mrb[0].mxu0
        %v4103 = vadd.f32 0.0, %v4102
        %v4104 = vpop.f32.mrb[0].mxu0
        %v4105 = vadd.f32 0.0, %v4104
        %4106 = vmatprep.mubr.f32.mxu0 0.0
        %4107 = vmatmul.mubr.f32.gmra.mrb[0].mxu0 %v3989
        %v4108 = vpop.f32.mrb[0].mxu0
        %v4109 = vadd.f32 0.0, %v4108
        %v4110 = vpop.f32.mrb[0].mxu0
        %v4111 = vadd.f32 0.0, %v4110
        %4112 = vmatprep.mubr.f32.mxu0 0.0
        %4113 = vmatmul.mubr.f32.gmra.mrb[0].mxu0 %v3992
        %v4114 = vpop.f32.mrb[0].mxu0
        %v4115 = vadd.f32 0.0, %v4114
        %v4116 = vpop.f32.mrb[0].mxu0
        %v4117 = vadd.f32 0.0, %v4116
        %4118 = vmatprep.mubr.f32.mxu0 0.0
        %4119 = vmatmul.mubr.f32.gmra.mrb[0].mxu0 %v3995
        %v4120 = vpop.f32.mrb[0].mxu0
        %v4121 = vadd.f32 0.0, %v4120
        %v4122 = vpop.f32.mrb[0].mxu0
        %v4123 = vadd.f32 0.0, %v4122
        %4124 = vmatprep.mubr.f32.mxu0 0.0
        %4125 = vmatmul.mubr.f32.gmra.mrb[0].mxu0 %v3998
        %v4126 = vpop.f32.mrb[0].mxu0
        %v4127 = vadd.f32 0.0, %v4126
        %v4128 = vpop.f32.mrb[0].mxu0
        %v4129 = vadd.f32 0.0, %v4128
        %4130 = vmatprep.mubr.f32.mxu0 0.0
        %4131 = vmatmul.mubr.f32.gmra.mrb[0].mxu0 %v4001
        %v4132 = vpop.f32.mrb[0].mxu0
        %v4133 = vadd.f32 0.0, %v4132
        %v4134 = vpop.f32.mrb[0].mxu0
        %v4135 = vadd.f32 0.0, %v4134
        %4136 = vmatprep.mubr.f32.mxu0 0.0
        %4137 = vmatmul.mubr.f32.gmra.mrb[0].mxu0 %v4004
        %v4138 = vpop.f32.mrb[0].mxu0
        %v4139 = vadd.f32 0.0, %v4138
        %v4140 = vpop.f32.mrb[0].mxu0
        %v4141 = vadd.f32 0.0, %v4140
        %4142 = vmatprep.mubr.f32.mxu0 0.0
        %4143 = vmatmul.mubr.f32.gmra.mrb[0].mxu0 %v4007
        %v4144 = vpop.f32.mrb[0].mxu0
        %v4145 = vadd.f32 0.0, %v4144
        %v4146 = vpop.f32.mrb[0].mxu0
        %v4147 = vadd.f32 0.0, %v4146
        %4148 = vmatprep.mubr.f32.mxu0 0.0
        %4149 = vmatmul.mubr.f32.gmra.mrb[0].mxu0 %v4010
        %v4150 = vpop.f32.mrb[0].mxu0
        %v4151 = vadd.f32 0.0, %v4150
        %v4152 = vpop.f32.mrb[0].mxu0
        %v4153 = vadd.f32 0.0, %v4152
        %4154 = vmatprep.mubr.f32.mxu0 0.0
        %4155 = vmatmul.mubr.f32.gmra.mrb[0].mxu0 %v4013
        %v4156 = vpop.f32.mrb[0].mxu0
        %v4157 = vadd.f32 0.0, %v4156
        %v4158 = vpop.f32.mrb[0].mxu0
        %v4159 = vadd.f32 0.0, %v4158
        %4160 = vmatprep.mubr.f32.mxu0 0.0
        %4161 = vmatmul.mubr.f32.gmra.mrb[0].mxu0 %v4016
        %v4162 = vpop.f32.mrb[0].mxu0
        %v4163 = vadd.f32 0.0, %v4162
        %v4164 = vpop.f32.mrb[0].mxu0
        %v4165 = vadd.f32 0.0, %v4164
        %4166 = vmatprep.mubr.f32.mxu0 0.0
        %4167 = vmatmul.mubr.f32.gmra.mrb[0].mxu0 %v4019
        %v4168 = vpop.f32.mrb[0].mxu0
        %v4169 = vadd.f32 0.0, %v4168
        %v4170 = vpop.f32.mrb[0].mxu0
        %v4171 = vadd.f32 0.0, %v4170
        %4172 = vmatprep.mubr.f32.mxu0 0.0
        %4173 = vmatmul.mubr.f32.gmra.mrb[0].mxu0 %v4022
        %v4174 = vpop.f32.mrb[0].mxu0
        %v4175 = vadd.f32 0.0, %v4174
        %v4176 = vpop.f32.mrb[0].mxu0
        %v4177 = vadd.f32 0.0, %v4176
        %4178 = vmatprep.mubr.f32.mxu0 0.0
        %4179 = vmatmul.mubr.f32.gmra.mrb[0].mxu0 %v4025
        %v4180 = vpop.f32.mrb[0].mxu0
        %v4181 = vadd.f32 0.0, %v4180
        %v4182 = vpop.f32.mrb[0].mxu0
        %v4183 = vadd.f32 0.0, %v4182
        %4184 = vmatprep.mubr.f32.mxu0 0.0
        %4185 = vmatmul.mubr.f32.gmra.mrb[0].mxu0 %v4028
        %v4186 = vpop.f32.mrb[0].mxu0
        %v4187 = vadd.f32 0.0, %v4186
        %v4188 = vpop.f32.mrb[0].mxu0
        %v4189 = vadd.f32 0.0, %v4188
        %4190 = vdwg.mxu0
        %4191 = vst [vmem:[#allocation4] sm:$0xff] %v4097
        %4192 = vst [vmem:[#allocation4 + $0x8] sm:$0xff] %v4099
        %4193 = vst [vmem:[#allocation4 + $0x10] sm:$0xff] %v4103
        %4194 = vst [vmem:[#allocation4 + $0x18] sm:$0xff] %v4105
        %4195 = vst [vmem:[#allocation4 + $0x20] sm:$0xff] %v4109
        %4196 = vst [vmem:[#allocation4 + $0x28] sm:$0xff] %v4111
        %4197 = vst [vmem:[#allocation4 + $0x30] sm:$0xff] %v4115
        %4198 = vst [vmem:[#allocation4 + $0x38] sm:$0xff] %v4117
        %4199 = vst [vmem:[#allocation4 + $0x40] sm:$0xff] %v4121
        %4200 = vst [vmem:[#allocation4 + $0x48] sm:$0xff] %v4123
        %4201 = vst [vmem:[#allocation4 + $0x50] sm:$0xff] %v4127
        %4202 = vst [vmem:[#allocation4 + $0x58] sm:$0xff] %v4129
        %4203 = vst [vmem:[#allocation4 + $0x60] sm:$0xff] %v4133
        %4204 = vst [vmem:[#allocation4 + $0x68] sm:$0xff] %v4135
        %4205 = vst [vmem:[#allocation4 + $0x70] sm:$0xff] %v4139
        %4206 = vst [vmem:[#allocation4 + $0x78] sm:$0xff] %v4141
        %4207 = vst [vmem:[#allocation4 + $0x80] sm:$0xff] %v4145
        %4208 = vst [vmem:[#allocation4 + $0x88] sm:$0xff] %v4147
        %4209 = vst [vmem:[#allocation4 + $0x90] sm:$0xff] %v4151
        %4210 = vst [vmem:[#allocation4 + $0x98] sm:$0xff] %v4153
        %4211 = vst [vmem:[#allocation4 + $0xa0] sm:$0xff] %v4157
        %4212 = vst [vmem:[#allocation4 + $0xa8] sm:$0xff] %v4159
        %4213 = vst [vmem:[#allocation4 + $0xb0] sm:$0xff] %v4163
        %4214 = vst [vmem:[#allocation4 + $0xb8] sm:$0xff] %v4165
        %4215 = vst [vmem:[#allocation4 + $0xc0] sm:$0xff] %v4169
        %4216 = vst [vmem:[#allocation4 + $0xc8] sm:$0xff] %v4171
        %4217 = vst [vmem:[#allocation4 + $0xd0] sm:$0xff] %v4175
        %4218 = vst [vmem:[#allocation4 + $0xd8] sm:$0xff] %v4177
        %4219 = vst [vmem:[#allocation4 + $0xe0] sm:$0xff] %v4181
        %4220 = vst [vmem:[#allocation4 + $0xe8] sm:$0xff] %v4183
        %4221 = vst [vmem:[#allocation4 + $0xf0] sm:$0xff] %v4187
        %4222 = vst [vmem:[#allocation4 + $0xf8] sm:$0xff] %v4189
        %s4223 = sadd.s32 %s3955, 256
        %s4224 = scalar_lea.vmem [#allocation2], %s4223
        %v4225 = vld [vmem:[%s4224] sm:$0xff]
        %v4226 = vld [vmem:[%s4224 + $0x8] sm:$0xff]
        %v4227 = vld [vmem:[%s4224 + $0x10] sm:$0xff]
        %v4228 = vld [vmem:[%s4224 + $0x18] sm:$0xff]
        %v4229 = vld [vmem:[%s4224 + $0x20] sm:$0xff]
        %v4230 = vld [vmem:[%s4224 + $0x28] sm:$0xff]
        %v4231 = vld [vmem:[%s4224 + $0x30] sm:$0xff]
        %v4232 = vld [vmem:[%s4224 + $0x38] sm:$0xff]
        %v4233 = vld [vmem:[%s4224 + $0x40] sm:$0xff]
        %v4234 = vld [vmem:[%s4224 + $0x48] sm:$0xff]
        %v4235 = vld [vmem:[%s4224 + $0x50] sm:$0xff]
        %v4236 = vld [vmem:[%s4224 + $0x58] sm:$0xff]
        %v4237 = vld [vmem:[%s4224 + $0x60] sm:$0xff]
        %v4238 = vld [vmem:[%s4224 + $0x68] sm:$0xff]
        %v4239 = vld [vmem:[%s4224 + $0x70] sm:$0xff]
        %v4240 = vld [vmem:[%s4224 + $0x78] sm:$0xff]
        %s4241 = scalar_lea.vmem [#allocation3], 64
        %v4242 = vld [vmem:[%s4241] sm:$0xff]
        %v4243 = vld [vmem:[%s4241 + $0x8] sm:$0xff]
        %v4244 = vld [vmem:[%s4241 + $0x10] sm:$0xff]
        %v4245 = vld [vmem:[%s4241 + $0x18] sm:$0xff]
        %v4246 = vld [vmem:[%s4241 + $0x20] sm:$0xff]
        %v4247 = vld [vmem:[%s4241 + $0x28] sm:$0xff]
        %v4248 = vld [vmem:[%s4241 + $0x30] sm:$0xff]
        %v4249 = vld [vmem:[%s4241 + $0x38] sm:$0xff]
        %v4251 = vsel %vm3981, %v4225, 0
        %v4254 = vsel %vm3981, %v4226, 0
        %v4257 = vsel %vm3981, %v4227, 0
        %v4260 = vsel %vm3981, %v4228, 0
        %v4263 = vsel %vm3981, %v4229, 0
        %v4266 = vsel %vm3981, %v4230, 0
        %v4269 = vsel %vm3981, %v4231, 0
        %v4272 = vsel %vm3981, %v4232, 0
        %v4275 = vsel %vm3981, %v4233, 0
        %v4278 = vsel %vm3981, %v4234, 0
        %v4281 = vsel %vm3981, %v4235, 0
        %v4284 = vsel %vm3981, %v4236, 0
        %v4287 = vsel %vm3981, %v4237, 0
        %v4290 = vsel %vm3981, %v4238, 0
        %v4293 = vsel %vm3981, %v4239, 0
        %v4296 = vsel %vm3981, %v4240, 0
        %4298 = vmatprep.subr.mxu0 %v4243
        %4299 = vmatpush1.msra.mxu0 %v4242
        %4300 = vmatprep.subr.mxu0 %v4245
        %4301 = vmatpush1.msra.mxu0 %v4244
        %4302 = vmatprep.subr.mxu0 %v4247
        %4303 = vmatpush1.msra.mxu0 %v4246
        %4304 = vmatprep.subr.mxu0 %v4249
        %4305 = vmatpush1.msra.mxu0 %v4248
        %4306 = vmatprep.subr.mxu0 0.0
        %4307 = vmatpush1.msra.mxu0 0.0
        %4308 = vmatprep.subr.mxu0 0.0
        %4309 = vmatpush1.msra.mxu0 0.0
        %4310 = vmatprep.subr.mxu0 0.0
        %4311 = vmatpush1.msra.mxu0 0.0
        %4312 = vmatprep.subr.mxu0 0.0
        %4313 = vmatpush1.msra.mxu0 0.0
        %4314 = vmatprep.subr.mxu0 0.0
        %4315 = vmatpush1.msra.mxu0 0.0
        %4316 = vmatprep.subr.mxu0 0.0
        %4317 = vmatpush1.msra.mxu0 0.0
        %4318 = vmatprep.subr.mxu0 0.0
        %4319 = vmatpush1.msra.mxu0 0.0
        %4320 = vmatprep.subr.mxu0 0.0
        %4321 = vmatpush1.msra.mxu0 0.0
        %4322 = vmatprep.subr.mxu0 0.0
        %4323 = vmatpush1.msra.mxu0 0.0
        %4324 = vmatprep.subr.mxu0 0.0
        %4325 = vmatpush1.msra.mxu0 0.0
        %4326 = vmatprep.subr.mxu0 0.0
        %4327 = vmatpush1.msra.mxu0 0.0
        %4328 = vmatprep.subr.mxu0 0.0
        %4329 = vmatpush1.msra.mxu0 0.0
        %4330 = vmatprep.subr.mxu0 0.0
        %4331 = vmatpush1.msra.mxu0 0.0
        %4332 = vmatprep.subr.mxu0 0.0
        %4333 = vmatpush1.msra.mxu0 0.0
        %4334 = vmatprep.subr.mxu0 0.0
        %4335 = vmatpush1.msra.mxu0 0.0
        %4336 = vmatprep.subr.mxu0 0.0
        %4337 = vmatpush1.msra.mxu0 0.0
        %4338 = vmatprep.subr.mxu0 0.0
        %4339 = vmatpush1.msra.mxu0 0.0
        %4340 = vmatprep.subr.mxu0 0.0
        %4341 = vmatpush1.msra.mxu0 0.0
        %4342 = vmatprep.subr.mxu0 0.0
        %4343 = vmatpush1.msra.mxu0 0.0
        %4344 = vmatprep.subr.mxu0 0.0
        %4345 = vmatpush1.msra.mxu0 0.0
        %4346 = vmatprep.subr.mxu0 0.0
        %4347 = vmatpush1.msra.mxu0 0.0
        %4348 = vmatprep.subr.mxu0 0.0
        %4349 = vmatpush1.msra.mxu0 0.0
        %4350 = vmatprep.subr.mxu0 0.0
        %4351 = vmatpush1.msra.mxu0 0.0
        %4352 = vmatprep.subr.mxu0 0.0
        %4353 = vmatpush1.msra.mxu0 0.0
        %4354 = vmatprep.subr.mxu0 0.0
        %4355 = vmatpush1.msra.mxu0 0.0
        %4356 = vmatprep.subr.mxu0 0.0
        %4357 = vmatpush1.msra.mxu0 0.0
        %4358 = vmatprep.subr.mxu0 0.0
        %4359 = vmatpush1.msra.mxu0 0.0
        %4360 = vmatprep.subr.mxu0 0.0
        %4361 = vmatpush1.msra.mxu0 0.0
        %4362 = vmatprep.mubr.f32.mxu0 0.0
        %4363 = vmatmul.mubr.f32.gmra.mrb[0].mxu0 %v4251
        %v4364 = vpop.f32.mrb[0].mxu0
        %v4365 = vadd.f32 0.0, %v4364
        %v4366 = vpop.f32.mrb[0].mxu0
        %v4367 = vadd.f32 0.0, %v4366
        %4368 = vmatprep.mubr.f32.mxu0 0.0
        %4369 = vmatmul.mubr.f32.gmra.mrb[0].mxu0 %v4254
        %v4370 = vpop.f32.mrb[0].mxu0
        %v4371 = vadd.f32 0.0, %v4370
        %v4372 = vpop.f32.mrb[0].mxu0
        %v4373 = vadd.f32 0.0, %v4372
        %4374 = vmatprep.mubr.f32.mxu0 0.0
        %4375 = vmatmul.mubr.f32.gmra.mrb[0].mxu0 %v4257
        %v4376 = vpop.f32.mrb[0].mxu0
        %v4377 = vadd.f32 0.0, %v4376
        %v4378 = vpop.f32.mrb[0].mxu0
        %v4379 = vadd.f32 0.0, %v4378
        %4380 = vmatprep.mubr.f32.mxu0 0.0
        %4381 = vmatmul.mubr.f32.gmra.mrb[0].mxu0 %v4260
        %v4382 = vpop.f32.mrb[0].mxu0
        %v4383 = vadd.f32 0.0, %v4382
        %v4384 = vpop.f32.mrb[0].mxu0
        %v4385 = vadd.f32 0.0, %v4384
        %4386 = vmatprep.mubr.f32.mxu0 0.0
        %4387 = vmatmul.mubr.f32.gmra.mrb[0].mxu0 %v4263
        %v4388 = vpop.f32.mrb[0].mxu0
        %v4389 = vadd.f32 0.0, %v4388
        %v4390 = vpop.f32.mrb[0].mxu0
        %v4391 = vadd.f32 0.0, %v4390
        %4392 = vmatprep.mubr.f32.mxu0 0.0
        %4393 = vmatmul.mubr.f32.gmra.mrb[0].mxu0 %v4266
        %v4394 = vpop.f32.mrb[0].mxu0
        %v4395 = vadd.f32 0.0, %v4394
        %v4396 = vpop.f32.mrb[0].mxu0
        %v4397 = vadd.f32 0.0, %v4396
        %4398 = vmatprep.mubr.f32.mxu0 0.0
        %4399 = vmatmul.mubr.f32.gmra.mrb[0].mxu0 %v4269
        %v4400 = vpop.f32.mrb[0].mxu0
        %v4401 = vadd.f32 0.0, %v4400
        %v4402 = vpop.f32.mrb[0].mxu0
        %v4403 = vadd.f32 0.0, %v4402
        %4404 = vmatprep.mubr.f32.mxu0 0.0
        %4405 = vmatmul.mubr.f32.gmra.mrb[0].mxu0 %v4272
        %v4406 = vpop.f32.mrb[0].mxu0
        %v4407 = vadd.f32 0.0, %v4406
        %v4408 = vpop.f32.mrb[0].mxu0
        %v4409 = vadd.f32 0.0, %v4408
        %4410 = vmatprep.mubr.f32.mxu0 0.0
        %4411 = vmatmul.mubr.f32.gmra.mrb[0].mxu0 %v4275
        %v4412 = vpop.f32.mrb[0].mxu0
        %v4413 = vadd.f32 0.0, %v4412
        %v4414 = vpop.f32.mrb[0].mxu0
        %v4415 = vadd.f32 0.0, %v4414
        %4416 = vmatprep.mubr.f32.mxu0 0.0
        %4417 = vmatmul.mubr.f32.gmra.mrb[0].mxu0 %v4278
        %v4418 = vpop.f32.mrb[0].mxu0
        %v4419 = vadd.f32 0.0, %v4418
        %v4420 = vpop.f32.mrb[0].mxu0
        %v4421 = vadd.f32 0.0, %v4420
        %4422 = vmatprep.mubr.f32.mxu0 0.0
        %4423 = vmatmul.mubr.f32.gmra.mrb[0].mxu0 %v4281
        %v4424 = vpop.f32.mrb[0].mxu0
        %v4425 = vadd.f32 0.0, %v4424
        %v4426 = vpop.f32.mrb[0].mxu0
        %v4427 = vadd.f32 0.0, %v4426
        %4428 = vmatprep.mubr.f32.mxu0 0.0
        %4429 = vmatmul.mubr.f32.gmra.mrb[0].mxu0 %v4284
        %v4430 = vpop.f32.mrb[0].mxu0
        %v4431 = vadd.f32 0.0, %v4430
        %v4432 = vpop.f32.mrb[0].mxu0
        %v4433 = vadd.f32 0.0, %v4432
        %4434 = vmatprep.mubr.f32.mxu0 0.0
        %4435 = vmatmul.mubr.f32.gmra.mrb[0].mxu0 %v4287
        %v4436 = vpop.f32.mrb[0].mxu0
        %v4437 = vadd.f32 0.0, %v4436
        %v4438 = vpop.f32.mrb[0].mxu0
        %v4439 = vadd.f32 0.0, %v4438
        %4440 = vmatprep.mubr.f32.mxu0 0.0
        %4441 = vmatmul.mubr.f32.gmra.mrb[0].mxu0 %v4290
        %v4442 = vpop.f32.mrb[0].mxu0
        %v4443 = vadd.f32 0.0, %v4442
        %v4444 = vpop.f32.mrb[0].mxu0
        %v4445 = vadd.f32 0.0, %v4444
        %4446 = vmatprep.mubr.f32.mxu0 0.0
        %4447 = vmatmul.mubr.f32.gmra.mrb[0].mxu0 %v4293
        %v4448 = vpop.f32.mrb[0].mxu0
        %v4449 = vadd.f32 0.0, %v4448
        %v4450 = vpop.f32.mrb[0].mxu0
        %v4451 = vadd.f32 0.0, %v4450
        %4452 = vmatprep.mubr.f32.mxu0 0.0
        %4453 = vmatmul.mubr.f32.gmra.mrb[0].mxu0 %v4296
        %v4454 = vpop.f32.mrb[0].mxu0
        %v4455 = vadd.f32 0.0, %v4454
        %v4456 = vpop.f32.mrb[0].mxu0
        %v4457 = vadd.f32 0.0, %v4456
        %4458 = vdwg.mxu0
        %s4459 = scalar_lea.vmem [#allocation4], 256
        %4460 = vst [vmem:[%s4459] sm:$0xff] %v4365
        %4461 = vst [vmem:[%s4459 + $0x8] sm:$0xff] %v4367
        %4462 = vst [vmem:[%s4459 + $0x10] sm:$0xff] %v4371
        %4463 = vst [vmem:[%s4459 + $0x18] sm:$0xff] %v4373
        %4464 = vst [vmem:[%s4459 + $0x20] sm:$0xff] %v4377
        %4465 = vst [vmem:[%s4459 + $0x28] sm:$0xff] %v4379
        %4466 = vst [vmem:[%s4459 + $0x30] sm:$0xff] %v4383
        %4467 = vst [vmem:[%s4459 + $0x38] sm:$0xff] %v4385
        %4468 = vst [vmem:[%s4459 + $0x40] sm:$0xff] %v4389
        %4469 = vst [vmem:[%s4459 + $0x48] sm:$0xff] %v4391
        %4470 = vst [vmem:[%s4459 + $0x50] sm:$0xff] %v4395
        %4471 = vst [vmem:[%s4459 + $0x58] sm:$0xff] %v4397
        %4472 = vst [vmem:[%s4459 + $0x60] sm:$0xff] %v4401
        %4473 = vst [vmem:[%s4459 + $0x68] sm:$0xff] %v4403
        %4474 = vst [vmem:[%s4459 + $0x70] sm:$0xff] %v4407
        %4475 = vst [vmem:[%s4459 + $0x78] sm:$0xff] %v4409
        %4476 = vst [vmem:[%s4459 + $0x80] sm:$0xff] %v4413
        %4477 = vst [vmem:[%s4459 + $0x88] sm:$0xff] %v4415
        %4478 = vst [vmem:[%s4459 + $0x90] sm:$0xff] %v4419
        %4479 = vst [vmem:[%s4459 + $0x98] sm:$0xff] %v4421
        %4480 = vst [vmem:[%s4459 + $0xa0] sm:$0xff] %v4425
        %4481 = vst [vmem:[%s4459 + $0xa8] sm:$0xff] %v4427
        %4482 = vst [vmem:[%s4459 + $0xb0] sm:$0xff] %v4431
        %4483 = vst [vmem:[%s4459 + $0xb8] sm:$0xff] %v4433
        %4484 = vst [vmem:[%s4459 + $0xc0] sm:$0xff] %v4437
        %4485 = vst [vmem:[%s4459 + $0xc8] sm:$0xff] %v4439
        %4486 = vst [vmem:[%s4459 + $0xd0] sm:$0xff] %v4443
        %4487 = vst [vmem:[%s4459 + $0xd8] sm:$0xff] %v4445
        %4488 = vst [vmem:[%s4459 + $0xe0] sm:$0xff] %v4449
        %4489 = vst [vmem:[%s4459 + $0xe8] sm:$0xff] %v4451
        %4490 = vst [vmem:[%s4459 + $0xf0] sm:$0xff] %v4455
        %4491 = vst [vmem:[%s4459 + $0xf8] sm:$0xff] %v4457
        %v4492 = vmax.f32 %v4097, %v4365
        %v4493 = vmax.f32 %v4099, %v4367
        %v4494 = vmax.f32 %v4103, %v4371
        %v4495 = vmax.f32 %v4105, %v4373
        %v4496 = vmax.f32 %v4109, %v4377
        %v4497 = vmax.f32 %v4111, %v4379
        %v4498 = vmax.f32 %v4115, %v4383
        %v4499 = vmax.f32 %v4117, %v4385
        %v4500 = vmax.f32 %v4121, %v4389
        %v4501 = vmax.f32 %v4123, %v4391
        %v4502 = vmax.f32 %v4127, %v4395
        %v4503 = vmax.f32 %v4129, %v4397
        %v4504 = vmax.f32 %v4133, %v4401
        %v4505 = vmax.f32 %v4135, %v4403
        %v4506 = vmax.f32 %v4139, %v4407
        %v4507 = vmax.f32 %v4141, %v4409
        %v4508 = vmax.f32 %v4145, %v4413
        %v4509 = vmax.f32 %v4147, %v4415
        %v4510 = vmax.f32 %v4151, %v4419
        %v4511 = vmax.f32 %v4153, %v4421
        %v4512 = vmax.f32 %v4157, %v4425
        %v4513 = vmax.f32 %v4159, %v4427
        %v4514 = vmax.f32 %v4163, %v4431
        %v4515 = vmax.f32 %v4165, %v4433
        %v4516 = vmax.f32 %v4169, %v4437
        %v4517 = vmax.f32 %v4171, %v4439
        %v4518 = vmax.f32 %v4175, %v4443
        %v4519 = vmax.f32 %v4177, %v4445
        %v4520 = vmax.f32 %v4181, %v4449
        %v4521 = vmax.f32 %v4183, %v4451
        %v4522 = vmax.f32 %v4187, %v4455
        %v4523 = vmax.f32 %v4189, %v4457
        %s4524 = sadd.s32 %s3955, 512
        %s4525 = scalar_lea.vmem [#allocation2], %s4524
        %v4526 = vld [vmem:[%s4525] sm:$0xff]
        %v4527 = vld [vmem:[%s4525 + $0x8] sm:$0xff]
        %v4528 = vld [vmem:[%s4525 + $0x10] sm:$0xff]
        %v4529 = vld [vmem:[%s4525 + $0x18] sm:$0xff]
        %v4530 = vld [vmem:[%s4525 + $0x20] sm:$0xff]
        %v4531 = vld [vmem:[%s4525 + $0x28] sm:$0xff]
        %v4532 = vld [vmem:[%s4525 + $0x30] sm:$0xff]
        %v4533 = vld [vmem:[%s4525 + $0x38] sm:$0xff]
        %v4534 = vld [vmem:[%s4525 + $0x40] sm:$0xff]
        %v4535 = vld [vmem:[%s4525 + $0x48] sm:$0xff]
        %v4536 = vld [vmem:[%s4525 + $0x50] sm:$0xff]
        %v4537 = vld [vmem:[%s4525 + $0x58] sm:$0xff]
        %v4538 = vld [vmem:[%s4525 + $0x60] sm:$0xff]
        %v4539 = vld [vmem:[%s4525 + $0x68] sm:$0xff]
        %v4540 = vld [vmem:[%s4525 + $0x70] sm:$0xff]
        %v4541 = vld [vmem:[%s4525 + $0x78] sm:$0xff]
        %s4542 = scalar_lea.vmem [#allocation3], 128
        %v4543 = vld [vmem:[%s4542] sm:$0xff]
        %v4544 = vld [vmem:[%s4542 + $0x8] sm:$0xff]
        %v4545 = vld [vmem:[%s4542 + $0x10] sm:$0xff]
        %v4546 = vld [vmem:[%s4542 + $0x18] sm:$0xff]
        %v4547 = vld [vmem:[%s4542 + $0x20] sm:$0xff]
        %v4548 = vld [vmem:[%s4542 + $0x28] sm:$0xff]
        %v4549 = vld [vmem:[%s4542 + $0x30] sm:$0xff]
        %v4550 = vld [vmem:[%s4542 + $0x38] sm:$0xff]
        %v4552 = vsel %vm3981, %v4526, 0
        %v4555 = vsel %vm3981, %v4527, 0
        %v4558 = vsel %vm3981, %v4528, 0
        %v4561 = vsel %vm3981, %v4529, 0
        %v4564 = vsel %vm3981, %v4530, 0
        %v4567 = vsel %vm3981, %v4531, 0
        %v4570 = vsel %vm3981, %v4532, 0
        %v4573 = vsel %vm3981, %v4533, 0
        %v4576 = vsel %vm3981, %v4534, 0
        %v4579 = vsel %vm3981, %v4535, 0
        %v4582 = vsel %vm3981, %v4536, 0
        %v4585 = vsel %vm3981, %v4537, 0
        %v4588 = vsel %vm3981, %v4538, 0
        %v4591 = vsel %vm3981, %v4539, 0
        %v4594 = vsel %vm3981, %v4540, 0
        %v4597 = vsel %vm3981, %v4541, 0
        %4599 = vmatprep.subr.mxu0 %v4544
        %4600 = vmatpush1.msra.mxu0 %v4543
        %4601 = vmatprep.subr.mxu0 %v4546
        %4602 = vmatpush1.msra.mxu0 %v4545
        %4603 = vmatprep.subr.mxu0 %v4548
        %4604 = vmatpush1.msra.mxu0 %v4547
        %4605 = vmatprep.subr.mxu0 %v4550
        %4606 = vmatpush1.msra.mxu0 %v4549
        %4607 = vmatprep.subr.mxu0 0.0
        %4608 = vmatpush1.msra.mxu0 0.0
        %4609 = vmatprep.subr.mxu0 0.0
        %4610 = vmatpush1.msra.mxu0 0.0
        %4611 = vmatprep.subr.mxu0 0.0
        %4612 = vmatpush1.msra.mxu0 0.0
        %4613 = vmatprep.subr.mxu0 0.0
        %4614 = vmatpush1.msra.mxu0 0.0
        %4615 = vmatprep.subr.mxu0 0.0
        %4616 = vmatpush1.msra.mxu0 0.0
        %4617 = vmatprep.subr.mxu0 0.0
        %4618 = vmatpush1.msra.mxu0 0.0
        %4619 = vmatprep.subr.mxu0 0.0
        %4620 = vmatpush1.msra.mxu0 0.0
        %4621 = vmatprep.subr.mxu0 0.0
        %4622 = vmatpush1.msra.mxu0 0.0
        %4623 = vmatprep.subr.mxu0 0.0
        %4624 = vmatpush1.msra.mxu0 0.0
        %4625 = vmatprep.subr.mxu0 0.0
        %4626 = vmatpush1.msra.mxu0 0.0
        %4627 = vmatprep.subr.mxu0 0.0
        %4628 = vmatpush1.msra.mxu0 0.0
        %4629 = vmatprep.subr.mxu0 0.0
        %4630 = vmatpush1.msra.mxu0 0.0
        %4631 = vmatprep.subr.mxu0 0.0
        %4632 = vmatpush1.msra.mxu0 0.0
        %4633 = vmatprep.subr.mxu0 0.0
        %4634 = vmatpush1.msra.mxu0 0.0
        %4635 = vmatprep.subr.mxu0 0.0
        %4636 = vmatpush1.msra.mxu0 0.0
        %4637 = vmatprep.subr.mxu0 0.0
        %4638 = vmatpush1.msra.mxu0 0.0
        %4639 = vmatprep.subr.mxu0 0.0
        %4640 = vmatpush1.msra.mxu0 0.0
        %4641 = vmatprep.subr.mxu0 0.0
        %4642 = vmatpush1.msra.mxu0 0.0
        %4643 = vmatprep.subr.mxu0 0.0
        %4644 = vmatpush1.msra.mxu0 0.0
        %4645 = vmatprep.subr.mxu0 0.0
        %4646 = vmatpush1.msra.mxu0 0.0
        %4647 = vmatprep.subr.mxu0 0.0
        %4648 = vmatpush1.msra.mxu0 0.0
        %4649 = vmatprep.subr.mxu0 0.0
        %4650 = vmatpush1.msra.mxu0 0.0
        %4651 = vmatprep.subr.mxu0 0.0
        %4652 = vmatpush1.msra.mxu0 0.0
        %4653 = vmatprep.subr.mxu0 0.0
        %4654 = vmatpush1.msra.mxu0 0.0
        %4655 = vmatprep.subr.mxu0 0.0
        %4656 = vmatpush1.msra.mxu0 0.0
        %4657 = vmatprep.subr.mxu0 0.0
        %4658 = vmatpush1.msra.mxu0 0.0
        %4659 = vmatprep.subr.mxu0 0.0
        %4660 = vmatpush1.msra.mxu0 0.0
        %4661 = vmatprep.subr.mxu0 0.0
        %4662 = vmatpush1.msra.mxu0 0.0
        %4663 = vmatprep.mubr.f32.mxu0 0.0
        %4664 = vmatmul.mubr.f32.gmra.mrb[0].mxu0 %v4552
        %v4665 = vpop.f32.mrb[0].mxu0
        %v4666 = vadd.f32 0.0, %v4665
        %v4667 = vpop.f32.mrb[0].mxu0
        %v4668 = vadd.f32 0.0, %v4667
        %4669 = vmatprep.mubr.f32.mxu0 0.0
        %4670 = vmatmul.mubr.f32.gmra.mrb[0].mxu0 %v4555
        %v4671 = vpop.f32.mrb[0].mxu0
        %v4672 = vadd.f32 0.0, %v4671
        %v4673 = vpop.f32.mrb[0].mxu0
        %v4674 = vadd.f32 0.0, %v4673
        %4675 = vmatprep.mubr.f32.mxu0 0.0
        %4676 = vmatmul.mubr.f32.gmra.mrb[0].mxu0 %v4558
        %v4677 = vpop.f32.mrb[0].mxu0
        %v4678 = vadd.f32 0.0, %v4677
        %v4679 = vpop.f32.mrb[0].mxu0
        %v4680 = vadd.f32 0.0, %v4679
        %4681 = vmatprep.mubr.f32.mxu0 0.0
        %4682 = vmatmul.mubr.f32.gmra.mrb[0].mxu0 %v4561
        %v4683 = vpop.f32.mrb[0].mxu0
        %v4684 = vadd.f32 0.0, %v4683
        %v4685 = vpop.f32.mrb[0].mxu0
        %v4686 = vadd.f32 0.0, %v4685
        %4687 = vmatprep.mubr.f32.mxu0 0.0
        %4688 = vmatmul.mubr.f32.gmra.mrb[0].mxu0 %v4564
        %v4689 = vpop.f32.mrb[0].mxu0
        %v4690 = vadd.f32 0.0, %v4689
        %v4691 = vpop.f32.mrb[0].mxu0
        %v4692 = vadd.f32 0.0, %v4691
        %4693 = vmatprep.mubr.f32.mxu0 0.0
        %4694 = vmatmul.mubr.f32.gmra.mrb[0].mxu0 %v4567
        %v4695 = vpop.f32.mrb[0].mxu0
        %v4696 = vadd.f32 0.0, %v4695
        %v4697 = vpop.f32.mrb[0].mxu0
        %v4698 = vadd.f32 0.0, %v4697
        %4699 = vmatprep.mubr.f32.mxu0 0.0
        %4700 = vmatmul.mubr.f32.gmra.mrb[0].mxu0 %v4570
        %v4701 = vpop.f32.mrb[0].mxu0
        %v4702 = vadd.f32 0.0, %v4701
        %v4703 = vpop.f32.mrb[0].mxu0
        %v4704 = vadd.f32 0.0, %v4703
        %4705 = vmatprep.mubr.f32.mxu0 0.0
        %4706 = vmatmul.mubr.f32.gmra.mrb[0].mxu0 %v4573
        %v4707 = vpop.f32.mrb[0].mxu0
        %v4708 = vadd.f32 0.0, %v4707
        %v4709 = vpop.f32.mrb[0].mxu0
        %v4710 = vadd.f32 0.0, %v4709
        %4711 = vmatprep.mubr.f32.mxu0 0.0
        %4712 = vmatmul.mubr.f32.gmra.mrb[0].mxu0 %v4576
        %v4713 = vpop.f32.mrb[0].mxu0
        %v4714 = vadd.f32 0.0, %v4713
        %v4715 = vpop.f32.mrb[0].mxu0
        %v4716 = vadd.f32 0.0, %v4715
        %4717 = vmatprep.mubr.f32.mxu0 0.0
        %4718 = vmatmul.mubr.f32.gmra.mrb[0].mxu0 %v4579
        %v4719 = vpop.f32.mrb[0].mxu0
        %v4720 = vadd.f32 0.0, %v4719
        %v4721 = vpop.f32.mrb[0].mxu0
        %v4722 = vadd.f32 0.0, %v4721
        %4723 = vmatprep.mubr.f32.mxu0 0.0
        %4724 = vmatmul.mubr.f32.gmra.mrb[0].mxu0 %v4582
        %v4725 = vpop.f32.mrb[0].mxu0
        %v4726 = vadd.f32 0.0, %v4725
        %v4727 = vpop.f32.mrb[0].mxu0
        %v4728 = vadd.f32 0.0, %v4727
        %4729 = vmatprep.mubr.f32.mxu0 0.0
        %4730 = vmatmul.mubr.f32.gmra.mrb[0].mxu0 %v4585
        %v4731 = vpop.f32.mrb[0].mxu0
        %v4732 = vadd.f32 0.0, %v4731
        %v4733 = vpop.f32.mrb[0].mxu0
        %v4734 = vadd.f32 0.0, %v4733
        %4735 = vmatprep.mubr.f32.mxu0 0.0
        %4736 = vmatmul.mubr.f32.gmra.mrb[0].mxu0 %v4588
        %v4737 = vpop.f32.mrb[0].mxu0
        %v4738 = vadd.f32 0.0, %v4737
        %v4739 = vpop.f32.mrb[0].mxu0
        %v4740 = vadd.f32 0.0, %v4739
        %4741 = vmatprep.mubr.f32.mxu0 0.0
        %4742 = vmatmul.mubr.f32.gmra.mrb[0].mxu0 %v4591
        %v4743 = vpop.f32.mrb[0].mxu0
        %v4744 = vadd.f32 0.0, %v4743
        %v4745 = vpop.f32.mrb[0].mxu0
        %v4746 = vadd.f32 0.0, %v4745
        %4747 = vmatprep.mubr.f32.mxu0 0.0
        %4748 = vmatmul.mubr.f32.gmra.mrb[0].mxu0 %v4594
        %v4749 = vpop.f32.mrb[0].mxu0
        %v4750 = vadd.f32 0.0, %v4749
        %v4751 = vpop.f32.mrb[0].mxu0
        %v4752 = vadd.f32 0.0, %v4751
        %4753 = vmatprep.mubr.f32.mxu0 0.0
        %4754 = vmatmul.mubr.f32.gmra.mrb[0].mxu0 %v4597
        %v4755 = vpop.f32.mrb[0].mxu0
        %v4756 = vadd.f32 0.0, %v4755
        %v4757 = vpop.f32.mrb[0].mxu0
        %v4758 = vadd.f32 0.0, %v4757
        %4759 = vdwg.mxu0
        %s4760 = scalar_lea.vmem [#allocation4], 512
        %4761 = vst [vmem:[%s4760] sm:$0xff] %v4666
        %4762 = vst [vmem:[%s4760 + $0x8] sm:$0xff] %v4668
        %4763 = vst [vmem:[%s4760 + $0x10] sm:$0xff] %v4672
        %4764 = vst [vmem:[%s4760 + $0x18] sm:$0xff] %v4674
        %4765 = vst [vmem:[%s4760 + $0x20] sm:$0xff] %v4678
        %4766 = vst [vmem:[%s4760 + $0x28] sm:$0xff] %v4680
        %4767 = vst [vmem:[%s4760 + $0x30] sm:$0xff] %v4684
        %4768 = vst [vmem:[%s4760 + $0x38] sm:$0xff] %v4686
        %4769 = vst [vmem:[%s4760 + $0x40] sm:$0xff] %v4690
        %4770 = vst [vmem:[%s4760 + $0x48] sm:$0xff] %v4692
        %4771 = vst [vmem:[%s4760 + $0x50] sm:$0xff] %v4696
        %4772 = vst [vmem:[%s4760 + $0x58] sm:$0xff] %v4698
        %4773 = vst [vmem:[%s4760 + $0x60] sm:$0xff] %v4702
        %4774 = vst [vmem:[%s4760 + $0x68] sm:$0xff] %v4704
        %4775 = vst [vmem:[%s4760 + $0x70] sm:$0xff] %v4708
        %4776 = vst [vmem:[%s4760 + $0x78] sm:$0xff] %v4710
        %4777 = vst [vmem:[%s4760 + $0x80] sm:$0xff] %v4714
        %4778 = vst [vmem:[%s4760 + $0x88] sm:$0xff] %v4716
        %4779 = vst [vmem:[%s4760 + $0x90] sm:$0xff] %v4720
        %4780 = vst [vmem:[%s4760 + $0x98] sm:$0xff] %v4722
        %4781 = vst [vmem:[%s4760 + $0xa0] sm:$0xff] %v4726
        %4782 = vst [vmem:[%s4760 + $0xa8] sm:$0xff] %v4728
        %4783 = vst [vmem:[%s4760 + $0xb0] sm:$0xff] %v4732
        %4784 = vst [vmem:[%s4760 + $0xb8] sm:$0xff] %v4734
        %4785 = vst [vmem:[%s4760 + $0xc0] sm:$0xff] %v4738
        %4786 = vst [vmem:[%s4760 + $0xc8] sm:$0xff] %v4740
        %4787 = vst [vmem:[%s4760 + $0xd0] sm:$0xff] %v4744
        %4788 = vst [vmem:[%s4760 + $0xd8] sm:$0xff] %v4746
        %4789 = vst [vmem:[%s4760 + $0xe0] sm:$0xff] %v4750
        %4790 = vst [vmem:[%s4760 + $0xe8] sm:$0xff] %v4752
        %4791 = vst [vmem:[%s4760 + $0xf0] sm:$0xff] %v4756
        %4792 = vst [vmem:[%s4760 + $0xf8] sm:$0xff] %v4758
        %v4793 = vmax.f32 %v4492, %v4666
        %v4794 = vmax.f32 %v4493, %v4668
        %v4795 = vmax.f32 %v4494, %v4672
        %v4796 = vmax.f32 %v4495, %v4674
        %v4797 = vmax.f32 %v4496, %v4678
        %v4798 = vmax.f32 %v4497, %v4680
        %v4799 = vmax.f32 %v4498, %v4684
        %v4800 = vmax.f32 %v4499, %v4686
        %v4801 = vmax.f32 %v4500, %v4690
        %v4802 = vmax.f32 %v4501, %v4692
        %v4803 = vmax.f32 %v4502, %v4696
        %v4804 = vmax.f32 %v4503, %v4698
        %v4805 = vmax.f32 %v4504, %v4702
        %v4806 = vmax.f32 %v4505, %v4704
        %v4807 = vmax.f32 %v4506, %v4708
        %v4808 = vmax.f32 %v4507, %v4710
        %v4809 = vmax.f32 %v4508, %v4714
        %v4810 = vmax.f32 %v4509, %v4716
        %v4811 = vmax.f32 %v4510, %v4720
        %v4812 = vmax.f32 %v4511, %v4722
        %v4813 = vmax.f32 %v4512, %v4726
        %v4814 = vmax.f32 %v4513, %v4728
        %v4815 = vmax.f32 %v4514, %v4732
        %v4816 = vmax.f32 %v4515, %v4734
        %v4817 = vmax.f32 %v4516, %v4738
        %v4818 = vmax.f32 %v4517, %v4740
        %v4819 = vmax.f32 %v4518, %v4744
        %v4820 = vmax.f32 %v4519, %v4746
        %v4821 = vmax.f32 %v4520, %v4750
        %v4822 = vmax.f32 %v4521, %v4752
        %v4823 = vmax.f32 %v4522, %v4756
        %v4824 = vmax.f32 %v4523, %v4758
        %s4825 = sadd.s32 %s3955, 768
        %s4826 = scalar_lea.vmem [#allocation2], %s4825
        %v4827 = vld [vmem:[%s4826] sm:$0xff]
        %v4828 = vld [vmem:[%s4826 + $0x8] sm:$0xff]
        %v4829 = vld [vmem:[%s4826 + $0x10] sm:$0xff]
        %v4830 = vld [vmem:[%s4826 + $0x18] sm:$0xff]
        %v4831 = vld [vmem:[%s4826 + $0x20] sm:$0xff]
        %v4832 = vld [vmem:[%s4826 + $0x28] sm:$0xff]
        %v4833 = vld [vmem:[%s4826 + $0x30] sm:$0xff]
        %v4834 = vld [vmem:[%s4826 + $0x38] sm:$0xff]
        %v4835 = vld [vmem:[%s4826 + $0x40] sm:$0xff]
        %v4836 = vld [vmem:[%s4826 + $0x48] sm:$0xff]
        %v4837 = vld [vmem:[%s4826 + $0x50] sm:$0xff]
        %v4838 = vld [vmem:[%s4826 + $0x58] sm:$0xff]
        %v4839 = vld [vmem:[%s4826 + $0x60] sm:$0xff]
        %v4840 = vld [vmem:[%s4826 + $0x68] sm:$0xff]
        %v4841 = vld [vmem:[%s4826 + $0x70] sm:$0xff]
        %v4842 = vld [vmem:[%s4826 + $0x78] sm:$0xff]
        %s4843 = scalar_lea.vmem [#allocation3], 192
        %v4844 = vld [vmem:[%s4843] sm:$0xff]
        %v4845 = vld [vmem:[%s4843 + $0x8] sm:$0xff]
        %v4846 = vld [vmem:[%s4843 + $0x10] sm:$0xff]
        %v4847 = vld [vmem:[%s4843 + $0x18] sm:$0xff]
        %v4848 = vld [vmem:[%s4843 + $0x20] sm:$0xff]
        %v4849 = vld [vmem:[%s4843 + $0x28] sm:$0xff]
        %v4850 = vld [vmem:[%s4843 + $0x30] sm:$0xff]
        %v4851 = vld [vmem:[%s4843 + $0x38] sm:$0xff]
        %v4853 = vsel %vm3981, %v4827, 0
        %v4856 = vsel %vm3981, %v4828, 0
        %v4859 = vsel %vm3981, %v4829, 0
        %v4862 = vsel %vm3981, %v4830, 0
        %v4865 = vsel %vm3981, %v4831, 0
        %v4868 = vsel %vm3981, %v4832, 0
        %v4871 = vsel %vm3981, %v4833, 0
        %v4874 = vsel %vm3981, %v4834, 0
        %v4877 = vsel %vm3981, %v4835, 0
        %v4880 = vsel %vm3981, %v4836, 0
        %v4883 = vsel %vm3981, %v4837, 0
        %v4886 = vsel %vm3981, %v4838, 0
        %v4889 = vsel %vm3981, %v4839, 0
        %v4892 = vsel %vm3981, %v4840, 0
        %v4895 = vsel %vm3981, %v4841, 0
        %v4898 = vsel %vm3981, %v4842, 0
        %4900 = vmatprep.subr.mxu0 %v4845
        %4901 = vmatpush1.msra.mxu0 %v4844
        %4902 = vmatprep.subr.mxu0 %v4847
        %4903 = vmatpush1.msra.mxu0 %v4846
        %4904 = vmatprep.subr.mxu0 %v4849
        %4905 = vmatpush1.msra.mxu0 %v4848
        %4906 = vmatprep.subr.mxu0 %v4851
        %4907 = vmatpush1.msra.mxu0 %v4850
        %4908 = vmatprep.subr.mxu0 0.0
        %4909 = vmatpush1.msra.mxu0 0.0
        %4910 = vmatprep.subr.mxu0 0.0
        %4911 = vmatpush1.msra.mxu0 0.0
        %4912 = vmatprep.subr.mxu0 0.0
        %4913 = vmatpush1.msra.mxu0 0.0
        %4914 = vmatprep.subr.mxu0 0.0
        %4915 = vmatpush1.msra.mxu0 0.0
        %4916 = vmatprep.subr.mxu0 0.0
        %4917 = vmatpush1.msra.mxu0 0.0
        %4918 = vmatprep.subr.mxu0 0.0
        %4919 = vmatpush1.msra.mxu0 0.0
        %4920 = vmatprep.subr.mxu0 0.0
        %4921 = vmatpush1.msra.mxu0 0.0
        %4922 = vmatprep.subr.mxu0 0.0
        %4923 = vmatpush1.msra.mxu0 0.0
        %4924 = vmatprep.subr.mxu0 0.0
        %4925 = vmatpush1.msra.mxu0 0.0
        %4926 = vmatprep.subr.mxu0 0.0
        %4927 = vmatpush1.msra.mxu0 0.0
        %4928 = vmatprep.subr.mxu0 0.0
        %4929 = vmatpush1.msra.mxu0 0.0
        %4930 = vmatprep.subr.mxu0 0.0
        %4931 = vmatpush1.msra.mxu0 0.0
        %4932 = vmatprep.subr.mxu0 0.0
        %4933 = vmatpush1.msra.mxu0 0.0
        %4934 = vmatprep.subr.mxu0 0.0
        %4935 = vmatpush1.msra.mxu0 0.0
        %4936 = vmatprep.subr.mxu0 0.0
        %4937 = vmatpush1.msra.mxu0 0.0
        %4938 = vmatprep.subr.mxu0 0.0
        %4939 = vmatpush1.msra.mxu0 0.0
        %4940 = vmatprep.subr.mxu0 0.0
        %4941 = vmatpush1.msra.mxu0 0.0
        %4942 = vmatprep.subr.mxu0 0.0
        %4943 = vmatpush1.msra.mxu0 0.0
        %4944 = vmatprep.subr.mxu0 0.0
        %4945 = vmatpush1.msra.mxu0 0.0
        %4946 = vmatprep.subr.mxu0 0.0
        %4947 = vmatpush1.msra.mxu0 0.0
        %4948 = vmatprep.subr.mxu0 0.0
        %4949 = vmatpush1.msra.mxu0 0.0
        %4950 = vmatprep.subr.mxu0 0.0
        %4951 = vmatpush1.msra.mxu0 0.0
        %4952 = vmatprep.subr.mxu0 0.0
        %4953 = vmatpush1.msra.mxu0 0.0
        %4954 = vmatprep.subr.mxu0 0.0
        %4955 = vmatpush1.msra.mxu0 0.0
        %4956 = vmatprep.subr.mxu0 0.0
        %4957 = vmatpush1.msra.mxu0 0.0
        %4958 = vmatprep.subr.mxu0 0.0
        %4959 = vmatpush1.msra.mxu0 0.0
        %4960 = vmatprep.subr.mxu0 0.0
        %4961 = vmatpush1.msra.mxu0 0.0
        %4962 = vmatprep.subr.mxu0 0.0
        %4963 = vmatpush1.msra.mxu0 0.0
        %4964 = vmatprep.mubr.f32.mxu0 0.0
        %4965 = vmatmul.mubr.f32.gmra.mrb[0].mxu0 %v4853
        %v4966 = vpop.f32.mrb[0].mxu0
        %v4967 = vadd.f32 0.0, %v4966
        %v4968 = vpop.f32.mrb[0].mxu0
        %v4969 = vadd.f32 0.0, %v4968
        %4970 = vmatprep.mubr.f32.mxu0 0.0
        %4971 = vmatmul.mubr.f32.gmra.mrb[0].mxu0 %v4856
        %v4972 = vpop.f32.mrb[0].mxu0
        %v4973 = vadd.f32 0.0, %v4972
        %v4974 = vpop.f32.mrb[0].mxu0
        %v4975 = vadd.f32 0.0, %v4974
        %4976 = vmatprep.mubr.f32.mxu0 0.0
        %4977 = vmatmul.mubr.f32.gmra.mrb[0].mxu0 %v4859
        %v4978 = vpop.f32.mrb[0].mxu0
        %v4979 = vadd.f32 0.0, %v4978
        %v4980 = vpop.f32.mrb[0].mxu0
        %v4981 = vadd.f32 0.0, %v4980
        %4982 = vmatprep.mubr.f32.mxu0 0.0
        %4983 = vmatmul.mubr.f32.gmra.mrb[0].mxu0 %v4862
        %v4984 = vpop.f32.mrb[0].mxu0
        %v4985 = vadd.f32 0.0, %v4984
        %v4986 = vpop.f32.mrb[0].mxu0
        %v4987 = vadd.f32 0.0, %v4986
        %4988 = vmatprep.mubr.f32.mxu0 0.0
        %4989 = vmatmul.mubr.f32.gmra.mrb[0].mxu0 %v4865
        %v4990 = vpop.f32.mrb[0].mxu0
        %v4991 = vadd.f32 0.0, %v4990
        %v4992 = vpop.f32.mrb[0].mxu0
        %v4993 = vadd.f32 0.0, %v4992
        %4994 = vmatprep.mubr.f32.mxu0 0.0
        %4995 = vmatmul.mubr.f32.gmra.mrb[0].mxu0 %v4868
        %v4996 = vpop.f32.mrb[0].mxu0
        %v4997 = vadd.f32 0.0, %v4996
        %v4998 = vpop.f32.mrb[0].mxu0
        %v4999 = vadd.f32 0.0, %v4998
        %5000 = vmatprep.mubr.f32.mxu0 0.0
        %5001 = vmatmul.mubr.f32.gmra.mrb[0].mxu0 %v4871
        %v5002 = vpop.f32.mrb[0].mxu0
        %v5003 = vadd.f32 0.0, %v5002
        %v5004 = vpop.f32.mrb[0].mxu0
        %v5005 = vadd.f32 0.0, %v5004
        %5006 = vmatprep.mubr.f32.mxu0 0.0
        %5007 = vmatmul.mubr.f32.gmra.mrb[0].mxu0 %v4874
        %v5008 = vpop.f32.mrb[0].mxu0
        %v5009 = vadd.f32 0.0, %v5008
        %v5010 = vpop.f32.mrb[0].mxu0
        %v5011 = vadd.f32 0.0, %v5010
        %5012 = vmatprep.mubr.f32.mxu0 0.0
        %5013 = vmatmul.mubr.f32.gmra.mrb[0].mxu0 %v4877
        %v5014 = vpop.f32.mrb[0].mxu0
        %v5015 = vadd.f32 0.0, %v5014
        %v5016 = vpop.f32.mrb[0].mxu0
        %v5017 = vadd.f32 0.0, %v5016
        %5018 = vmatprep.mubr.f32.mxu0 0.0
        %5019 = vmatmul.mubr.f32.gmra.mrb[0].mxu0 %v4880
        %v5020 = vpop.f32.mrb[0].mxu0
        %v5021 = vadd.f32 0.0, %v5020
        %v5022 = vpop.f32.mrb[0].mxu0
        %v5023 = vadd.f32 0.0, %v5022
        %5024 = vmatprep.mubr.f32.mxu0 0.0
        %5025 = vmatmul.mubr.f32.gmra.mrb[0].mxu0 %v4883
        %v5026 = vpop.f32.mrb[0].mxu0
        %v5027 = vadd.f32 0.0, %v5026
        %v5028 = vpop.f32.mrb[0].mxu0
        %v5029 = vadd.f32 0.0, %v5028
        %5030 = vmatprep.mubr.f32.mxu0 0.0
        %5031 = vmatmul.mubr.f32.gmra.mrb[0].mxu0 %v4886
        %v5032 = vpop.f32.mrb[0].mxu0
        %v5033 = vadd.f32 0.0, %v5032
        %v5034 = vpop.f32.mrb[0].mxu0
        %v5035 = vadd.f32 0.0, %v5034
        %5036 = vmatprep.mubr.f32.mxu0 0.0
        %5037 = vmatmul.mubr.f32.gmra.mrb[0].mxu0 %v4889
        %v5038 = vpop.f32.mrb[0].mxu0
        %v5039 = vadd.f32 0.0, %v5038
        %v5040 = vpop.f32.mrb[0].mxu0
        %v5041 = vadd.f32 0.0, %v5040
        %5042 = vmatprep.mubr.f32.mxu0 0.0
        %5043 = vmatmul.mubr.f32.gmra.mrb[0].mxu0 %v4892
        %v5044 = vpop.f32.mrb[0].mxu0
        %v5045 = vadd.f32 0.0, %v5044
        %v5046 = vpop.f32.mrb[0].mxu0
        %v5047 = vadd.f32 0.0, %v5046
        %5048 = vmatprep.mubr.f32.mxu0 0.0
        %5049 = vmatmul.mubr.f32.gmra.mrb[0].mxu0 %v4895
        %v5050 = vpop.f32.mrb[0].mxu0
        %v5051 = vadd.f32 0.0, %v5050
        %v5052 = vpop.f32.mrb[0].mxu0
        %v5053 = vadd.f32 0.0, %v5052
        %5054 = vmatprep.mubr.f32.mxu0 0.0
        %5055 = vmatmul.mubr.f32.gmra.mrb[0].mxu0 %v4898
        %v5056 = vpop.f32.mrb[0].mxu0
        %v5057 = vadd.f32 0.0, %v5056
        %v5058 = vpop.f32.mrb[0].mxu0
        %v5059 = vadd.f32 0.0, %v5058
        %5060 = vdwg.mxu0
        %s5061 = scalar_lea.vmem [#allocation4], 768
        %5062 = vst [vmem:[%s5061] sm:$0xff] %v4967
        %5063 = vst [vmem:[%s5061 + $0x8] sm:$0xff] %v4969
        %5064 = vst [vmem:[%s5061 + $0x10] sm:$0xff] %v4973
        %5065 = vst [vmem:[%s5061 + $0x18] sm:$0xff] %v4975
        %5066 = vst [vmem:[%s5061 + $0x20] sm:$0xff] %v4979
        %5067 = vst [vmem:[%s5061 + $0x28] sm:$0xff] %v4981
        %5068 = vst [vmem:[%s5061 + $0x30] sm:$0xff] %v4985
        %5069 = vst [vmem:[%s5061 + $0x38] sm:$0xff] %v4987
        %5070 = vst [vmem:[%s5061 + $0x40] sm:$0xff] %v4991
        %5071 = vst [vmem:[%s5061 + $0x48] sm:$0xff] %v4993
        %5072 = vst [vmem:[%s5061 + $0x50] sm:$0xff] %v4997
        %5073 = vst [vmem:[%s5061 + $0x58] sm:$0xff] %v4999
        %5074 = vst [vmem:[%s5061 + $0x60] sm:$0xff] %v5003
        %5075 = vst [vmem:[%s5061 + $0x68] sm:$0xff] %v5005
        %5076 = vst [vmem:[%s5061 + $0x70] sm:$0xff] %v5009
        %5077 = vst [vmem:[%s5061 + $0x78] sm:$0xff] %v5011
        %5078 = vst [vmem:[%s5061 + $0x80] sm:$0xff] %v5015
        %5079 = vst [vmem:[%s5061 + $0x88] sm:$0xff] %v5017
        %5080 = vst [vmem:[%s5061 + $0x90] sm:$0xff] %v5021
        %5081 = vst [vmem:[%s5061 + $0x98] sm:$0xff] %v5023
        %5082 = vst [vmem:[%s5061 + $0xa0] sm:$0xff] %v5027
        %5083 = vst [vmem:[%s5061 + $0xa8] sm:$0xff] %v5029
        %5084 = vst [vmem:[%s5061 + $0xb0] sm:$0xff] %v5033
        %5085 = vst [vmem:[%s5061 + $0xb8] sm:$0xff] %v5035
        %5086 = vst [vmem:[%s5061 + $0xc0] sm:$0xff] %v5039
        %5087 = vst [vmem:[%s5061 + $0xc8] sm:$0xff] %v5041
        %5088 = vst [vmem:[%s5061 + $0xd0] sm:$0xff] %v5045
        %5089 = vst [vmem:[%s5061 + $0xd8] sm:$0xff] %v5047
        %5090 = vst [vmem:[%s5061 + $0xe0] sm:$0xff] %v5051
        %5091 = vst [vmem:[%s5061 + $0xe8] sm:$0xff] %v5053
        %5092 = vst [vmem:[%s5061 + $0xf0] sm:$0xff] %v5057
        %5093 = vst [vmem:[%s5061 + $0xf8] sm:$0xff] %v5059
        %v5094 = vmax.f32 %v4793, %v4967
        %v5095 = vmax.f32 %v4794, %v4969
        %v5096 = vmax.f32 %v4795, %v4973
        %v5097 = vmax.f32 %v4796, %v4975
        %v5098 = vmax.f32 %v4797, %v4979
        %v5099 = vmax.f32 %v4798, %v4981
        %v5100 = vmax.f32 %v4799, %v4985
        %v5101 = vmax.f32 %v4800, %v4987
        %v5102 = vmax.f32 %v4801, %v4991
        %v5103 = vmax.f32 %v4802, %v4993
        %v5104 = vmax.f32 %v4803, %v4997
        %v5105 = vmax.f32 %v4804, %v4999
        %v5106 = vmax.f32 %v4805, %v5003
        %v5107 = vmax.f32 %v4806, %v5005
        %v5108 = vmax.f32 %v4807, %v5009
        %v5109 = vmax.f32 %v4808, %v5011
        %v5110 = vmax.f32 %v4809, %v5015
        %v5111 = vmax.f32 %v4810, %v5017
        %v5112 = vmax.f32 %v4811, %v5021
        %v5113 = vmax.f32 %v4812, %v5023
        %v5114 = vmax.f32 %v4813, %v5027
        %v5115 = vmax.f32 %v4814, %v5029
        %v5116 = vmax.f32 %v4815, %v5033
        %v5117 = vmax.f32 %v4816, %v5035
        %v5118 = vmax.f32 %v4817, %v5039
        %v5119 = vmax.f32 %v4818, %v5041
        %v5120 = vmax.f32 %v4819, %v5045
        %v5121 = vmax.f32 %v4820, %v5047
        %v5122 = vmax.f32 %v4821, %v5051
        %v5123 = vmax.f32 %v4822, %v5053
        %v5124 = vmax.f32 %v4823, %v5057
        %v5125 = vmax.f32 %v4824, %v5059
        %v5126 = vld [vmem:[#allocation4] sm:$0xff]
        %v5127 = vld [vmem:[#allocation4 + $0x8] sm:$0xff]
        %v5128 = vld [vmem:[#allocation4 + $0x10] sm:$0xff]
        %v5129 = vld [vmem:[#allocation4 + $0x18] sm:$0xff]
        %v5130 = vld [vmem:[#allocation4 + $0x20] sm:$0xff]
        %v5131 = vld [vmem:[#allocation4 + $0x28] sm:$0xff]
        %v5132 = vld [vmem:[#allocation4 + $0x30] sm:$0xff]
        %v5133 = vld [vmem:[#allocation4 + $0x38] sm:$0xff]
        %v5134 = vld [vmem:[#allocation4 + $0x40] sm:$0xff]
        %v5135 = vld [vmem:[#allocation4 + $0x48] sm:$0xff]
        %v5136 = vld [vmem:[#allocation4 + $0x50] sm:$0xff]
        %v5137 = vld [vmem:[#allocation4 + $0x58] sm:$0xff]
        %v5138 = vld [vmem:[#allocation4 + $0x60] sm:$0xff]
        %v5139 = vld [vmem:[#allocation4 + $0x68] sm:$0xff]
        %v5140 = vld [vmem:[#allocation4 + $0x70] sm:$0xff]
        %v5141 = vld [vmem:[#allocation4 + $0x78] sm:$0xff]
        %v5142 = vld [vmem:[#allocation4 + $0x80] sm:$0xff]
        %v5143 = vld [vmem:[#allocation4 + $0x88] sm:$0xff]
        %v5144 = vld [vmem:[#allocation4 + $0x90] sm:$0xff]
        %v5145 = vld [vmem:[#allocation4 + $0x98] sm:$0xff]
        %v5146 = vld [vmem:[#allocation4 + $0xa0] sm:$0xff]
        %v5147 = vld [vmem:[#allocation4 + $0xa8] sm:$0xff]
        %v5148 = vld [vmem:[#allocation4 + $0xb0] sm:$0xff]
        %v5149 = vld [vmem:[#allocation4 + $0xb8] sm:$0xff]
        %v5150 = vld [vmem:[#allocation4 + $0xc0] sm:$0xff]
        %v5151 = vld [vmem:[#allocation4 + $0xc8] sm:$0xff]
        %v5152 = vld [vmem:[#allocation4 + $0xd0] sm:$0xff]
        %v5153 = vld [vmem:[#allocation4 + $0xd8] sm:$0xff]
        %v5154 = vld [vmem:[#allocation4 + $0xe0] sm:$0xff]
        %v5155 = vld [vmem:[#allocation4 + $0xe8] sm:$0xff]
        %v5156 = vld [vmem:[#allocation4 + $0xf0] sm:$0xff]
        %v5157 = vld [vmem:[#allocation4 + $0xf8] sm:$0xff]
        %v5158 = vsub.f32 %v5126, %v5094
        %v5159 = vsub.f32 %v5127, %v5095
        %v5160 = vsub.f32 %v5128, %v5096
        %v5161 = vsub.f32 %v5129, %v5097
        %v5162 = vsub.f32 %v5130, %v5098
        %v5163 = vsub.f32 %v5131, %v5099
        %v5164 = vsub.f32 %v5132, %v5100
        %v5165 = vsub.f32 %v5133, %v5101
        %v5166 = vsub.f32 %v5134, %v5102
        %v5167 = vsub.f32 %v5135, %v5103
        %v5168 = vsub.f32 %v5136, %v5104
        %v5169 = vsub.f32 %v5137, %v5105
        %v5170 = vsub.f32 %v5138, %v5106
        %v5171 = vsub.f32 %v5139, %v5107
        %v5172 = vsub.f32 %v5140, %v5108
        %v5173 = vsub.f32 %v5141, %v5109
        %v5174 = vsub.f32 %v5142, %v5110
        %v5175 = vsub.f32 %v5143, %v5111
        %v5176 = vsub.f32 %v5144, %v5112
        %v5177 = vsub.f32 %v5145, %v5113
        %v5178 = vsub.f32 %v5146, %v5114
        %v5179 = vsub.f32 %v5147, %v5115
        %v5180 = vsub.f32 %v5148, %v5116
        %v5181 = vsub.f32 %v5149, %v5117
        %v5182 = vsub.f32 %v5150, %v5118
        %v5183 = vsub.f32 %v5151, %v5119
        %v5184 = vsub.f32 %v5152, %v5120
        %v5185 = vsub.f32 %v5153, %v5121
        %v5186 = vsub.f32 %v5154, %v5122
        %v5187 = vsub.f32 %v5155, %v5123
        %v5188 = vsub.f32 %v5156, %v5124
        %v5189 = vsub.f32 %v5157, %v5125
        %v5190 = vmul.f32 %v5158, 1.442695
        %v5191 = vpow.pop %v5190
        %v5192 = vmul.f32 %v5159, 1.442695
        %v5193 = vpow.pop %v5192
        %v5194 = vmul.f32 %v5160, 1.442695
        %v5195 = vpow.pop %v5194
        %v5196 = vmul.f32 %v5161, 1.442695
        %v5197 = vpow.pop %v5196
        %v5198 = vmul.f32 %v5162, 1.442695
        %v5199 = vpow.pop %v5198
        %v5200 = vmul.f32 %v5163, 1.442695
        %v5201 = vpow.pop %v5200
        %v5202 = vmul.f32 %v5164, 1.442695
        %v5203 = vpow.pop %v5202
        %v5204 = vmul.f32 %v5165, 1.442695
        %v5205 = vpow.pop %v5204
        %v5206 = vmul.f32 %v5166, 1.442695
        %v5207 = vpow.pop %v5206
        %v5208 = vmul.f32 %v5167, 1.442695
        %v5209 = vpow.pop %v5208
        %v5210 = vmul.f32 %v5168, 1.442695
        %v5211 = vpow.pop %v5210
        %v5212 = vmul.f32 %v5169, 1.442695
        %v5213 = vpow.pop %v5212
        %v5214 = vmul.f32 %v5170, 1.442695
        %v5215 = vpow.pop %v5214
        %v5216 = vmul.f32 %v5171, 1.442695
        %v5217 = vpow.pop %v5216
        %v5218 = vmul.f32 %v5172, 1.442695
        %v5219 = vpow.pop %v5218
        %v5220 = vmul.f32 %v5173, 1.442695
        %v5221 = vpow.pop %v5220
        %v5222 = vmul.f32 %v5174, 1.442695
        %v5223 = vpow.pop %v5222
        %v5224 = vmul.f32 %v5175, 1.442695
        %v5225 = vpow.pop %v5224
        %v5226 = vmul.f32 %v5176, 1.442695
        %v5227 = vpow.pop %v5226
        %v5228 = vmul.f32 %v5177, 1.442695
        %v5229 = vpow.pop %v5228
        %v5230 = vmul.f32 %v5178, 1.442695
        %v5231 = vpow.pop %v5230
        %v5232 = vmul.f32 %v5179, 1.442695
        %v5233 = vpow.pop %v5232
        %v5234 = vmul.f32 %v5180, 1.442695
        %v5235 = vpow.pop %v5234
        %v5236 = vmul.f32 %v5181, 1.442695
        %v5237 = vpow.pop %v5236
        %v5238 = vmul.f32 %v5182, 1.442695
        %v5239 = vpow.pop %v5238
        %v5240 = vmul.f32 %v5183, 1.442695
        %v5241 = vpow.pop %v5240
        %v5242 = vmul.f32 %v5184, 1.442695
        %v5243 = vpow.pop %v5242
        %v5244 = vmul.f32 %v5185, 1.442695
        %v5245 = vpow.pop %v5244
        %v5246 = vmul.f32 %v5186, 1.442695
        %v5247 = vpow.pop %v5246
        %v5248 = vmul.f32 %v5187, 1.442695
        %v5249 = vpow.pop %v5248
        %v5250 = vmul.f32 %v5188, 1.442695
        %v5251 = vpow.pop %v5250
        %v5252 = vmul.f32 %v5189, 1.442695
        %v5253 = vpow.pop %v5252
        %5254 = vst [vmem:[#allocation4] sm:$0xff] %v5191
        %5255 = vst [vmem:[#allocation4 + $0x8] sm:$0xff] %v5193
        %5256 = vst [vmem:[#allocation4 + $0x10] sm:$0xff] %v5195
        %5257 = vst [vmem:[#allocation4 + $0x18] sm:$0xff] %v5197
        %5258 = vst [vmem:[#allocation4 + $0x20] sm:$0xff] %v5199
        %5259 = vst [vmem:[#allocation4 + $0x28] sm:$0xff] %v5201
        %5260 = vst [vmem:[#allocation4 + $0x30] sm:$0xff] %v5203
        %5261 = vst [vmem:[#allocation4 + $0x38] sm:$0xff] %v5205
        %5262 = vst [vmem:[#allocation4 + $0x40] sm:$0xff] %v5207
        %5263 = vst [vmem:[#allocation4 + $0x48] sm:$0xff] %v5209
        %5264 = vst [vmem:[#allocation4 + $0x50] sm:$0xff] %v5211
        %5265 = vst [vmem:[#allocation4 + $0x58] sm:$0xff] %v5213
        %5266 = vst [vmem:[#allocation4 + $0x60] sm:$0xff] %v5215
        %5267 = vst [vmem:[#allocation4 + $0x68] sm:$0xff] %v5217
        %5268 = vst [vmem:[#allocation4 + $0x70] sm:$0xff] %v5219
        %5269 = vst [vmem:[#allocation4 + $0x78] sm:$0xff] %v5221
        %5270 = vst [vmem:[#allocation4 + $0x80] sm:$0xff] %v5223
        %5271 = vst [vmem:[#allocation4 + $0x88] sm:$0xff] %v5225
        %5272 = vst [vmem:[#allocation4 + $0x90] sm:$0xff] %v5227
        %5273 = vst [vmem:[#allocation4 + $0x98] sm:$0xff] %v5229
        %5274 = vst [vmem:[#allocation4 + $0xa0] sm:$0xff] %v5231
        %5275 = vst [vmem:[#allocation4 + $0xa8] sm:$0xff] %v5233
        %5276 = vst [vmem:[#allocation4 + $0xb0] sm:$0xff] %v5235
        %5277 = vst [vmem:[#allocation4 + $0xb8] sm:$0xff] %v5237
        %5278 = vst [vmem:[#allocation4 + $0xc0] sm:$0xff] %v5239
        %5279 = vst [vmem:[#allocation4 + $0xc8] sm:$0xff] %v5241
        %5280 = vst [vmem:[#allocation4 + $0xd0] sm:$0xff] %v5243
        %5281 = vst [vmem:[#allocation4 + $0xd8] sm:$0xff] %v5245
        %5282 = vst [vmem:[#allocation4 + $0xe0] sm:$0xff] %v5247
        %5283 = vst [vmem:[#allocation4 + $0xe8] sm:$0xff] %v5249
        %5284 = vst [vmem:[#allocation4 + $0xf0] sm:$0xff] %v5251
        %5285 = vst [vmem:[#allocation4 + $0xf8] sm:$0xff] %v5253
        %v5286 = vadd.f32 %v5191, 0.0
        %v5287 = vadd.f32 %v5193, 0.0
        %v5288 = vadd.f32 %v5195, 0.0
        %v5289 = vadd.f32 %v5197, 0.0
        %v5290 = vadd.f32 %v5199, 0.0
        %v5291 = vadd.f32 %v5201, 0.0
        %v5292 = vadd.f32 %v5203, 0.0
        %v5293 = vadd.f32 %v5205, 0.0
        %v5294 = vadd.f32 %v5207, 0.0
        %v5295 = vadd.f32 %v5209, 0.0
        %v5296 = vadd.f32 %v5211, 0.0
        %v5297 = vadd.f32 %v5213, 0.0
        %v5298 = vadd.f32 %v5215, 0.0
        %v5299 = vadd.f32 %v5217, 0.0
        %v5300 = vadd.f32 %v5219, 0.0
        %v5301 = vadd.f32 %v5221, 0.0
        %v5302 = vadd.f32 %v5223, 0.0
        %v5303 = vadd.f32 %v5225, 0.0
        %v5304 = vadd.f32 %v5227, 0.0
        %v5305 = vadd.f32 %v5229, 0.0
        %v5306 = vadd.f32 %v5231, 0.0
        %v5307 = vadd.f32 %v5233, 0.0
        %v5308 = vadd.f32 %v5235, 0.0
        %v5309 = vadd.f32 %v5237, 0.0
        %v5310 = vadd.f32 %v5239, 0.0
        %v5311 = vadd.f32 %v5241, 0.0
        %v5312 = vadd.f32 %v5243, 0.0
        %v5313 = vadd.f32 %v5245, 0.0
        %v5314 = vadd.f32 %v5247, 0.0
        %v5315 = vadd.f32 %v5249, 0.0
        %v5316 = vadd.f32 %v5251, 0.0
        %v5317 = vadd.f32 %v5253, 0.0
        %v5318 = vld [vmem:[%s4459] sm:$0xff]
        %v5319 = vld [vmem:[%s4459 + $0x8] sm:$0xff]
        %v5320 = vld [vmem:[%s4459 + $0x10] sm:$0xff]
        %v5321 = vld [vmem:[%s4459 + $0x18] sm:$0xff]
        %v5322 = vld [vmem:[%s4459 + $0x20] sm:$0xff]
        %v5323 = vld [vmem:[%s4459 + $0x28] sm:$0xff]
        %v5324 = vld [vmem:[%s4459 + $0x30] sm:$0xff]
        %v5325 = vld [vmem:[%s4459 + $0x38] sm:$0xff]
        %v5326 = vld [vmem:[%s4459 + $0x40] sm:$0xff]
        %v5327 = vld [vmem:[%s4459 + $0x48] sm:$0xff]
        %v5328 = vld [vmem:[%s4459 + $0x50] sm:$0xff]
        %v5329 = vld [vmem:[%s4459 + $0x58] sm:$0xff]
        %v5330 = vld [vmem:[%s4459 + $0x60] sm:$0xff]
        %v5331 = vld [vmem:[%s4459 + $0x68] sm:$0xff]
        %v5332 = vld [vmem:[%s4459 + $0x70] sm:$0xff]
        %v5333 = vld [vmem:[%s4459 + $0x78] sm:$0xff]
        %v5334 = vld [vmem:[%s4459 + $0x80] sm:$0xff]
        %v5335 = vld [vmem:[%s4459 + $0x88] sm:$0xff]
        %v5336 = vld [vmem:[%s4459 + $0x90] sm:$0xff]
        %v5337 = vld [vmem:[%s4459 + $0x98] sm:$0xff]
        %v5338 = vld [vmem:[%s4459 + $0xa0] sm:$0xff]
        %v5339 = vld [vmem:[%s4459 + $0xa8] sm:$0xff]
        %v5340 = vld [vmem:[%s4459 + $0xb0] sm:$0xff]
        %v5341 = vld [vmem:[%s4459 + $0xb8] sm:$0xff]
        %v5342 = vld [vmem:[%s4459 + $0xc0] sm:$0xff]
        %v5343 = vld [vmem:[%s4459 + $0xc8] sm:$0xff]
        %v5344 = vld [vmem:[%s4459 + $0xd0] sm:$0xff]
        %v5345 = vld [vmem:[%s4459 + $0xd8] sm:$0xff]
        %v5346 = vld [vmem:[%s4459 + $0xe0] sm:$0xff]
        %v5347 = vld [vmem:[%s4459 + $0xe8] sm:$0xff]
        %v5348 = vld [vmem:[%s4459 + $0xf0] sm:$0xff]
        %v5349 = vld [vmem:[%s4459 + $0xf8] sm:$0xff]
        %v5350 = vsub.f32 %v5318, %v5094
        %v5351 = vsub.f32 %v5319, %v5095
        %v5352 = vsub.f32 %v5320, %v5096
        %v5353 = vsub.f32 %v5321, %v5097
        %v5354 = vsub.f32 %v5322, %v5098
        %v5355 = vsub.f32 %v5323, %v5099
        %v5356 = vsub.f32 %v5324, %v5100
        %v5357 = vsub.f32 %v5325, %v5101
        %v5358 = vsub.f32 %v5326, %v5102
        %v5359 = vsub.f32 %v5327, %v5103
        %v5360 = vsub.f32 %v5328, %v5104
        %v5361 = vsub.f32 %v5329, %v5105
        %v5362 = vsub.f32 %v5330, %v5106
        %v5363 = vsub.f32 %v5331, %v5107
        %v5364 = vsub.f32 %v5332, %v5108
        %v5365 = vsub.f32 %v5333, %v5109
        %v5366 = vsub.f32 %v5334, %v5110
        %v5367 = vsub.f32 %v5335, %v5111
        %v5368 = vsub.f32 %v5336, %v5112
        %v5369 = vsub.f32 %v5337, %v5113
        %v5370 = vsub.f32 %v5338, %v5114
        %v5371 = vsub.f32 %v5339, %v5115
        %v5372 = vsub.f32 %v5340, %v5116
        %v5373 = vsub.f32 %v5341, %v5117
        %v5374 = vsub.f32 %v5342, %v5118
        %v5375 = vsub.f32 %v5343, %v5119
        %v5376 = vsub.f32 %v5344, %v5120
        %v5377 = vsub.f32 %v5345, %v5121
        %v5378 = vsub.f32 %v5346, %v5122
        %v5379 = vsub.f32 %v5347, %v5123
        %v5380 = vsub.f32 %v5348, %v5124
        %v5381 = vsub.f32 %v5349, %v5125
        %v5382 = vmul.f32 %v5350, 1.442695
        %v5383 = vpow.pop %v5382
        %v5384 = vmul.f32 %v5351, 1.442695
        %v5385 = vpow.pop %v5384
        %v5386 = vmul.f32 %v5352, 1.442695
        %v5387 = vpow.pop %v5386
        %v5388 = vmul.f32 %v5353, 1.442695
        %v5389 = vpow.pop %v5388
        %v5390 = vmul.f32 %v5354, 1.442695
        %v5391 = vpow.pop %v5390
        %v5392 = vmul.f32 %v5355, 1.442695
        %v5393 = vpow.pop %v5392
        %v5394 = vmul.f32 %v5356, 1.442695
        %v5395 = vpow.pop %v5394
        %v5396 = vmul.f32 %v5357, 1.442695
        %v5397 = vpow.pop %v5396
        %v5398 = vmul.f32 %v5358, 1.442695
        %v5399 = vpow.pop %v5398
        %v5400 = vmul.f32 %v5359, 1.442695
        %v5401 = vpow.pop %v5400
        %v5402 = vmul.f32 %v5360, 1.442695
        %v5403 = vpow.pop %v5402
        %v5404 = vmul.f32 %v5361, 1.442695
        %v5405 = vpow.pop %v5404
        %v5406 = vmul.f32 %v5362, 1.442695
        %v5407 = vpow.pop %v5406
        %v5408 = vmul.f32 %v5363, 1.442695
        %v5409 = vpow.pop %v5408
        %v5410 = vmul.f32 %v5364, 1.442695
        %v5411 = vpow.pop %v5410
        %v5412 = vmul.f32 %v5365, 1.442695
        %v5413 = vpow.pop %v5412
        %v5414 = vmul.f32 %v5366, 1.442695
        %v5415 = vpow.pop %v5414
        %v5416 = vmul.f32 %v5367, 1.442695
        %v5417 = vpow.pop %v5416
        %v5418 = vmul.f32 %v5368, 1.442695
        %v5419 = vpow.pop %v5418
        %v5420 = vmul.f32 %v5369, 1.442695
        %v5421 = vpow.pop %v5420
        %v5422 = vmul.f32 %v5370, 1.442695
        %v5423 = vpow.pop %v5422
        %v5424 = vmul.f32 %v5371, 1.442695
        %v5425 = vpow.pop %v5424
        %v5426 = vmul.f32 %v5372, 1.442695
        %v5427 = vpow.pop %v5426
        %v5428 = vmul.f32 %v5373, 1.442695
        %v5429 = vpow.pop %v5428
        %v5430 = vmul.f32 %v5374, 1.442695
        %v5431 = vpow.pop %v5430
        %v5432 = vmul.f32 %v5375, 1.442695
        %v5433 = vpow.pop %v5432
        %v5434 = vmul.f32 %v5376, 1.442695
        %v5435 = vpow.pop %v5434
        %v5436 = vmul.f32 %v5377, 1.442695
        %v5437 = vpow.pop %v5436
        %v5438 = vmul.f32 %v5378, 1.442695
        %v5439 = vpow.pop %v5438
        %v5440 = vmul.f32 %v5379, 1.442695
        %v5441 = vpow.pop %v5440
        %v5442 = vmul.f32 %v5380, 1.442695
        %v5443 = vpow.pop %v5442
        %v5444 = vmul.f32 %v5381, 1.442695
        %v5445 = vpow.pop %v5444
        %5446 = vst [vmem:[%s4459] sm:$0xff] %v5383
        %5447 = vst [vmem:[%s4459 + $0x8] sm:$0xff] %v5385
        %5448 = vst [vmem:[%s4459 + $0x10] sm:$0xff] %v5387
        %5449 = vst [vmem:[%s4459 + $0x18] sm:$0xff] %v5389
        %5450 = vst [vmem:[%s4459 + $0x20] sm:$0xff] %v5391
        %5451 = vst [vmem:[%s4459 + $0x28] sm:$0xff] %v5393
        %5452 = vst [vmem:[%s4459 + $0x30] sm:$0xff] %v5395
        %5453 = vst [vmem:[%s4459 + $0x38] sm:$0xff] %v5397
        %5454 = vst [vmem:[%s4459 + $0x40] sm:$0xff] %v5399
        %5455 = vst [vmem:[%s4459 + $0x48] sm:$0xff] %v5401
        %5456 = vst [vmem:[%s4459 + $0x50] sm:$0xff] %v5403
        %5457 = vst [vmem:[%s4459 + $0x58] sm:$0xff] %v5405
        %5458 = vst [vmem:[%s4459 + $0x60] sm:$0xff] %v5407
        %5459 = vst [vmem:[%s4459 + $0x68] sm:$0xff] %v5409
        %5460 = vst [vmem:[%s4459 + $0x70] sm:$0xff] %v5411
        %5461 = vst [vmem:[%s4459 + $0x78] sm:$0xff] %v5413
        %5462 = vst [vmem:[%s4459 + $0x80] sm:$0xff] %v5415
        %5463 = vst [vmem:[%s4459 + $0x88] sm:$0xff] %v5417
        %5464 = vst [vmem:[%s4459 + $0x90] sm:$0xff] %v5419
        %5465 = vst [vmem:[%s4459 + $0x98] sm:$0xff] %v5421
        %5466 = vst [vmem:[%s4459 + $0xa0] sm:$0xff] %v5423
        %5467 = vst [vmem:[%s4459 + $0xa8] sm:$0xff] %v5425
        %5468 = vst [vmem:[%s4459 + $0xb0] sm:$0xff] %v5427
        %5469 = vst [vmem:[%s4459 + $0xb8] sm:$0xff] %v5429
        %5470 = vst [vmem:[%s4459 + $0xc0] sm:$0xff] %v5431
        %5471 = vst [vmem:[%s4459 + $0xc8] sm:$0xff] %v5433
        %5472 = vst [vmem:[%s4459 + $0xd0] sm:$0xff] %v5435
        %5473 = vst [vmem:[%s4459 + $0xd8] sm:$0xff] %v5437
        %5474 = vst [vmem:[%s4459 + $0xe0] sm:$0xff] %v5439
        %5475 = vst [vmem:[%s4459 + $0xe8] sm:$0xff] %v5441
        %5476 = vst [vmem:[%s4459 + $0xf0] sm:$0xff] %v5443
        %5477 = vst [vmem:[%s4459 + $0xf8] sm:$0xff] %v5445
        %v5478 = vadd.f32 %v5286, %v5383
        %v5479 = vadd.f32 %v5287, %v5385
        %v5480 = vadd.f32 %v5288, %v5387
        %v5481 = vadd.f32 %v5289, %v5389
        %v5482 = vadd.f32 %v5290, %v5391
        %v5483 = vadd.f32 %v5291, %v5393
        %v5484 = vadd.f32 %v5292, %v5395
        %v5485 = vadd.f32 %v5293, %v5397
        %v5486 = vadd.f32 %v5294, %v5399
        %v5487 = vadd.f32 %v5295, %v5401
        %v5488 = vadd.f32 %v5296, %v5403
        %v5489 = vadd.f32 %v5297, %v5405
        %v5490 = vadd.f32 %v5298, %v5407
        %v5491 = vadd.f32 %v5299, %v5409
        %v5492 = vadd.f32 %v5300, %v5411
        %v5493 = vadd.f32 %v5301, %v5413
        %v5494 = vadd.f32 %v5302, %v5415
        %v5495 = vadd.f32 %v5303, %v5417
        %v5496 = vadd.f32 %v5304, %v5419
        %v5497 = vadd.f32 %v5305, %v5421
        %v5498 = vadd.f32 %v5306, %v5423
        %v5499 = vadd.f32 %v5307, %v5425
        %v5500 = vadd.f32 %v5308, %v5427
        %v5501 = vadd.f32 %v5309, %v5429
        %v5502 = vadd.f32 %v5310, %v5431
        %v5503 = vadd.f32 %v5311, %v5433
        %v5504 = vadd.f32 %v5312, %v5435
        %v5505 = vadd.f32 %v5313, %v5437
        %v5506 = vadd.f32 %v5314, %v5439
        %v5507 = vadd.f32 %v5315, %v5441
        %v5508 = vadd.f32 %v5316, %v5443
        %v5509 = vadd.f32 %v5317, %v5445
        %v5510 = vld [vmem:[%s4760] sm:$0xff]
        %v5511 = vld [vmem:[%s4760 + $0x8] sm:$0xff]
        %v5512 = vld [vmem:[%s4760 + $0x10] sm:$0xff]
        %v5513 = vld [vmem:[%s4760 + $0x18] sm:$0xff]
        %v5514 = vld [vmem:[%s4760 + $0x20] sm:$0xff]
        %v5515 = vld [vmem:[%s4760 + $0x28] sm:$0xff]
        %v5516 = vld [vmem:[%s4760 + $0x30] sm:$0xff]
        %v5517 = vld [vmem:[%s4760 + $0x38] sm:$0xff]
        %v5518 = vld [vmem:[%s4760 + $0x40] sm:$0xff]
        %v5519 = vld [vmem:[%s4760 + $0x48] sm:$0xff]
        %v5520 = vld [vmem:[%s4760 + $0x50] sm:$0xff]
        %v5521 = vld [vmem:[%s4760 + $0x58] sm:$0xff]
        %v5522 = vld [vmem:[%s4760 + $0x60] sm:$0xff]
        %v5523 = vld [vmem:[%s4760 + $0x68] sm:$0xff]
        %v5524 = vld [vmem:[%s4760 + $0x70] sm:$0xff]
        %v5525 = vld [vmem:[%s4760 + $0x78] sm:$0xff]
        %v5526 = vld [vmem:[%s4760 + $0x80] sm:$0xff]
        %v5527 = vld [vmem:[%s4760 + $0x88] sm:$0xff]
        %v5528 = vld [vmem:[%s4760 + $0x90] sm:$0xff]
        %v5529 = vld [vmem:[%s4760 + $0x98] sm:$0xff]
        %v5530 = vld [vmem:[%s4760 + $0xa0] sm:$0xff]
        %v5531 = vld [vmem:[%s4760 + $0xa8] sm:$0xff]
        %v5532 = vld [vmem:[%s4760 + $0xb0] sm:$0xff]
        %v5533 = vld [vmem:[%s4760 + $0xb8] sm:$0xff]
        %v5534 = vld [vmem:[%s4760 + $0xc0] sm:$0xff]
        %v5535 = vld [vmem:[%s4760 + $0xc8] sm:$0xff]
        %v5536 = vld [vmem:[%s4760 + $0xd0] sm:$0xff]
        %v5537 = vld [vmem:[%s4760 + $0xd8] sm:$0xff]
        %v5538 = vld [vmem:[%s4760 + $0xe0] sm:$0xff]
        %v5539 = vld [vmem:[%s4760 + $0xe8] sm:$0xff]
        %v5540 = vld [vmem:[%s4760 + $0xf0] sm:$0xff]
        %v5541 = vld [vmem:[%s4760 + $0xf8] sm:$0xff]
        %v5542 = vsub.f32 %v5510, %v5094
        %v5543 = vsub.f32 %v5511, %v5095
        %v5544 = vsub.f32 %v5512, %v5096
        %v5545 = vsub.f32 %v5513, %v5097
        %v5546 = vsub.f32 %v5514, %v5098
        %v5547 = vsub.f32 %v5515, %v5099
        %v5548 = vsub.f32 %v5516, %v5100
        %v5549 = vsub.f32 %v5517, %v5101
        %v5550 = vsub.f32 %v5518, %v5102
        %v5551 = vsub.f32 %v5519, %v5103
        %v5552 = vsub.f32 %v5520, %v5104
        %v5553 = vsub.f32 %v5521, %v5105
        %v5554 = vsub.f32 %v5522, %v5106
        %v5555 = vsub.f32 %v5523, %v5107
        %v5556 = vsub.f32 %v5524, %v5108
        %v5557 = vsub.f32 %v5525, %v5109
        %v5558 = vsub.f32 %v5526, %v5110
        %v5559 = vsub.f32 %v5527, %v5111
        %v5560 = vsub.f32 %v5528, %v5112
        %v5561 = vsub.f32 %v5529, %v5113
        %v5562 = vsub.f32 %v5530, %v5114
        %v5563 = vsub.f32 %v5531, %v5115
        %v5564 = vsub.f32 %v5532, %v5116
        %v5565 = vsub.f32 %v5533, %v5117
        %v5566 = vsub.f32 %v5534, %v5118
        %v5567 = vsub.f32 %v5535, %v5119
        %v5568 = vsub.f32 %v5536, %v5120
        %v5569 = vsub.f32 %v5537, %v5121
        %v5570 = vsub.f32 %v5538, %v5122
        %v5571 = vsub.f32 %v5539, %v5123
        %v5572 = vsub.f32 %v5540, %v5124
        %v5573 = vsub.f32 %v5541, %v5125
        %v5574 = vmul.f32 %v5542, 1.442695
        %v5575 = vpow.pop %v5574
        %v5576 = vmul.f32 %v5543, 1.442695
        %v5577 = vpow.pop %v5576
        %v5578 = vmul.f32 %v5544, 1.442695
        %v5579 = vpow.pop %v5578
        %v5580 = vmul.f32 %v5545, 1.442695
        %v5581 = vpow.pop %v5580
        %v5582 = vmul.f32 %v5546, 1.442695
        %v5583 = vpow.pop %v5582
        %v5584 = vmul.f32 %v5547, 1.442695
        %v5585 = vpow.pop %v5584
        %v5586 = vmul.f32 %v5548, 1.442695
        %v5587 = vpow.pop %v5586
        %v5588 = vmul.f32 %v5549, 1.442695
        %v5589 = vpow.pop %v5588
        %v5590 = vmul.f32 %v5550, 1.442695
        %v5591 = vpow.pop %v5590
        %v5592 = vmul.f32 %v5551, 1.442695
        %v5593 = vpow.pop %v5592
        %v5594 = vmul.f32 %v5552, 1.442695
        %v5595 = vpow.pop %v5594
        %v5596 = vmul.f32 %v5553, 1.442695
        %v5597 = vpow.pop %v5596
        %v5598 = vmul.f32 %v5554, 1.442695
        %v5599 = vpow.pop %v5598
        %v5600 = vmul.f32 %v5555, 1.442695
        %v5601 = vpow.pop %v5600
        %v5602 = vmul.f32 %v5556, 1.442695
        %v5603 = vpow.pop %v5602
        %v5604 = vmul.f32 %v5557, 1.442695
        %v5605 = vpow.pop %v5604
        %v5606 = vmul.f32 %v5558, 1.442695
        %v5607 = vpow.pop %v5606
        %v5608 = vmul.f32 %v5559, 1.442695
        %v5609 = vpow.pop %v5608
        %v5610 = vmul.f32 %v5560, 1.442695
        %v5611 = vpow.pop %v5610
        %v5612 = vmul.f32 %v5561, 1.442695
        %v5613 = vpow.pop %v5612
        %v5614 = vmul.f32 %v5562, 1.442695
        %v5615 = vpow.pop %v5614
        %v5616 = vmul.f32 %v5563, 1.442695
        %v5617 = vpow.pop %v5616
        %v5618 = vmul.f32 %v5564, 1.442695
        %v5619 = vpow.pop %v5618
        %v5620 = vmul.f32 %v5565, 1.442695
        %v5621 = vpow.pop %v5620
        %v5622 = vmul.f32 %v5566, 1.442695
        %v5623 = vpow.pop %v5622
        %v5624 = vmul.f32 %v5567, 1.442695
        %v5625 = vpow.pop %v5624
        %v5626 = vmul.f32 %v5568, 1.442695
        %v5627 = vpow.pop %v5626
        %v5628 = vmul.f32 %v5569, 1.442695
        %v5629 = vpow.pop %v5628
        %v5630 = vmul.f32 %v5570, 1.442695
        %v5631 = vpow.pop %v5630
        %v5632 = vmul.f32 %v5571, 1.442695
        %v5633 = vpow.pop %v5632
        %v5634 = vmul.f32 %v5572, 1.442695
        %v5635 = vpow.pop %v5634
        %v5636 = vmul.f32 %v5573, 1.442695
        %v5637 = vpow.pop %v5636
        %5638 = vst [vmem:[%s4760] sm:$0xff] %v5575
        %5639 = vst [vmem:[%s4760 + $0x8] sm:$0xff] %v5577
        %5640 = vst [vmem:[%s4760 + $0x10] sm:$0xff] %v5579
        %5641 = vst [vmem:[%s4760 + $0x18] sm:$0xff] %v5581
        %5642 = vst [vmem:[%s4760 + $0x20] sm:$0xff] %v5583
        %5643 = vst [vmem:[%s4760 + $0x28] sm:$0xff] %v5585
        %5644 = vst [vmem:[%s4760 + $0x30] sm:$0xff] %v5587
        %5645 = vst [vmem:[%s4760 + $0x38] sm:$0xff] %v5589
        %5646 = vst [vmem:[%s4760 + $0x40] sm:$0xff] %v5591
        %5647 = vst [vmem:[%s4760 + $0x48] sm:$0xff] %v5593
        %5648 = vst [vmem:[%s4760 + $0x50] sm:$0xff] %v5595
        %5649 = vst [vmem:[%s4760 + $0x58] sm:$0xff] %v5597
        %5650 = vst [vmem:[%s4760 + $0x60] sm:$0xff] %v5599
        %5651 = vst [vmem:[%s4760 + $0x68] sm:$0xff] %v5601
        %5652 = vst [vmem:[%s4760 + $0x70] sm:$0xff] %v5603
        %5653 = vst [vmem:[%s4760 + $0x78] sm:$0xff] %v5605
        %5654 = vst [vmem:[%s4760 + $0x80] sm:$0xff] %v5607
        %5655 = vst [vmem:[%s4760 + $0x88] sm:$0xff] %v5609
        %5656 = vst [vmem:[%s4760 + $0x90] sm:$0xff] %v5611
        %5657 = vst [vmem:[%s4760 + $0x98] sm:$0xff] %v5613
        %5658 = vst [vmem:[%s4760 + $0xa0] sm:$0xff] %v5615
        %5659 = vst [vmem:[%s4760 + $0xa8] sm:$0xff] %v5617
        %5660 = vst [vmem:[%s4760 + $0xb0] sm:$0xff] %v5619
        %5661 = vst [vmem:[%s4760 + $0xb8] sm:$0xff] %v5621
        %5662 = vst [vmem:[%s4760 + $0xc0] sm:$0xff] %v5623
        %5663 = vst [vmem:[%s4760 + $0xc8] sm:$0xff] %v5625
        %5664 = vst [vmem:[%s4760 + $0xd0] sm:$0xff] %v5627
        %5665 = vst [vmem:[%s4760 + $0xd8] sm:$0xff] %v5629
        %5666 = vst [vmem:[%s4760 + $0xe0] sm:$0xff] %v5631
        %5667 = vst [vmem:[%s4760 + $0xe8] sm:$0xff] %v5633
        %5668 = vst [vmem:[%s4760 + $0xf0] sm:$0xff] %v5635
        %5669 = vst [vmem:[%s4760 + $0xf8] sm:$0xff] %v5637
        %v5670 = vadd.f32 %v5478, %v5575
        %v5671 = vadd.f32 %v5479, %v5577
        %v5672 = vadd.f32 %v5480, %v5579
        %v5673 = vadd.f32 %v5481, %v5581
        %v5674 = vadd.f32 %v5482, %v5583
        %v5675 = vadd.f32 %v5483, %v5585
        %v5676 = vadd.f32 %v5484, %v5587
        %v5677 = vadd.f32 %v5485, %v5589
        %v5678 = vadd.f32 %v5486, %v5591
        %v5679 = vadd.f32 %v5487, %v5593
        %v5680 = vadd.f32 %v5488, %v5595
        %v5681 = vadd.f32 %v5489, %v5597
        %v5682 = vadd.f32 %v5490, %v5599
        %v5683 = vadd.f32 %v5491, %v5601
        %v5684 = vadd.f32 %v5492, %v5603
        %v5685 = vadd.f32 %v5493, %v5605
        %v5686 = vadd.f32 %v5494, %v5607
        %v5687 = vadd.f32 %v5495, %v5609
        %v5688 = vadd.f32 %v5496, %v5611
        %v5689 = vadd.f32 %v5497, %v5613
        %v5690 = vadd.f32 %v5498, %v5615
        %v5691 = vadd.f32 %v5499, %v5617
        %v5692 = vadd.f32 %v5500, %v5619
        %v5693 = vadd.f32 %v5501, %v5621
        %v5694 = vadd.f32 %v5502, %v5623
        %v5695 = vadd.f32 %v5503, %v5625
        %v5696 = vadd.f32 %v5504, %v5627
        %v5697 = vadd.f32 %v5505, %v5629
        %v5698 = vadd.f32 %v5506, %v5631
        %v5699 = vadd.f32 %v5507, %v5633
        %v5700 = vadd.f32 %v5508, %v5635
        %v5701 = vadd.f32 %v5509, %v5637
        %v5702 = vld [vmem:[%s5061] sm:$0xff]
        %v5703 = vld [vmem:[%s5061 + $0x8] sm:$0xff]
        %v5704 = vld [vmem:[%s5061 + $0x10] sm:$0xff]
        %v5705 = vld [vmem:[%s5061 + $0x18] sm:$0xff]
        %v5706 = vld [vmem:[%s5061 + $0x20] sm:$0xff]
        %v5707 = vld [vmem:[%s5061 + $0x28] sm:$0xff]
        %v5708 = vld [vmem:[%s5061 + $0x30] sm:$0xff]
        %v5709 = vld [vmem:[%s5061 + $0x38] sm:$0xff]
        %v5710 = vld [vmem:[%s5061 + $0x40] sm:$0xff]
        %v5711 = vld [vmem:[%s5061 + $0x48] sm:$0xff]
        %v5712 = vld [vmem:[%s5061 + $0x50] sm:$0xff]
        %v5713 = vld [vmem:[%s5061 + $0x58] sm:$0xff]
        %v5714 = vld [vmem:[%s5061 + $0x60] sm:$0xff]
        %v5715 = vld [vmem:[%s5061 + $0x68] sm:$0xff]
        %v5716 = vld [vmem:[%s5061 + $0x70] sm:$0xff]
        %v5717 = vld [vmem:[%s5061 + $0x78] sm:$0xff]
        %v5718 = vld [vmem:[%s5061 + $0x80] sm:$0xff]
        %v5719 = vld [vmem:[%s5061 + $0x88] sm:$0xff]
        %v5720 = vld [vmem:[%s5061 + $0x90] sm:$0xff]
        %v5721 = vld [vmem:[%s5061 + $0x98] sm:$0xff]
        %v5722 = vld [vmem:[%s5061 + $0xa0] sm:$0xff]
        %v5723 = vld [vmem:[%s5061 + $0xa8] sm:$0xff]
        %v5724 = vld [vmem:[%s5061 + $0xb0] sm:$0xff]
        %v5725 = vld [vmem:[%s5061 + $0xb8] sm:$0xff]
        %v5726 = vld [vmem:[%s5061 + $0xc0] sm:$0xff]
        %v5727 = vld [vmem:[%s5061 + $0xc8] sm:$0xff]
        %v5728 = vld [vmem:[%s5061 + $0xd0] sm:$0xff]
        %v5729 = vld [vmem:[%s5061 + $0xd8] sm:$0xff]
        %v5730 = vld [vmem:[%s5061 + $0xe0] sm:$0xff]
        %v5731 = vld [vmem:[%s5061 + $0xe8] sm:$0xff]
        %v5732 = vld [vmem:[%s5061 + $0xf0] sm:$0xff]
        %v5733 = vld [vmem:[%s5061 + $0xf8] sm:$0xff]
        %v5734 = vsub.f32 %v5702, %v5094
        %v5735 = vsub.f32 %v5703, %v5095
        %v5736 = vsub.f32 %v5704, %v5096
        %v5737 = vsub.f32 %v5705, %v5097
        %v5738 = vsub.f32 %v5706, %v5098
        %v5739 = vsub.f32 %v5707, %v5099
        %v5740 = vsub.f32 %v5708, %v5100
        %v5741 = vsub.f32 %v5709, %v5101
        %v5742 = vsub.f32 %v5710, %v5102
        %v5743 = vsub.f32 %v5711, %v5103
        %v5744 = vsub.f32 %v5712, %v5104
        %v5745 = vsub.f32 %v5713, %v5105
        %v5746 = vsub.f32 %v5714, %v5106
        %v5747 = vsub.f32 %v5715, %v5107
        %v5748 = vsub.f32 %v5716, %v5108
        %v5749 = vsub.f32 %v5717, %v5109
        %v5750 = vsub.f32 %v5718, %v5110
        %v5751 = vsub.f32 %v5719, %v5111
        %v5752 = vsub.f32 %v5720, %v5112
        %v5753 = vsub.f32 %v5721, %v5113
        %v5754 = vsub.f32 %v5722, %v5114
        %v5755 = vsub.f32 %v5723, %v5115
        %v5756 = vsub.f32 %v5724, %v5116
        %v5757 = vsub.f32 %v5725, %v5117
        %v5758 = vsub.f32 %v5726, %v5118
        %v5759 = vsub.f32 %v5727, %v5119
        %v5760 = vsub.f32 %v5728, %v5120
        %v5761 = vsub.f32 %v5729, %v5121
        %v5762 = vsub.f32 %v5730, %v5122
        %v5763 = vsub.f32 %v5731, %v5123
        %v5764 = vsub.f32 %v5732, %v5124
        %v5765 = vsub.f32 %v5733, %v5125
        %v5766 = vmul.f32 %v5734, 1.442695
        %v5767 = vpow.pop %v5766
        %v5768 = vmul.f32 %v5735, 1.442695
        %v5769 = vpow.pop %v5768
        %v5770 = vmul.f32 %v5736, 1.442695
        %v5771 = vpow.pop %v5770
        %v5772 = vmul.f32 %v5737, 1.442695
        %v5773 = vpow.pop %v5772
        %v5774 = vmul.f32 %v5738, 1.442695
        %v5775 = vpow.pop %v5774
        %v5776 = vmul.f32 %v5739, 1.442695
        %v5777 = vpow.pop %v5776
        %v5778 = vmul.f32 %v5740, 1.442695
        %v5779 = vpow.pop %v5778
        %v5780 = vmul.f32 %v5741, 1.442695
        %v5781 = vpow.pop %v5780
        %v5782 = vmul.f32 %v5742, 1.442695
        %v5783 = vpow.pop %v5782
        %v5784 = vmul.f32 %v5743, 1.442695
        %v5785 = vpow.pop %v5784
        %v5786 = vmul.f32 %v5744, 1.442695
        %v5787 = vpow.pop %v5786
        %v5788 = vmul.f32 %v5745, 1.442695
        %v5789 = vpow.pop %v5788
        %v5790 = vmul.f32 %v5746, 1.442695
        %v5791 = vpow.pop %v5790
        %v5792 = vmul.f32 %v5747, 1.442695
        %v5793 = vpow.pop %v5792
        %v5794 = vmul.f32 %v5748, 1.442695
        %v5795 = vpow.pop %v5794
        %v5796 = vmul.f32 %v5749, 1.442695
        %v5797 = vpow.pop %v5796
        %v5798 = vmul.f32 %v5750, 1.442695
        %v5799 = vpow.pop %v5798
        %v5800 = vmul.f32 %v5751, 1.442695
        %v5801 = vpow.pop %v5800
        %v5802 = vmul.f32 %v5752, 1.442695
        %v5803 = vpow.pop %v5802
        %v5804 = vmul.f32 %v5753, 1.442695
        %v5805 = vpow.pop %v5804
        %v5806 = vmul.f32 %v5754, 1.442695
        %v5807 = vpow.pop %v5806
        %v5808 = vmul.f32 %v5755, 1.442695
        %v5809 = vpow.pop %v5808
        %v5810 = vmul.f32 %v5756, 1.442695
        %v5811 = vpow.pop %v5810
        %v5812 = vmul.f32 %v5757, 1.442695
        %v5813 = vpow.pop %v5812
        %v5814 = vmul.f32 %v5758, 1.442695
        %v5815 = vpow.pop %v5814
        %v5816 = vmul.f32 %v5759, 1.442695
        %v5817 = vpow.pop %v5816
        %v5818 = vmul.f32 %v5760, 1.442695
        %v5819 = vpow.pop %v5818
        %v5820 = vmul.f32 %v5761, 1.442695
        %v5821 = vpow.pop %v5820
        %v5822 = vmul.f32 %v5762, 1.442695
        %v5823 = vpow.pop %v5822
        %v5824 = vmul.f32 %v5763, 1.442695
        %v5825 = vpow.pop %v5824
        %v5826 = vmul.f32 %v5764, 1.442695
        %v5827 = vpow.pop %v5826
        %v5828 = vmul.f32 %v5765, 1.442695
        %v5829 = vpow.pop %v5828
        %5830 = vst [vmem:[%s5061] sm:$0xff] %v5767
        %5831 = vst [vmem:[%s5061 + $0x8] sm:$0xff] %v5769
        %5832 = vst [vmem:[%s5061 + $0x10] sm:$0xff] %v5771
        %5833 = vst [vmem:[%s5061 + $0x18] sm:$0xff] %v5773
        %5834 = vst [vmem:[%s5061 + $0x20] sm:$0xff] %v5775
        %5835 = vst [vmem:[%s5061 + $0x28] sm:$0xff] %v5777
        %5836 = vst [vmem:[%s5061 + $0x30] sm:$0xff] %v5779
        %5837 = vst [vmem:[%s5061 + $0x38] sm:$0xff] %v5781
        %5838 = vst [vmem:[%s5061 + $0x40] sm:$0xff] %v5783
        %5839 = vst [vmem:[%s5061 + $0x48] sm:$0xff] %v5785
        %5840 = vst [vmem:[%s5061 + $0x50] sm:$0xff] %v5787
        %5841 = vst [vmem:[%s5061 + $0x58] sm:$0xff] %v5789
        %5842 = vst [vmem:[%s5061 + $0x60] sm:$0xff] %v5791
        %5843 = vst [vmem:[%s5061 + $0x68] sm:$0xff] %v5793
        %5844 = vst [vmem:[%s5061 + $0x70] sm:$0xff] %v5795
        %5845 = vst [vmem:[%s5061 + $0x78] sm:$0xff] %v5797
        %5846 = vst [vmem:[%s5061 + $0x80] sm:$0xff] %v5799
        %5847 = vst [vmem:[%s5061 + $0x88] sm:$0xff] %v5801
        %5848 = vst [vmem:[%s5061 + $0x90] sm:$0xff] %v5803
        %5849 = vst [vmem:[%s5061 + $0x98] sm:$0xff] %v5805
        %5850 = vst [vmem:[%s5061 + $0xa0] sm:$0xff] %v5807
        %5851 = vst [vmem:[%s5061 + $0xa8] sm:$0xff] %v5809
        %5852 = vst [vmem:[%s5061 + $0xb0] sm:$0xff] %v5811
        %5853 = vst [vmem:[%s5061 + $0xb8] sm:$0xff] %v5813
        %5854 = vst [vmem:[%s5061 + $0xc0] sm:$0xff] %v5815
        %5855 = vst [vmem:[%s5061 + $0xc8] sm:$0xff] %v5817
        %5856 = vst [vmem:[%s5061 + $0xd0] sm:$0xff] %v5819
        %5857 = vst [vmem:[%s5061 + $0xd8] sm:$0xff] %v5821
        %5858 = vst [vmem:[%s5061 + $0xe0] sm:$0xff] %v5823
        %5859 = vst [vmem:[%s5061 + $0xe8] sm:$0xff] %v5825
        %5860 = vst [vmem:[%s5061 + $0xf0] sm:$0xff] %v5827
        %5861 = vst [vmem:[%s5061 + $0xf8] sm:$0xff] %v5829
        %v5862 = vadd.f32 %v5670, %v5767
        %v5863 = vadd.f32 %v5671, %v5769
        %v5864 = vadd.f32 %v5672, %v5771
        %v5865 = vadd.f32 %v5673, %v5773
        %v5866 = vadd.f32 %v5674, %v5775
        %v5867 = vadd.f32 %v5675, %v5777
        %v5868 = vadd.f32 %v5676, %v5779
        %v5869 = vadd.f32 %v5677, %v5781
        %v5870 = vadd.f32 %v5678, %v5783
        %v5871 = vadd.f32 %v5679, %v5785
        %v5872 = vadd.f32 %v5680, %v5787
        %v5873 = vadd.f32 %v5681, %v5789
        %v5874 = vadd.f32 %v5682, %v5791
        %v5875 = vadd.f32 %v5683, %v5793
        %v5876 = vadd.f32 %v5684, %v5795
        %v5877 = vadd.f32 %v5685, %v5797
        %v5878 = vadd.f32 %v5686, %v5799
        %v5879 = vadd.f32 %v5687, %v5801
        %v5880 = vadd.f32 %v5688, %v5803
        %v5881 = vadd.f32 %v5689, %v5805
        %v5882 = vadd.f32 %v5690, %v5807
        %v5883 = vadd.f32 %v5691, %v5809
        %v5884 = vadd.f32 %v5692, %v5811
        %v5885 = vadd.f32 %v5693, %v5813
        %v5886 = vadd.f32 %v5694, %v5815
        %v5887 = vadd.f32 %v5695, %v5817
        %v5888 = vadd.f32 %v5696, %v5819
        %v5889 = vadd.f32 %v5697, %v5821
        %v5890 = vadd.f32 %v5698, %v5823
        %v5891 = vadd.f32 %v5699, %v5825
        %v5892 = vadd.f32 %v5700, %v5827
        %v5893 = vadd.f32 %v5701, %v5829
        %v5894 = vrcp.pop %v5862
        %v5895 = vrcp.pop %v5863
        %v5896 = vrcp.pop %v5864
        %v5897 = vrcp.pop %v5865
        %v5898 = vrcp.pop %v5866
        %v5899 = vrcp.pop %v5867
        %v5900 = vrcp.pop %v5868
        %v5901 = vrcp.pop %v5869
        %v5902 = vrcp.pop %v5870
        %v5903 = vrcp.pop %v5871
        %v5904 = vrcp.pop %v5872
        %v5905 = vrcp.pop %v5873
        %v5906 = vrcp.pop %v5874
        %v5907 = vrcp.pop %v5875
        %v5908 = vrcp.pop %v5876
        %v5909 = vrcp.pop %v5877
        %v5910 = vrcp.pop %v5878
        %v5911 = vrcp.pop %v5879
        %v5912 = vrcp.pop %v5880
        %v5913 = vrcp.pop %v5881
        %v5914 = vrcp.pop %v5882
        %v5915 = vrcp.pop %v5883
        %v5916 = vrcp.pop %v5884
        %v5917 = vrcp.pop %v5885
        %v5918 = vrcp.pop %v5886
        %v5919 = vrcp.pop %v5887
        %v5920 = vrcp.pop %v5888
        %v5921 = vrcp.pop %v5889
        %v5922 = vrcp.pop %v5890
        %v5923 = vrcp.pop %v5891
        %v5924 = vrcp.pop %v5892
        %v5925 = vrcp.pop %v5893
        %5926 = vst [vmem:[#allocation5] sm:$0xff] 0.0
        %5927 = vst [vmem:[#allocation5 + $0x8] sm:$0xff] 0.0
        %5928 = vst [vmem:[#allocation5 + $0x10] sm:$0xff] 0.0
        %5929 = vst [vmem:[#allocation5 + $0x18] sm:$0xff] 0.0
        %5930 = vst [vmem:[#allocation5 + $0x20] sm:$0xff] 0.0
        %5931 = vst [vmem:[#allocation5 + $0x28] sm:$0xff] 0.0
        %5932 = vst [vmem:[#allocation5 + $0x30] sm:$0xff] 0.0
        %5933 = vst [vmem:[#allocation5 + $0x38] sm:$0xff] 0.0
        %5934 = vst [vmem:[#allocation5 + $0x40] sm:$0xff] 0.0
        %5935 = vst [vmem:[#allocation5 + $0x48] sm:$0xff] 0.0
        %5936 = vst [vmem:[#allocation5 + $0x50] sm:$0xff] 0.0
        %5937 = vst [vmem:[#allocation5 + $0x58] sm:$0xff] 0.0
        %5938 = vst [vmem:[#allocation5 + $0x60] sm:$0xff] 0.0
        %5939 = vst [vmem:[#allocation5 + $0x68] sm:$0xff] 0.0
        %5940 = vst [vmem:[#allocation5 + $0x70] sm:$0xff] 0.0
        %5941 = vst [vmem:[#allocation5 + $0x78] sm:$0xff] 0.0
        %v5942 = vld [vmem:[#allocation4] sm:$0xff]
        %v5943 = vld [vmem:[#allocation4 + $0x8] sm:$0xff]
        %v5944 = vld [vmem:[#allocation4 + $0x10] sm:$0xff]
        %v5945 = vld [vmem:[#allocation4 + $0x18] sm:$0xff]
        %v5946 = vld [vmem:[#allocation4 + $0x20] sm:$0xff]
        %v5947 = vld [vmem:[#allocation4 + $0x28] sm:$0xff]
        %v5948 = vld [vmem:[#allocation4 + $0x30] sm:$0xff]
        %v5949 = vld [vmem:[#allocation4 + $0x38] sm:$0xff]
        %v5950 = vld [vmem:[#allocation4 + $0x40] sm:$0xff]
        %v5951 = vld [vmem:[#allocation4 + $0x48] sm:$0xff]
        %v5952 = vld [vmem:[#allocation4 + $0x50] sm:$0xff]
        %v5953 = vld [vmem:[#allocation4 + $0x58] sm:$0xff]
        %v5954 = vld [vmem:[#allocation4 + $0x60] sm:$0xff]
        %v5955 = vld [vmem:[#allocation4 + $0x68] sm:$0xff]
        %v5956 = vld [vmem:[#allocation4 + $0x70] sm:$0xff]
        %v5957 = vld [vmem:[#allocation4 + $0x78] sm:$0xff]
        %v5958 = vld [vmem:[#allocation4 + $0x80] sm:$0xff]
        %v5959 = vld [vmem:[#allocation4 + $0x88] sm:$0xff]
        %v5960 = vld [vmem:[#allocation4 + $0x90] sm:$0xff]
        %v5961 = vld [vmem:[#allocation4 + $0x98] sm:$0xff]
        %v5962 = vld [vmem:[#allocation4 + $0xa0] sm:$0xff]
        %v5963 = vld [vmem:[#allocation4 + $0xa8] sm:$0xff]
        %v5964 = vld [vmem:[#allocation4 + $0xb0] sm:$0xff]
        %v5965 = vld [vmem:[#allocation4 + $0xb8] sm:$0xff]
        %v5966 = vld [vmem:[#allocation4 + $0xc0] sm:$0xff]
        %v5967 = vld [vmem:[#allocation4 + $0xc8] sm:$0xff]
        %v5968 = vld [vmem:[#allocation4 + $0xd0] sm:$0xff]
        %v5969 = vld [vmem:[#allocation4 + $0xd8] sm:$0xff]
        %v5970 = vld [vmem:[#allocation4 + $0xe0] sm:$0xff]
        %v5971 = vld [vmem:[#allocation4 + $0xe8] sm:$0xff]
        %v5972 = vld [vmem:[#allocation4 + $0xf0] sm:$0xff]
        %v5973 = vld [vmem:[#allocation4 + $0xf8] sm:$0xff]
        %v5974 = vmul.f32 %v5942, %v5894
        %v5975 = vmul.f32 %v5943, %v5895
        %v5976 = vmul.f32 %v5944, %v5896
        %v5977 = vmul.f32 %v5945, %v5897
        %v5978 = vmul.f32 %v5946, %v5898
        %v5979 = vmul.f32 %v5947, %v5899
        %v5980 = vmul.f32 %v5948, %v5900
        %v5981 = vmul.f32 %v5949, %v5901
        %v5982 = vmul.f32 %v5950, %v5902
        %v5983 = vmul.f32 %v5951, %v5903
        %v5984 = vmul.f32 %v5952, %v5904
        %v5985 = vmul.f32 %v5953, %v5905
        %v5986 = vmul.f32 %v5954, %v5906
        %v5987 = vmul.f32 %v5955, %v5907
        %v5988 = vmul.f32 %v5956, %v5908
        %v5989 = vmul.f32 %v5957, %v5909
        %v5990 = vmul.f32 %v5958, %v5910
        %v5991 = vmul.f32 %v5959, %v5911
        %v5992 = vmul.f32 %v5960, %v5912
        %v5993 = vmul.f32 %v5961, %v5913
        %v5994 = vmul.f32 %v5962, %v5914
        %v5995 = vmul.f32 %v5963, %v5915
        %v5996 = vmul.f32 %v5964, %v5916
        %v5997 = vmul.f32 %v5965, %v5917
        %v5998 = vmul.f32 %v5966, %v5918
        %v5999 = vmul.f32 %v5967, %v5919
        %v6000 = vmul.f32 %v5968, %v5920
        %v6001 = vmul.f32 %v5969, %v5921
        %v6002 = vmul.f32 %v5970, %v5922
        %v6003 = vmul.f32 %v5971, %v5923
        %v6004 = vmul.f32 %v5972, %v5924
        %v6005 = vmul.f32 %v5973, %v5925
        %s6006 = scalar_lea.vmem [#allocation2], 1024
        %v6007 = vld [vmem:[%s6006] sm:$0xff]
        %v6008 = vld [vmem:[%s6006 + $0x8] sm:$0xff]
        %v6009 = vld [vmem:[%s6006 + $0x10] sm:$0xff]
        %v6010 = vld [vmem:[%s6006 + $0x18] sm:$0xff]
        %v6011 = vld [vmem:[%s6006 + $0x20] sm:$0xff]
        %v6012 = vld [vmem:[%s6006 + $0x28] sm:$0xff]
        %v6013 = vld [vmem:[%s6006 + $0x30] sm:$0xff]
        %v6014 = vld [vmem:[%s6006 + $0x38] sm:$0xff]
        %v6015 = vld [vmem:[%s6006 + $0x40] sm:$0xff]
        %v6016 = vld [vmem:[%s6006 + $0x48] sm:$0xff]
        %v6017 = vld [vmem:[%s6006 + $0x50] sm:$0xff]
        %v6018 = vld [vmem:[%s6006 + $0x58] sm:$0xff]
        %v6019 = vld [vmem:[%s6006 + $0x60] sm:$0xff]
        %v6020 = vld [vmem:[%s6006 + $0x68] sm:$0xff]
        %v6021 = vld [vmem:[%s6006 + $0x70] sm:$0xff]
        %v6022 = vld [vmem:[%s6006 + $0x78] sm:$0xff]
        %v6023 = vld [vmem:[%s6006 + $0x80] sm:$0xff]
        %v6024 = vld [vmem:[%s6006 + $0x88] sm:$0xff]
        %v6025 = vld [vmem:[%s6006 + $0x90] sm:$0xff]
        %v6026 = vld [vmem:[%s6006 + $0x98] sm:$0xff]
        %v6027 = vld [vmem:[%s6006 + $0xa0] sm:$0xff]
        %v6028 = vld [vmem:[%s6006 + $0xa8] sm:$0xff]
        %v6029 = vld [vmem:[%s6006 + $0xb0] sm:$0xff]
        %v6030 = vld [vmem:[%s6006 + $0xb8] sm:$0xff]
        %v6031 = vld [vmem:[%s6006 + $0xc0] sm:$0xff]
        %v6032 = vld [vmem:[%s6006 + $0xc8] sm:$0xff]
        %v6033 = vld [vmem:[%s6006 + $0xd0] sm:$0xff]
        %v6034 = vld [vmem:[%s6006 + $0xd8] sm:$0xff]
        %v6035 = vld [vmem:[%s6006 + $0xe0] sm:$0xff]
        %v6036 = vld [vmem:[%s6006 + $0xe8] sm:$0xff]
        %v6037 = vld [vmem:[%s6006 + $0xf0] sm:$0xff]
        %v6038 = vld [vmem:[%s6006 + $0xf8] sm:$0xff]
        %6039 = vmatprep.subr.mxu0 0.0
        %6040 = vmatpush1.msra.mxu0 %v6007
        %6041 = vmatprep.subr.mxu0 0.0
        %6042 = vmatpush1.msra.mxu0 %v6008
        %6043 = vmatprep.subr.mxu0 0.0
        %6044 = vmatpush1.msra.mxu0 %v6009
        %6045 = vmatprep.subr.mxu0 0.0
        %6046 = vmatpush1.msra.mxu0 %v6010
        %6047 = vmatprep.subr.mxu0 0.0
        %6048 = vmatpush1.msra.mxu0 %v6011
        %6049 = vmatprep.subr.mxu0 0.0
        %6050 = vmatpush1.msra.mxu0 %v6012
        %6051 = vmatprep.subr.mxu0 0.0
        %6052 = vmatpush1.msra.mxu0 %v6013
        %6053 = vmatprep.subr.mxu0 0.0
        %6054 = vmatpush1.msra.mxu0 %v6014
        %6055 = vmatprep.subr.mxu0 0.0
        %6056 = vmatpush1.msra.mxu0 %v6015
        %6057 = vmatprep.subr.mxu0 0.0
        %6058 = vmatpush1.msra.mxu0 %v6016
        %6059 = vmatprep.subr.mxu0 0.0
        %6060 = vmatpush1.msra.mxu0 %v6017
        %6061 = vmatprep.subr.mxu0 0.0
        %6062 = vmatpush1.msra.mxu0 %v6018
        %6063 = vmatprep.subr.mxu0 0.0
        %6064 = vmatpush1.msra.mxu0 %v6019
        %6065 = vmatprep.subr.mxu0 0.0
        %6066 = vmatpush1.msra.mxu0 %v6020
        %6067 = vmatprep.subr.mxu0 0.0
        %6068 = vmatpush1.msra.mxu0 %v6021
        %6069 = vmatprep.subr.mxu0 0.0
        %6070 = vmatpush1.msra.mxu0 %v6022
        %6071 = vmatprep.subr.mxu0 0.0
        %6072 = vmatpush1.msra.mxu0 %v6023
        %6073 = vmatprep.subr.mxu0 0.0
        %6074 = vmatpush1.msra.mxu0 %v6024
        %6075 = vmatprep.subr.mxu0 0.0
        %6076 = vmatpush1.msra.mxu0 %v6025
        %6077 = vmatprep.subr.mxu0 0.0
        %6078 = vmatpush1.msra.mxu0 %v6026
        %6079 = vmatprep.subr.mxu0 0.0
        %6080 = vmatpush1.msra.mxu0 %v6027
        %6081 = vmatprep.subr.mxu0 0.0
        %6082 = vmatpush1.msra.mxu0 %v6028
        %6083 = vmatprep.subr.mxu0 0.0
        %6084 = vmatpush1.msra.mxu0 %v6029
        %6085 = vmatprep.subr.mxu0 0.0
        %6086 = vmatpush1.msra.mxu0 %v6030
        %6087 = vmatprep.subr.mxu0 0.0
        %6088 = vmatpush1.msra.mxu0 %v6031
        %6089 = vmatprep.subr.mxu0 0.0
        %6090 = vmatpush1.msra.mxu0 %v6032
        %6091 = vmatprep.subr.mxu0 0.0
        %6092 = vmatpush1.msra.mxu0 %v6033
        %6093 = vmatprep.subr.mxu0 0.0
        %6094 = vmatpush1.msra.mxu0 %v6034
        %6095 = vmatprep.subr.mxu0 0.0
        %6096 = vmatpush1.msra.mxu0 %v6035
        %6097 = vmatprep.subr.mxu0 0.0
        %6098 = vmatpush1.msra.mxu0 %v6036
        %6099 = vmatprep.subr.mxu0 0.0
        %6100 = vmatpush1.msra.mxu0 %v6037
        %6101 = vmatprep.subr.mxu0 0.0
        %6102 = vmatpush1.msra.mxu0 %v6038
        %6103 = vmatprep.mubr.f32.mxu0 %v5975
        %6104 = vmatmul.mubr.f32.gmra.mrb[0].mxu0 %v5974
        %v6105 = vpop.f32.mrb[0].mxu0
        %v6106 = vadd.f32 0.0, %v6105
        %v6107 = vpop.f32.mrb[0].mxu0
        %6108 = vmatprep.mubr.f32.mxu0 %v5977
        %6109 = vmatmul.mubr.f32.gmra.mrb[0].mxu0 %v5976
        %v6110 = vpop.f32.mrb[0].mxu0
        %v6111 = vadd.f32 0.0, %v6110
        %v6112 = vpop.f32.mrb[0].mxu0
        %6113 = vmatprep.mubr.f32.mxu0 %v5979
        %6114 = vmatmul.mubr.f32.gmra.mrb[0].mxu0 %v5978
        %v6115 = vpop.f32.mrb[0].mxu0
        %v6116 = vadd.f32 0.0, %v6115
        %v6117 = vpop.f32.mrb[0].mxu0
        %6118 = vmatprep.mubr.f32.mxu0 %v5981
        %6119 = vmatmul.mubr.f32.gmra.mrb[0].mxu0 %v5980
        %v6120 = vpop.f32.mrb[0].mxu0
        %v6121 = vadd.f32 0.0, %v6120
        %v6122 = vpop.f32.mrb[0].mxu0
        %6123 = vmatprep.mubr.f32.mxu0 %v5983
        %6124 = vmatmul.mubr.f32.gmra.mrb[0].mxu0 %v5982
        %v6125 = vpop.f32.mrb[0].mxu0
        %v6126 = vadd.f32 0.0, %v6125
        %v6127 = vpop.f32.mrb[0].mxu0
        %6128 = vmatprep.mubr.f32.mxu0 %v5985
        %6129 = vmatmul.mubr.f32.gmra.mrb[0].mxu0 %v5984
        %v6130 = vpop.f32.mrb[0].mxu0
        %v6131 = vadd.f32 0.0, %v6130
        %v6132 = vpop.f32.mrb[0].mxu0
        %6133 = vmatprep.mubr.f32.mxu0 %v5987
        %6134 = vmatmul.mubr.f32.gmra.mrb[0].mxu0 %v5986
        %v6135 = vpop.f32.mrb[0].mxu0
        %v6136 = vadd.f32 0.0, %v6135
        %v6137 = vpop.f32.mrb[0].mxu0
        %6138 = vmatprep.mubr.f32.mxu0 %v5989
        %6139 = vmatmul.mubr.f32.gmra.mrb[0].mxu0 %v5988
        %v6140 = vpop.f32.mrb[0].mxu0
        %v6141 = vadd.f32 0.0, %v6140
        %v6142 = vpop.f32.mrb[0].mxu0
        %6143 = vmatprep.mubr.f32.mxu0 %v5991
        %6144 = vmatmul.mubr.f32.gmra.mrb[0].mxu0 %v5990
        %v6145 = vpop.f32.mrb[0].mxu0
        %v6146 = vadd.f32 0.0, %v6145
        %v6147 = vpop.f32.mrb[0].mxu0
        %6148 = vmatprep.mubr.f32.mxu0 %v5993
        %6149 = vmatmul.mubr.f32.gmra.mrb[0].mxu0 %v5992
        %v6150 = vpop.f32.mrb[0].mxu0
        %v6151 = vadd.f32 0.0, %v6150
        %v6152 = vpop.f32.mrb[0].mxu0
        %6153 = vmatprep.mubr.f32.mxu0 %v5995
        %6154 = vmatmul.mubr.f32.gmra.mrb[0].mxu0 %v5994
        %v6155 = vpop.f32.mrb[0].mxu0
        %v6156 = vadd.f32 0.0, %v6155
        %v6157 = vpop.f32.mrb[0].mxu0
        %6158 = vmatprep.mubr.f32.mxu0 %v5997
        %6159 = vmatmul.mubr.f32.gmra.mrb[0].mxu0 %v5996
        %v6160 = vpop.f32.mrb[0].mxu0
        %v6161 = vadd.f32 0.0, %v6160
        %v6162 = vpop.f32.mrb[0].mxu0
        %6163 = vmatprep.mubr.f32.mxu0 %v5999
        %6164 = vmatmul.mubr.f32.gmra.mrb[0].mxu0 %v5998
        %v6165 = vpop.f32.mrb[0].mxu0
        %v6166 = vadd.f32 0.0, %v6165
        %v6167 = vpop.f32.mrb[0].mxu0
        %6168 = vmatprep.mubr.f32.mxu0 %v6001
        %6169 = vmatmul.mubr.f32.gmra.mrb[0].mxu0 %v6000
        %v6170 = vpop.f32.mrb[0].mxu0
        %v6171 = vadd.f32 0.0, %v6170
        %v6172 = vpop.f32.mrb[0].mxu0
        %6173 = vmatprep.mubr.f32.mxu0 %v6003
        %6174 = vmatmul.mubr.f32.gmra.mrb[0].mxu0 %v6002
        %v6175 = vpop.f32.mrb[0].mxu0
        %v6176 = vadd.f32 0.0, %v6175
        %v6177 = vpop.f32.mrb[0].mxu0
        %6178 = vmatprep.mubr.f32.mxu0 %v6005
        %6179 = vmatmul.mubr.f32.gmra.mrb[0].mxu0 %v6004
        %v6180 = vpop.f32.mrb[0].mxu0
        %v6181 = vadd.f32 0.0, %v6180
        %v6182 = vpop.f32.mrb[0].mxu0
        %6183 = vdwg.mxu0
        %v6184 = vld [vmem:[#allocation5] sm:$0xff]
        %v6185 = vld [vmem:[#allocation5 + $0x8] sm:$0xff]
        %v6186 = vld [vmem:[#allocation5 + $0x10] sm:$0xff]
        %v6187 = vld [vmem:[#allocation5 + $0x18] sm:$0xff]
        %v6188 = vld [vmem:[#allocation5 + $0x20] sm:$0xff]
        %v6189 = vld [vmem:[#allocation5 + $0x28] sm:$0xff]
        %v6190 = vld [vmem:[#allocation5 + $0x30] sm:$0xff]
        %v6191 = vld [vmem:[#allocation5 + $0x38] sm:$0xff]
        %v6192 = vld [vmem:[#allocation5 + $0x40] sm:$0xff]
        %v6193 = vld [vmem:[#allocation5 + $0x48] sm:$0xff]
        %v6194 = vld [vmem:[#allocation5 + $0x50] sm:$0xff]
        %v6195 = vld [vmem:[#allocation5 + $0x58] sm:$0xff]
        %v6196 = vld [vmem:[#allocation5 + $0x60] sm:$0xff]
        %v6197 = vld [vmem:[#allocation5 + $0x68] sm:$0xff]
        %v6198 = vld [vmem:[#allocation5 + $0x70] sm:$0xff]
        %v6199 = vld [vmem:[#allocation5 + $0x78] sm:$0xff]
        %v6200 = vld [vmem:[%s3] sm:$0xff]
        %v6201 = vld [vmem:[%s3 + $0x8] sm:$0xff]
        %v6202 = vld [vmem:[%s3 + $0x10] sm:$0xff]
        %v6203 = vld [vmem:[%s3 + $0x18] sm:$0xff]
        %v6205 = vsel %vm3981, %v6106, 0
        %v6208 = vsel %vm3981, %v6111, 0
        %v6211 = vsel %vm3981, %v6116, 0
        %v6214 = vsel %vm3981, %v6121, 0
        %v6217 = vsel %vm3981, %v6126, 0
        %v6220 = vsel %vm3981, %v6131, 0
        %v6223 = vsel %vm3981, %v6136, 0
        %v6226 = vsel %vm3981, %v6141, 0
        %v6229 = vsel %vm3981, %v6146, 0
        %v6232 = vsel %vm3981, %v6151, 0
        %v6235 = vsel %vm3981, %v6156, 0
        %v6238 = vsel %vm3981, %v6161, 0
        %v6241 = vsel %vm3981, %v6166, 0
        %v6244 = vsel %vm3981, %v6171, 0
        %v6247 = vsel %vm3981, %v6176, 0
        %v6250 = vsel %vm3981, %v6181, 0
        %6252 = vmatprep.subr.mxu0 0.0
        %6253 = vmatpush1.msra.mxu0 %v6200
        %6254 = vmatprep.subr.mxu0 0.0
        %6255 = vmatpush1.msra.mxu0 %v6201
        %6256 = vmatprep.subr.mxu0 0.0
        %6257 = vmatpush1.msra.mxu0 %v6202
        %6258 = vmatprep.subr.mxu0 0.0
        %6259 = vmatpush1.msra.mxu0 %v6203
        %6260 = vmatprep.subr.mxu0 0.0
        %6261 = vmatpush1.msra.mxu0 0.0
        %6262 = vmatprep.subr.mxu0 0.0
        %6263 = vmatpush1.msra.mxu0 0.0
        %6264 = vmatprep.subr.mxu0 0.0
        %6265 = vmatpush1.msra.mxu0 0.0
        %6266 = vmatprep.subr.mxu0 0.0
        %6267 = vmatpush1.msra.mxu0 0.0
        %6268 = vmatprep.subr.mxu0 0.0
        %6269 = vmatpush1.msra.mxu0 0.0
        %6270 = vmatprep.subr.mxu0 0.0
        %6271 = vmatpush1.msra.mxu0 0.0
        %6272 = vmatprep.subr.mxu0 0.0
        %6273 = vmatpush1.msra.mxu0 0.0
        %6274 = vmatprep.subr.mxu0 0.0
        %6275 = vmatpush1.msra.mxu0 0.0
        %6276 = vmatprep.subr.mxu0 0.0
        %6277 = vmatpush1.msra.mxu0 0.0
        %6278 = vmatprep.subr.mxu0 0.0
        %6279 = vmatpush1.msra.mxu0 0.0
        %6280 = vmatprep.subr.mxu0 0.0
        %6281 = vmatpush1.msra.mxu0 0.0
        %6282 = vmatprep.subr.mxu0 0.0
        %6283 = vmatpush1.msra.mxu0 0.0
        %6284 = vmatprep.subr.mxu0 0.0
        %6285 = vmatpush1.msra.mxu0 0.0
        %6286 = vmatprep.subr.mxu0 0.0
        %6287 = vmatpush1.msra.mxu0 0.0
        %6288 = vmatprep.subr.mxu0 0.0
        %6289 = vmatpush1.msra.mxu0 0.0
        %6290 = vmatprep.subr.mxu0 0.0
        %6291 = vmatpush1.msra.mxu0 0.0
        %6292 = vmatprep.subr.mxu0 0.0
        %6293 = vmatpush1.msra.mxu0 0.0
        %6294 = vmatprep.subr.mxu0 0.0
        %6295 = vmatpush1.msra.mxu0 0.0
        %6296 = vmatprep.subr.mxu0 0.0
        %6297 = vmatpush1.msra.mxu0 0.0
        %6298 = vmatprep.subr.mxu0 0.0
        %6299 = vmatpush1.msra.mxu0 0.0
        %6300 = vmatprep.subr.mxu0 0.0
        %6301 = vmatpush1.msra.mxu0 0.0
        %6302 = vmatprep.subr.mxu0 0.0
        %6303 = vmatpush1.msra.mxu0 0.0
        %6304 = vmatprep.subr.mxu0 0.0
        %6305 = vmatpush1.msra.mxu0 0.0
        %6306 = vmatprep.subr.mxu0 0.0
        %6307 = vmatpush1.msra.mxu0 0.0
        %6308 = vmatprep.subr.mxu0 0.0
        %6309 = vmatpush1.msra.mxu0 0.0
        %6310 = vmatprep.subr.mxu0 0.0
        %6311 = vmatpush1.msra.mxu0 0.0
        %6312 = vmatprep.subr.mxu0 0.0
        %6313 = vmatpush1.msra.mxu0 0.0
        %6314 = vmatprep.subr.mxu0 0.0
        %6315 = vmatpush1.msra.mxu0 0.0
        %6316 = vmatprep.mubr.f32.mxu0 0.0
        %6317 = vmatmul.mubr.f32.gmra.mrb[0].mxu0 %v6205
        %v6318 = vpop.f32.mrb[0].mxu0
        %v6319 = vadd.f32 0.0, %v6318
        %v6320 = vpop.f32.mrb[0].mxu0
        %6321 = vmatprep.mubr.f32.mxu0 0.0
        %6322 = vmatmul.mubr.f32.gmra.mrb[0].mxu0 %v6208
        %v6323 = vpop.f32.mrb[0].mxu0
        %v6324 = vadd.f32 0.0, %v6323
        %v6325 = vpop.f32.mrb[0].mxu0
        %6326 = vmatprep.mubr.f32.mxu0 0.0
        %6327 = vmatmul.mubr.f32.gmra.mrb[0].mxu0 %v6211
        %v6328 = vpop.f32.mrb[0].mxu0
        %v6329 = vadd.f32 0.0, %v6328
        %v6330 = vpop.f32.mrb[0].mxu0
        %6331 = vmatprep.mubr.f32.mxu0 0.0
        %6332 = vmatmul.mubr.f32.gmra.mrb[0].mxu0 %v6214
        %v6333 = vpop.f32.mrb[0].mxu0
        %v6334 = vadd.f32 0.0, %v6333
        %v6335 = vpop.f32.mrb[0].mxu0
        %6336 = vmatprep.mubr.f32.mxu0 0.0
        %6337 = vmatmul.mubr.f32.gmra.mrb[0].mxu0 %v6217
        %v6338 = vpop.f32.mrb[0].mxu0
        %v6339 = vadd.f32 0.0, %v6338
        %v6340 = vpop.f32.mrb[0].mxu0
        %6341 = vmatprep.mubr.f32.mxu0 0.0
        %6342 = vmatmul.mubr.f32.gmra.mrb[0].mxu0 %v6220
        %v6343 = vpop.f32.mrb[0].mxu0
        %v6344 = vadd.f32 0.0, %v6343
        %v6345 = vpop.f32.mrb[0].mxu0
        %6346 = vmatprep.mubr.f32.mxu0 0.0
        %6347 = vmatmul.mubr.f32.gmra.mrb[0].mxu0 %v6223
        %v6348 = vpop.f32.mrb[0].mxu0
        %v6349 = vadd.f32 0.0, %v6348
        %v6350 = vpop.f32.mrb[0].mxu0
        %6351 = vmatprep.mubr.f32.mxu0 0.0
        %6352 = vmatmul.mubr.f32.gmra.mrb[0].mxu0 %v6226
        %v6353 = vpop.f32.mrb[0].mxu0
        %v6354 = vadd.f32 0.0, %v6353
        %v6355 = vpop.f32.mrb[0].mxu0
        %6356 = vmatprep.mubr.f32.mxu0 0.0
        %6357 = vmatmul.mubr.f32.gmra.mrb[0].mxu0 %v6229
        %v6358 = vpop.f32.mrb[0].mxu0
        %v6359 = vadd.f32 0.0, %v6358
        %v6360 = vpop.f32.mrb[0].mxu0
        %6361 = vmatprep.mubr.f32.mxu0 0.0
        %6362 = vmatmul.mubr.f32.gmra.mrb[0].mxu0 %v6232
        %v6363 = vpop.f32.mrb[0].mxu0
        %v6364 = vadd.f32 0.0, %v6363
        %v6365 = vpop.f32.mrb[0].mxu0
        %6366 = vmatprep.mubr.f32.mxu0 0.0
        %6367 = vmatmul.mubr.f32.gmra.mrb[0].mxu0 %v6235
        %v6368 = vpop.f32.mrb[0].mxu0
        %v6369 = vadd.f32 0.0, %v6368
        %v6370 = vpop.f32.mrb[0].mxu0
        %6371 = vmatprep.mubr.f32.mxu0 0.0
        %6372 = vmatmul.mubr.f32.gmra.mrb[0].mxu0 %v6238
        %v6373 = vpop.f32.mrb[0].mxu0
        %v6374 = vadd.f32 0.0, %v6373
        %v6375 = vpop.f32.mrb[0].mxu0
        %6376 = vmatprep.mubr.f32.mxu0 0.0
        %6377 = vmatmul.mubr.f32.gmra.mrb[0].mxu0 %v6241
        %v6378 = vpop.f32.mrb[0].mxu0
        %v6379 = vadd.f32 0.0, %v6378
        %v6380 = vpop.f32.mrb[0].mxu0
        %6381 = vmatprep.mubr.f32.mxu0 0.0
        %6382 = vmatmul.mubr.f32.gmra.mrb[0].mxu0 %v6244
        %v6383 = vpop.f32.mrb[0].mxu0
        %v6384 = vadd.f32 0.0, %v6383
        %v6385 = vpop.f32.mrb[0].mxu0
        %6386 = vmatprep.mubr.f32.mxu0 0.0
        %6387 = vmatmul.mubr.f32.gmra.mrb[0].mxu0 %v6247
        %v6388 = vpop.f32.mrb[0].mxu0
        %v6389 = vadd.f32 0.0, %v6388
        %v6390 = vpop.f32.mrb[0].mxu0
        %6391 = vmatprep.mubr.f32.mxu0 0.0
        %6392 = vmatmul.mubr.f32.gmra.mrb[0].mxu0 %v6250
        %v6393 = vpop.f32.mrb[0].mxu0
        %v6394 = vadd.f32 0.0, %v6393
        %v6395 = vpop.f32.mrb[0].mxu0
        %6396 = vdwg.mxu0
        %v6397 = vadd.f32 %v6184, %v6319
        %v6398 = vadd.f32 %v6185, %v6324
        %v6399 = vadd.f32 %v6186, %v6329
        %v6400 = vadd.f32 %v6187, %v6334
        %v6401 = vadd.f32 %v6188, %v6339
        %v6402 = vadd.f32 %v6189, %v6344
        %v6403 = vadd.f32 %v6190, %v6349
        %v6404 = vadd.f32 %v6191, %v6354
        %v6405 = vadd.f32 %v6192, %v6359
        %v6406 = vadd.f32 %v6193, %v6364
        %v6407 = vadd.f32 %v6194, %v6369
        %v6408 = vadd.f32 %v6195, %v6374
        %v6409 = vadd.f32 %v6196, %v6379
        %v6410 = vadd.f32 %v6197, %v6384
        %v6411 = vadd.f32 %v6198, %v6389
        %v6412 = vadd.f32 %v6199, %v6394
        %6413 = vst [vmem:[#allocation5] sm:$0xff] %v6397
        %6414 = vst [vmem:[#allocation5 + $0x8] sm:$0xff] %v6398
        %6415 = vst [vmem:[#allocation5 + $0x10] sm:$0xff] %v6399
        %6416 = vst [vmem:[#allocation5 + $0x18] sm:$0xff] %v6400
        %6417 = vst [vmem:[#allocation5 + $0x20] sm:$0xff] %v6401
        %6418 = vst [vmem:[#allocation5 + $0x28] sm:$0xff] %v6402
        %6419 = vst [vmem:[#allocation5 + $0x30] sm:$0xff] %v6403
        %6420 = vst [vmem:[#allocation5 + $0x38] sm:$0xff] %v6404
        %6421 = vst [vmem:[#allocation5 + $0x40] sm:$0xff] %v6405
        %6422 = vst [vmem:[#allocation5 + $0x48] sm:$0xff] %v6406
        %6423 = vst [vmem:[#allocation5 + $0x50] sm:$0xff] %v6407
        %6424 = vst [vmem:[#allocation5 + $0x58] sm:$0xff] %v6408
        %6425 = vst [vmem:[#allocation5 + $0x60] sm:$0xff] %v6409
        %6426 = vst [vmem:[#allocation5 + $0x68] sm:$0xff] %v6410
        %6427 = vst [vmem:[#allocation5 + $0x70] sm:$0xff] %v6411
        %6428 = vst [vmem:[#allocation5 + $0x78] sm:$0xff] %v6412
        %v6429 = vld [vmem:[%s4459] sm:$0xff]
        %v6430 = vld [vmem:[%s4459 + $0x8] sm:$0xff]
        %v6431 = vld [vmem:[%s4459 + $0x10] sm:$0xff]
        %v6432 = vld [vmem:[%s4459 + $0x18] sm:$0xff]
        %v6433 = vld [vmem:[%s4459 + $0x20] sm:$0xff]
        %v6434 = vld [vmem:[%s4459 + $0x28] sm:$0xff]
        %v6435 = vld [vmem:[%s4459 + $0x30] sm:$0xff]
        %v6436 = vld [vmem:[%s4459 + $0x38] sm:$0xff]
        %v6437 = vld [vmem:[%s4459 + $0x40] sm:$0xff]
        %v6438 = vld [vmem:[%s4459 + $0x48] sm:$0xff]
        %v6439 = vld [vmem:[%s4459 + $0x50] sm:$0xff]
        %v6440 = vld [vmem:[%s4459 + $0x58] sm:$0xff]
        %v6441 = vld [vmem:[%s4459 + $0x60] sm:$0xff]
        %v6442 = vld [vmem:[%s4459 + $0x68] sm:$0xff]
        %v6443 = vld [vmem:[%s4459 + $0x70] sm:$0xff]
        %v6444 = vld [vmem:[%s4459 + $0x78] sm:$0xff]
        %v6445 = vld [vmem:[%s4459 + $0x80] sm:$0xff]
        %v6446 = vld [vmem:[%s4459 + $0x88] sm:$0xff]
        %v6447 = vld [vmem:[%s4459 + $0x90] sm:$0xff]
        %v6448 = vld [vmem:[%s4459 + $0x98] sm:$0xff]
        %v6449 = vld [vmem:[%s4459 + $0xa0] sm:$0xff]
        %v6450 = vld [vmem:[%s4459 + $0xa8] sm:$0xff]
        %v6451 = vld [vmem:[%s4459 + $0xb0] sm:$0xff]
        %v6452 = vld [vmem:[%s4459 + $0xb8] sm:$0xff]
        %v6453 = vld [vmem:[%s4459 + $0xc0] sm:$0xff]
        %v6454 = vld [vmem:[%s4459 + $0xc8] sm:$0xff]
        %v6455 = vld [vmem:[%s4459 + $0xd0] sm:$0xff]
        %v6456 = vld [vmem:[%s4459 + $0xd8] sm:$0xff]
        %v6457 = vld [vmem:[%s4459 + $0xe0] sm:$0xff]
        %v6458 = vld [vmem:[%s4459 + $0xe8] sm:$0xff]
        %v6459 = vld [vmem:[%s4459 + $0xf0] sm:$0xff]
        %v6460 = vld [vmem:[%s4459 + $0xf8] sm:$0xff]
        %v6461 = vmul.f32 %v6429, %v5894
        %v6462 = vmul.f32 %v6430, %v5895
        %v6463 = vmul.f32 %v6431, %v5896
        %v6464 = vmul.f32 %v6432, %v5897
        %v6465 = vmul.f32 %v6433, %v5898
        %v6466 = vmul.f32 %v6434, %v5899
        %v6467 = vmul.f32 %v6435, %v5900
        %v6468 = vmul.f32 %v6436, %v5901
        %v6469 = vmul.f32 %v6437, %v5902
        %v6470 = vmul.f32 %v6438, %v5903
        %v6471 = vmul.f32 %v6439, %v5904
        %v6472 = vmul.f32 %v6440, %v5905
        %v6473 = vmul.f32 %v6441, %v5906
        %v6474 = vmul.f32 %v6442, %v5907
        %v6475 = vmul.f32 %v6443, %v5908
        %v6476 = vmul.f32 %v6444, %v5909
        %v6477 = vmul.f32 %v6445, %v5910
        %v6478 = vmul.f32 %v6446, %v5911
        %v6479 = vmul.f32 %v6447, %v5912
        %v6480 = vmul.f32 %v6448, %v5913
        %v6481 = vmul.f32 %v6449, %v5914
        %v6482 = vmul.f32 %v6450, %v5915
        %v6483 = vmul.f32 %v6451, %v5916
        %v6484 = vmul.f32 %v6452, %v5917
        %v6485 = vmul.f32 %v6453, %v5918
        %v6486 = vmul.f32 %v6454, %v5919
        %v6487 = vmul.f32 %v6455, %v5920
        %v6488 = vmul.f32 %v6456, %v5921
        %v6489 = vmul.f32 %v6457, %v5922
        %v6490 = vmul.f32 %v6458, %v5923
        %v6491 = vmul.f32 %v6459, %v5924
        %v6492 = vmul.f32 %v6460, %v5925
        %s6493 = scalar_lea.vmem [#allocation2], 1280
        %v6494 = vld [vmem:[%s6493] sm:$0xff]
        %v6495 = vld [vmem:[%s6493 + $0x8] sm:$0xff]
        %v6496 = vld [vmem:[%s6493 + $0x10] sm:$0xff]
        %v6497 = vld [vmem:[%s6493 + $0x18] sm:$0xff]
        %v6498 = vld [vmem:[%s6493 + $0x20] sm:$0xff]
        %v6499 = vld [vmem:[%s6493 + $0x28] sm:$0xff]
        %v6500 = vld [vmem:[%s6493 + $0x30] sm:$0xff]
        %v6501 = vld [vmem:[%s6493 + $0x38] sm:$0xff]
        %v6502 = vld [vmem:[%s6493 + $0x40] sm:$0xff]
        %v6503 = vld [vmem:[%s6493 + $0x48] sm:$0xff]
        %v6504 = vld [vmem:[%s6493 + $0x50] sm:$0xff]
        %v6505 = vld [vmem:[%s6493 + $0x58] sm:$0xff]
        %v6506 = vld [vmem:[%s6493 + $0x60] sm:$0xff]
        %v6507 = vld [vmem:[%s6493 + $0x68] sm:$0xff]
        %v6508 = vld [vmem:[%s6493 + $0x70] sm:$0xff]
        %v6509 = vld [vmem:[%s6493 + $0x78] sm:$0xff]
        %v6510 = vld [vmem:[%s6493 + $0x80] sm:$0xff]
        %v6511 = vld [vmem:[%s6493 + $0x88] sm:$0xff]
        %v6512 = vld [vmem:[%s6493 + $0x90] sm:$0xff]
        %v6513 = vld [vmem:[%s6493 + $0x98] sm:$0xff]
        %v6514 = vld [vmem:[%s6493 + $0xa0] sm:$0xff]
        %v6515 = vld [vmem:[%s6493 + $0xa8] sm:$0xff]
        %v6516 = vld [vmem:[%s6493 + $0xb0] sm:$0xff]
        %v6517 = vld [vmem:[%s6493 + $0xb8] sm:$0xff]
        %v6518 = vld [vmem:[%s6493 + $0xc0] sm:$0xff]
        %v6519 = vld [vmem:[%s6493 + $0xc8] sm:$0xff]
        %v6520 = vld [vmem:[%s6493 + $0xd0] sm:$0xff]
        %v6521 = vld [vmem:[%s6493 + $0xd8] sm:$0xff]
        %v6522 = vld [vmem:[%s6493 + $0xe0] sm:$0xff]
        %v6523 = vld [vmem:[%s6493 + $0xe8] sm:$0xff]
        %v6524 = vld [vmem:[%s6493 + $0xf0] sm:$0xff]
        %v6525 = vld [vmem:[%s6493 + $0xf8] sm:$0xff]
        %6526 = vmatprep.subr.mxu0 0.0
        %6527 = vmatpush1.msra.mxu0 %v6494
        %6528 = vmatprep.subr.mxu0 0.0
        %6529 = vmatpush1.msra.mxu0 %v6495
        %6530 = vmatprep.subr.mxu0 0.0
        %6531 = vmatpush1.msra.mxu0 %v6496
        %6532 = vmatprep.subr.mxu0 0.0
        %6533 = vmatpush1.msra.mxu0 %v6497
        %6534 = vmatprep.subr.mxu0 0.0
        %6535 = vmatpush1.msra.mxu0 %v6498
        %6536 = vmatprep.subr.mxu0 0.0
        %6537 = vmatpush1.msra.mxu0 %v6499
        %6538 = vmatprep.subr.mxu0 0.0
        %6539 = vmatpush1.msra.mxu0 %v6500
        %6540 = vmatprep.subr.mxu0 0.0
        %6541 = vmatpush1.msra.mxu0 %v6501
        %6542 = vmatprep.subr.mxu0 0.0
        %6543 = vmatpush1.msra.mxu0 %v6502
        %6544 = vmatprep.subr.mxu0 0.0
        %6545 = vmatpush1.msra.mxu0 %v6503
        %6546 = vmatprep.subr.mxu0 0.0
        %6547 = vmatpush1.msra.mxu0 %v6504
        %6548 = vmatprep.subr.mxu0 0.0
        %6549 = vmatpush1.msra.mxu0 %v6505
        %6550 = vmatprep.subr.mxu0 0.0
        %6551 = vmatpush1.msra.mxu0 %v6506
        %6552 = vmatprep.subr.mxu0 0.0
        %6553 = vmatpush1.msra.mxu0 %v6507
        %6554 = vmatprep.subr.mxu0 0.0
        %6555 = vmatpush1.msra.mxu0 %v6508
        %6556 = vmatprep.subr.mxu0 0.0
        %6557 = vmatpush1.msra.mxu0 %v6509
        %6558 = vmatprep.subr.mxu0 0.0
        %6559 = vmatpush1.msra.mxu0 %v6510
        %6560 = vmatprep.subr.mxu0 0.0
        %6561 = vmatpush1.msra.mxu0 %v6511
        %6562 = vmatprep.subr.mxu0 0.0
        %6563 = vmatpush1.msra.mxu0 %v6512
        %6564 = vmatprep.subr.mxu0 0.0
        %6565 = vmatpush1.msra.mxu0 %v6513
        %6566 = vmatprep.subr.mxu0 0.0
        %6567 = vmatpush1.msra.mxu0 %v6514
        %6568 = vmatprep.subr.mxu0 0.0
        %6569 = vmatpush1.msra.mxu0 %v6515
        %6570 = vmatprep.subr.mxu0 0.0
        %6571 = vmatpush1.msra.mxu0 %v6516
        %6572 = vmatprep.subr.mxu0 0.0
        %6573 = vmatpush1.msra.mxu0 %v6517
        %6574 = vmatprep.subr.mxu0 0.0
        %6575 = vmatpush1.msra.mxu0 %v6518
        %6576 = vmatprep.subr.mxu0 0.0
        %6577 = vmatpush1.msra.mxu0 %v6519
        %6578 = vmatprep.subr.mxu0 0.0
        %6579 = vmatpush1.msra.mxu0 %v6520
        %6580 = vmatprep.subr.mxu0 0.0
        %6581 = vmatpush1.msra.mxu0 %v6521
        %6582 = vmatprep.subr.mxu0 0.0
        %6583 = vmatpush1.msra.mxu0 %v6522
        %6584 = vmatprep.subr.mxu0 0.0
        %6585 = vmatpush1.msra.mxu0 %v6523
        %6586 = vmatprep.subr.mxu0 0.0
        %6587 = vmatpush1.msra.mxu0 %v6524
        %6588 = vmatprep.subr.mxu0 0.0
        %6589 = vmatpush1.msra.mxu0 %v6525
        %6590 = vmatprep.mubr.f32.mxu0 %v6462
        %6591 = vmatmul.mubr.f32.gmra.mrb[0].mxu0 %v6461
        %v6592 = vpop.f32.mrb[0].mxu0
        %v6593 = vadd.f32 0.0, %v6592
        %v6594 = vpop.f32.mrb[0].mxu0
        %6595 = vmatprep.mubr.f32.mxu0 %v6464
        %6596 = vmatmul.mubr.f32.gmra.mrb[0].mxu0 %v6463
        %v6597 = vpop.f32.mrb[0].mxu0
        %v6598 = vadd.f32 0.0, %v6597
        %v6599 = vpop.f32.mrb[0].mxu0
        %6600 = vmatprep.mubr.f32.mxu0 %v6466
        %6601 = vmatmul.mubr.f32.gmra.mrb[0].mxu0 %v6465
        %v6602 = vpop.f32.mrb[0].mxu0
        %v6603 = vadd.f32 0.0, %v6602
        %v6604 = vpop.f32.mrb[0].mxu0
        %6605 = vmatprep.mubr.f32.mxu0 %v6468
        %6606 = vmatmul.mubr.f32.gmra.mrb[0].mxu0 %v6467
        %v6607 = vpop.f32.mrb[0].mxu0
        %v6608 = vadd.f32 0.0, %v6607
        %v6609 = vpop.f32.mrb[0].mxu0
        %6610 = vmatprep.mubr.f32.mxu0 %v6470
        %6611 = vmatmul.mubr.f32.gmra.mrb[0].mxu0 %v6469
        %v6612 = vpop.f32.mrb[0].mxu0
        %v6613 = vadd.f32 0.0, %v6612
        %v6614 = vpop.f32.mrb[0].mxu0
        %6615 = vmatprep.mubr.f32.mxu0 %v6472
        %6616 = vmatmul.mubr.f32.gmra.mrb[0].mxu0 %v6471
        %v6617 = vpop.f32.mrb[0].mxu0
        %v6618 = vadd.f32 0.0, %v6617
        %v6619 = vpop.f32.mrb[0].mxu0
        %6620 = vmatprep.mubr.f32.mxu0 %v6474
        %6621 = vmatmul.mubr.f32.gmra.mrb[0].mxu0 %v6473
        %v6622 = vpop.f32.mrb[0].mxu0
        %v6623 = vadd.f32 0.0, %v6622
        %v6624 = vpop.f32.mrb[0].mxu0
        %6625 = vmatprep.mubr.f32.mxu0 %v6476
        %6626 = vmatmul.mubr.f32.gmra.mrb[0].mxu0 %v6475
        %v6627 = vpop.f32.mrb[0].mxu0
        %v6628 = vadd.f32 0.0, %v6627
        %v6629 = vpop.f32.mrb[0].mxu0
        %6630 = vmatprep.mubr.f32.mxu0 %v6478
        %6631 = vmatmul.mubr.f32.gmra.mrb[0].mxu0 %v6477
        %v6632 = vpop.f32.mrb[0].mxu0
        %v6633 = vadd.f32 0.0, %v6632
        %v6634 = vpop.f32.mrb[0].mxu0
        %6635 = vmatprep.mubr.f32.mxu0 %v6480
        %6636 = vmatmul.mubr.f32.gmra.mrb[0].mxu0 %v6479
        %v6637 = vpop.f32.mrb[0].mxu0
        %v6638 = vadd.f32 0.0, %v6637
        %v6639 = vpop.f32.mrb[0].mxu0
        %6640 = vmatprep.mubr.f32.mxu0 %v6482
        %6641 = vmatmul.mubr.f32.gmra.mrb[0].mxu0 %v6481
        %v6642 = vpop.f32.mrb[0].mxu0
        %v6643 = vadd.f32 0.0, %v6642
        %v6644 = vpop.f32.mrb[0].mxu0
        %6645 = vmatprep.mubr.f32.mxu0 %v6484
        %6646 = vmatmul.mubr.f32.gmra.mrb[0].mxu0 %v6483
        %v6647 = vpop.f32.mrb[0].mxu0
        %v6648 = vadd.f32 0.0, %v6647
        %v6649 = vpop.f32.mrb[0].mxu0
        %6650 = vmatprep.mubr.f32.mxu0 %v6486
        %6651 = vmatmul.mubr.f32.gmra.mrb[0].mxu0 %v6485
        %v6652 = vpop.f32.mrb[0].mxu0
        %v6653 = vadd.f32 0.0, %v6652
        %v6654 = vpop.f32.mrb[0].mxu0
        %6655 = vmatprep.mubr.f32.mxu0 %v6488
        %6656 = vmatmul.mubr.f32.gmra.mrb[0].mxu0 %v6487
        %v6657 = vpop.f32.mrb[0].mxu0
        %v6658 = vadd.f32 0.0, %v6657
        %v6659 = vpop.f32.mrb[0].mxu0
        %6660 = vmatprep.mubr.f32.mxu0 %v6490
        %6661 = vmatmul.mubr.f32.gmra.mrb[0].mxu0 %v6489
        %v6662 = vpop.f32.mrb[0].mxu0
        %v6663 = vadd.f32 0.0, %v6662
        %v6664 = vpop.f32.mrb[0].mxu0
        %6665 = vmatprep.mubr.f32.mxu0 %v6492
        %6666 = vmatmul.mubr.f32.gmra.mrb[0].mxu0 %v6491
        %v6667 = vpop.f32.mrb[0].mxu0
        %v6668 = vadd.f32 0.0, %v6667
        %v6669 = vpop.f32.mrb[0].mxu0
        %6670 = vdwg.mxu0
        %v6671 = vld [vmem:[#allocation5] sm:$0xff]
        %v6672 = vld [vmem:[#allocation5 + $0x8] sm:$0xff]
        %v6673 = vld [vmem:[#allocation5 + $0x10] sm:$0xff]
        %v6674 = vld [vmem:[#allocation5 + $0x18] sm:$0xff]
        %v6675 = vld [vmem:[#allocation5 + $0x20] sm:$0xff]
        %v6676 = vld [vmem:[#allocation5 + $0x28] sm:$0xff]
        %v6677 = vld [vmem:[#allocation5 + $0x30] sm:$0xff]
        %v6678 = vld [vmem:[#allocation5 + $0x38] sm:$0xff]
        %v6679 = vld [vmem:[#allocation5 + $0x40] sm:$0xff]
        %v6680 = vld [vmem:[#allocation5 + $0x48] sm:$0xff]
        %v6681 = vld [vmem:[#allocation5 + $0x50] sm:$0xff]
        %v6682 = vld [vmem:[#allocation5 + $0x58] sm:$0xff]
        %v6683 = vld [vmem:[#allocation5 + $0x60] sm:$0xff]
        %v6684 = vld [vmem:[#allocation5 + $0x68] sm:$0xff]
        %v6685 = vld [vmem:[#allocation5 + $0x70] sm:$0xff]
        %v6686 = vld [vmem:[#allocation5 + $0x78] sm:$0xff]
        %s6687 = scalar_lea.vmem %s3, 32
        %v6688 = vld [vmem:[%s6687] sm:$0xff]
        %v6689 = vld [vmem:[%s6687 + $0x8] sm:$0xff]
        %v6690 = vld [vmem:[%s6687 + $0x10] sm:$0xff]
        %v6691 = vld [vmem:[%s6687 + $0x18] sm:$0xff]
        %v6693 = vsel %vm3981, %v6593, 0
        %v6696 = vsel %vm3981, %v6598, 0
        %v6699 = vsel %vm3981, %v6603, 0
        %v6702 = vsel %vm3981, %v6608, 0
        %v6705 = vsel %vm3981, %v6613, 0
        %v6708 = vsel %vm3981, %v6618, 0
        %v6711 = vsel %vm3981, %v6623, 0
        %v6714 = vsel %vm3981, %v6628, 0
        %v6717 = vsel %vm3981, %v6633, 0
        %v6720 = vsel %vm3981, %v6638, 0
        %v6723 = vsel %vm3981, %v6643, 0
        %v6726 = vsel %vm3981, %v6648, 0
        %v6729 = vsel %vm3981, %v6653, 0
        %v6732 = vsel %vm3981, %v6658, 0
        %v6735 = vsel %vm3981, %v6663, 0
        %v6738 = vsel %vm3981, %v6668, 0
        %6740 = vmatprep.subr.mxu0 0.0
        %6741 = vmatpush1.msra.mxu0 %v6688
        %6742 = vmatprep.subr.mxu0 0.0
        %6743 = vmatpush1.msra.mxu0 %v6689
        %6744 = vmatprep.subr.mxu0 0.0
        %6745 = vmatpush1.msra.mxu0 %v6690
        %6746 = vmatprep.subr.mxu0 0.0
        %6747 = vmatpush1.msra.mxu0 %v6691
        %6748 = vmatprep.subr.mxu0 0.0
        %6749 = vmatpush1.msra.mxu0 0.0
        %6750 = vmatprep.subr.mxu0 0.0
        %6751 = vmatpush1.msra.mxu0 0.0
        %6752 = vmatprep.subr.mxu0 0.0
        %6753 = vmatpush1.msra.mxu0 0.0
        %6754 = vmatprep.subr.mxu0 0.0
        %6755 = vmatpush1.msra.mxu0 0.0
        %6756 = vmatprep.subr.mxu0 0.0
        %6757 = vmatpush1.msra.mxu0 0.0
        %6758 = vmatprep.subr.mxu0 0.0
        %6759 = vmatpush1.msra.mxu0 0.0
        %6760 = vmatprep.subr.mxu0 0.0
        %6761 = vmatpush1.msra.mxu0 0.0
        %6762 = vmatprep.subr.mxu0 0.0
        %6763 = vmatpush1.msra.mxu0 0.0
        %6764 = vmatprep.subr.mxu0 0.0
        %6765 = vmatpush1.msra.mxu0 0.0
        %6766 = vmatprep.subr.mxu0 0.0
        %6767 = vmatpush1.msra.mxu0 0.0
        %6768 = vmatprep.subr.mxu0 0.0
        %6769 = vmatpush1.msra.mxu0 0.0
        %6770 = vmatprep.subr.mxu0 0.0
        %6771 = vmatpush1.msra.mxu0 0.0
        %6772 = vmatprep.subr.mxu0 0.0
        %6773 = vmatpush1.msra.mxu0 0.0
        %6774 = vmatprep.subr.mxu0 0.0
        %6775 = vmatpush1.msra.mxu0 0.0
        %6776 = vmatprep.subr.mxu0 0.0
        %6777 = vmatpush1.msra.mxu0 0.0
        %6778 = vmatprep.subr.mxu0 0.0
        %6779 = vmatpush1.msra.mxu0 0.0
        %6780 = vmatprep.subr.mxu0 0.0
        %6781 = vmatpush1.msra.mxu0 0.0
        %6782 = vmatprep.subr.mxu0 0.0
        %6783 = vmatpush1.msra.mxu0 0.0
        %6784 = vmatprep.subr.mxu0 0.0
        %6785 = vmatpush1.msra.mxu0 0.0
        %6786 = vmatprep.subr.mxu0 0.0
        %6787 = vmatpush1.msra.mxu0 0.0
        %6788 = vmatprep.subr.mxu0 0.0
        %6789 = vmatpush1.msra.mxu0 0.0
        %6790 = vmatprep.subr.mxu0 0.0
        %6791 = vmatpush1.msra.mxu0 0.0
        %6792 = vmatprep.subr.mxu0 0.0
        %6793 = vmatpush1.msra.mxu0 0.0
        %6794 = vmatprep.subr.mxu0 0.0
        %6795 = vmatpush1.msra.mxu0 0.0
        %6796 = vmatprep.subr.mxu0 0.0
        %6797 = vmatpush1.msra.mxu0 0.0
        %6798 = vmatprep.subr.mxu0 0.0
        %6799 = vmatpush1.msra.mxu0 0.0
        %6800 = vmatprep.subr.mxu0 0.0
        %6801 = vmatpush1.msra.mxu0 0.0
        %6802 = vmatprep.subr.mxu0 0.0
        %6803 = vmatpush1.msra.mxu0 0.0
        %6804 = vmatprep.mubr.f32.mxu0 0.0
        %6805 = vmatmul.mubr.f32.gmra.mrb[0].mxu0 %v6693
        %v6806 = vpop.f32.mrb[0].mxu0
        %v6807 = vadd.f32 0.0, %v6806
        %v6808 = vpop.f32.mrb[0].mxu0
        %6809 = vmatprep.mubr.f32.mxu0 0.0
        %6810 = vmatmul.mubr.f32.gmra.mrb[0].mxu0 %v6696
        %v6811 = vpop.f32.mrb[0].mxu0
        %v6812 = vadd.f32 0.0, %v6811
        %v6813 = vpop.f32.mrb[0].mxu0
        %6814 = vmatprep.mubr.f32.mxu0 0.0
        %6815 = vmatmul.mubr.f32.gmra.mrb[0].mxu0 %v6699
        %v6816 = vpop.f32.mrb[0].mxu0
        %v6817 = vadd.f32 0.0, %v6816
        %v6818 = vpop.f32.mrb[0].mxu0
        %6819 = vmatprep.mubr.f32.mxu0 0.0
        %6820 = vmatmul.mubr.f32.gmra.mrb[0].mxu0 %v6702
        %v6821 = vpop.f32.mrb[0].mxu0
        %v6822 = vadd.f32 0.0, %v6821
        %v6823 = vpop.f32.mrb[0].mxu0
        %6824 = vmatprep.mubr.f32.mxu0 0.0
        %6825 = vmatmul.mubr.f32.gmra.mrb[0].mxu0 %v6705
        %v6826 = vpop.f32.mrb[0].mxu0
        %v6827 = vadd.f32 0.0, %v6826
        %v6828 = vpop.f32.mrb[0].mxu0
        %6829 = vmatprep.mubr.f32.mxu0 0.0
        %6830 = vmatmul.mubr.f32.gmra.mrb[0].mxu0 %v6708
        %v6831 = vpop.f32.mrb[0].mxu0
        %v6832 = vadd.f32 0.0, %v6831
        %v6833 = vpop.f32.mrb[0].mxu0
        %6834 = vmatprep.mubr.f32.mxu0 0.0
        %6835 = vmatmul.mubr.f32.gmra.mrb[0].mxu0 %v6711
        %v6836 = vpop.f32.mrb[0].mxu0
        %v6837 = vadd.f32 0.0, %v6836
        %v6838 = vpop.f32.mrb[0].mxu0
        %6839 = vmatprep.mubr.f32.mxu0 0.0
        %6840 = vmatmul.mubr.f32.gmra.mrb[0].mxu0 %v6714
        %v6841 = vpop.f32.mrb[0].mxu0
        %v6842 = vadd.f32 0.0, %v6841
        %v6843 = vpop.f32.mrb[0].mxu0
        %6844 = vmatprep.mubr.f32.mxu0 0.0
        %6845 = vmatmul.mubr.f32.gmra.mrb[0].mxu0 %v6717
        %v6846 = vpop.f32.mrb[0].mxu0
        %v6847 = vadd.f32 0.0, %v6846
        %v6848 = vpop.f32.mrb[0].mxu0
        %6849 = vmatprep.mubr.f32.mxu0 0.0
        %6850 = vmatmul.mubr.f32.gmra.mrb[0].mxu0 %v6720
        %v6851 = vpop.f32.mrb[0].mxu0
        %v6852 = vadd.f32 0.0, %v6851
        %v6853 = vpop.f32.mrb[0].mxu0
        %6854 = vmatprep.mubr.f32.mxu0 0.0
        %6855 = vmatmul.mubr.f32.gmra.mrb[0].mxu0 %v6723
        %v6856 = vpop.f32.mrb[0].mxu0
        %v6857 = vadd.f32 0.0, %v6856
        %v6858 = vpop.f32.mrb[0].mxu0
        %6859 = vmatprep.mubr.f32.mxu0 0.0
        %6860 = vmatmul.mubr.f32.gmra.mrb[0].mxu0 %v6726
        %v6861 = vpop.f32.mrb[0].mxu0
        %v6862 = vadd.f32 0.0, %v6861
        %v6863 = vpop.f32.mrb[0].mxu0
        %6864 = vmatprep.mubr.f32.mxu0 0.0
        %6865 = vmatmul.mubr.f32.gmra.mrb[0].mxu0 %v6729
        %v6866 = vpop.f32.mrb[0].mxu0
        %v6867 = vadd.f32 0.0, %v6866
        %v6868 = vpop.f32.mrb[0].mxu0
        %6869 = vmatprep.mubr.f32.mxu0 0.0
        %6870 = vmatmul.mubr.f32.gmra.mrb[0].mxu0 %v6732
        %v6871 = vpop.f32.mrb[0].mxu0
        %v6872 = vadd.f32 0.0, %v6871
        %v6873 = vpop.f32.mrb[0].mxu0
        %6874 = vmatprep.mubr.f32.mxu0 0.0
        %6875 = vmatmul.mubr.f32.gmra.mrb[0].mxu0 %v6735
        %v6876 = vpop.f32.mrb[0].mxu0
        %v6877 = vadd.f32 0.0, %v6876
        %v6878 = vpop.f32.mrb[0].mxu0
        %6879 = vmatprep.mubr.f32.mxu0 0.0
        %6880 = vmatmul.mubr.f32.gmra.mrb[0].mxu0 %v6738
        %v6881 = vpop.f32.mrb[0].mxu0
        %v6882 = vadd.f32 0.0, %v6881
        %v6883 = vpop.f32.mrb[0].mxu0
        %6884 = vdwg.mxu0
        %v6885 = vadd.f32 %v6671, %v6807
        %v6886 = vadd.f32 %v6672, %v6812
        %v6887 = vadd.f32 %v6673, %v6817
        %v6888 = vadd.f32 %v6674, %v6822
        %v6889 = vadd.f32 %v6675, %v6827
        %v6890 = vadd.f32 %v6676, %v6832
        %v6891 = vadd.f32 %v6677, %v6837
        %v6892 = vadd.f32 %v6678, %v6842
        %v6893 = vadd.f32 %v6679, %v6847
        %v6894 = vadd.f32 %v6680, %v6852
        %v6895 = vadd.f32 %v6681, %v6857
        %v6896 = vadd.f32 %v6682, %v6862
        %v6897 = vadd.f32 %v6683, %v6867
        %v6898 = vadd.f32 %v6684, %v6872
        %v6899 = vadd.f32 %v6685, %v6877
        %v6900 = vadd.f32 %v6686, %v6882
        %6901 = vst [vmem:[#allocation5] sm:$0xff] %v6885
        %6902 = vst [vmem:[#allocation5 + $0x8] sm:$0xff] %v6886
        %6903 = vst [vmem:[#allocation5 + $0x10] sm:$0xff] %v6887
        %6904 = vst [vmem:[#allocation5 + $0x18] sm:$0xff] %v6888
        %6905 = vst [vmem:[#allocation5 + $0x20] sm:$0xff] %v6889
        %6906 = vst [vmem:[#allocation5 + $0x28] sm:$0xff] %v6890
        %6907 = vst [vmem:[#allocation5 + $0x30] sm:$0xff] %v6891
        %6908 = vst [vmem:[#allocation5 + $0x38] sm:$0xff] %v6892
        %6909 = vst [vmem:[#allocation5 + $0x40] sm:$0xff] %v6893
        %6910 = vst [vmem:[#allocation5 + $0x48] sm:$0xff] %v6894
        %6911 = vst [vmem:[#allocation5 + $0x50] sm:$0xff] %v6895
        %6912 = vst [vmem:[#allocation5 + $0x58] sm:$0xff] %v6896
        %6913 = vst [vmem:[#allocation5 + $0x60] sm:$0xff] %v6897
        %6914 = vst [vmem:[#allocation5 + $0x68] sm:$0xff] %v6898
        %6915 = vst [vmem:[#allocation5 + $0x70] sm:$0xff] %v6899
        %6916 = vst [vmem:[#allocation5 + $0x78] sm:$0xff] %v6900
        %v6917 = vld [vmem:[%s4760] sm:$0xff]
        %v6918 = vld [vmem:[%s4760 + $0x8] sm:$0xff]
        %v6919 = vld [vmem:[%s4760 + $0x10] sm:$0xff]
        %v6920 = vld [vmem:[%s4760 + $0x18] sm:$0xff]
        %v6921 = vld [vmem:[%s4760 + $0x20] sm:$0xff]
        %v6922 = vld [vmem:[%s4760 + $0x28] sm:$0xff]
        %v6923 = vld [vmem:[%s4760 + $0x30] sm:$0xff]
        %v6924 = vld [vmem:[%s4760 + $0x38] sm:$0xff]
        %v6925 = vld [vmem:[%s4760 + $0x40] sm:$0xff]
        %v6926 = vld [vmem:[%s4760 + $0x48] sm:$0xff]
        %v6927 = vld [vmem:[%s4760 + $0x50] sm:$0xff]
        %v6928 = vld [vmem:[%s4760 + $0x58] sm:$0xff]
        %v6929 = vld [vmem:[%s4760 + $0x60] sm:$0xff]
        %v6930 = vld [vmem:[%s4760 + $0x68] sm:$0xff]
        %v6931 = vld [vmem:[%s4760 + $0x70] sm:$0xff]
        %v6932 = vld [vmem:[%s4760 + $0x78] sm:$0xff]
        %v6933 = vld [vmem:[%s4760 + $0x80] sm:$0xff]
        %v6934 = vld [vmem:[%s4760 + $0x88] sm:$0xff]
        %v6935 = vld [vmem:[%s4760 + $0x90] sm:$0xff]
        %v6936 = vld [vmem:[%s4760 + $0x98] sm:$0xff]
        %v6937 = vld [vmem:[%s4760 + $0xa0] sm:$0xff]
        %v6938 = vld [vmem:[%s4760 + $0xa8] sm:$0xff]
        %v6939 = vld [vmem:[%s4760 + $0xb0] sm:$0xff]
        %v6940 = vld [vmem:[%s4760 + $0xb8] sm:$0xff]
        %v6941 = vld [vmem:[%s4760 + $0xc0] sm:$0xff]
        %v6942 = vld [vmem:[%s4760 + $0xc8] sm:$0xff]
        %v6943 = vld [vmem:[%s4760 + $0xd0] sm:$0xff]
        %v6944 = vld [vmem:[%s4760 + $0xd8] sm:$0xff]
        %v6945 = vld [vmem:[%s4760 + $0xe0] sm:$0xff]
        %v6946 = vld [vmem:[%s4760 + $0xe8] sm:$0xff]
        %v6947 = vld [vmem:[%s4760 + $0xf0] sm:$0xff]
        %v6948 = vld [vmem:[%s4760 + $0xf8] sm:$0xff]
        %v6949 = vmul.f32 %v6917, %v5894
        %v6950 = vmul.f32 %v6918, %v5895
        %v6951 = vmul.f32 %v6919, %v5896
        %v6952 = vmul.f32 %v6920, %v5897
        %v6953 = vmul.f32 %v6921, %v5898
        %v6954 = vmul.f32 %v6922, %v5899
        %v6955 = vmul.f32 %v6923, %v5900
        %v6956 = vmul.f32 %v6924, %v5901
        %v6957 = vmul.f32 %v6925, %v5902
        %v6958 = vmul.f32 %v6926, %v5903
        %v6959 = vmul.f32 %v6927, %v5904
        %v6960 = vmul.f32 %v6928, %v5905
        %v6961 = vmul.f32 %v6929, %v5906
        %v6962 = vmul.f32 %v6930, %v5907
        %v6963 = vmul.f32 %v6931, %v5908
        %v6964 = vmul.f32 %v6932, %v5909
        %v6965 = vmul.f32 %v6933, %v5910
        %v6966 = vmul.f32 %v6934, %v5911
        %v6967 = vmul.f32 %v6935, %v5912
        %v6968 = vmul.f32 %v6936, %v5913
        %v6969 = vmul.f32 %v6937, %v5914
        %v6970 = vmul.f32 %v6938, %v5915
        %v6971 = vmul.f32 %v6939, %v5916
        %v6972 = vmul.f32 %v6940, %v5917
        %v6973 = vmul.f32 %v6941, %v5918
        %v6974 = vmul.f32 %v6942, %v5919
        %v6975 = vmul.f32 %v6943, %v5920
        %v6976 = vmul.f32 %v6944, %v5921
        %v6977 = vmul.f32 %v6945, %v5922
        %v6978 = vmul.f32 %v6946, %v5923
        %v6979 = vmul.f32 %v6947, %v5924
        %v6980 = vmul.f32 %v6948, %v5925
        %s6981 = scalar_lea.vmem [#allocation2], 1536
        %v6982 = vld [vmem:[%s6981] sm:$0xff]
        %v6983 = vld [vmem:[%s6981 + $0x8] sm:$0xff]
        %v6984 = vld [vmem:[%s6981 + $0x10] sm:$0xff]
        %v6985 = vld [vmem:[%s6981 + $0x18] sm:$0xff]
        %v6986 = vld [vmem:[%s6981 + $0x20] sm:$0xff]
        %v6987 = vld [vmem:[%s6981 + $0x28] sm:$0xff]
        %v6988 = vld [vmem:[%s6981 + $0x30] sm:$0xff]
        %v6989 = vld [vmem:[%s6981 + $0x38] sm:$0xff]
        %v6990 = vld [vmem:[%s6981 + $0x40] sm:$0xff]
        %v6991 = vld [vmem:[%s6981 + $0x48] sm:$0xff]
        %v6992 = vld [vmem:[%s6981 + $0x50] sm:$0xff]
        %v6993 = vld [vmem:[%s6981 + $0x58] sm:$0xff]
        %v6994 = vld [vmem:[%s6981 + $0x60] sm:$0xff]
        %v6995 = vld [vmem:[%s6981 + $0x68] sm:$0xff]
        %v6996 = vld [vmem:[%s6981 + $0x70] sm:$0xff]
        %v6997 = vld [vmem:[%s6981 + $0x78] sm:$0xff]
        %v6998 = vld [vmem:[%s6981 + $0x80] sm:$0xff]
        %v6999 = vld [vmem:[%s6981 + $0x88] sm:$0xff]
        %v7000 = vld [vmem:[%s6981 + $0x90] sm:$0xff]
        %v7001 = vld [vmem:[%s6981 + $0x98] sm:$0xff]
        %v7002 = vld [vmem:[%s6981 + $0xa0] sm:$0xff]
        %v7003 = vld [vmem:[%s6981 + $0xa8] sm:$0xff]
        %v7004 = vld [vmem:[%s6981 + $0xb0] sm:$0xff]
        %v7005 = vld [vmem:[%s6981 + $0xb8] sm:$0xff]
        %v7006 = vld [vmem:[%s6981 + $0xc0] sm:$0xff]
        %v7007 = vld [vmem:[%s6981 + $0xc8] sm:$0xff]
        %v7008 = vld [vmem:[%s6981 + $0xd0] sm:$0xff]
        %v7009 = vld [vmem:[%s6981 + $0xd8] sm:$0xff]
        %v7010 = vld [vmem:[%s6981 + $0xe0] sm:$0xff]
        %v7011 = vld [vmem:[%s6981 + $0xe8] sm:$0xff]
        %v7012 = vld [vmem:[%s6981 + $0xf0] sm:$0xff]
        %v7013 = vld [vmem:[%s6981 + $0xf8] sm:$0xff]
        %7014 = vmatprep.subr.mxu0 0.0
        %7015 = vmatpush1.msra.mxu0 %v6982
        %7016 = vmatprep.subr.mxu0 0.0
        %7017 = vmatpush1.msra.mxu0 %v6983
        %7018 = vmatprep.subr.mxu0 0.0
        %7019 = vmatpush1.msra.mxu0 %v6984
        %7020 = vmatprep.subr.mxu0 0.0
        %7021 = vmatpush1.msra.mxu0 %v6985
        %7022 = vmatprep.subr.mxu0 0.0
        %7023 = vmatpush1.msra.mxu0 %v6986
        %7024 = vmatprep.subr.mxu0 0.0
        %7025 = vmatpush1.msra.mxu0 %v6987
        %7026 = vmatprep.subr.mxu0 0.0
        %7027 = vmatpush1.msra.mxu0 %v6988
        %7028 = vmatprep.subr.mxu0 0.0
        %7029 = vmatpush1.msra.mxu0 %v6989
        %7030 = vmatprep.subr.mxu0 0.0
        %7031 = vmatpush1.msra.mxu0 %v6990
        %7032 = vmatprep.subr.mxu0 0.0
        %7033 = vmatpush1.msra.mxu0 %v6991
        %7034 = vmatprep.subr.mxu0 0.0
        %7035 = vmatpush1.msra.mxu0 %v6992
        %7036 = vmatprep.subr.mxu0 0.0
        %7037 = vmatpush1.msra.mxu0 %v6993
        %7038 = vmatprep.subr.mxu0 0.0
        %7039 = vmatpush1.msra.mxu0 %v6994
        %7040 = vmatprep.subr.mxu0 0.0
        %7041 = vmatpush1.msra.mxu0 %v6995
        %7042 = vmatprep.subr.mxu0 0.0
        %7043 = vmatpush1.msra.mxu0 %v6996
        %7044 = vmatprep.subr.mxu0 0.0
        %7045 = vmatpush1.msra.mxu0 %v6997
        %7046 = vmatprep.subr.mxu0 0.0
        %7047 = vmatpush1.msra.mxu0 %v6998
        %7048 = vmatprep.subr.mxu0 0.0
        %7049 = vmatpush1.msra.mxu0 %v6999
        %7050 = vmatprep.subr.mxu0 0.0
        %7051 = vmatpush1.msra.mxu0 %v7000
        %7052 = vmatprep.subr.mxu0 0.0
        %7053 = vmatpush1.msra.mxu0 %v7001
        %7054 = vmatprep.subr.mxu0 0.0
        %7055 = vmatpush1.msra.mxu0 %v7002
        %7056 = vmatprep.subr.mxu0 0.0
        %7057 = vmatpush1.msra.mxu0 %v7003
        %7058 = vmatprep.subr.mxu0 0.0
        %7059 = vmatpush1.msra.mxu0 %v7004
        %7060 = vmatprep.subr.mxu0 0.0
        %7061 = vmatpush1.msra.mxu0 %v7005
        %7062 = vmatprep.subr.mxu0 0.0
        %7063 = vmatpush1.msra.mxu0 %v7006
        %7064 = vmatprep.subr.mxu0 0.0
        %7065 = vmatpush1.msra.mxu0 %v7007
        %7066 = vmatprep.subr.mxu0 0.0
        %7067 = vmatpush1.msra.mxu0 %v7008
        %7068 = vmatprep.subr.mxu0 0.0
        %7069 = vmatpush1.msra.mxu0 %v7009
        %7070 = vmatprep.subr.mxu0 0.0
        %7071 = vmatpush1.msra.mxu0 %v7010
        %7072 = vmatprep.subr.mxu0 0.0
        %7073 = vmatpush1.msra.mxu0 %v7011
        %7074 = vmatprep.subr.mxu0 0.0
        %7075 = vmatpush1.msra.mxu0 %v7012
        %7076 = vmatprep.subr.mxu0 0.0
        %7077 = vmatpush1.msra.mxu0 %v7013
        %7078 = vmatprep.mubr.f32.mxu0 %v6950
        %7079 = vmatmul.mubr.f32.gmra.mrb[0].mxu0 %v6949
        %v7080 = vpop.f32.mrb[0].mxu0
        %v7081 = vadd.f32 0.0, %v7080
        %v7082 = vpop.f32.mrb[0].mxu0
        %7083 = vmatprep.mubr.f32.mxu0 %v6952
        %7084 = vmatmul.mubr.f32.gmra.mrb[0].mxu0 %v6951
        %v7085 = vpop.f32.mrb[0].mxu0
        %v7086 = vadd.f32 0.0, %v7085
        %v7087 = vpop.f32.mrb[0].mxu0
        %7088 = vmatprep.mubr.f32.mxu0 %v6954
        %7089 = vmatmul.mubr.f32.gmra.mrb[0].mxu0 %v6953
        %v7090 = vpop.f32.mrb[0].mxu0
        %v7091 = vadd.f32 0.0, %v7090
        %v7092 = vpop.f32.mrb[0].mxu0
        %7093 = vmatprep.mubr.f32.mxu0 %v6956
        %7094 = vmatmul.mubr.f32.gmra.mrb[0].mxu0 %v6955
        %v7095 = vpop.f32.mrb[0].mxu0
        %v7096 = vadd.f32 0.0, %v7095
        %v7097 = vpop.f32.mrb[0].mxu0
        %7098 = vmatprep.mubr.f32.mxu0 %v6958
        %7099 = vmatmul.mubr.f32.gmra.mrb[0].mxu0 %v6957
        %v7100 = vpop.f32.mrb[0].mxu0
        %v7101 = vadd.f32 0.0, %v7100
        %v7102 = vpop.f32.mrb[0].mxu0
        %7103 = vmatprep.mubr.f32.mxu0 %v6960
        %7104 = vmatmul.mubr.f32.gmra.mrb[0].mxu0 %v6959
        %v7105 = vpop.f32.mrb[0].mxu0
        %v7106 = vadd.f32 0.0, %v7105
        %v7107 = vpop.f32.mrb[0].mxu0
        %7108 = vmatprep.mubr.f32.mxu0 %v6962
        %7109 = vmatmul.mubr.f32.gmra.mrb[0].mxu0 %v6961
        %v7110 = vpop.f32.mrb[0].mxu0
        %v7111 = vadd.f32 0.0, %v7110
        %v7112 = vpop.f32.mrb[0].mxu0
        %7113 = vmatprep.mubr.f32.mxu0 %v6964
        %7114 = vmatmul.mubr.f32.gmra.mrb[0].mxu0 %v6963
        %v7115 = vpop.f32.mrb[0].mxu0
        %v7116 = vadd.f32 0.0, %v7115
        %v7117 = vpop.f32.mrb[0].mxu0
        %7118 = vmatprep.mubr.f32.mxu0 %v6966
        %7119 = vmatmul.mubr.f32.gmra.mrb[0].mxu0 %v6965
        %v7120 = vpop.f32.mrb[0].mxu0
        %v7121 = vadd.f32 0.0, %v7120
        %v7122 = vpop.f32.mrb[0].mxu0
        %7123 = vmatprep.mubr.f32.mxu0 %v6968
        %7124 = vmatmul.mubr.f32.gmra.mrb[0].mxu0 %v6967
        %v7125 = vpop.f32.mrb[0].mxu0
        %v7126 = vadd.f32 0.0, %v7125
        %v7127 = vpop.f32.mrb[0].mxu0
        %7128 = vmatprep.mubr.f32.mxu0 %v6970
        %7129 = vmatmul.mubr.f32.gmra.mrb[0].mxu0 %v6969
        %v7130 = vpop.f32.mrb[0].mxu0
        %v7131 = vadd.f32 0.0, %v7130
        %v7132 = vpop.f32.mrb[0].mxu0
        %7133 = vmatprep.mubr.f32.mxu0 %v6972
        %7134 = vmatmul.mubr.f32.gmra.mrb[0].mxu0 %v6971
        %v7135 = vpop.f32.mrb[0].mxu0
        %v7136 = vadd.f32 0.0, %v7135
        %v7137 = vpop.f32.mrb[0].mxu0
        %7138 = vmatprep.mubr.f32.mxu0 %v6974
        %7139 = vmatmul.mubr.f32.gmra.mrb[0].mxu0 %v6973
        %v7140 = vpop.f32.mrb[0].mxu0
        %v7141 = vadd.f32 0.0, %v7140
        %v7142 = vpop.f32.mrb[0].mxu0
        %7143 = vmatprep.mubr.f32.mxu0 %v6976
        %7144 = vmatmul.mubr.f32.gmra.mrb[0].mxu0 %v6975
        %v7145 = vpop.f32.mrb[0].mxu0
        %v7146 = vadd.f32 0.0, %v7145
        %v7147 = vpop.f32.mrb[0].mxu0
        %7148 = vmatprep.mubr.f32.mxu0 %v6978
        %7149 = vmatmul.mubr.f32.gmra.mrb[0].mxu0 %v6977
        %v7150 = vpop.f32.mrb[0].mxu0
        %v7151 = vadd.f32 0.0, %v7150
        %v7152 = vpop.f32.mrb[0].mxu0
        %7153 = vmatprep.mubr.f32.mxu0 %v6980
        %7154 = vmatmul.mubr.f32.gmra.mrb[0].mxu0 %v6979
        %v7155 = vpop.f32.mrb[0].mxu0
        %v7156 = vadd.f32 0.0, %v7155
        %v7157 = vpop.f32.mrb[0].mxu0
        %7158 = vdwg.mxu0
        %v7159 = vld [vmem:[#allocation5] sm:$0xff]
        %v7160 = vld [vmem:[#allocation5 + $0x8] sm:$0xff]
        %v7161 = vld [vmem:[#allocation5 + $0x10] sm:$0xff]
        %v7162 = vld [vmem:[#allocation5 + $0x18] sm:$0xff]
        %v7163 = vld [vmem:[#allocation5 + $0x20] sm:$0xff]
        %v7164 = vld [vmem:[#allocation5 + $0x28] sm:$0xff]
        %v7165 = vld [vmem:[#allocation5 + $0x30] sm:$0xff]
        %v7166 = vld [vmem:[#allocation5 + $0x38] sm:$0xff]
        %v7167 = vld [vmem:[#allocation5 + $0x40] sm:$0xff]
        %v7168 = vld [vmem:[#allocation5 + $0x48] sm:$0xff]
        %v7169 = vld [vmem:[#allocation5 + $0x50] sm:$0xff]
        %v7170 = vld [vmem:[#allocation5 + $0x58] sm:$0xff]
        %v7171 = vld [vmem:[#allocation5 + $0x60] sm:$0xff]
        %v7172 = vld [vmem:[#allocation5 + $0x68] sm:$0xff]
        %v7173 = vld [vmem:[#allocation5 + $0x70] sm:$0xff]
        %v7174 = vld [vmem:[#allocation5 + $0x78] sm:$0xff]
        %s7175 = scalar_lea.vmem %s3, 64
        %v7176 = vld [vmem:[%s7175] sm:$0xff]
        %v7177 = vld [vmem:[%s7175 + $0x8] sm:$0xff]
        %v7178 = vld [vmem:[%s7175 + $0x10] sm:$0xff]
        %v7179 = vld [vmem:[%s7175 + $0x18] sm:$0xff]
        %v7181 = vsel %vm3981, %v7081, 0
        %v7184 = vsel %vm3981, %v7086, 0
        %v7187 = vsel %vm3981, %v7091, 0
        %v7190 = vsel %vm3981, %v7096, 0
        %v7193 = vsel %vm3981, %v7101, 0
        %v7196 = vsel %vm3981, %v7106, 0
        %v7199 = vsel %vm3981, %v7111, 0
        %v7202 = vsel %vm3981, %v7116, 0
        %v7205 = vsel %vm3981, %v7121, 0
        %v7208 = vsel %vm3981, %v7126, 0
        %v7211 = vsel %vm3981, %v7131, 0
        %v7214 = vsel %vm3981, %v7136, 0
        %v7217 = vsel %vm3981, %v7141, 0
        %v7220 = vsel %vm3981, %v7146, 0
        %v7223 = vsel %vm3981, %v7151, 0
        %v7226 = vsel %vm3981, %v7156, 0
        %7228 = vmatprep.subr.mxu0 0.0
        %7229 = vmatpush1.msra.mxu0 %v7176
        %7230 = vmatprep.subr.mxu0 0.0
        %7231 = vmatpush1.msra.mxu0 %v7177
        %7232 = vmatprep.subr.mxu0 0.0
        %7233 = vmatpush1.msra.mxu0 %v7178
        %7234 = vmatprep.subr.mxu0 0.0
        %7235 = vmatpush1.msra.mxu0 %v7179
        %7236 = vmatprep.subr.mxu0 0.0
        %7237 = vmatpush1.msra.mxu0 0.0
        %7238 = vmatprep.subr.mxu0 0.0
        %7239 = vmatpush1.msra.mxu0 0.0
        %7240 = vmatprep.subr.mxu0 0.0
        %7241 = vmatpush1.msra.mxu0 0.0
        %7242 = vmatprep.subr.mxu0 0.0
        %7243 = vmatpush1.msra.mxu0 0.0
        %7244 = vmatprep.subr.mxu0 0.0
        %7245 = vmatpush1.msra.mxu0 0.0
        %7246 = vmatprep.subr.mxu0 0.0
        %7247 = vmatpush1.msra.mxu0 0.0
        %7248 = vmatprep.subr.mxu0 0.0
        %7249 = vmatpush1.msra.mxu0 0.0
        %7250 = vmatprep.subr.mxu0 0.0
        %7251 = vmatpush1.msra.mxu0 0.0
        %7252 = vmatprep.subr.mxu0 0.0
        %7253 = vmatpush1.msra.mxu0 0.0
        %7254 = vmatprep.subr.mxu0 0.0
        %7255 = vmatpush1.msra.mxu0 0.0
        %7256 = vmatprep.subr.mxu0 0.0
        %7257 = vmatpush1.msra.mxu0 0.0
        %7258 = vmatprep.subr.mxu0 0.0
        %7259 = vmatpush1.msra.mxu0 0.0
        %7260 = vmatprep.subr.mxu0 0.0
        %7261 = vmatpush1.msra.mxu0 0.0
        %7262 = vmatprep.subr.mxu0 0.0
        %7263 = vmatpush1.msra.mxu0 0.0
        %7264 = vmatprep.subr.mxu0 0.0
        %7265 = vmatpush1.msra.mxu0 0.0
        %7266 = vmatprep.subr.mxu0 0.0
        %7267 = vmatpush1.msra.mxu0 0.0
        %7268 = vmatprep.subr.mxu0 0.0
        %7269 = vmatpush1.msra.mxu0 0.0
        %7270 = vmatprep.subr.mxu0 0.0
        %7271 = vmatpush1.msra.mxu0 0.0
        %7272 = vmatprep.subr.mxu0 0.0
        %7273 = vmatpush1.msra.mxu0 0.0
        %7274 = vmatprep.subr.mxu0 0.0
        %7275 = vmatpush1.msra.mxu0 0.0
        %7276 = vmatprep.subr.mxu0 0.0
        %7277 = vmatpush1.msra.mxu0 0.0
        %7278 = vmatprep.subr.mxu0 0.0
        %7279 = vmatpush1.msra.mxu0 0.0
        %7280 = vmatprep.subr.mxu0 0.0
        %7281 = vmatpush1.msra.mxu0 0.0
        %7282 = vmatprep.subr.mxu0 0.0
        %7283 = vmatpush1.msra.mxu0 0.0
        %7284 = vmatprep.subr.mxu0 0.0
        %7285 = vmatpush1.msra.mxu0 0.0
        %7286 = vmatprep.subr.mxu0 0.0
        %7287 = vmatpush1.msra.mxu0 0.0
        %7288 = vmatprep.subr.mxu0 0.0
        %7289 = vmatpush1.msra.mxu0 0.0
        %7290 = vmatprep.subr.mxu0 0.0
        %7291 = vmatpush1.msra.mxu0 0.0
        %7292 = vmatprep.mubr.f32.mxu0 0.0
        %7293 = vmatmul.mubr.f32.gmra.mrb[0].mxu0 %v7181
        %v7294 = vpop.f32.mrb[0].mxu0
        %v7295 = vadd.f32 0.0, %v7294
        %v7296 = vpop.f32.mrb[0].mxu0
        %7297 = vmatprep.mubr.f32.mxu0 0.0
        %7298 = vmatmul.mubr.f32.gmra.mrb[0].mxu0 %v7184
        %v7299 = vpop.f32.mrb[0].mxu0
        %v7300 = vadd.f32 0.0, %v7299
        %v7301 = vpop.f32.mrb[0].mxu0
        %7302 = vmatprep.mubr.f32.mxu0 0.0
        %7303 = vmatmul.mubr.f32.gmra.mrb[0].mxu0 %v7187
        %v7304 = vpop.f32.mrb[0].mxu0
        %v7305 = vadd.f32 0.0, %v7304
        %v7306 = vpop.f32.mrb[0].mxu0
        %7307 = vmatprep.mubr.f32.mxu0 0.0
        %7308 = vmatmul.mubr.f32.gmra.mrb[0].mxu0 %v7190
        %v7309 = vpop.f32.mrb[0].mxu0
        %v7310 = vadd.f32 0.0, %v7309
        %v7311 = vpop.f32.mrb[0].mxu0
        %7312 = vmatprep.mubr.f32.mxu0 0.0
        %7313 = vmatmul.mubr.f32.gmra.mrb[0].mxu0 %v7193
        %v7314 = vpop.f32.mrb[0].mxu0
        %v7315 = vadd.f32 0.0, %v7314
        %v7316 = vpop.f32.mrb[0].mxu0
        %7317 = vmatprep.mubr.f32.mxu0 0.0
        %7318 = vmatmul.mubr.f32.gmra.mrb[0].mxu0 %v7196
        %v7319 = vpop.f32.mrb[0].mxu0
        %v7320 = vadd.f32 0.0, %v7319
        %v7321 = vpop.f32.mrb[0].mxu0
        %7322 = vmatprep.mubr.f32.mxu0 0.0
        %7323 = vmatmul.mubr.f32.gmra.mrb[0].mxu0 %v7199
        %v7324 = vpop.f32.mrb[0].mxu0
        %v7325 = vadd.f32 0.0, %v7324
        %v7326 = vpop.f32.mrb[0].mxu0
        %7327 = vmatprep.mubr.f32.mxu0 0.0
        %7328 = vmatmul.mubr.f32.gmra.mrb[0].mxu0 %v7202
        %v7329 = vpop.f32.mrb[0].mxu0
        %v7330 = vadd.f32 0.0, %v7329
        %v7331 = vpop.f32.mrb[0].mxu0
        %7332 = vmatprep.mubr.f32.mxu0 0.0
        %7333 = vmatmul.mubr.f32.gmra.mrb[0].mxu0 %v7205
        %v7334 = vpop.f32.mrb[0].mxu0
        %v7335 = vadd.f32 0.0, %v7334
        %v7336 = vpop.f32.mrb[0].mxu0
        %7337 = vmatprep.mubr.f32.mxu0 0.0
        %7338 = vmatmul.mubr.f32.gmra.mrb[0].mxu0 %v7208
        %v7339 = vpop.f32.mrb[0].mxu0
        %v7340 = vadd.f32 0.0, %v7339
        %v7341 = vpop.f32.mrb[0].mxu0
        %7342 = vmatprep.mubr.f32.mxu0 0.0
        %7343 = vmatmul.mubr.f32.gmra.mrb[0].mxu0 %v7211
        %v7344 = vpop.f32.mrb[0].mxu0
        %v7345 = vadd.f32 0.0, %v7344
        %v7346 = vpop.f32.mrb[0].mxu0
        %7347 = vmatprep.mubr.f32.mxu0 0.0
        %7348 = vmatmul.mubr.f32.gmra.mrb[0].mxu0 %v7214
        %v7349 = vpop.f32.mrb[0].mxu0
        %v7350 = vadd.f32 0.0, %v7349
        %v7351 = vpop.f32.mrb[0].mxu0
        %7352 = vmatprep.mubr.f32.mxu0 0.0
        %7353 = vmatmul.mubr.f32.gmra.mrb[0].mxu0 %v7217
        %v7354 = vpop.f32.mrb[0].mxu0
        %v7355 = vadd.f32 0.0, %v7354
        %v7356 = vpop.f32.mrb[0].mxu0
        %7357 = vmatprep.mubr.f32.mxu0 0.0
        %7358 = vmatmul.mubr.f32.gmra.mrb[0].mxu0 %v7220
        %v7359 = vpop.f32.mrb[0].mxu0
        %v7360 = vadd.f32 0.0, %v7359
        %v7361 = vpop.f32.mrb[0].mxu0
        %7362 = vmatprep.mubr.f32.mxu0 0.0
        %7363 = vmatmul.mubr.f32.gmra.mrb[0].mxu0 %v7223
        %v7364 = vpop.f32.mrb[0].mxu0
        %v7365 = vadd.f32 0.0, %v7364
        %v7366 = vpop.f32.mrb[0].mxu0
        %7367 = vmatprep.mubr.f32.mxu0 0.0
        %7368 = vmatmul.mubr.f32.gmra.mrb[0].mxu0 %v7226
        %v7369 = vpop.f32.mrb[0].mxu0
        %v7370 = vadd.f32 0.0, %v7369
        %v7371 = vpop.f32.mrb[0].mxu0
        %7372 = vdwg.mxu0
        %v7373 = vadd.f32 %v7159, %v7295
        %v7374 = vadd.f32 %v7160, %v7300
        %v7375 = vadd.f32 %v7161, %v7305
        %v7376 = vadd.f32 %v7162, %v7310
        %v7377 = vadd.f32 %v7163, %v7315
        %v7378 = vadd.f32 %v7164, %v7320
        %v7379 = vadd.f32 %v7165, %v7325
        %v7380 = vadd.f32 %v7166, %v7330
        %v7381 = vadd.f32 %v7167, %v7335
        %v7382 = vadd.f32 %v7168, %v7340
        %v7383 = vadd.f32 %v7169, %v7345
        %v7384 = vadd.f32 %v7170, %v7350
        %v7385 = vadd.f32 %v7171, %v7355
        %v7386 = vadd.f32 %v7172, %v7360
        %v7387 = vadd.f32 %v7173, %v7365
        %v7388 = vadd.f32 %v7174, %v7370
        %7389 = vst [vmem:[#allocation5] sm:$0xff] %v7373
        %7390 = vst [vmem:[#allocation5 + $0x8] sm:$0xff] %v7374
        %7391 = vst [vmem:[#allocation5 + $0x10] sm:$0xff] %v7375
        %7392 = vst [vmem:[#allocation5 + $0x18] sm:$0xff] %v7376
        %7393 = vst [vmem:[#allocation5 + $0x20] sm:$0xff] %v7377
        %7394 = vst [vmem:[#allocation5 + $0x28] sm:$0xff] %v7378
        %7395 = vst [vmem:[#allocation5 + $0x30] sm:$0xff] %v7379
        %7396 = vst [vmem:[#allocation5 + $0x38] sm:$0xff] %v7380
        %7397 = vst [vmem:[#allocation5 + $0x40] sm:$0xff] %v7381
        %7398 = vst [vmem:[#allocation5 + $0x48] sm:$0xff] %v7382
        %7399 = vst [vmem:[#allocation5 + $0x50] sm:$0xff] %v7383
        %7400 = vst [vmem:[#allocation5 + $0x58] sm:$0xff] %v7384
        %7401 = vst [vmem:[#allocation5 + $0x60] sm:$0xff] %v7385
        %7402 = vst [vmem:[#allocation5 + $0x68] sm:$0xff] %v7386
        %7403 = vst [vmem:[#allocation5 + $0x70] sm:$0xff] %v7387
        %7404 = vst [vmem:[#allocation5 + $0x78] sm:$0xff] %v7388
        %v7405 = vld [vmem:[%s5061] sm:$0xff]
        %v7406 = vld [vmem:[%s5061 + $0x8] sm:$0xff]
        %v7407 = vld [vmem:[%s5061 + $0x10] sm:$0xff]
        %v7408 = vld [vmem:[%s5061 + $0x18] sm:$0xff]
        %v7409 = vld [vmem:[%s5061 + $0x20] sm:$0xff]
        %v7410 = vld [vmem:[%s5061 + $0x28] sm:$0xff]
        %v7411 = vld [vmem:[%s5061 + $0x30] sm:$0xff]
        %v7412 = vld [vmem:[%s5061 + $0x38] sm:$0xff]
        %v7413 = vld [vmem:[%s5061 + $0x40] sm:$0xff]
        %v7414 = vld [vmem:[%s5061 + $0x48] sm:$0xff]
        %v7415 = vld [vmem:[%s5061 + $0x50] sm:$0xff]
        %v7416 = vld [vmem:[%s5061 + $0x58] sm:$0xff]
        %v7417 = vld [vmem:[%s5061 + $0x60] sm:$0xff]
        %v7418 = vld [vmem:[%s5061 + $0x68] sm:$0xff]
        %v7419 = vld [vmem:[%s5061 + $0x70] sm:$0xff]
        %v7420 = vld [vmem:[%s5061 + $0x78] sm:$0xff]
        %v7421 = vld [vmem:[%s5061 + $0x80] sm:$0xff]
        %v7422 = vld [vmem:[%s5061 + $0x88] sm:$0xff]
        %v7423 = vld [vmem:[%s5061 + $0x90] sm:$0xff]
        %v7424 = vld [vmem:[%s5061 + $0x98] sm:$0xff]
        %v7425 = vld [vmem:[%s5061 + $0xa0] sm:$0xff]
        %v7426 = vld [vmem:[%s5061 + $0xa8] sm:$0xff]
        %v7427 = vld [vmem:[%s5061 + $0xb0] sm:$0xff]
        %v7428 = vld [vmem:[%s5061 + $0xb8] sm:$0xff]
        %v7429 = vld [vmem:[%s5061 + $0xc0] sm:$0xff]
        %v7430 = vld [vmem:[%s5061 + $0xc8] sm:$0xff]
        %v7431 = vld [vmem:[%s5061 + $0xd0] sm:$0xff]
        %v7432 = vld [vmem:[%s5061 + $0xd8] sm:$0xff]
        %v7433 = vld [vmem:[%s5061 + $0xe0] sm:$0xff]
        %v7434 = vld [vmem:[%s5061 + $0xe8] sm:$0xff]
        %v7435 = vld [vmem:[%s5061 + $0xf0] sm:$0xff]
        %v7436 = vld [vmem:[%s5061 + $0xf8] sm:$0xff]
        %v7437 = vmul.f32 %v7405, %v5894
        %v7438 = vmul.f32 %v7406, %v5895
        %v7439 = vmul.f32 %v7407, %v5896
        %v7440 = vmul.f32 %v7408, %v5897
        %v7441 = vmul.f32 %v7409, %v5898
        %v7442 = vmul.f32 %v7410, %v5899
        %v7443 = vmul.f32 %v7411, %v5900
        %v7444 = vmul.f32 %v7412, %v5901
        %v7445 = vmul.f32 %v7413, %v5902
        %v7446 = vmul.f32 %v7414, %v5903
        %v7447 = vmul.f32 %v7415, %v5904
        %v7448 = vmul.f32 %v7416, %v5905
        %v7449 = vmul.f32 %v7417, %v5906
        %v7450 = vmul.f32 %v7418, %v5907
        %v7451 = vmul.f32 %v7419, %v5908
        %v7452 = vmul.f32 %v7420, %v5909
        %v7453 = vmul.f32 %v7421, %v5910
        %v7454 = vmul.f32 %v7422, %v5911
        %v7455 = vmul.f32 %v7423, %v5912
        %v7456 = vmul.f32 %v7424, %v5913
        %v7457 = vmul.f32 %v7425, %v5914
        %v7458 = vmul.f32 %v7426, %v5915
        %v7459 = vmul.f32 %v7427, %v5916
        %v7460 = vmul.f32 %v7428, %v5917
        %v7461 = vmul.f32 %v7429, %v5918
        %v7462 = vmul.f32 %v7430, %v5919
        %v7463 = vmul.f32 %v7431, %v5920
        %v7464 = vmul.f32 %v7432, %v5921
        %v7465 = vmul.f32 %v7433, %v5922
        %v7466 = vmul.f32 %v7434, %v5923
        %v7467 = vmul.f32 %v7435, %v5924
        %v7468 = vmul.f32 %v7436, %v5925
        %s7469 = scalar_lea.vmem [#allocation2], 1792
        %v7470 = vld [vmem:[%s7469] sm:$0xff]
        %v7471 = vld [vmem:[%s7469 + $0x8] sm:$0xff]
        %v7472 = vld [vmem:[%s7469 + $0x10] sm:$0xff]
        %v7473 = vld [vmem:[%s7469 + $0x18] sm:$0xff]
        %v7474 = vld [vmem:[%s7469 + $0x20] sm:$0xff]
        %v7475 = vld [vmem:[%s7469 + $0x28] sm:$0xff]
        %v7476 = vld [vmem:[%s7469 + $0x30] sm:$0xff]
        %v7477 = vld [vmem:[%s7469 + $0x38] sm:$0xff]
        %v7478 = vld [vmem:[%s7469 + $0x40] sm:$0xff]
        %v7479 = vld [vmem:[%s7469 + $0x48] sm:$0xff]
        %v7480 = vld [vmem:[%s7469 + $0x50] sm:$0xff]
        %v7481 = vld [vmem:[%s7469 + $0x58] sm:$0xff]
        %v7482 = vld [vmem:[%s7469 + $0x60] sm:$0xff]
        %v7483 = vld [vmem:[%s7469 + $0x68] sm:$0xff]
        %v7484 = vld [vmem:[%s7469 + $0x70] sm:$0xff]
        %v7485 = vld [vmem:[%s7469 + $0x78] sm:$0xff]
        %v7486 = vld [vmem:[%s7469 + $0x80] sm:$0xff]
        %v7487 = vld [vmem:[%s7469 + $0x88] sm:$0xff]
        %v7488 = vld [vmem:[%s7469 + $0x90] sm:$0xff]
        %v7489 = vld [vmem:[%s7469 + $0x98] sm:$0xff]
        %v7490 = vld [vmem:[%s7469 + $0xa0] sm:$0xff]
        %v7491 = vld [vmem:[%s7469 + $0xa8] sm:$0xff]
        %v7492 = vld [vmem:[%s7469 + $0xb0] sm:$0xff]
        %v7493 = vld [vmem:[%s7469 + $0xb8] sm:$0xff]
        %v7494 = vld [vmem:[%s7469 + $0xc0] sm:$0xff]
        %v7495 = vld [vmem:[%s7469 + $0xc8] sm:$0xff]
        %v7496 = vld [vmem:[%s7469 + $0xd0] sm:$0xff]
        %v7497 = vld [vmem:[%s7469 + $0xd8] sm:$0xff]
        %v7498 = vld [vmem:[%s7469 + $0xe0] sm:$0xff]
        %v7499 = vld [vmem:[%s7469 + $0xe8] sm:$0xff]
        %v7500 = vld [vmem:[%s7469 + $0xf0] sm:$0xff]
        %v7501 = vld [vmem:[%s7469 + $0xf8] sm:$0xff]
        %7502 = vmatprep.subr.mxu0 0.0
        %7503 = vmatpush1.msra.mxu0 %v7470
        %7504 = vmatprep.subr.mxu0 0.0
        %7505 = vmatpush1.msra.mxu0 %v7471
        %7506 = vmatprep.subr.mxu0 0.0
        %7507 = vmatpush1.msra.mxu0 %v7472
        %7508 = vmatprep.subr.mxu0 0.0
        %7509 = vmatpush1.msra.mxu0 %v7473
        %7510 = vmatprep.subr.mxu0 0.0
        %7511 = vmatpush1.msra.mxu0 %v7474
        %7512 = vmatprep.subr.mxu0 0.0
        %7513 = vmatpush1.msra.mxu0 %v7475
        %7514 = vmatprep.subr.mxu0 0.0
        %7515 = vmatpush1.msra.mxu0 %v7476
        %7516 = vmatprep.subr.mxu0 0.0
        %7517 = vmatpush1.msra.mxu0 %v7477
        %7518 = vmatprep.subr.mxu0 0.0
        %7519 = vmatpush1.msra.mxu0 %v7478
        %7520 = vmatprep.subr.mxu0 0.0
        %7521 = vmatpush1.msra.mxu0 %v7479
        %7522 = vmatprep.subr.mxu0 0.0
        %7523 = vmatpush1.msra.mxu0 %v7480
        %7524 = vmatprep.subr.mxu0 0.0
        %7525 = vmatpush1.msra.mxu0 %v7481
        %7526 = vmatprep.subr.mxu0 0.0
        %7527 = vmatpush1.msra.mxu0 %v7482
        %7528 = vmatprep.subr.mxu0 0.0
        %7529 = vmatpush1.msra.mxu0 %v7483
        %7530 = vmatprep.subr.mxu0 0.0
        %7531 = vmatpush1.msra.mxu0 %v7484
        %7532 = vmatprep.subr.mxu0 0.0
        %7533 = vmatpush1.msra.mxu0 %v7485
        %7534 = vmatprep.subr.mxu0 0.0
        %7535 = vmatpush1.msra.mxu0 %v7486
        %7536 = vmatprep.subr.mxu0 0.0
        %7537 = vmatpush1.msra.mxu0 %v7487
        %7538 = vmatprep.subr.mxu0 0.0
        %7539 = vmatpush1.msra.mxu0 %v7488
        %7540 = vmatprep.subr.mxu0 0.0
        %7541 = vmatpush1.msra.mxu0 %v7489
        %7542 = vmatprep.subr.mxu0 0.0
        %7543 = vmatpush1.msra.mxu0 %v7490
        %7544 = vmatprep.subr.mxu0 0.0
        %7545 = vmatpush1.msra.mxu0 %v7491
        %7546 = vmatprep.subr.mxu0 0.0
        %7547 = vmatpush1.msra.mxu0 %v7492
        %7548 = vmatprep.subr.mxu0 0.0
        %7549 = vmatpush1.msra.mxu0 %v7493
        %7550 = vmatprep.subr.mxu0 0.0
        %7551 = vmatpush1.msra.mxu0 %v7494
        %7552 = vmatprep.subr.mxu0 0.0
        %7553 = vmatpush1.msra.mxu0 %v7495
        %7554 = vmatprep.subr.mxu0 0.0
        %7555 = vmatpush1.msra.mxu0 %v7496
        %7556 = vmatprep.subr.mxu0 0.0
        %7557 = vmatpush1.msra.mxu0 %v7497
        %7558 = vmatprep.subr.mxu0 0.0
        %7559 = vmatpush1.msra.mxu0 %v7498
        %7560 = vmatprep.subr.mxu0 0.0
        %7561 = vmatpush1.msra.mxu0 %v7499
        %7562 = vmatprep.subr.mxu0 0.0
        %7563 = vmatpush1.msra.mxu0 %v7500
        %7564 = vmatprep.subr.mxu0 0.0
        %7565 = vmatpush1.msra.mxu0 %v7501
        %7566 = vmatprep.mubr.f32.mxu0 %v7438
        %7567 = vmatmul.mubr.f32.gmra.mrb[0].mxu0 %v7437
        %v7568 = vpop.f32.mrb[0].mxu0
        %v7569 = vadd.f32 0.0, %v7568
        %v7570 = vpop.f32.mrb[0].mxu0
        %7571 = vmatprep.mubr.f32.mxu0 %v7440
        %7572 = vmatmul.mubr.f32.gmra.mrb[0].mxu0 %v7439
        %v7573 = vpop.f32.mrb[0].mxu0
        %v7574 = vadd.f32 0.0, %v7573
        %v7575 = vpop.f32.mrb[0].mxu0
        %7576 = vmatprep.mubr.f32.mxu0 %v7442
        %7577 = vmatmul.mubr.f32.gmra.mrb[0].mxu0 %v7441
        %v7578 = vpop.f32.mrb[0].mxu0
        %v7579 = vadd.f32 0.0, %v7578
        %v7580 = vpop.f32.mrb[0].mxu0
        %7581 = vmatprep.mubr.f32.mxu0 %v7444
        %7582 = vmatmul.mubr.f32.gmra.mrb[0].mxu0 %v7443
        %v7583 = vpop.f32.mrb[0].mxu0
        %v7584 = vadd.f32 0.0, %v7583
        %v7585 = vpop.f32.mrb[0].mxu0
        %7586 = vmatprep.mubr.f32.mxu0 %v7446
        %7587 = vmatmul.mubr.f32.gmra.mrb[0].mxu0 %v7445
        %v7588 = vpop.f32.mrb[0].mxu0
        %v7589 = vadd.f32 0.0, %v7588
        %v7590 = vpop.f32.mrb[0].mxu0
        %7591 = vmatprep.mubr.f32.mxu0 %v7448
        %7592 = vmatmul.mubr.f32.gmra.mrb[0].mxu0 %v7447
        %v7593 = vpop.f32.mrb[0].mxu0
        %v7594 = vadd.f32 0.0, %v7593
        %v7595 = vpop.f32.mrb[0].mxu0
        %7596 = vmatprep.mubr.f32.mxu0 %v7450
        %7597 = vmatmul.mubr.f32.gmra.mrb[0].mxu0 %v7449
        %v7598 = vpop.f32.mrb[0].mxu0
        %v7599 = vadd.f32 0.0, %v7598
        %v7600 = vpop.f32.mrb[0].mxu0
        %7601 = vmatprep.mubr.f32.mxu0 %v7452
        %7602 = vmatmul.mubr.f32.gmra.mrb[0].mxu0 %v7451
        %v7603 = vpop.f32.mrb[0].mxu0
        %v7604 = vadd.f32 0.0, %v7603
        %v7605 = vpop.f32.mrb[0].mxu0
        %7606 = vmatprep.mubr.f32.mxu0 %v7454
        %7607 = vmatmul.mubr.f32.gmra.mrb[0].mxu0 %v7453
        %v7608 = vpop.f32.mrb[0].mxu0
        %v7609 = vadd.f32 0.0, %v7608
        %v7610 = vpop.f32.mrb[0].mxu0
        %7611 = vmatprep.mubr.f32.mxu0 %v7456
        %7612 = vmatmul.mubr.f32.gmra.mrb[0].mxu0 %v7455
        %v7613 = vpop.f32.mrb[0].mxu0
        %v7614 = vadd.f32 0.0, %v7613
        %v7615 = vpop.f32.mrb[0].mxu0
        %7616 = vmatprep.mubr.f32.mxu0 %v7458
        %7617 = vmatmul.mubr.f32.gmra.mrb[0].mxu0 %v7457
        %v7618 = vpop.f32.mrb[0].mxu0
        %v7619 = vadd.f32 0.0, %v7618
        %v7620 = vpop.f32.mrb[0].mxu0
        %7621 = vmatprep.mubr.f32.mxu0 %v7460
        %7622 = vmatmul.mubr.f32.gmra.mrb[0].mxu0 %v7459
        %v7623 = vpop.f32.mrb[0].mxu0
        %v7624 = vadd.f32 0.0, %v7623
        %v7625 = vpop.f32.mrb[0].mxu0
        %7626 = vmatprep.mubr.f32.mxu0 %v7462
        %7627 = vmatmul.mubr.f32.gmra.mrb[0].mxu0 %v7461
        %v7628 = vpop.f32.mrb[0].mxu0
        %v7629 = vadd.f32 0.0, %v7628
        %v7630 = vpop.f32.mrb[0].mxu0
        %7631 = vmatprep.mubr.f32.mxu0 %v7464
        %7632 = vmatmul.mubr.f32.gmra.mrb[0].mxu0 %v7463
        %v7633 = vpop.f32.mrb[0].mxu0
        %v7634 = vadd.f32 0.0, %v7633
        %v7635 = vpop.f32.mrb[0].mxu0
        %7636 = vmatprep.mubr.f32.mxu0 %v7466
        %7637 = vmatmul.mubr.f32.gmra.mrb[0].mxu0 %v7465
        %v7638 = vpop.f32.mrb[0].mxu0
        %v7639 = vadd.f32 0.0, %v7638
        %v7640 = vpop.f32.mrb[0].mxu0
        %7641 = vmatprep.mubr.f32.mxu0 %v7468
        %7642 = vmatmul.mubr.f32.gmra.mrb[0].mxu0 %v7467
        %v7643 = vpop.f32.mrb[0].mxu0
        %v7644 = vadd.f32 0.0, %v7643
        %v7645 = vpop.f32.mrb[0].mxu0
        %7646 = vdwg.mxu0
        %v7647 = vld [vmem:[#allocation5] sm:$0xff]
        %v7648 = vld [vmem:[#allocation5 + $0x8] sm:$0xff]
        %v7649 = vld [vmem:[#allocation5 + $0x10] sm:$0xff]
        %v7650 = vld [vmem:[#allocation5 + $0x18] sm:$0xff]
        %v7651 = vld [vmem:[#allocation5 + $0x20] sm:$0xff]
        %v7652 = vld [vmem:[#allocation5 + $0x28] sm:$0xff]
        %v7653 = vld [vmem:[#allocation5 + $0x30] sm:$0xff]
        %v7654 = vld [vmem:[#allocation5 + $0x38] sm:$0xff]
        %v7655 = vld [vmem:[#allocation5 + $0x40] sm:$0xff]
        %v7656 = vld [vmem:[#allocation5 + $0x48] sm:$0xff]
        %v7657 = vld [vmem:[#allocation5 + $0x50] sm:$0xff]
        %v7658 = vld [vmem:[#allocation5 + $0x58] sm:$0xff]
        %v7659 = vld [vmem:[#allocation5 + $0x60] sm:$0xff]
        %v7660 = vld [vmem:[#allocation5 + $0x68] sm:$0xff]
        %v7661 = vld [vmem:[#allocation5 + $0x70] sm:$0xff]
        %v7662 = vld [vmem:[#allocation5 + $0x78] sm:$0xff]
        %s7663 = scalar_lea.vmem %s3, 96
        %v7664 = vld [vmem:[%s7663] sm:$0xff]
        %v7665 = vld [vmem:[%s7663 + $0x8] sm:$0xff]
        %v7666 = vld [vmem:[%s7663 + $0x10] sm:$0xff]
        %v7667 = vld [vmem:[%s7663 + $0x18] sm:$0xff]
        %v7669 = vsel %vm3981, %v7569, 0
        %v7672 = vsel %vm3981, %v7574, 0
        %v7675 = vsel %vm3981, %v7579, 0
        %v7678 = vsel %vm3981, %v7584, 0
        %v7681 = vsel %vm3981, %v7589, 0
        %v7684 = vsel %vm3981, %v7594, 0
        %v7687 = vsel %vm3981, %v7599, 0
        %v7690 = vsel %vm3981, %v7604, 0
        %v7693 = vsel %vm3981, %v7609, 0
        %v7696 = vsel %vm3981, %v7614, 0
        %v7699 = vsel %vm3981, %v7619, 0
        %v7702 = vsel %vm3981, %v7624, 0
        %v7705 = vsel %vm3981, %v7629, 0
        %v7708 = vsel %vm3981, %v7634, 0
        %v7711 = vsel %vm3981, %v7639, 0
        %v7714 = vsel %vm3981, %v7644, 0
        %7716 = vmatprep.subr.mxu0 0.0
        %7717 = vmatpush1.msra.mxu0 %v7664
        %7718 = vmatprep.subr.mxu0 0.0
        %7719 = vmatpush1.msra.mxu0 %v7665
        %7720 = vmatprep.subr.mxu0 0.0
        %7721 = vmatpush1.msra.mxu0 %v7666
        %7722 = vmatprep.subr.mxu0 0.0
        %7723 = vmatpush1.msra.mxu0 %v7667
        %7724 = vmatprep.subr.mxu0 0.0
        %7725 = vmatpush1.msra.mxu0 0.0
        %7726 = vmatprep.subr.mxu0 0.0
        %7727 = vmatpush1.msra.mxu0 0.0
        %7728 = vmatprep.subr.mxu0 0.0
        %7729 = vmatpush1.msra.mxu0 0.0
        %7730 = vmatprep.subr.mxu0 0.0
        %7731 = vmatpush1.msra.mxu0 0.0
        %7732 = vmatprep.subr.mxu0 0.0
        %7733 = vmatpush1.msra.mxu0 0.0
        %7734 = vmatprep.subr.mxu0 0.0
        %7735 = vmatpush1.msra.mxu0 0.0
        %7736 = vmatprep.subr.mxu0 0.0
        %7737 = vmatpush1.msra.mxu0 0.0
        %7738 = vmatprep.subr.mxu0 0.0
        %7739 = vmatpush1.msra.mxu0 0.0
        %7740 = vmatprep.subr.mxu0 0.0
        %7741 = vmatpush1.msra.mxu0 0.0
        %7742 = vmatprep.subr.mxu0 0.0
        %7743 = vmatpush1.msra.mxu0 0.0
        %7744 = vmatprep.subr.mxu0 0.0
        %7745 = vmatpush1.msra.mxu0 0.0
        %7746 = vmatprep.subr.mxu0 0.0
        %7747 = vmatpush1.msra.mxu0 0.0
        %7748 = vmatprep.subr.mxu0 0.0
        %7749 = vmatpush1.msra.mxu0 0.0
        %7750 = vmatprep.subr.mxu0 0.0
        %7751 = vmatpush1.msra.mxu0 0.0
        %7752 = vmatprep.subr.mxu0 0.0
        %7753 = vmatpush1.msra.mxu0 0.0
        %7754 = vmatprep.subr.mxu0 0.0
        %7755 = vmatpush1.msra.mxu0 0.0
        %7756 = vmatprep.subr.mxu0 0.0
        %7757 = vmatpush1.msra.mxu0 0.0
        %7758 = vmatprep.subr.mxu0 0.0
        %7759 = vmatpush1.msra.mxu0 0.0
        %7760 = vmatprep.subr.mxu0 0.0
        %7761 = vmatpush1.msra.mxu0 0.0
        %7762 = vmatprep.subr.mxu0 0.0
        %7763 = vmatpush1.msra.mxu0 0.0
        %7764 = vmatprep.subr.mxu0 0.0
        %7765 = vmatpush1.msra.mxu0 0.0
        %7766 = vmatprep.subr.mxu0 0.0
        %7767 = vmatpush1.msra.mxu0 0.0
        %7768 = vmatprep.subr.mxu0 0.0
        %7769 = vmatpush1.msra.mxu0 0.0
        %7770 = vmatprep.subr.mxu0 0.0
        %7771 = vmatpush1.msra.mxu0 0.0
        %7772 = vmatprep.subr.mxu0 0.0
        %7773 = vmatpush1.msra.mxu0 0.0
        %7774 = vmatprep.subr.mxu0 0.0
        %7775 = vmatpush1.msra.mxu0 0.0
        %7776 = vmatprep.subr.mxu0 0.0
        %7777 = vmatpush1.msra.mxu0 0.0
        %7778 = vmatprep.subr.mxu0 0.0
        %7779 = vmatpush1.msra.mxu0 0.0
        %7780 = vmatprep.mubr.f32.mxu0 0.0
        %7781 = vmatmul.mubr.f32.gmra.mrb[0].mxu0 %v7669
        %v7782 = vpop.f32.mrb[0].mxu0
        %v7783 = vadd.f32 0.0, %v7782
        %v7784 = vpop.f32.mrb[0].mxu0
        %7785 = vmatprep.mubr.f32.mxu0 0.0
        %7786 = vmatmul.mubr.f32.gmra.mrb[0].mxu0 %v7672
        %v7787 = vpop.f32.mrb[0].mxu0
        %v7788 = vadd.f32 0.0, %v7787
        %v7789 = vpop.f32.mrb[0].mxu0
        %7790 = vmatprep.mubr.f32.mxu0 0.0
        %7791 = vmatmul.mubr.f32.gmra.mrb[0].mxu0 %v7675
        %v7792 = vpop.f32.mrb[0].mxu0
        %v7793 = vadd.f32 0.0, %v7792
        %v7794 = vpop.f32.mrb[0].mxu0
        %7795 = vmatprep.mubr.f32.mxu0 0.0
        %7796 = vmatmul.mubr.f32.gmra.mrb[0].mxu0 %v7678
        %v7797 = vpop.f32.mrb[0].mxu0
        %v7798 = vadd.f32 0.0, %v7797
        %v7799 = vpop.f32.mrb[0].mxu0
        %7800 = vmatprep.mubr.f32.mxu0 0.0
        %7801 = vmatmul.mubr.f32.gmra.mrb[0].mxu0 %v7681
        %v7802 = vpop.f32.mrb[0].mxu0
        %v7803 = vadd.f32 0.0, %v7802
        %v7804 = vpop.f32.mrb[0].mxu0
        %7805 = vmatprep.mubr.f32.mxu0 0.0
        %7806 = vmatmul.mubr.f32.gmra.mrb[0].mxu0 %v7684
        %v7807 = vpop.f32.mrb[0].mxu0
        %v7808 = vadd.f32 0.0, %v7807
        %v7809 = vpop.f32.mrb[0].mxu0
        %7810 = vmatprep.mubr.f32.mxu0 0.0
        %7811 = vmatmul.mubr.f32.gmra.mrb[0].mxu0 %v7687
        %v7812 = vpop.f32.mrb[0].mxu0
        %v7813 = vadd.f32 0.0, %v7812
        %v7814 = vpop.f32.mrb[0].mxu0
        %7815 = vmatprep.mubr.f32.mxu0 0.0
        %7816 = vmatmul.mubr.f32.gmra.mrb[0].mxu0 %v7690
        %v7817 = vpop.f32.mrb[0].mxu0
        %v7818 = vadd.f32 0.0, %v7817
        %v7819 = vpop.f32.mrb[0].mxu0
        %7820 = vmatprep.mubr.f32.mxu0 0.0
        %7821 = vmatmul.mubr.f32.gmra.mrb[0].mxu0 %v7693
        %v7822 = vpop.f32.mrb[0].mxu0
        %v7823 = vadd.f32 0.0, %v7822
        %v7824 = vpop.f32.mrb[0].mxu0
        %7825 = vmatprep.mubr.f32.mxu0 0.0
        %7826 = vmatmul.mubr.f32.gmra.mrb[0].mxu0 %v7696
        %v7827 = vpop.f32.mrb[0].mxu0
        %v7828 = vadd.f32 0.0, %v7827
        %v7829 = vpop.f32.mrb[0].mxu0
        %7830 = vmatprep.mubr.f32.mxu0 0.0
        %7831 = vmatmul.mubr.f32.gmra.mrb[0].mxu0 %v7699
        %v7832 = vpop.f32.mrb[0].mxu0
        %v7833 = vadd.f32 0.0, %v7832
        %v7834 = vpop.f32.mrb[0].mxu0
        %7835 = vmatprep.mubr.f32.mxu0 0.0
        %7836 = vmatmul.mubr.f32.gmra.mrb[0].mxu0 %v7702
        %v7837 = vpop.f32.mrb[0].mxu0
        %v7838 = vadd.f32 0.0, %v7837
        %v7839 = vpop.f32.mrb[0].mxu0
        %7840 = vmatprep.mubr.f32.mxu0 0.0
        %7841 = vmatmul.mubr.f32.gmra.mrb[0].mxu0 %v7705
        %v7842 = vpop.f32.mrb[0].mxu0
        %v7843 = vadd.f32 0.0, %v7842
        %v7844 = vpop.f32.mrb[0].mxu0
        %7845 = vmatprep.mubr.f32.mxu0 0.0
        %7846 = vmatmul.mubr.f32.gmra.mrb[0].mxu0 %v7708
        %v7847 = vpop.f32.mrb[0].mxu0
        %v7848 = vadd.f32 0.0, %v7847
        %v7849 = vpop.f32.mrb[0].mxu0
        %7850 = vmatprep.mubr.f32.mxu0 0.0
        %7851 = vmatmul.mubr.f32.gmra.mrb[0].mxu0 %v7711
        %v7852 = vpop.f32.mrb[0].mxu0
        %v7853 = vadd.f32 0.0, %v7852
        %v7854 = vpop.f32.mrb[0].mxu0
        %7855 = vmatprep.mubr.f32.mxu0 0.0
        %7856 = vmatmul.mubr.f32.gmra.mrb[0].mxu0 %v7714
        %v7857 = vpop.f32.mrb[0].mxu0
        %v7858 = vadd.f32 0.0, %v7857
        %v7859 = vpop.f32.mrb[0].mxu0
        %7860 = vdwg.mxu0
        %v7861 = vadd.f32 %v7647, %v7783
        %v7862 = vadd.f32 %v7648, %v7788
        %v7863 = vadd.f32 %v7649, %v7793
        %v7864 = vadd.f32 %v7650, %v7798
        %v7865 = vadd.f32 %v7651, %v7803
        %v7866 = vadd.f32 %v7652, %v7808
        %v7867 = vadd.f32 %v7653, %v7813
        %v7868 = vadd.f32 %v7654, %v7818
        %v7869 = vadd.f32 %v7655, %v7823
        %v7870 = vadd.f32 %v7656, %v7828
        %v7871 = vadd.f32 %v7657, %v7833
        %v7872 = vadd.f32 %v7658, %v7838
        %v7873 = vadd.f32 %v7659, %v7843
        %v7874 = vadd.f32 %v7660, %v7848
        %v7875 = vadd.f32 %v7661, %v7853
        %v7876 = vadd.f32 %v7662, %v7858
        %7877 = vst [vmem:[#allocation5] sm:$0xff] %v7861
        %7878 = vst [vmem:[#allocation5 + $0x8] sm:$0xff] %v7862
        %7879 = vst [vmem:[#allocation5 + $0x10] sm:$0xff] %v7863
        %7880 = vst [vmem:[#allocation5 + $0x18] sm:$0xff] %v7864
        %7881 = vst [vmem:[#allocation5 + $0x20] sm:$0xff] %v7865
        %7882 = vst [vmem:[#allocation5 + $0x28] sm:$0xff] %v7866
        %7883 = vst [vmem:[#allocation5 + $0x30] sm:$0xff] %v7867
        %7884 = vst [vmem:[#allocation5 + $0x38] sm:$0xff] %v7868
        %7885 = vst [vmem:[#allocation5 + $0x40] sm:$0xff] %v7869
        %7886 = vst [vmem:[#allocation5 + $0x48] sm:$0xff] %v7870
        %7887 = vst [vmem:[#allocation5 + $0x50] sm:$0xff] %v7871
        %7888 = vst [vmem:[#allocation5 + $0x58] sm:$0xff] %v7872
        %7889 = vst [vmem:[#allocation5 + $0x60] sm:$0xff] %v7873
        %7890 = vst [vmem:[#allocation5 + $0x68] sm:$0xff] %v7874
        %7891 = vst [vmem:[#allocation5 + $0x70] sm:$0xff] %v7875
        %7892 = vst [vmem:[#allocation5 + $0x78] sm:$0xff] %v7876
        %v7893 = vld [vmem:[#allocation5] sm:$0xff]
        %v7894 = vld [vmem:[#allocation5 + $0x8] sm:$0xff]
        %v7895 = vld [vmem:[#allocation5 + $0x10] sm:$0xff]
        %v7896 = vld [vmem:[#allocation5 + $0x18] sm:$0xff]
        %v7897 = vld [vmem:[#allocation5 + $0x20] sm:$0xff]
        %v7898 = vld [vmem:[#allocation5 + $0x28] sm:$0xff]
        %v7899 = vld [vmem:[#allocation5 + $0x30] sm:$0xff]
        %v7900 = vld [vmem:[#allocation5 + $0x38] sm:$0xff]
        %v7901 = vld [vmem:[#allocation5 + $0x40] sm:$0xff]
        %v7902 = vld [vmem:[#allocation5 + $0x48] sm:$0xff]
        %v7903 = vld [vmem:[#allocation5 + $0x50] sm:$0xff]
        %v7904 = vld [vmem:[#allocation5 + $0x58] sm:$0xff]
        %v7905 = vld [vmem:[#allocation5 + $0x60] sm:$0xff]
        %v7906 = vld [vmem:[#allocation5 + $0x68] sm:$0xff]
        %v7907 = vld [vmem:[#allocation5 + $0x70] sm:$0xff]
        %v7908 = vld [vmem:[#allocation5 + $0x78] sm:$0xff]
        %v7909 = vld [vmem:[%s4] sm:$0x1]
        %v7911 = vlaneseq
        %v7912 = vshrl.u32 %v7911, 7
        %v7913 = vsub.s32 0, %v7912
        %v7914 = vrot.slane %v7909, %v7913
        %v7916 = vadd.f32 %v7893, %v7914
        %v7917 = vadd.f32 %v7894, %v7914
        %v7918 = vadd.f32 %v7895, %v7914
        %v7919 = vadd.f32 %v7896, %v7914
        %v7920 = vadd.f32 %v7897, %v7914
        %v7921 = vadd.f32 %v7898, %v7914
        %v7922 = vadd.f32 %v7899, %v7914
        %v7923 = vadd.f32 %v7900, %v7914
        %v7924 = vadd.f32 %v7901, %v7914
        %v7925 = vadd.f32 %v7902, %v7914
        %v7926 = vadd.f32 %v7903, %v7914
        %v7927 = vadd.f32 %v7904, %v7914
        %v7928 = vadd.f32 %v7905, %v7914
        %v7929 = vadd.f32 %v7906, %v7914
        %v7930 = vadd.f32 %v7907, %v7914
        %v7931 = vadd.f32 %v7908, %v7914
        %7932 = vst [vmem:[%s231] sm:$0xff] %v7916
        %7933 = vst [vmem:[%s231 + $0x8] sm:$0xff] %v7917
        %7934 = vst [vmem:[%s231 + $0x10] sm:$0xff] %v7918
        %7935 = vst [vmem:[%s231 + $0x18] sm:$0xff] %v7919
        %7936 = vst [vmem:[%s231 + $0x20] sm:$0xff] %v7920
        %7937 = vst [vmem:[%s231 + $0x28] sm:$0xff] %v7921
        %7938 = vst [vmem:[%s231 + $0x30] sm:$0xff] %v7922
        %7939 = vst [vmem:[%s231 + $0x38] sm:$0xff] %v7923
        %7940 = vst [vmem:[%s231 + $0x40] sm:$0xff] %v7924
        %7941 = vst [vmem:[%s231 + $0x48] sm:$0xff] %v7925
        %7942 = vst [vmem:[%s231 + $0x50] sm:$0xff] %v7926
        %7943 = vst [vmem:[%s231 + $0x58] sm:$0xff] %v7927
        %7944 = vst [vmem:[%s231 + $0x60] sm:$0xff] %v7928
        %7945 = vst [vmem:[%s231 + $0x68] sm:$0xff] %v7929
        %7946 = vst [vmem:[%s231 + $0x70] sm:$0xff] %v7930
        %7947 = vst [vmem:[%s231 + $0x78] sm:$0xff] %v7931
        %s7948 = sand.u32 %s151, 1
        %s7949 = scalar_lea.sflag [#allocation7], %s7948
        %s7950 = sand.u32 %s151, 1
        %s7951 = smul.addr %s7950, 128
        %s7952 = scalar_lea.vmem [#allocation6], %s7951
        // Predicated region
        $region45: #{tpu_custom_call.1} parent=39 // pred_check
          %p7953 = pneg %p161
        $region46: #{tpu_custom_call.1} parent=39 // pred_check_branch
          %7955 = sbr.rel (%p7953) target = $region48
        $region47: #{tpu_custom_call.1} parent=39 // pred_region
          %s7956 = smul.u32 16, %s24
          %s7958 = ssub.s32 2048, 2048
          %7959 = vsyncadd %s7949, %s7958
          %s7960 = smul.addr %s23, 32
          %s7961 = sadd.s32 %s7956, %s7960
          %s7962 = smul.addr %s7961, 128
          %s7963 = scalar_lea.hbm %s5, %s7962
          %s7964 = sshll.u32 %s7952, 4
          %s7965 = int_to_ptr.vmem [resolvable:$true] %s7964
          %7970 = dma.vmem_to_hbm [thread:$0]  %s7965, 2048, %s7963, %s7949, 128, 128, 8
        $region48: #{tpu_custom_call.1} parent=39 // pred_fallthru
          _
      $region40: #{tpu_custom_call.1} parent=5 // pred_fallthru
        _
      %p7971 = scmp.le.s32.totalorder 2, %s14
      // Predicated region
      $region49: #{tpu_custom_call.1} parent=5 // pred_check
        %p7972 = pneg %p7971
      $region50: #{tpu_custom_call.1} parent=5 // pred_check_branch
        %7974 = sbr.rel (%p7972) target = $region52
      $region51: #{tpu_custom_call.1} parent=5 // pred_region
        %s7975 = ssub.s32 %s14, 2
        // Predicated region
        $region53: #{tpu_custom_call.1} parent=51 // pred_check
          %p7976 = pneg %p167
        $region54: #{tpu_custom_call.1} parent=51 // pred_check_branch
          %7978 = sbr.rel (%p7976) target = $region56
        $region55: #{tpu_custom_call.1} parent=51 // pred_region
          %s7979 = sand.u32 %s152, 1
          %s7980 = scalar_lea.sflag [#allocation7], %s7979
          %s7981 = sand.u32 %s152, 1
          %s7982 = smul.addr %s7981, 128
          %s7983 = scalar_lea.vmem [#allocation6], %s7982
          %7984 = dma.done %s7980, 2048
        $region56: #{tpu_custom_call.1} parent=51 // pred_fallthru
          _
      $region52: #{tpu_custom_call.1} parent=5 // pred_fallthru
        _
    $region6: #{tpu_custom_call.1} parent=1 // loop_footer
      %s18 = sadd.s32 1, %s14
    $region7: #{tpu_custom_call.1} parent=1 // loop_footer_branch
      %13 = sbr.rel target = $region3
    $region8: #{tpu_custom_call.1} parent=1 // loop_exit
      _
    %7985 = vsyncpa [#allocation7], 1
    %s7986 = scalar_lea.sflag [#allocation7], 1
    %7987 = vsyncpa %s7986, 1

</llo_original>
